<compile_context>
chip_gen: v6e
topology: v6e:2x2x1
jax: 0.10.0
libtpu: 0.0.40
codegen_flags: <defaults>
</compile_context>

<pallas_src>
import jax
import jax.numpy as jnp
import numpy as np
from jax import lax
from jax.experimental import pallas as pl
from jax.experimental.pallas import tpu as pltpu


def _reflect(i, n):
    # PyTorch 'reflect' padding index map (no edge repeat); needs n >= 4 for pad=3.
    if i < 0:
        return -i
    if i >= n:
        return 2 * n - 2 - i
    return i


def _pick_bt(B, C):
    """Images per grid step: fold batch into sublanes, keep >=2 grid steps (v7x)."""
    best = None
    for bt in range(1, B + 1):
        if B % bt:
            continue
        rows = bt * C
        if bt != B and rows % 8 != 0:       # (8,128) block-shape rule on the row dim
            continue
        if B >= 2 and B // bt < 2:          # keep both v7x TensorCores busy
            continue
        if rows > 64:                       # cap per-step sublane rows / VMEM pressure
            continue
        if best is None or bt > best:
            best = bt
    if best is None:
        best = 1 if (C % 8 == 0 or B == 1) else B
    return best


def _make_kernel(H, W, C, Bt):
    Wp = W + 6                     # padded row stride
    SP = (H + 6) * Wp              # flat padded spatial size
    L = (H - 1) * Wp + W           # strided tap-slice length ("junk columns" between rows
    #                                are discarded by the de-stride matmul; taps never
    #                                read past SP since max off + L == SP exactly)
    BtC = Bt * C

    def kernel(x_ref, y_ref, ppad_ref, dmat_ref, m0_ref, m1_ref,
               wcols_ref, w1sum_ref, bpa_ref,
               w1bd_ref, b1_ref, w2bd_ref, b2_ref,
               abd_ref, bcv_ref, out_ref):
        x = x_ref[...]                                           # (BtC, S)
        y = y_ref[...]
        initial = x + y

        # ---- ChannelAttention_CGA (block-diagonal weights over the Bt images) ----
        gap = jnp.mean(initial, axis=1, keepdims=True)           # (BtC, 1)
        hid = jnp.maximum(
            jnp.sum(w1bd_ref[...] * gap, axis=0, keepdims=True) + b1_ref[...], 0.0)
        cattn = (jnp.sum(w2bd_ref[...] * hid, axis=1, keepdims=True)
                 + b2_ref[...])                                  # (BtC, 1)

        # ---- SpatialAttention_CGA: per-image channel mean/max, then the 7x7
        #      reflect conv folded into dense (S,S) matrices -> MXU matmuls ----
        pas, pms = [], []
        for b in range(Bt):
            blk = initial[b * C:(b + 1) * C, :]
            pas.append(jnp.mean(blk, axis=0, keepdims=True))
            pms.append(jnp.max(blk, axis=0, keepdims=True))
        pa = pas[0] if Bt == 1 else jnp.concatenate(pas, axis=0)        # (Bt, S)
        pm = pms[0] if Bt == 1 else jnp.concatenate(pms, axis=0)
        sattn = (jnp.dot(pa, m0_ref[...], preferred_element_type=jnp.float32)
                 + jnp.dot(pm, m1_ref[...], preferred_element_type=jnp.float32))
        # (the spatial-attention bias b_sa is spatially constant and folded into
        #  bpa_ref in the wrapper; valid only for reflect padding)

        # ---- reflect pad as one-hot selection matmuls (idle MXU, no store storm,
        #      padded images stay values -> no scratch round trip) ----
        pi = jnp.dot(initial, ppad_ref[...], preferred_element_type=jnp.float32)  # (BtC, SP)
        ps = jnp.dot(sattn, ppad_ref[...], preferred_element_type=jnp.float32)    # (Bt, SP)
        if Bt == 1:
            ps_full = jnp.broadcast_to(ps, (C, SP))
        else:
            ps_full = jnp.concatenate(
                [jnp.broadcast_to(ps[b:b + 1, :], (C, SP)) for b in range(Bt)], axis=0)
        stacked = jnp.concatenate([pi, ps_full], axis=0)          # (2*BtC, SP)

        # ---- PixelAttention grouped 7x7 conv: one slice + one FMA per tap;
        #      two partial accumulators break the 49-deep dependent-add chain.
        #      cattn (spatially constant under reflect pad) is folded analytically. ----
        w_all = wcols_ref[...]                                    # (2*BtC, 49)
        p0 = jnp.zeros((2 * BtC, L), jnp.float32)
        p1 = jnp.zeros((2 * BtC, L), jnp.float32)
        for di in range(7):
            for dj in range(7):
                t = di * 7 + dj
                off = di * Wp + dj
                term = w_all[:, t:t + 1] * stacked[:, off:off + L]
                if di & 1:
                    p1 = p1 + term
                else:
                    p0 = p0 + term
        acc = p0 + p1
        acc = acc[:BtC, :] + acc[BtC:, :]                         # (BtC, L) strided

        # de-stride (drop junk columns) via one-hot matmul, add folded constants.
        pre = (jnp.dot(acc, dmat_ref[...], preferred_element_type=jnp.float32)
               + cattn * w1sum_ref[...] + bpa_ref[...])           # (BtC, S)
        # Double sigmoid is intentional (PixelAttention + CGAFusion both apply it).
        pattn2 = jax.nn.sigmoid(jax.nn.sigmoid(pre))

        fused = initial + y + pattn2 * (x - y)
        out_ref[...] = (jnp.dot(abd_ref[...], fused, preferred_element_type=jnp.float32)
                        + bcv_ref[...])

    return kernel


def cga_fusion_pallas(x_nchw, y_nchw, params):
    (w_ca1, b_ca1, w_ca2, b_ca2, w_sa, b_sa, w_pa, b_pa, w_cv, b_cv) = params
    B, C, H, W = x_nchw.shape
    R = w_ca1.shape[0]
    assert H >= 4 and W >= 4, "3-wide reflect padding needs H, W >= 4"

    Wp = W + 6
    S = H * W
    SP = (H + 6) * Wp
    L = (H - 1) * Wp + W

    Bt = _pick_bt(B, C)
    G = B // Bt
    BtC = Bt * C
    f32 = jnp.float32

    # NCHW is channel-major: flattening spatial is a free reshape.
    x2d = x_nchw.reshape(B * C, S).astype(f32)
    y2d = y_nchw.reshape(B * C, S).astype(f32)

    # ---- constant one-hot selection matrices (host-built) ----
    # reflect-pad + flatten: clean (S) -> flat padded (SP), row stride Wp
    P = np.zeros((S, SP), np.float32)
    for hp in range(H + 6):
        hs = _reflect(hp - 3, H)
        for wp in range(Wp):
            ws = _reflect(wp - 3, W)
            P[hs * W + ws, hp * Wp + wp] = 1.0
    # de-stride: strided (L, row stride Wp) -> clean (S)
    Dm = np.zeros((L, S), np.float32)
    for h in range(H):
        Dm[h * Wp:h * Wp + W, h * W:h * W + W] = np.eye(W, dtype=np.float32)
    # clean-source index for every (tap, clean-dst) of the 7x7 reflect conv
    src_idx = np.zeros((49, S), np.int32)
    for di in range(7):
        for dj in range(7):
            t = di * 7 + dj
            for h in range(H):
                hs = _reflect(h + di - 3, H)
                for w in range(W):
                    ws = _reflect(w + dj - 3, W)
                    src_idx[t, h * W + w] = hs * W + ws
    rows = src_idx.reshape(-1)
    cols = np.tile(np.arange(S, dtype=np.int32), 49)

    wsa = w_sa.reshape(2, 49).astype(f32)

    def conv_matrix(w49):  # dense (S, S) matrix of the 7x7 reflect-padded conv
        vals = jnp.repeat(w49, S)
        return jnp.zeros((S, S), f32).at[rows, cols].add(vals)

    M0 = conv_matrix(wsa[0])   # channel-mean plane
    M1 = conv_matrix(wsa[1])   # channel-max plane

    # ---- weights, block-diagonal / tiled over the Bt images per grid step ----
    eye_bt = jnp.eye(Bt, dtype=f32)
    w1bd = jnp.kron(eye_bt, jnp.transpose(w_ca1).astype(f32))          # (BtC, Bt*R)
    b1t = jnp.tile(b_ca1.reshape(1, R).astype(f32), (1, Bt))           # (1, Bt*R)
    w2bd = jnp.kron(eye_bt, w_ca2.astype(f32))                         # (BtC, Bt*R)
    b2t = jnp.tile(b_ca2.reshape(C, 1).astype(f32), (Bt, 1))           # (BtC, 1)

    wpa0 = w_pa[:, 0].reshape(C, 49).astype(f32)
    wpa1 = w_pa[:, 1].reshape(C, 49).astype(f32)
    wcols = jnp.concatenate([jnp.tile(wpa0, (Bt, 1)),
                             jnp.tile(wpa1, (Bt, 1))], axis=0)         # (2*BtC, 49)
    w1s = jnp.sum(wpa1, axis=1, keepdims=True)                         # (C, 1)
    w1sum = jnp.tile(w1s, (Bt, 1))                                     # (BtC, 1)
    # pixel-attn bias + folded spatially-constant spatial-attn bias contribution
    bpa_eff = jnp.tile(b_pa.reshape(C, 1).astype(f32)
                       + b_sa.astype(f32)[0] * w1s, (Bt, 1))           # (BtC, 1)

    abd = jnp.kron(eye_bt, w_cv[:, :, 0, 0].astype(f32))               # (BtC, BtC)
    bcv_t = jnp.tile(b_cv.reshape(C, 1).astype(f32), (Bt, 1))          # (BtC, 1)

    kernel = _make_kernel(H, W, C, Bt)
    row_blk = pl.BlockSpec((BtC, S), lambda i: (i, 0))

    def const(shape):
        return pl.BlockSpec(shape, lambda i: tuple(0 for _ in shape))

    # modest scoped-VMEM budget (resident constants + double-buffered row blocks +
    # in-kernel temporaries + headroom); far below the v7x 32 MiB scoped default.
    const_bytes = 4 * (S * SP + L * S + 2 * S * S)
    tmp_bytes = 4 * BtC * (4 * SP + 8 * L + 8 * S)
    vmem_limit = int(min(100 * 2**20,
                         2 * const_bytes + 24 * BtC * S + tmp_bytes + 8 * 2**20))

    out2d = pl.pallas_call(
        kernel,
        out_shape=jax.ShapeDtypeStruct((B * C, S), f32),
        grid=(G,),
        in_specs=[row_blk, row_blk,
                  const((S, SP)), const((L, S)), const((S, S)), const((S, S)),
                  const((2 * BtC, 49)), const((BtC, 1)), const((BtC, 1)),
                  const((BtC, Bt * R)), const((1, Bt * R)),
                  const((BtC, Bt * R)), const((BtC, 1)),
                  const((BtC, BtC)), const((BtC, 1))],
        out_specs=row_blk,
        compiler_params=pltpu.CompilerParams(
            dimension_semantics=("parallel",),
            vmem_limit_bytes=vmem_limit),
    )(x2d, y2d, jnp.asarray(P), jnp.asarray(Dm), M0, M1,
      wcols, w1sum, bpa_eff, w1bd, b1t, w2bd, b2t, abd, bcv_t)

    # TODO(synk): for large H*W (where the (C, SP) padded buffers / constants outgrow
    # v7x's 64 MiB VMEM), add an H-band grid axis with a 3-row halo per band.
    return out2d.reshape(B, C, H, W)


def cga_fusion_reference(x, y, params):
    """Pure-JAX (XLA) reference of the PyTorch forward, NCHW."""
    (w_ca1, b_ca1, w_ca2, b_ca2, w_sa, b_sa, w_pa, b_pa, w_cv, b_cv) = params
    B, C, H, W = x.shape
    hp = lax.Precision.HIGHEST
    initial = x + y
    gap = jnp.mean(initial, axis=(2, 3))                                       # (B, C)
    hid = jax.nn.relu(jnp.dot(gap, w_ca1.T, precision=hp) + b_ca1)             # (B, R)
    cattn = (jnp.dot(hid, w_ca2.T, precision=hp) + b_ca2)[:, :, None, None]    # (B,C,1,1)
    x_avg = jnp.mean(initial, axis=1, keepdims=True)
    x_max = jnp.max(initial, axis=1, keepdims=True)
    s2 = jnp.concatenate([x_avg, x_max], axis=1)
    s2p = jnp.pad(s2, ((0, 0), (0, 0), (3, 3), (3, 3)), mode="reflect")
    sattn = lax.conv_general_dilated(
        s2p, w_sa, (1, 1), "VALID",
        dimension_numbers=("NCHW", "OIHW", "NCHW"), precision=hp) + b_sa.reshape(1, 1, 1, 1)
    pattn1 = sattn + cattn
    x2 = jnp.stack([initial, pattn1], axis=2).reshape(B, 2 * C, H, W)
    x2p = jnp.pad(x2, ((0, 0), (0, 0), (3, 3), (3, 3)), mode="reflect")
    p2 = lax.conv_general_dilated(
        x2p, w_pa, (1, 1), "VALID",
        dimension_numbers=("NCHW", "OIHW", "NCHW"),
        feature_group_count=C, precision=hp) + b_pa.reshape(1, C, 1, 1)
    pattn2 = jax.nn.sigmoid(jax.nn.sigmoid(p2))
    fused = initial + pattn2 * x + (1.0 - pattn2) * y
    out = lax.conv_general_dilated(
        fused, w_cv, (1, 1), "VALID",
        dimension_numbers=("NCHW", "OIHW", "NCHW"), precision=hp) + b_cv.reshape(1, C, 1, 1)
    return out


if __name__ == "__main__":
    B, C, H, W = 4, 16, 16, 16        # dim=16, reduction=8 -> hidden R=2
    R = C // 8
    key = jax.random.PRNGKey(0)
    kx, ky, kp = jax.random.split(key, 3)
    x = jax.random.normal(kx, (B, C, H, W), jnp.float32)
    y = jax.random.normal(ky, (B, C, H, W), jnp.float32)

    pk = jax.random.split(kp, 10)
    params = (
        0.2 * jax.random.normal(pk[0], (R, C), jnp.float32),        # ca conv1 weight
        0.1 * jax.random.normal(pk[1], (R,), jnp.float32),          # ca conv1 bias
        0.2 * jax.random.normal(pk[2], (C, R), jnp.float32),        # ca conv2 weight
        0.1 * jax.random.normal(pk[3], (C,), jnp.float32),          # ca conv2 bias
        0.1 * jax.random.normal(pk[4], (1, 2, 7, 7), jnp.float32),  # sa 7x7 weight
        0.1 * jax.random.normal(pk[5], (1,), jnp.float32),          # sa bias
        0.1 * jax.random.normal(pk[6], (C, 2, 7, 7), jnp.float32),  # pa grouped 7x7 weight
        0.1 * jax.random.normal(pk[7], (C,), jnp.float32),          # pa bias
        0.2 * jax.random.normal(pk[8], (C, C, 1, 1), jnp.float32),  # final 1x1 conv weight
        0.1 * jax.random.normal(pk[9], (C,), jnp.float32),          # final 1x1 conv bias
    )

    out = jax.block_until_ready(cga_fusion_pallas(x, y, params))
    ref = jax.block_until_ready(cga_fusion_reference(x, y, params))
    assert out.shape == (B, C, H, W)
    # Tolerance allows for MXU f32 matmuls being emulated via bf16 passes.
    if not np.allclose(np.asarray(out), np.asarray(ref), rtol=2e-2, atol=2e-2):
        err = float(jnp.max(jnp.abs(out - ref)))
        raise AssertionError(f"Pallas kernel mismatch vs reference (max abs err={err})")
    print("KERNEL_OK")
</pallas_src>

<mosaic_0001>
module attributes {stable_mosaic.version = 11 : i64} {
  func.func @kernel(%arg0: i32, %arg1: memref<32x256xf32, #tpu.memory_space<vmem>>, %arg2: memref<32x256xf32, #tpu.memory_space<vmem>>, %arg3: memref<256x484xf32, #tpu.memory_space<vmem>>, %arg4: memref<346x256xf32, #tpu.memory_space<vmem>>, %arg5: memref<256x256xf32, #tpu.memory_space<vmem>>, %arg6: memref<256x256xf32, #tpu.memory_space<vmem>>, %arg7: memref<64x49xf32, #tpu.memory_space<vmem>>, %arg8: memref<32x1xf32, #tpu.memory_space<vmem>>, %arg9: memref<32x1xf32, #tpu.memory_space<vmem>>, %arg10: memref<32x4xf32, #tpu.memory_space<vmem>>, %arg11: memref<1x4xf32, #tpu.memory_space<vmem>>, %arg12: memref<32x4xf32, #tpu.memory_space<vmem>>, %arg13: memref<32x1xf32, #tpu.memory_space<vmem>>, %arg14: memref<32x32xf32, #tpu.memory_space<vmem>>, %arg15: memref<32x1xf32, #tpu.memory_space<vmem>>, %arg16: memref<32x256xf32, #tpu.memory_space<vmem>>) attributes {dimension_semantics = [#tpu.dimension_semantics<parallel>], iteration_bounds = array<i64: 2>, scalar_prefetch = 0 : i64, scratch_operands = 0 : i64, tpu.core_type = #tpu.core_type<tc>, window_params = [{transform_indices = @transform_0, window_bounds = array<i64: 32, 256>}, {transform_indices = @transform_1, window_bounds = array<i64: 32, 256>}, {pipeline_mode = #tpu.pipeline_mode<synchronous>, transform_indices = @transform_2, window_bounds = array<i64: 256, 484>}, {pipeline_mode = #tpu.pipeline_mode<synchronous>, transform_indices = @transform_3, window_bounds = array<i64: 346, 256>}, {pipeline_mode = #tpu.pipeline_mode<synchronous>, transform_indices = @transform_4, window_bounds = array<i64: 256, 256>}, {pipeline_mode = #tpu.pipeline_mode<synchronous>, transform_indices = @transform_5, window_bounds = array<i64: 256, 256>}, {pipeline_mode = #tpu.pipeline_mode<synchronous>, transform_indices = @transform_6, window_bounds = array<i64: 64, 49>}, {pipeline_mode = #tpu.pipeline_mode<synchronous>, transform_indices = @transform_7, window_bounds = array<i64: 32, 1>}, {pipeline_mode = #tpu.pipeline_mode<synchronous>, transform_indices = @transform_8, window_bounds = array<i64: 32, 1>}, {pipeline_mode = #tpu.pipeline_mode<synchronous>, transform_indices = @transform_9, window_bounds = array<i64: 32, 4>}, {pipeline_mode = #tpu.pipeline_mode<synchronous>, transform_indices = @transform_10, window_bounds = array<i64: 1, 4>}, {pipeline_mode = #tpu.pipeline_mode<synchronous>, transform_indices = @transform_11, window_bounds = array<i64: 32, 4>}, {pipeline_mode = #tpu.pipeline_mode<synchronous>, transform_indices = @transform_12, window_bounds = array<i64: 32, 1>}, {pipeline_mode = #tpu.pipeline_mode<synchronous>, transform_indices = @transform_13, window_bounds = array<i64: 32, 32>}, {pipeline_mode = #tpu.pipeline_mode<synchronous>, transform_indices = @transform_14, window_bounds = array<i64: 32, 1>}, {transform_indices = @transform_15, window_bounds = array<i64: 32, 256>}]} {
    %c0 = arith.constant 0 : index
    %c0_0 = arith.constant 0 : index
    %0 = vector.load %arg1[%c0, %c0_0] : memref<32x256xf32, #tpu.memory_space<vmem>>, vector<32x256xf32>
    %c0_1 = arith.constant 0 : index
    %c0_2 = arith.constant 0 : index
    %1 = vector.load %arg2[%c0_1, %c0_2] : memref<32x256xf32, #tpu.memory_space<vmem>>, vector<32x256xf32>
    %2 = arith.addf %0, %1 : vector<32x256xf32>
    %cst = arith.constant dense<0.000000e+00> : vector<32xf32>
    %3 = vector.multi_reduction <add>, %2, %cst [1] : vector<32x256xf32> to vector<32xf32>
    %4 = vector.shape_cast %3 : vector<32xf32> to vector<32x1xf32>
    %cst_3 = arith.constant 2.560000e+02 : f32
    %5 = vector.broadcast %cst_3 : f32 to vector<32x1xf32>
    %6 = arith.divf %4, %5 : vector<32x1xf32>
    %c0_4 = arith.constant 0 : index
    %c0_5 = arith.constant 0 : index
    %7 = vector.load %arg10[%c0_4, %c0_5] : memref<32x4xf32, #tpu.memory_space<vmem>>, vector<32x4xf32>
    %8 = vector.broadcast %6 : vector<32x1xf32> to vector<32x4xf32>
    %9 = arith.mulf %7, %8 : vector<32x4xf32>
    %cst_6 = arith.constant dense<0.000000e+00> : vector<4xf32>
    %10 = vector.multi_reduction <add>, %9, %cst_6 [0] : vector<32x4xf32> to vector<4xf32>
    %11 = vector.shape_cast %10 : vector<4xf32> to vector<1x4xf32>
    %c0_7 = arith.constant 0 : index
    %c0_8 = arith.constant 0 : index
    %12 = vector.load %arg11[%c0_7, %c0_8] : memref<1x4xf32, #tpu.memory_space<vmem>>, vector<1x4xf32>
    %13 = arith.addf %11, %12 : vector<1x4xf32>
    %cst_9 = arith.constant 0.000000e+00 : f32
    %14 = vector.broadcast %cst_9 : f32 to vector<1x4xf32>
    %15 = arith.maximumf %13, %14 : vector<1x4xf32>
    %c0_10 = arith.constant 0 : index
    %c0_11 = arith.constant 0 : index
    %16 = vector.load %arg12[%c0_10, %c0_11] : memref<32x4xf32, #tpu.memory_space<vmem>>, vector<32x4xf32>
    %17 = vector.broadcast %15 : vector<1x4xf32> to vector<32x4xf32>
    %18 = arith.mulf %16, %17 : vector<32x4xf32>
    %cst_12 = arith.constant dense<0.000000e+00> : vector<32xf32>
    %19 = vector.multi_reduction <add>, %18, %cst_12 [1] : vector<32x4xf32> to vector<32xf32>
    %20 = vector.shape_cast %19 : vector<32xf32> to vector<32x1xf32>
    %c0_13 = arith.constant 0 : index
    %c0_14 = arith.constant 0 : index
    %21 = vector.load %arg13[%c0_13, %c0_14] : memref<32x1xf32, #tpu.memory_space<vmem>>, vector<32x1xf32>
    %22 = arith.addf %20, %21 : vector<32x1xf32>
    %23 = vector.extract_strided_slice %2 {offsets = [0, 0], sizes = [16, 256], strides = [1, 1]} : vector<32x256xf32> to vector<16x256xf32>
    %cst_15 = arith.constant dense<0.000000e+00> : vector<256xf32>
    %24 = vector.multi_reduction <add>, %23, %cst_15 [0] : vector<16x256xf32> to vector<256xf32>
    %25 = vector.shape_cast %24 : vector<256xf32> to vector<1x256xf32>
    %cst_16 = arith.constant 1.600000e+01 : f32
    %26 = vector.broadcast %cst_16 : f32 to vector<1x256xf32>
    %27 = arith.divf %25, %26 : vector<1x256xf32>
    %cst_17 = arith.constant dense<0xFF800000> : vector<256xf32>
    %28 = vector.multi_reduction <maximumf>, %23, %cst_17 [0] : vector<16x256xf32> to vector<256xf32>
    %29 = vector.shape_cast %28 : vector<256xf32> to vector<1x256xf32>
    %30 = vector.extract_strided_slice %2 {offsets = [16, 0], sizes = [16, 256], strides = [1, 1]} : vector<32x256xf32> to vector<16x256xf32>
    %cst_18 = arith.constant dense<0.000000e+00> : vector<256xf32>
    %31 = vector.multi_reduction <add>, %30, %cst_18 [0] : vector<16x256xf32> to vector<256xf32>
    %32 = vector.shape_cast %31 : vector<256xf32> to vector<1x256xf32>
    %cst_19 = arith.constant 1.600000e+01 : f32
    %33 = vector.broadcast %cst_19 : f32 to vector<1x256xf32>
    %34 = arith.divf %32, %33 : vector<1x256xf32>
    %cst_20 = arith.constant dense<0xFF800000> : vector<256xf32>
    %35 = vector.multi_reduction <maximumf>, %30, %cst_20 [0] : vector<16x256xf32> to vector<256xf32>
    %36 = vector.shape_cast %35 : vector<256xf32> to vector<1x256xf32>
    %37 = tpu.concatenate %27, %34 in 0 : vector<1x256xf32>, vector<1x256xf32> -> vector<2x256xf32>
    %38 = tpu.concatenate %29, %36 in 0 : vector<1x256xf32>, vector<1x256xf32> -> vector<2x256xf32>
    %c0_21 = arith.constant 0 : index
    %c0_22 = arith.constant 0 : index
    %39 = vector.load %arg5[%c0_21, %c0_22] : memref<256x256xf32, #tpu.memory_space<vmem>>, vector<256x256xf32>
    %cst_23 = arith.constant dense<0.000000e+00> : vector<2x256xf32>
    %40 = tpu.matmul %37, %39, %cst_23 {dimension_numbers = #tpu.dot_dimension_numbers<[1], [0], [0], [1], [0, 0, 1, 1], [], []>} : vector<2x256xf32>, vector<256x256xf32>, vector<2x256xf32> -> vector<2x256xf32>
    %c0_24 = arith.constant 0 : index
    %c0_25 = arith.constant 0 : index
    %41 = vector.load %arg6[%c0_24, %c0_25] : memref<256x256xf32, #tpu.memory_space<vmem>>, vector<256x256xf32>
    %cst_26 = arith.constant dense<0.000000e+00> : vector<2x256xf32>
    %42 = tpu.matmul %38, %41, %cst_26 {dimension_numbers = #tpu.dot_dimension_numbers<[1], [0], [0], [1], [0, 0, 1, 1], [], []>} : vector<2x256xf32>, vector<256x256xf32>, vector<2x256xf32> -> vector<2x256xf32>
    %43 = arith.addf %40, %42 : vector<2x256xf32>
    %c0_27 = arith.constant 0 : index
    %c0_28 = arith.constant 0 : index
    %44 = vector.load %arg3[%c0_27, %c0_28] : memref<256x484xf32, #tpu.memory_space<vmem>>, vector<256x484xf32>
    %cst_29 = arith.constant dense<0.000000e+00> : vector<32x484xf32>
    %45 = tpu.matmul %2, %44, %cst_29 {dimension_numbers = #tpu.dot_dimension_numbers<[1], [0], [0], [1], [0, 0, 1, 1], [], []>} : vector<32x256xf32>, vector<256x484xf32>, vector<32x484xf32> -> vector<32x484xf32>
    %c0_30 = arith.constant 0 : index
    %c0_31 = arith.constant 0 : index
    %46 = vector.load %arg3[%c0_30, %c0_31] : memref<256x484xf32, #tpu.memory_space<vmem>>, vector<256x484xf32>
    %cst_32 = arith.constant dense<0.000000e+00> : vector<2x484xf32>
    %47 = tpu.matmul %43, %46, %cst_32 {dimension_numbers = #tpu.dot_dimension_numbers<[1], [0], [0], [1], [0, 0, 1, 1], [], []>} : vector<2x256xf32>, vector<256x484xf32>, vector<2x484xf32> -> vector<2x484xf32>
    %48 = vector.extract_strided_slice %47 {offsets = [0, 0], sizes = [1, 484], strides = [1, 1]} : vector<2x484xf32> to vector<1x484xf32>
    %49 = vector.shape_cast %48 : vector<1x484xf32> to vector<1x484xf32>
    %50 = vector.broadcast %49 : vector<1x484xf32> to vector<16x484xf32>
    %51 = vector.extract_strided_slice %47 {offsets = [1, 0], sizes = [1, 484], strides = [1, 1]} : vector<2x484xf32> to vector<1x484xf32>
    %52 = vector.shape_cast %51 : vector<1x484xf32> to vector<1x484xf32>
    %53 = vector.broadcast %52 : vector<1x484xf32> to vector<16x484xf32>
    %54 = tpu.concatenate %50, %53 in 0 : vector<16x484xf32>, vector<16x484xf32> -> vector<32x484xf32>
    %55 = tpu.concatenate %45, %54 in 0 : vector<32x484xf32>, vector<32x484xf32> -> vector<64x484xf32>
    %c0_33 = arith.constant 0 : index
    %c0_34 = arith.constant 0 : index
    %56 = vector.load %arg7[%c0_33, %c0_34] : memref<64x49xf32, #tpu.memory_space<vmem>>, vector<64x49xf32>
    %cst_35 = arith.constant 0.000000e+00 : f32
    %57 = vector.broadcast %cst_35 : f32 to vector<64x346xf32>
    %cst_36 = arith.constant 0.000000e+00 : f32
    %58 = vector.broadcast %cst_36 : f32 to vector<64x346xf32>
    %59 = vector.extract_strided_slice %56 {offsets = [0, 0], sizes = [64, 1], strides = [1, 1]} : vector<64x49xf32> to vector<64x1xf32>
    %60 = vector.extract_strided_slice %55 {offsets = [0, 0], sizes = [64, 346], strides = [1, 1]} : vector<64x484xf32> to vector<64x346xf32>
    %61 = vector.broadcast %59 : vector<64x1xf32> to vector<64x346xf32>
    %62 = arith.mulf %61, %60 : vector<64x346xf32>
    %63 = arith.addf %57, %62 : vector<64x346xf32>
    %64 = vector.extract_strided_slice %56 {offsets = [0, 1], sizes = [64, 1], strides = [1, 1]} : vector<64x49xf32> to vector<64x1xf32>
    %65 = vector.extract_strided_slice %55 {offsets = [0, 1], sizes = [64, 346], strides = [1, 1]} : vector<64x484xf32> to vector<64x346xf32>
    %66 = vector.broadcast %64 : vector<64x1xf32> to vector<64x346xf32>
    %67 = arith.mulf %66, %65 : vector<64x346xf32>
    %68 = arith.addf %63, %67 : vector<64x346xf32>
    %69 = vector.extract_strided_slice %56 {offsets = [0, 2], sizes = [64, 1], strides = [1, 1]} : vector<64x49xf32> to vector<64x1xf32>
    %70 = vector.extract_strided_slice %55 {offsets = [0, 2], sizes = [64, 346], strides = [1, 1]} : vector<64x484xf32> to vector<64x346xf32>
    %71 = vector.broadcast %69 : vector<64x1xf32> to vector<64x346xf32>
    %72 = arith.mulf %71, %70 : vector<64x346xf32>
    %73 = arith.addf %68, %72 : vector<64x346xf32>
    %74 = vector.extract_strided_slice %56 {offsets = [0, 3], sizes = [64, 1], strides = [1, 1]} : vector<64x49xf32> to vector<64x1xf32>
    %75 = vector.extract_strided_slice %55 {offsets = [0, 3], sizes = [64, 346], strides = [1, 1]} : vector<64x484xf32> to vector<64x346xf32>
    %76 = vector.broadcast %74 : vector<64x1xf32> to vector<64x346xf32>
    %77 = arith.mulf %76, %75 : vector<64x346xf32>
    %78 = arith.addf %73, %77 : vector<64x346xf32>
    %79 = vector.extract_strided_slice %56 {offsets = [0, 4], sizes = [64, 1], strides = [1, 1]} : vector<64x49xf32> to vector<64x1xf32>
    %80 = vector.extract_strided_slice %55 {offsets = [0, 4], sizes = [64, 346], strides = [1, 1]} : vector<64x484xf32> to vector<64x346xf32>
    %81 = vector.broadcast %79 : vector<64x1xf32> to vector<64x346xf32>
    %82 = arith.mulf %81, %80 : vector<64x346xf32>
    %83 = arith.addf %78, %82 : vector<64x346xf32>
    %84 = vector.extract_strided_slice %56 {offsets = [0, 5], sizes = [64, 1], strides = [1, 1]} : vector<64x49xf32> to vector<64x1xf32>
    %85 = vector.extract_strided_slice %55 {offsets = [0, 5], sizes = [64, 346], strides = [1, 1]} : vector<64x484xf32> to vector<64x346xf32>
    %86 = vector.broadcast %84 : vector<64x1xf32> to vector<64x346xf32>
    %87 = arith.mulf %86, %85 : vector<64x346xf32>
    %88 = arith.addf %83, %87 : vector<64x346xf32>
    %89 = vector.extract_strided_slice %56 {offsets = [0, 6], sizes = [64, 1], strides = [1, 1]} : vector<64x49xf32> to vector<64x1xf32>
    %90 = vector.extract_strided_slice %55 {offsets = [0, 6], sizes = [64, 346], strides = [1, 1]} : vector<64x484xf32> to vector<64x346xf32>
    %91 = vector.broadcast %89 : vector<64x1xf32> to vector<64x346xf32>
    %92 = arith.mulf %91, %90 : vector<64x346xf32>
    %93 = arith.addf %88, %92 : vector<64x346xf32>
    %94 = vector.extract_strided_slice %56 {offsets = [0, 7], sizes = [64, 1], strides = [1, 1]} : vector<64x49xf32> to vector<64x1xf32>
    %95 = vector.extract_strided_slice %55 {offsets = [0, 22], sizes = [64, 346], strides = [1, 1]} : vector<64x484xf32> to vector<64x346xf32>
    %96 = vector.broadcast %94 : vector<64x1xf32> to vector<64x346xf32>
    %97 = arith.mulf %96, %95 : vector<64x346xf32>
    %98 = arith.addf %58, %97 : vector<64x346xf32>
    %99 = vector.extract_strided_slice %56 {offsets = [0, 8], sizes = [64, 1], strides = [1, 1]} : vector<64x49xf32> to vector<64x1xf32>
    %100 = vector.extract_strided_slice %55 {offsets = [0, 23], sizes = [64, 346], strides = [1, 1]} : vector<64x484xf32> to vector<64x346xf32>
    %101 = vector.broadcast %99 : vector<64x1xf32> to vector<64x346xf32>
    %102 = arith.mulf %101, %100 : vector<64x346xf32>
    %103 = arith.addf %98, %102 : vector<64x346xf32>
    %104 = vector.extract_strided_slice %56 {offsets = [0, 9], sizes = [64, 1], strides = [1, 1]} : vector<64x49xf32> to vector<64x1xf32>
    %105 = vector.extract_strided_slice %55 {offsets = [0, 24], sizes = [64, 346], strides = [1, 1]} : vector<64x484xf32> to vector<64x346xf32>
    %106 = vector.broadcast %104 : vector<64x1xf32> to vector<64x346xf32>
    %107 = arith.mulf %106, %105 : vector<64x346xf32>
    %108 = arith.addf %103, %107 : vector<64x346xf32>
    %109 = vector.extract_strided_slice %56 {offsets = [0, 10], sizes = [64, 1], strides = [1, 1]} : vector<64x49xf32> to vector<64x1xf32>
    %110 = vector.extract_strided_slice %55 {offsets = [0, 25], sizes = [64, 346], strides = [1, 1]} : vector<64x484xf32> to vector<64x346xf32>
    %111 = vector.broadcast %109 : vector<64x1xf32> to vector<64x346xf32>
    %112 = arith.mulf %111, %110 : vector<64x346xf32>
    %113 = arith.addf %108, %112 : vector<64x346xf32>
    %114 = vector.extract_strided_slice %56 {offsets = [0, 11], sizes = [64, 1], strides = [1, 1]} : vector<64x49xf32> to vector<64x1xf32>
    %115 = vector.extract_strided_slice %55 {offsets = [0, 26], sizes = [64, 346], strides = [1, 1]} : vector<64x484xf32> to vector<64x346xf32>
    %116 = vector.broadcast %114 : vector<64x1xf32> to vector<64x346xf32>
    %117 = arith.mulf %116, %115 : vector<64x346xf32>
    %118 = arith.addf %113, %117 : vector<64x346xf32>
    %119 = vector.extract_strided_slice %56 {offsets = [0, 12], sizes = [64, 1], strides = [1, 1]} : vector<64x49xf32> to vector<64x1xf32>
    %120 = vector.extract_strided_slice %55 {offsets = [0, 27], sizes = [64, 346], strides = [1, 1]} : vector<64x484xf32> to vector<64x346xf32>
    %121 = vector.broadcast %119 : vector<64x1xf32> to vector<64x346xf32>
    %122 = arith.mulf %121, %120 : vector<64x346xf32>
    %123 = arith.addf %118, %122 : vector<64x346xf32>
    %124 = vector.extract_strided_slice %56 {offsets = [0, 13], sizes = [64, 1], strides = [1, 1]} : vector<64x49xf32> to vector<64x1xf32>
    %125 = vector.extract_strided_slice %55 {offsets = [0, 28], sizes = [64, 346], strides = [1, 1]} : vector<64x484xf32> to vector<64x346xf32>
    %126 = vector.broadcast %124 : vector<64x1xf32> to vector<64x346xf32>
    %127 = arith.mulf %126, %125 : vector<64x346xf32>
    %128 = arith.addf %123, %127 : vector<64x346xf32>
    %129 = vector.extract_strided_slice %56 {offsets = [0, 14], sizes = [64, 1], strides = [1, 1]} : vector<64x49xf32> to vector<64x1xf32>
    %130 = vector.extract_strided_slice %55 {offsets = [0, 44], sizes = [64, 346], strides = [1, 1]} : vector<64x484xf32> to vector<64x346xf32>
    %131 = vector.broadcast %129 : vector<64x1xf32> to vector<64x346xf32>
    %132 = arith.mulf %131, %130 : vector<64x346xf32>
    %133 = arith.addf %93, %132 : vector<64x346xf32>
    %134 = vector.extract_strided_slice %56 {offsets = [0, 15], sizes = [64, 1], strides = [1, 1]} : vector<64x49xf32> to vector<64x1xf32>
    %135 = vector.extract_strided_slice %55 {offsets = [0, 45], sizes = [64, 346], strides = [1, 1]} : vector<64x484xf32> to vector<64x346xf32>
    %136 = vector.broadcast %134 : vector<64x1xf32> to vector<64x346xf32>
    %137 = arith.mulf %136, %135 : vector<64x346xf32>
    %138 = arith.addf %133, %137 : vector<64x346xf32>
    %139 = vector.extract_strided_slice %56 {offsets = [0, 16], sizes = [64, 1], strides = [1, 1]} : vector<64x49xf32> to vector<64x1xf32>
    %140 = vector.extract_strided_slice %55 {offsets = [0, 46], sizes = [64, 346], strides = [1, 1]} : vector<64x484xf32> to vector<64x346xf32>
    %141 = vector.broadcast %139 : vector<64x1xf32> to vector<64x346xf32>
    %142 = arith.mulf %141, %140 : vector<64x346xf32>
    %143 = arith.addf %138, %142 : vector<64x346xf32>
    %144 = vector.extract_strided_slice %56 {offsets = [0, 17], sizes = [64, 1], strides = [1, 1]} : vector<64x49xf32> to vector<64x1xf32>
    %145 = vector.extract_strided_slice %55 {offsets = [0, 47], sizes = [64, 346], strides = [1, 1]} : vector<64x484xf32> to vector<64x346xf32>
    %146 = vector.broadcast %144 : vector<64x1xf32> to vector<64x346xf32>
    %147 = arith.mulf %146, %145 : vector<64x346xf32>
    %148 = arith.addf %143, %147 : vector<64x346xf32>
    %149 = vector.extract_strided_slice %56 {offsets = [0, 18], sizes = [64, 1], strides = [1, 1]} : vector<64x49xf32> to vector<64x1xf32>
    %150 = vector.extract_strided_slice %55 {offsets = [0, 48], sizes = [64, 346], strides = [1, 1]} : vector<64x484xf32> to vector<64x346xf32>
    %151 = vector.broadcast %149 : vector<64x1xf32> to vector<64x346xf32>
    %152 = arith.mulf %151, %150 : vector<64x346xf32>
    %153 = arith.addf %148, %152 : vector<64x346xf32>
    %154 = vector.extract_strided_slice %56 {offsets = [0, 19], sizes = [64, 1], strides = [1, 1]} : vector<64x49xf32> to vector<64x1xf32>
    %155 = vector.extract_strided_slice %55 {offsets = [0, 49], sizes = [64, 346], strides = [1, 1]} : vector<64x484xf32> to vector<64x346xf32>
    %156 = vector.broadcast %154 : vector<64x1xf32> to vector<64x346xf32>
    %157 = arith.mulf %156, %155 : vector<64x346xf32>
    %158 = arith.addf %153, %157 : vector<64x346xf32>
    %159 = vector.extract_strided_slice %56 {offsets = [0, 20], sizes = [64, 1], strides = [1, 1]} : vector<64x49xf32> to vector<64x1xf32>
    %160 = vector.extract_strided_slice %55 {offsets = [0, 50], sizes = [64, 346], strides = [1, 1]} : vector<64x484xf32> to vector<64x346xf32>
    %161 = vector.broadcast %159 : vector<64x1xf32> to vector<64x346xf32>
    %162 = arith.mulf %161, %160 : vector<64x346xf32>
    %163 = arith.addf %158, %162 : vector<64x346xf32>
    %164 = vector.extract_strided_slice %56 {offsets = [0, 21], sizes = [64, 1], strides = [1, 1]} : vector<64x49xf32> to vector<64x1xf32>
    %165 = vector.extract_strided_slice %55 {offsets = [0, 66], sizes = [64, 346], strides = [1, 1]} : vector<64x484xf32> to vector<64x346xf32>
    %166 = vector.broadcast %164 : vector<64x1xf32> to vector<64x346xf32>
    %167 = arith.mulf %166, %165 : vector<64x346xf32>
    %168 = arith.addf %128, %167 : vector<64x346xf32>
    %169 = vector.extract_strided_slice %56 {offsets = [0, 22], sizes = [64, 1], strides = [1, 1]} : vector<64x49xf32> to vector<64x1xf32>
    %170 = vector.extract_strided_slice %55 {offsets = [0, 67], sizes = [64, 346], strides = [1, 1]} : vector<64x484xf32> to vector<64x346xf32>
    %171 = vector.broadcast %169 : vector<64x1xf32> to vector<64x346xf32>
    %172 = arith.mulf %171, %170 : vector<64x346xf32>
    %173 = arith.addf %168, %172 : vector<64x346xf32>
    %174 = vector.extract_strided_slice %56 {offsets = [0, 23], sizes = [64, 1], strides = [1, 1]} : vector<64x49xf32> to vector<64x1xf32>
    %175 = vector.extract_strided_slice %55 {offsets = [0, 68], sizes = [64, 346], strides = [1, 1]} : vector<64x484xf32> to vector<64x346xf32>
    %176 = vector.broadcast %174 : vector<64x1xf32> to vector<64x346xf32>
    %177 = arith.mulf %176, %175 : vector<64x346xf32>
    %178 = arith.addf %173, %177 : vector<64x346xf32>
    %179 = vector.extract_strided_slice %56 {offsets = [0, 24], sizes = [64, 1], strides = [1, 1]} : vector<64x49xf32> to vector<64x1xf32>
    %180 = vector.extract_strided_slice %55 {offsets = [0, 69], sizes = [64, 346], strides = [1, 1]} : vector<64x484xf32> to vector<64x346xf32>
    %181 = vector.broadcast %179 : vector<64x1xf32> to vector<64x346xf32>
    %182 = arith.mulf %181, %180 : vector<64x346xf32>
    %183 = arith.addf %178, %182 : vector<64x346xf32>
    %184 = vector.extract_strided_slice %56 {offsets = [0, 25], sizes = [64, 1], strides = [1, 1]} : vector<64x49xf32> to vector<64x1xf32>
    %185 = vector.extract_strided_slice %55 {offsets = [0, 70], sizes = [64, 346], strides = [1, 1]} : vector<64x484xf32> to vector<64x346xf32>
    %186 = vector.broadcast %184 : vector<64x1xf32> to vector<64x346xf32>
    %187 = arith.mulf %186, %185 : vector<64x346xf32>
    %188 = arith.addf %183, %187 : vector<64x346xf32>
    %189 = vector.extract_strided_slice %56 {offsets = [0, 26], sizes = [64, 1], strides = [1, 1]} : vector<64x49xf32> to vector<64x1xf32>
    %190 = vector.extract_strided_slice %55 {offsets = [0, 71], sizes = [64, 346], strides = [1, 1]} : vector<64x484xf32> to vector<64x346xf32>
    %191 = vector.broadcast %189 : vector<64x1xf32> to vector<64x346xf32>
    %192 = arith.mulf %191, %190 : vector<64x346xf32>
    %193 = arith.addf %188, %192 : vector<64x346xf32>
    %194 = vector.extract_strided_slice %56 {offsets = [0, 27], sizes = [64, 1], strides = [1, 1]} : vector<64x49xf32> to vector<64x1xf32>
    %195 = vector.extract_strided_slice %55 {offsets = [0, 72], sizes = [64, 346], strides = [1, 1]} : vector<64x484xf32> to vector<64x346xf32>
    %196 = vector.broadcast %194 : vector<64x1xf32> to vector<64x346xf32>
    %197 = arith.mulf %196, %195 : vector<64x346xf32>
    %198 = arith.addf %193, %197 : vector<64x346xf32>
    %199 = vector.extract_strided_slice %56 {offsets = [0, 28], sizes = [64, 1], strides = [1, 1]} : vector<64x49xf32> to vector<64x1xf32>
    %200 = vector.extract_strided_slice %55 {offsets = [0, 88], sizes = [64, 346], strides = [1, 1]} : vector<64x484xf32> to vector<64x346xf32>
    %201 = vector.broadcast %199 : vector<64x1xf32> to vector<64x346xf32>
    %202 = arith.mulf %201, %200 : vector<64x346xf32>
    %203 = arith.addf %163, %202 : vector<64x346xf32>
    %204 = vector.extract_strided_slice %56 {offsets = [0, 29], sizes = [64, 1], strides = [1, 1]} : vector<64x49xf32> to vector<64x1xf32>
    %205 = vector.extract_strided_slice %55 {offsets = [0, 89], sizes = [64, 346], strides = [1, 1]} : vector<64x484xf32> to vector<64x346xf32>
    %206 = vector.broadcast %204 : vector<64x1xf32> to vector<64x346xf32>
    %207 = arith.mulf %206, %205 : vector<64x346xf32>
    %208 = arith.addf %203, %207 : vector<64x346xf32>
    %209 = vector.extract_strided_slice %56 {offsets = [0, 30], sizes = [64, 1], strides = [1, 1]} : vector<64x49xf32> to vector<64x1xf32>
    %210 = vector.extract_strided_slice %55 {offsets = [0, 90], sizes = [64, 346], strides = [1, 1]} : vector<64x484xf32> to vector<64x346xf32>
    %211 = vector.broadcast %209 : vector<64x1xf32> to vector<64x346xf32>
    %212 = arith.mulf %211, %210 : vector<64x346xf32>
    %213 = arith.addf %208, %212 : vector<64x346xf32>
    %214 = vector.extract_strided_slice %56 {offsets = [0, 31], sizes = [64, 1], strides = [1, 1]} : vector<64x49xf32> to vector<64x1xf32>
    %215 = vector.extract_strided_slice %55 {offsets = [0, 91], sizes = [64, 346], strides = [1, 1]} : vector<64x484xf32> to vector<64x346xf32>
    %216 = vector.broadcast %214 : vector<64x1xf32> to vector<64x346xf32>
    %217 = arith.mulf %216, %215 : vector<64x346xf32>
    %218 = arith.addf %213, %217 : vector<64x346xf32>
    %219 = vector.extract_strided_slice %56 {offsets = [0, 32], sizes = [64, 1], strides = [1, 1]} : vector<64x49xf32> to vector<64x1xf32>
    %220 = vector.extract_strided_slice %55 {offsets = [0, 92], sizes = [64, 346], strides = [1, 1]} : vector<64x484xf32> to vector<64x346xf32>
    %221 = vector.broadcast %219 : vector<64x1xf32> to vector<64x346xf32>
    %222 = arith.mulf %221, %220 : vector<64x346xf32>
    %223 = arith.addf %218, %222 : vector<64x346xf32>
    %224 = vector.extract_strided_slice %56 {offsets = [0, 33], sizes = [64, 1], strides = [1, 1]} : vector<64x49xf32> to vector<64x1xf32>
    %225 = vector.extract_strided_slice %55 {offsets = [0, 93], sizes = [64, 346], strides = [1, 1]} : vector<64x484xf32> to vector<64x346xf32>
    %226 = vector.broadcast %224 : vector<64x1xf32> to vector<64x346xf32>
    %227 = arith.mulf %226, %225 : vector<64x346xf32>
    %228 = arith.addf %223, %227 : vector<64x346xf32>
    %229 = vector.extract_strided_slice %56 {offsets = [0, 34], sizes = [64, 1], strides = [1, 1]} : vector<64x49xf32> to vector<64x1xf32>
    %230 = vector.extract_strided_slice %55 {offsets = [0, 94], sizes = [64, 346], strides = [1, 1]} : vector<64x484xf32> to vector<64x346xf32>
    %231 = vector.broadcast %229 : vector<64x1xf32> to vector<64x346xf32>
    %232 = arith.mulf %231, %230 : vector<64x346xf32>
    %233 = arith.addf %228, %232 : vector<64x346xf32>
    %234 = vector.extract_strided_slice %56 {offsets = [0, 35], sizes = [64, 1], strides = [1, 1]} : vector<64x49xf32> to vector<64x1xf32>
    %235 = vector.extract_strided_slice %55 {offsets = [0, 110], sizes = [64, 346], strides = [1, 1]} : vector<64x484xf32> to vector<64x346xf32>
    %236 = vector.broadcast %234 : vector<64x1xf32> to vector<64x346xf32>
    %237 = arith.mulf %236, %235 : vector<64x346xf32>
    %238 = arith.addf %198, %237 : vector<64x346xf32>
    %239 = vector.extract_strided_slice %56 {offsets = [0, 36], sizes = [64, 1], strides = [1, 1]} : vector<64x49xf32> to vector<64x1xf32>
    %240 = vector.extract_strided_slice %55 {offsets = [0, 111], sizes = [64, 346], strides = [1, 1]} : vector<64x484xf32> to vector<64x346xf32>
    %241 = vector.broadcast %239 : vector<64x1xf32> to vector<64x346xf32>
    %242 = arith.mulf %241, %240 : vector<64x346xf32>
    %243 = arith.addf %238, %242 : vector<64x346xf32>
    %244 = vector.extract_strided_slice %56 {offsets = [0, 37], sizes = [64, 1], strides = [1, 1]} : vector<64x49xf32> to vector<64x1xf32>
    %245 = vector.extract_strided_slice %55 {offsets = [0, 112], sizes = [64, 346], strides = [1, 1]} : vector<64x484xf32> to vector<64x346xf32>
    %246 = vector.broadcast %244 : vector<64x1xf32> to vector<64x346xf32>
    %247 = arith.mulf %246, %245 : vector<64x346xf32>
    %248 = arith.addf %243, %247 : vector<64x346xf32>
    %249 = vector.extract_strided_slice %56 {offsets = [0, 38], sizes = [64, 1], strides = [1, 1]} : vector<64x49xf32> to vector<64x1xf32>
    %250 = vector.extract_strided_slice %55 {offsets = [0, 113], sizes = [64, 346], strides = [1, 1]} : vector<64x484xf32> to vector<64x346xf32>
    %251 = vector.broadcast %249 : vector<64x1xf32> to vector<64x346xf32>
    %252 = arith.mulf %251, %250 : vector<64x346xf32>
    %253 = arith.addf %248, %252 : vector<64x346xf32>
    %254 = vector.extract_strided_slice %56 {offsets = [0, 39], sizes = [64, 1], strides = [1, 1]} : vector<64x49xf32> to vector<64x1xf32>
    %255 = vector.extract_strided_slice %55 {offsets = [0, 114], sizes = [64, 346], strides = [1, 1]} : vector<64x484xf32> to vector<64x346xf32>
    %256 = vector.broadcast %254 : vector<64x1xf32> to vector<64x346xf32>
    %257 = arith.mulf %256, %255 : vector<64x346xf32>
    %258 = arith.addf %253, %257 : vector<64x346xf32>
    %259 = vector.extract_strided_slice %56 {offsets = [0, 40], sizes = [64, 1], strides = [1, 1]} : vector<64x49xf32> to vector<64x1xf32>
    %260 = vector.extract_strided_slice %55 {offsets = [0, 115], sizes = [64, 346], strides = [1, 1]} : vector<64x484xf32> to vector<64x346xf32>
    %261 = vector.broadcast %259 : vector<64x1xf32> to vector<64x346xf32>
    %262 = arith.mulf %261, %260 : vector<64x346xf32>
    %263 = arith.addf %258, %262 : vector<64x346xf32>
    %264 = vector.extract_strided_slice %56 {offsets = [0, 41], sizes = [64, 1], strides = [1, 1]} : vector<64x49xf32> to vector<64x1xf32>
    %265 = vector.extract_strided_slice %55 {offsets = [0, 116], sizes = [64, 346], strides = [1, 1]} : vector<64x484xf32> to vector<64x346xf32>
    %266 = vector.broadcast %264 : vector<64x1xf32> to vector<64x346xf32>
    %267 = arith.mulf %266, %265 : vector<64x346xf32>
    %268 = arith.addf %263, %267 : vector<64x346xf32>
    %269 = vector.extract_strided_slice %56 {offsets = [0, 42], sizes = [64, 1], strides = [1, 1]} : vector<64x49xf32> to vector<64x1xf32>
    %270 = vector.extract_strided_slice %55 {offsets = [0, 132], sizes = [64, 346], strides = [1, 1]} : vector<64x484xf32> to vector<64x346xf32>
    %271 = vector.broadcast %269 : vector<64x1xf32> to vector<64x346xf32>
    %272 = arith.mulf %271, %270 : vector<64x346xf32>
    %273 = arith.addf %233, %272 : vector<64x346xf32>
    %274 = vector.extract_strided_slice %56 {offsets = [0, 43], sizes = [64, 1], strides = [1, 1]} : vector<64x49xf32> to vector<64x1xf32>
    %275 = vector.extract_strided_slice %55 {offsets = [0, 133], sizes = [64, 346], strides = [1, 1]} : vector<64x484xf32> to vector<64x346xf32>
    %276 = vector.broadcast %274 : vector<64x1xf32> to vector<64x346xf32>
    %277 = arith.mulf %276, %275 : vector<64x346xf32>
    %278 = arith.addf %273, %277 : vector<64x346xf32>
    %279 = vector.extract_strided_slice %56 {offsets = [0, 44], sizes = [64, 1], strides = [1, 1]} : vector<64x49xf32> to vector<64x1xf32>
    %280 = vector.extract_strided_slice %55 {offsets = [0, 134], sizes = [64, 346], strides = [1, 1]} : vector<64x484xf32> to vector<64x346xf32>
    %281 = vector.broadcast %279 : vector<64x1xf32> to vector<64x346xf32>
    %282 = arith.mulf %281, %280 : vector<64x346xf32>
    %283 = arith.addf %278, %282 : vector<64x346xf32>
    %284 = vector.extract_strided_slice %56 {offsets = [0, 45], sizes = [64, 1], strides = [1, 1]} : vector<64x49xf32> to vector<64x1xf32>
    %285 = vector.extract_strided_slice %55 {offsets = [0, 135], sizes = [64, 346], strides = [1, 1]} : vector<64x484xf32> to vector<64x346xf32>
    %286 = vector.broadcast %284 : vector<64x1xf32> to vector<64x346xf32>
    %287 = arith.mulf %286, %285 : vector<64x346xf32>
    %288 = arith.addf %283, %287 : vector<64x346xf32>
    %289 = vector.extract_strided_slice %56 {offsets = [0, 46], sizes = [64, 1], strides = [1, 1]} : vector<64x49xf32> to vector<64x1xf32>
    %290 = vector.extract_strided_slice %55 {offsets = [0, 136], sizes = [64, 346], strides = [1, 1]} : vector<64x484xf32> to vector<64x346xf32>
    %291 = vector.broadcast %289 : vector<64x1xf32> to vector<64x346xf32>
    %292 = arith.mulf %291, %290 : vector<64x346xf32>
    %293 = arith.addf %288, %292 : vector<64x346xf32>
    %294 = vector.extract_strided_slice %56 {offsets = [0, 47], sizes = [64, 1], strides = [1, 1]} : vector<64x49xf32> to vector<64x1xf32>
    %295 = vector.extract_strided_slice %55 {offsets = [0, 137], sizes = [64, 346], strides = [1, 1]} : vector<64x484xf32> to vector<64x346xf32>
    %296 = vector.broadcast %294 : vector<64x1xf32> to vector<64x346xf32>
    %297 = arith.mulf %296, %295 : vector<64x346xf32>
    %298 = arith.addf %293, %297 : vector<64x346xf32>
    %299 = vector.extract_strided_slice %56 {offsets = [0, 48], sizes = [64, 1], strides = [1, 1]} : vector<64x49xf32> to vector<64x1xf32>
    %300 = vector.extract_strided_slice %55 {offsets = [0, 138], sizes = [64, 346], strides = [1, 1]} : vector<64x484xf32> to vector<64x346xf32>
    %301 = vector.broadcast %299 : vector<64x1xf32> to vector<64x346xf32>
    %302 = arith.mulf %301, %300 : vector<64x346xf32>
    %303 = arith.addf %298, %302 : vector<64x346xf32>
    %304 = arith.addf %303, %268 : vector<64x346xf32>
    %305 = vector.extract_strided_slice %304 {offsets = [0, 0], sizes = [32, 346], strides = [1, 1]} : vector<64x346xf32> to vector<32x346xf32>
    %306 = vector.extract_strided_slice %304 {offsets = [32, 0], sizes = [32, 346], strides = [1, 1]} : vector<64x346xf32> to vector<32x346xf32>
    %307 = arith.addf %305, %306 : vector<32x346xf32>
    %c0_37 = arith.constant 0 : index
    %c0_38 = arith.constant 0 : index
    %308 = vector.load %arg4[%c0_37, %c0_38] : memref<346x256xf32, #tpu.memory_space<vmem>>, vector<346x256xf32>
    %cst_39 = arith.constant dense<0.000000e+00> : vector<32x256xf32>
    %309 = tpu.matmul %307, %308, %cst_39 {dimension_numbers = #tpu.dot_dimension_numbers<[1], [0], [0], [1], [0, 0, 1, 1], [], []>} : vector<32x346xf32>, vector<346x256xf32>, vector<32x256xf32> -> vector<32x256xf32>
    %c0_40 = arith.constant 0 : index
    %c0_41 = arith.constant 0 : index
    %310 = vector.load %arg8[%c0_40, %c0_41] : memref<32x1xf32, #tpu.memory_space<vmem>>, vector<32x1xf32>
    %311 = arith.mulf %22, %310 : vector<32x1xf32>
    %312 = vector.broadcast %311 : vector<32x1xf32> to vector<32x256xf32>
    %313 = arith.addf %309, %312 : vector<32x256xf32>
    %c0_42 = arith.constant 0 : index
    %c0_43 = arith.constant 0 : index
    %314 = vector.load %arg9[%c0_42, %c0_43] : memref<32x1xf32, #tpu.memory_space<vmem>>, vector<32x1xf32>
    %315 = vector.broadcast %314 : vector<32x1xf32> to vector<32x256xf32>
    %316 = arith.addf %313, %315 : vector<32x256xf32>
    %317 = arith.negf %316 : vector<32x256xf32>
    %318 = math.exp %317 : vector<32x256xf32>
    %cst_44 = arith.constant 1.000000e+00 : f32
    %319 = vector.broadcast %cst_44 : f32 to vector<32x256xf32>
    %320 = arith.addf %319, %318 : vector<32x256xf32>
    %321 = arith.divf %319, %320 : vector<32x256xf32>
    %322 = arith.negf %321 : vector<32x256xf32>
    %323 = math.exp %322 : vector<32x256xf32>
    %cst_45 = arith.constant 1.000000e+00 : f32
    %324 = vector.broadcast %cst_45 : f32 to vector<32x256xf32>
    %325 = arith.addf %324, %323 : vector<32x256xf32>
    %326 = arith.divf %324, %325 : vector<32x256xf32>
    %327 = arith.addf %2, %1 : vector<32x256xf32>
    %328 = arith.subf %0, %1 : vector<32x256xf32>
    %329 = arith.mulf %326, %328 : vector<32x256xf32>
    %330 = arith.addf %327, %329 : vector<32x256xf32>
    %c0_46 = arith.constant 0 : index
    %c0_47 = arith.constant 0 : index
    %331 = vector.load %arg14[%c0_46, %c0_47] : memref<32x32xf32, #tpu.memory_space<vmem>>, vector<32x32xf32>
    %cst_48 = arith.constant dense<0.000000e+00> : vector<32x256xf32>
    %332 = tpu.matmul %331, %330, %cst_48 {dimension_numbers = #tpu.dot_dimension_numbers<[1], [0], [0], [1], [0, 0, 1, 1], [], []>} : vector<32x32xf32>, vector<32x256xf32>, vector<32x256xf32> -> vector<32x256xf32>
    %c0_49 = arith.constant 0 : index
    %c0_50 = arith.constant 0 : index
    %333 = vector.load %arg15[%c0_49, %c0_50] : memref<32x1xf32, #tpu.memory_space<vmem>>, vector<32x1xf32>
    %334 = vector.broadcast %333 : vector<32x1xf32> to vector<32x256xf32>
    %335 = arith.addf %332, %334 : vector<32x256xf32>
    %c0_51 = arith.constant 0 : index
    %c0_52 = arith.constant 0 : index
    %336 = vector.load %arg16[%c0_51, %c0_52] : memref<32x256xf32, #tpu.memory_space<vmem>>, vector<32x256xf32>
    tpu.vector_store %arg16[%c0_51, %c0_52], %335 {strides = array<i32>} : memref<32x256xf32, #tpu.memory_space<vmem>>, vector<32x256xf32>,
    return
  }
  func.func @transform_0(%arg0: i32) -> (i32, i32) {
    %c0_i32 = arith.constant 0 : i32
    %c0_i32_0 = arith.constant 0 : i32
    return %arg0, %c0_i32 : i32, i32
  }
  func.func @transform_1(%arg0: i32) -> (i32, i32) {
    %c0_i32 = arith.constant 0 : i32
    %c0_i32_0 = arith.constant 0 : i32
    return %arg0, %c0_i32 : i32, i32
  }
  func.func @transform_2(%arg0: i32) -> (i32, i32) {
    %c0_i32 = arith.constant 0 : i32
    %c0_i32_0 = arith.constant 0 : i32
    %c0_i32_1 = arith.constant 0 : i32
    return %c0_i32, %c0_i32_0 : i32, i32
  }
  func.func @transform_3(%arg0: i32) -> (i32, i32) {
    %c0_i32 = arith.constant 0 : i32
    %c0_i32_0 = arith.constant 0 : i32
    %c0_i32_1 = arith.constant 0 : i32
    return %c0_i32, %c0_i32_0 : i32, i32
  }
  func.func @transform_4(%arg0: i32) -> (i32, i32) {
    %c0_i32 = arith.constant 0 : i32
    %c0_i32_0 = arith.constant 0 : i32
    %c0_i32_1 = arith.constant 0 : i32
    return %c0_i32, %c0_i32_0 : i32, i32
  }
  func.func @transform_5(%arg0: i32) -> (i32, i32) {
    %c0_i32 = arith.constant 0 : i32
    %c0_i32_0 = arith.constant 0 : i32
    %c0_i32_1 = arith.constant 0 : i32
    return %c0_i32, %c0_i32_0 : i32, i32
  }
  func.func @transform_6(%arg0: i32) -> (i32, i32) {
    %c0_i32 = arith.constant 0 : i32
    %c0_i32_0 = arith.constant 0 : i32
    %c0_i32_1 = arith.constant 0 : i32
    return %c0_i32, %c0_i32_0 : i32, i32
  }
  func.func @transform_7(%arg0: i32) -> (i32, i32) {
    %c0_i32 = arith.constant 0 : i32
    %c0_i32_0 = arith.constant 0 : i32
    %c0_i32_1 = arith.constant 0 : i32
    return %c0_i32, %c0_i32_0 : i32, i32
  }
  func.func @transform_8(%arg0: i32) -> (i32, i32) {
    %c0_i32 = arith.constant 0 : i32
    %c0_i32_0 = arith.constant 0 : i32
    %c0_i32_1 = arith.constant 0 : i32
    return %c0_i32, %c0_i32_0 : i32, i32
  }
  func.func @transform_9(%arg0: i32) -> (i32, i32) {
    %c0_i32 = arith.constant 0 : i32
    %c0_i32_0 = arith.constant 0 : i32
    %c0_i32_1 = arith.constant 0 : i32
    return %c0_i32, %c0_i32_0 : i32, i32
  }
  func.func @transform_10(%arg0: i32) -> (i32, i32) {
    %c0_i32 = arith.constant 0 : i32
    %c0_i32_0 = arith.constant 0 : i32
    %c0_i32_1 = arith.constant 0 : i32
    return %c0_i32, %c0_i32_0 : i32, i32
  }
  func.func @transform_11(%arg0: i32) -> (i32, i32) {
    %c0_i32 = arith.constant 0 : i32
    %c0_i32_0 = arith.constant 0 : i32
    %c0_i32_1 = arith.constant 0 : i32
    return %c0_i32, %c0_i32_0 : i32, i32
  }
  func.func @transform_12(%arg0: i32) -> (i32, i32) {
    %c0_i32 = arith.constant 0 : i32
    %c0_i32_0 = arith.constant 0 : i32
    %c0_i32_1 = arith.constant 0 : i32
    return %c0_i32, %c0_i32_0 : i32, i32
  }
  func.func @transform_13(%arg0: i32) -> (i32, i32) {
    %c0_i32 = arith.constant 0 : i32
    %c0_i32_0 = arith.constant 0 : i32
    %c0_i32_1 = arith.constant 0 : i32
    return %c0_i32, %c0_i32_0 : i32, i32
  }
  func.func @transform_14(%arg0: i32) -> (i32, i32) {
    %c0_i32 = arith.constant 0 : i32
    %c0_i32_0 = arith.constant 0 : i32
    %c0_i32_1 = arith.constant 0 : i32
    return %c0_i32, %c0_i32_0 : i32, i32
  }
  func.func @transform_15(%arg0: i32) -> (i32, i32) {
    %c0_i32 = arith.constant 0 : i32
    %c0_i32_0 = arith.constant 0 : i32
    return %arg0, %c0_i32 : i32, i32
  }
}

</mosaic_0001>

<llo_original>
// kernel: tpu_custom_call.1
$region0: #{tpu_custom_call.1}
  #allocation0 [shape = 'u32[]', space=smem, size = 0x4, offset = 0x4, fixed_abs, tag = 'smem constant byte address 0x4 - core index']
  #allocation1 [shape = 'u32[144,128]{1,0:T(1,128)}', space=vmem, size = 0x12000, scoped, tag = 'internal scratch']
  %s0 = inlined_call_operand.vmem [shape: f32[64,256], index: 0, kind: input, shape index: {}]
  %s1 = inlined_call_operand.vmem [shape: f32[64,256], index: 1, kind: input, shape index: {}]
  %s2 = inlined_call_operand.vmem [shape: f32[256,484], index: 2, kind: input, shape index: {}]
  %s3 = inlined_call_operand.vmem [shape: f32[346,256], index: 3, kind: input, shape index: {}]
  %s4 = inlined_call_operand.vmem [shape: f32[256,256], index: 4, kind: input, shape index: {}]
  %s5 = inlined_call_operand.vmem [shape: f32[256,256], index: 5, kind: input, shape index: {}]
  %s6 = inlined_call_operand.vmem [shape: f32[64,49], index: 6, kind: input, shape index: {}]
  %s7 = inlined_call_operand.vmem [shape: f32[32,1], index: 7, kind: input, shape index: {}]
  %s8 = inlined_call_operand.vmem [shape: f32[32,1], index: 8, kind: input, shape index: {}]
  %s9 = inlined_call_operand.vmem [shape: f32[32,4], index: 9, kind: input, shape index: {}]
  %s10 = inlined_call_operand.vmem [shape: f32[1,4], index: 10, kind: input, shape index: {}]
  %s11 = inlined_call_operand.vmem [shape: f32[32,4], index: 11, kind: input, shape index: {}]
  %s12 = inlined_call_operand.vmem [shape: f32[32,1], index: 12, kind: input, shape index: {}]
  %s13 = inlined_call_operand.vmem [shape: f32[32,32], index: 13, kind: input, shape index: {}]
  %s14 = inlined_call_operand.vmem [shape: f32[32,1], index: 14, kind: input, shape index: {}]
  %s15 = inlined_call_operand.hbm [shape: f32[64,256], index: 15, kind: output, shape index: {}]
  %s16 = sld [smem:[#allocation0]]
  $region93: #{tpu_custom_call.1} parent=0
    _
  %s18 = ssub.s32 1, %s16
  %s19 = scalar_select 0, %s18, %s16
  $region1: #{tpu_custom_call.1} parent=0
    #allocation2 [shape = 'u8[65536]{0}', space=vmem, size = 0x10000, scoped, tag = 'output window, operand 0']
    #allocation3 [shape = 's32[2]{0}', space=sflag, size = 0x8, scoped, tag = 'scoped memory for tpu_custom_call.1']
    %20 = vsyncpa [#allocation3], 0
    %s21 = scalar_lea.sflag [#allocation3], 1
    %22 = vsyncpa %s21, 0
    loop: start=0, step=1, limit=4
    $region2: #{tpu_custom_call.1} parent=1 // loop_pre_header
      _
    $region3: #{tpu_custom_call.1} parent=1 // loop_header
      %s24 = sphi 0, %s28
      %p25 = scmp.ge.s32.totalorder %s24, 4
      %s34 = sphi 0, %s36
      %s37 = sphi 0, %s34
      %s38 = sphi 0, %s37
      %s54 = sphi 0, %s38
      %s60 = sphi 0, %s62
      %s63 = sphi 0, %s60
      %s64 = sphi 0, %s63
      %s80 = sphi 0, %s64
      %s84 = sphi 0, %s84
      %s86 = sphi 0, %s84
      %s87 = sphi 0, %s86
      %s101 = sphi 0, %s87
      %s105 = sphi 0, %s105
      %s107 = sphi 0, %s105
      %s108 = sphi 0, %s107
      %s122 = sphi 0, %s108
      %s126 = sphi 0, %s126
      %s128 = sphi 0, %s126
      %s129 = sphi 0, %s128
      %s143 = sphi 0, %s129
      %s147 = sphi 0, %s147
      %s149 = sphi 0, %s147
      %s150 = sphi 0, %s149
      %s164 = sphi 0, %s150
      %s168 = sphi 0, %s168
      %s170 = sphi 0, %s168
      %s171 = sphi 0, %s170
      %s185 = sphi 0, %s171
      %s189 = sphi 0, %s189
      %s191 = sphi 0, %s189
      %s192 = sphi 0, %s191
      %s206 = sphi 0, %s192
      %s210 = sphi 0, %s210
      %s212 = sphi 0, %s210
      %s213 = sphi 0, %s212
      %s227 = sphi 0, %s213
      %s231 = sphi 0, %s231
      %s233 = sphi 0, %s231
      %s234 = sphi 0, %s233
      %s248 = sphi 0, %s234
      %s252 = sphi 0, %s252
      %s254 = sphi 0, %s252
      %s255 = sphi 0, %s254
      %s269 = sphi 0, %s255
      %s273 = sphi 0, %s273
      %s275 = sphi 0, %s273
      %s276 = sphi 0, %s275
      %s290 = sphi 0, %s276
      %s294 = sphi 0, %s294
      %s296 = sphi 0, %s294
      %s297 = sphi 0, %s296
      %s311 = sphi 0, %s297
      %s315 = sphi 0, %s315
      %s317 = sphi 0, %s315
      %s318 = sphi 0, %s317
      %s332 = sphi 0, %s318
      %s336 = sphi 0, %s336
      %s338 = sphi 0, %s336
      %s339 = sphi 0, %s338
      %s353 = sphi 0, %s339
      %s359 = sphi 0, %s361
      %s362 = sphi 0, %s359
      %s363 = sphi 0, %s362
      %s379 = sphi 0, %s363
    $region4: #{tpu_custom_call.1} parent=1 // loop_header_branch
      %27 = sbr.rel (%p25) target = $region8
    $region5: #{tpu_custom_call.1} parent=1 // loop_body
      %s29 = ssub.s32 %s24, 1
      %s30 = ssub.s32 %s24, 2
      %s31 = sadd.s32 %s24, 1
      %s32 = ssub.s32 %s24, %s31
      %p33 = scmp.eq.s32.totalorder %s32, 0
      %s35 = sadd.s32 %s34, 1
      %s36 = scalar_select %p33, %s34, %s35
      %p39 = pneg %p33
      %p40 = scmp.eq.s32.totalorder %s24, 1
      %p41 = por %p39, %p40
      %p42 = scmp.ne.s32.totalorder %s34, %s37
      %p43 = scmp.eq.s32.totalorder %s24, 0
      %p44 = por %p42, %p43
      %p45 = scmp.ne.s32.totalorder %s34, %s37
      %p46 = scmp.eq.s32.totalorder %s29, 1
      %p47 = por %p45, %p46
      %p48 = scmp.ne.s32.totalorder %s37, %s38
      %p49 = scmp.eq.s32.totalorder %s29, 0
      %p50 = por %p48, %p49
      %p51 = scmp.ne.s32.totalorder %s37, %s38
      %p52 = scmp.eq.s32.totalorder %s30, 1
      %p53 = por %p51, %p52
      %p55 = scmp.ne.s32.totalorder %s38, %s54
      %p56 = scmp.eq.s32.totalorder %s30, 0
      %p57 = por %p55, %p56
      %s58 = ssub.s32 %s24, %s31
      %p59 = scmp.eq.s32.totalorder %s58, 0
      %s61 = sadd.s32 %s60, 1
      %s62 = scalar_select %p59, %s60, %s61
      %p65 = pneg %p59
      %p66 = scmp.eq.s32.totalorder %s24, 1
      %p67 = por %p65, %p66
      %p68 = scmp.ne.s32.totalorder %s60, %s63
      %p69 = scmp.eq.s32.totalorder %s24, 0
      %p70 = por %p68, %p69
      %p71 = scmp.ne.s32.totalorder %s60, %s63
      %p72 = scmp.eq.s32.totalorder %s29, 1
      %p73 = por %p71, %p72
      %p74 = scmp.ne.s32.totalorder %s63, %s64
      %p75 = scmp.eq.s32.totalorder %s29, 0
      %p76 = por %p74, %p75
      %p77 = scmp.ne.s32.totalorder %s63, %s64
      %p78 = scmp.eq.s32.totalorder %s30, 1
      %p79 = por %p77, %p78
      %p81 = scmp.ne.s32.totalorder %s64, %s80
      %p82 = scmp.eq.s32.totalorder %s30, 0
      %p83 = por %p81, %p82
      %s85 = sadd.s32 %s84, 1
      %p88 = scmp.eq.s32.totalorder %s24, 1
      %p89 = scmp.ne.s32.totalorder %s84, %s86
      %p90 = scmp.eq.s32.totalorder %s24, 0
      %p91 = por %p89, %p90
      %p92 = scmp.ne.s32.totalorder %s84, %s86
      %p93 = scmp.eq.s32.totalorder %s29, 1
      %p94 = por %p92, %p93
      %p95 = scmp.ne.s32.totalorder %s86, %s87
      %p96 = scmp.eq.s32.totalorder %s29, 0
      %p97 = por %p95, %p96
      %p98 = scmp.ne.s32.totalorder %s86, %s87
      %p99 = scmp.eq.s32.totalorder %s30, 1
      %p100 = por %p98, %p99
      %p102 = scmp.ne.s32.totalorder %s87, %s101
      %p103 = scmp.eq.s32.totalorder %s30, 0
      %p104 = por %p102, %p103
      %s106 = sadd.s32 %s105, 1
      %p109 = scmp.eq.s32.totalorder %s24, 1
      %p110 = scmp.ne.s32.totalorder %s105, %s107
      %p111 = scmp.eq.s32.totalorder %s24, 0
      %p112 = por %p110, %p111
      %p113 = scmp.ne.s32.totalorder %s105, %s107
      %p114 = scmp.eq.s32.totalorder %s29, 1
      %p115 = por %p113, %p114
      %p116 = scmp.ne.s32.totalorder %s107, %s108
      %p117 = scmp.eq.s32.totalorder %s29, 0
      %p118 = por %p116, %p117
      %p119 = scmp.ne.s32.totalorder %s107, %s108
      %p120 = scmp.eq.s32.totalorder %s30, 1
      %p121 = por %p119, %p120
      %p123 = scmp.ne.s32.totalorder %s108, %s122
      %p124 = scmp.eq.s32.totalorder %s30, 0
      %p125 = por %p123, %p124
      %s127 = sadd.s32 %s126, 1
      %p130 = scmp.eq.s32.totalorder %s24, 1
      %p131 = scmp.ne.s32.totalorder %s126, %s128
      %p132 = scmp.eq.s32.totalorder %s24, 0
      %p133 = por %p131, %p132
      %p134 = scmp.ne.s32.totalorder %s126, %s128
      %p135 = scmp.eq.s32.totalorder %s29, 1
      %p136 = por %p134, %p135
      %p137 = scmp.ne.s32.totalorder %s128, %s129
      %p138 = scmp.eq.s32.totalorder %s29, 0
      %p139 = por %p137, %p138
      %p140 = scmp.ne.s32.totalorder %s128, %s129
      %p141 = scmp.eq.s32.totalorder %s30, 1
      %p142 = por %p140, %p141
      %p144 = scmp.ne.s32.totalorder %s129, %s143
      %p145 = scmp.eq.s32.totalorder %s30, 0
      %p146 = por %p144, %p145
      %s148 = sadd.s32 %s147, 1
      %p151 = scmp.eq.s32.totalorder %s24, 1
      %p152 = scmp.ne.s32.totalorder %s147, %s149
      %p153 = scmp.eq.s32.totalorder %s24, 0
      %p154 = por %p152, %p153
      %p155 = scmp.ne.s32.totalorder %s147, %s149
      %p156 = scmp.eq.s32.totalorder %s29, 1
      %p157 = por %p155, %p156
      %p158 = scmp.ne.s32.totalorder %s149, %s150
      %p159 = scmp.eq.s32.totalorder %s29, 0
      %p160 = por %p158, %p159
      %p161 = scmp.ne.s32.totalorder %s149, %s150
      %p162 = scmp.eq.s32.totalorder %s30, 1
      %p163 = por %p161, %p162
      %p165 = scmp.ne.s32.totalorder %s150, %s164
      %p166 = scmp.eq.s32.totalorder %s30, 0
      %p167 = por %p165, %p166
      %s169 = sadd.s32 %s168, 1
      %p172 = scmp.eq.s32.totalorder %s24, 1
      %p173 = scmp.ne.s32.totalorder %s168, %s170
      %p174 = scmp.eq.s32.totalorder %s24, 0
      %p175 = por %p173, %p174
      %p176 = scmp.ne.s32.totalorder %s168, %s170
      %p177 = scmp.eq.s32.totalorder %s29, 1
      %p178 = por %p176, %p177
      %p179 = scmp.ne.s32.totalorder %s170, %s171
      %p180 = scmp.eq.s32.totalorder %s29, 0
      %p181 = por %p179, %p180
      %p182 = scmp.ne.s32.totalorder %s170, %s171
      %p183 = scmp.eq.s32.totalorder %s30, 1
      %p184 = por %p182, %p183
      %p186 = scmp.ne.s32.totalorder %s171, %s185
      %p187 = scmp.eq.s32.totalorder %s30, 0
      %p188 = por %p186, %p187
      %s190 = sadd.s32 %s189, 1
      %p193 = scmp.eq.s32.totalorder %s24, 1
      %p194 = scmp.ne.s32.totalorder %s189, %s191
      %p195 = scmp.eq.s32.totalorder %s24, 0
      %p196 = por %p194, %p195
      %p197 = scmp.ne.s32.totalorder %s189, %s191
      %p198 = scmp.eq.s32.totalorder %s29, 1
      %p199 = por %p197, %p198
      %p200 = scmp.ne.s32.totalorder %s191, %s192
      %p201 = scmp.eq.s32.totalorder %s29, 0
      %p202 = por %p200, %p201
      %p203 = scmp.ne.s32.totalorder %s191, %s192
      %p204 = scmp.eq.s32.totalorder %s30, 1
      %p205 = por %p203, %p204
      %p207 = scmp.ne.s32.totalorder %s192, %s206
      %p208 = scmp.eq.s32.totalorder %s30, 0
      %p209 = por %p207, %p208
      %s211 = sadd.s32 %s210, 1
      %p214 = scmp.eq.s32.totalorder %s24, 1
      %p215 = scmp.ne.s32.totalorder %s210, %s212
      %p216 = scmp.eq.s32.totalorder %s24, 0
      %p217 = por %p215, %p216
      %p218 = scmp.ne.s32.totalorder %s210, %s212
      %p219 = scmp.eq.s32.totalorder %s29, 1
      %p220 = por %p218, %p219
      %p221 = scmp.ne.s32.totalorder %s212, %s213
      %p222 = scmp.eq.s32.totalorder %s29, 0
      %p223 = por %p221, %p222
      %p224 = scmp.ne.s32.totalorder %s212, %s213
      %p225 = scmp.eq.s32.totalorder %s30, 1
      %p226 = por %p224, %p225
      %p228 = scmp.ne.s32.totalorder %s213, %s227
      %p229 = scmp.eq.s32.totalorder %s30, 0
      %p230 = por %p228, %p229
      %s232 = sadd.s32 %s231, 1
      %p235 = scmp.eq.s32.totalorder %s24, 1
      %p236 = scmp.ne.s32.totalorder %s231, %s233
      %p237 = scmp.eq.s32.totalorder %s24, 0
      %p238 = por %p236, %p237
      %p239 = scmp.ne.s32.totalorder %s231, %s233
      %p240 = scmp.eq.s32.totalorder %s29, 1
      %p241 = por %p239, %p240
      %p242 = scmp.ne.s32.totalorder %s233, %s234
      %p243 = scmp.eq.s32.totalorder %s29, 0
      %p244 = por %p242, %p243
      %p245 = scmp.ne.s32.totalorder %s233, %s234
      %p246 = scmp.eq.s32.totalorder %s30, 1
      %p247 = por %p245, %p246
      %p249 = scmp.ne.s32.totalorder %s234, %s248
      %p250 = scmp.eq.s32.totalorder %s30, 0
      %p251 = por %p249, %p250
      %s253 = sadd.s32 %s252, 1
      %p256 = scmp.eq.s32.totalorder %s24, 1
      %p257 = scmp.ne.s32.totalorder %s252, %s254
      %p258 = scmp.eq.s32.totalorder %s24, 0
      %p259 = por %p257, %p258
      %p260 = scmp.ne.s32.totalorder %s252, %s254
      %p261 = scmp.eq.s32.totalorder %s29, 1
      %p262 = por %p260, %p261
      %p263 = scmp.ne.s32.totalorder %s254, %s255
      %p264 = scmp.eq.s32.totalorder %s29, 0
      %p265 = por %p263, %p264
      %p266 = scmp.ne.s32.totalorder %s254, %s255
      %p267 = scmp.eq.s32.totalorder %s30, 1
      %p268 = por %p266, %p267
      %p270 = scmp.ne.s32.totalorder %s255, %s269
      %p271 = scmp.eq.s32.totalorder %s30, 0
      %p272 = por %p270, %p271
      %s274 = sadd.s32 %s273, 1
      %p277 = scmp.eq.s32.totalorder %s24, 1
      %p278 = scmp.ne.s32.totalorder %s273, %s275
      %p279 = scmp.eq.s32.totalorder %s24, 0
      %p280 = por %p278, %p279
      %p281 = scmp.ne.s32.totalorder %s273, %s275
      %p282 = scmp.eq.s32.totalorder %s29, 1
      %p283 = por %p281, %p282
      %p284 = scmp.ne.s32.totalorder %s275, %s276
      %p285 = scmp.eq.s32.totalorder %s29, 0
      %p286 = por %p284, %p285
      %p287 = scmp.ne.s32.totalorder %s275, %s276
      %p288 = scmp.eq.s32.totalorder %s30, 1
      %p289 = por %p287, %p288
      %p291 = scmp.ne.s32.totalorder %s276, %s290
      %p292 = scmp.eq.s32.totalorder %s30, 0
      %p293 = por %p291, %p292
      %s295 = sadd.s32 %s294, 1
      %p298 = scmp.eq.s32.totalorder %s24, 1
      %p299 = scmp.ne.s32.totalorder %s294, %s296
      %p300 = scmp.eq.s32.totalorder %s24, 0
      %p301 = por %p299, %p300
      %p302 = scmp.ne.s32.totalorder %s294, %s296
      %p303 = scmp.eq.s32.totalorder %s29, 1
      %p304 = por %p302, %p303
      %p305 = scmp.ne.s32.totalorder %s296, %s297
      %p306 = scmp.eq.s32.totalorder %s29, 0
      %p307 = por %p305, %p306
      %p308 = scmp.ne.s32.totalorder %s296, %s297
      %p309 = scmp.eq.s32.totalorder %s30, 1
      %p310 = por %p308, %p309
      %p312 = scmp.ne.s32.totalorder %s297, %s311
      %p313 = scmp.eq.s32.totalorder %s30, 0
      %p314 = por %p312, %p313
      %s316 = sadd.s32 %s315, 1
      %p319 = scmp.eq.s32.totalorder %s24, 1
      %p320 = scmp.ne.s32.totalorder %s315, %s317
      %p321 = scmp.eq.s32.totalorder %s24, 0
      %p322 = por %p320, %p321
      %p323 = scmp.ne.s32.totalorder %s315, %s317
      %p324 = scmp.eq.s32.totalorder %s29, 1
      %p325 = por %p323, %p324
      %p326 = scmp.ne.s32.totalorder %s317, %s318
      %p327 = scmp.eq.s32.totalorder %s29, 0
      %p328 = por %p326, %p327
      %p329 = scmp.ne.s32.totalorder %s317, %s318
      %p330 = scmp.eq.s32.totalorder %s30, 1
      %p331 = por %p329, %p330
      %p333 = scmp.ne.s32.totalorder %s318, %s332
      %p334 = scmp.eq.s32.totalorder %s30, 0
      %p335 = por %p333, %p334
      %s337 = sadd.s32 %s336, 1
      %p340 = scmp.eq.s32.totalorder %s24, 1
      %p341 = scmp.ne.s32.totalorder %s336, %s338
      %p342 = scmp.eq.s32.totalorder %s24, 0
      %p343 = por %p341, %p342
      %p344 = scmp.ne.s32.totalorder %s336, %s338
      %p345 = scmp.eq.s32.totalorder %s29, 1
      %p346 = por %p344, %p345
      %p347 = scmp.ne.s32.totalorder %s338, %s339
      %p348 = scmp.eq.s32.totalorder %s29, 0
      %p349 = por %p347, %p348
      %p350 = scmp.ne.s32.totalorder %s338, %s339
      %p351 = scmp.eq.s32.totalorder %s30, 1
      %p352 = por %p350, %p351
      %p354 = scmp.ne.s32.totalorder %s339, %s353
      %p355 = scmp.eq.s32.totalorder %s30, 0
      %p356 = por %p354, %p355
      %s357 = ssub.s32 %s24, %s31
      %p358 = scmp.eq.s32.totalorder %s357, 0
      %s360 = sadd.s32 %s359, 1
      %s361 = scalar_select %p358, %s359, %s360
      %p364 = pneg %p358
      %p365 = scmp.eq.s32.totalorder %s24, 1
      %p366 = por %p364, %p365
      %p367 = scmp.ne.s32.totalorder %s359, %s362
      %p368 = scmp.eq.s32.totalorder %s24, 0
      %p369 = por %p367, %p368
      %p370 = scmp.ne.s32.totalorder %s359, %s362
      %p371 = scmp.eq.s32.totalorder %s29, 1
      %p372 = por %p370, %p371
      %p373 = scmp.ne.s32.totalorder %s362, %s363
      %p374 = scmp.eq.s32.totalorder %s29, 0
      %p375 = por %p373, %p374
      %p376 = scmp.ne.s32.totalorder %s362, %s363
      %p377 = scmp.eq.s32.totalorder %s30, 1
      %p378 = por %p376, %p377
      %p380 = scmp.ne.s32.totalorder %s363, %s379
      %p381 = scmp.eq.s32.totalorder %s30, 0
      %p382 = por %p380, %p381
      %p383 = scmp.le.s32.totalorder 1, %s24
      %p384 = scmp.lt.s32.totalorder %s24, 3
      %p385 = pnand %p383, %p384
      %p386 = pneg %p385
      // Predicated region
      $region9: #{tpu_custom_call.1} parent=5 // pred_check
        _
      $region10: #{tpu_custom_call.1} parent=5 // pred_check_branch
        %388 = sbr.rel (%p385) target = $region12
      $region11: #{tpu_custom_call.1} parent=5 // pred_region
        %s389 = ssub.s32 %s24, 1
        // Predicated region
        $region13: #{tpu_custom_call.1} parent=11 // pred_check
          %p390 = pneg %p97
        $region14: #{tpu_custom_call.1} parent=11 // pred_check_branch
          %392 = sbr.rel (%p390) target = $region16
        $region15: #{tpu_custom_call.1} parent=11 // pred_region
          _
        $region16: #{tpu_custom_call.1} parent=11 // pred_fallthru
          _
        // Predicated region
        $region17: #{tpu_custom_call.1} parent=11 // pred_check
          %p393 = pneg %p118
        $region18: #{tpu_custom_call.1} parent=11 // pred_check_branch
          %395 = sbr.rel (%p393) target = $region20
        $region19: #{tpu_custom_call.1} parent=11 // pred_region
          _
        $region20: #{tpu_custom_call.1} parent=11 // pred_fallthru
          _
        // Predicated region
        $region21: #{tpu_custom_call.1} parent=11 // pred_check
          %p396 = pneg %p139
        $region22: #{tpu_custom_call.1} parent=11 // pred_check_branch
          %398 = sbr.rel (%p396) target = $region24
        $region23: #{tpu_custom_call.1} parent=11 // pred_region
          _
        $region24: #{tpu_custom_call.1} parent=11 // pred_fallthru
          _
        // Predicated region
        $region25: #{tpu_custom_call.1} parent=11 // pred_check
          %p399 = pneg %p160
        $region26: #{tpu_custom_call.1} parent=11 // pred_check_branch
          %401 = sbr.rel (%p399) target = $region28
        $region27: #{tpu_custom_call.1} parent=11 // pred_region
          _
        $region28: #{tpu_custom_call.1} parent=11 // pred_fallthru
          _
        // Predicated region
        $region29: #{tpu_custom_call.1} parent=11 // pred_check
          %p402 = pneg %p181
        $region30: #{tpu_custom_call.1} parent=11 // pred_check_branch
          %404 = sbr.rel (%p402) target = $region32
        $region31: #{tpu_custom_call.1} parent=11 // pred_region
          _
        $region32: #{tpu_custom_call.1} parent=11 // pred_fallthru
          _
        // Predicated region
        $region33: #{tpu_custom_call.1} parent=11 // pred_check
          %p405 = pneg %p202
        $region34: #{tpu_custom_call.1} parent=11 // pred_check_branch
          %407 = sbr.rel (%p405) target = $region36
        $region35: #{tpu_custom_call.1} parent=11 // pred_region
          _
        $region36: #{tpu_custom_call.1} parent=11 // pred_fallthru
          _
        // Predicated region
        $region37: #{tpu_custom_call.1} parent=11 // pred_check
          %p408 = pneg %p223
        $region38: #{tpu_custom_call.1} parent=11 // pred_check_branch
          %410 = sbr.rel (%p408) target = $region40
        $region39: #{tpu_custom_call.1} parent=11 // pred_region
          _
        $region40: #{tpu_custom_call.1} parent=11 // pred_fallthru
          _
        // Predicated region
        $region41: #{tpu_custom_call.1} parent=11 // pred_check
          %p411 = pneg %p244
        $region42: #{tpu_custom_call.1} parent=11 // pred_check_branch
          %413 = sbr.rel (%p411) target = $region44
        $region43: #{tpu_custom_call.1} parent=11 // pred_region
          _
        $region44: #{tpu_custom_call.1} parent=11 // pred_fallthru
          _
        // Predicated region
        $region45: #{tpu_custom_call.1} parent=11 // pred_check
          %p414 = pneg %p265
        $region46: #{tpu_custom_call.1} parent=11 // pred_check_branch
          %416 = sbr.rel (%p414) target = $region48
        $region47: #{tpu_custom_call.1} parent=11 // pred_region
          _
        $region48: #{tpu_custom_call.1} parent=11 // pred_fallthru
          _
        // Predicated region
        $region49: #{tpu_custom_call.1} parent=11 // pred_check
          %p417 = pneg %p286
        $region50: #{tpu_custom_call.1} parent=11 // pred_check_branch
          %419 = sbr.rel (%p417) target = $region52
        $region51: #{tpu_custom_call.1} parent=11 // pred_region
          _
        $region52: #{tpu_custom_call.1} parent=11 // pred_fallthru
          _
        // Predicated region
        $region53: #{tpu_custom_call.1} parent=11 // pred_check
          %p420 = pneg %p307
        $region54: #{tpu_custom_call.1} parent=11 // pred_check_branch
          %422 = sbr.rel (%p420) target = $region56
        $region55: #{tpu_custom_call.1} parent=11 // pred_region
          _
        $region56: #{tpu_custom_call.1} parent=11 // pred_fallthru
          _
        // Predicated region
        $region57: #{tpu_custom_call.1} parent=11 // pred_check
          %p423 = pneg %p328
        $region58: #{tpu_custom_call.1} parent=11 // pred_check_branch
          %425 = sbr.rel (%p423) target = $region60
        $region59: #{tpu_custom_call.1} parent=11 // pred_region
          _
        $region60: #{tpu_custom_call.1} parent=11 // pred_fallthru
          _
        // Predicated region
        $region61: #{tpu_custom_call.1} parent=11 // pred_check
          %p426 = pneg %p349
        $region62: #{tpu_custom_call.1} parent=11 // pred_check_branch
          %428 = sbr.rel (%p426) target = $region64
        $region63: #{tpu_custom_call.1} parent=11 // pred_region
          _
        $region64: #{tpu_custom_call.1} parent=11 // pred_fallthru
          _
      $region12: #{tpu_custom_call.1} parent=5 // pred_fallthru
        _
      %p429 = scmp.lt.s32.totalorder %s24, 2
      // Predicated region
      $region65: #{tpu_custom_call.1} parent=5 // pred_check
        %p430 = pneg %p429
      $region66: #{tpu_custom_call.1} parent=5 // pred_check_branch
        %432 = sbr.rel (%p430) target = $region68
      $region67: #{tpu_custom_call.1} parent=5 // pred_region
        // Predicated region
        $region69: #{tpu_custom_call.1} parent=67 // pred_check
          %p433 = pneg %p44
        $region70: #{tpu_custom_call.1} parent=67 // pred_check_branch
          %435 = sbr.rel (%p433) target = $region72
        $region71: #{tpu_custom_call.1} parent=67 // pred_region
          %s436 = smul.u32 4, %s24
          %p437 = scmp.lt.s32.totalorder %s436, 7
          %s438 = scalar_select %p437, %s436, 7
          %s439 = smul.addr %s438, 2
          %s440 = smul.addr %s439, 8
          %s441 = scalar_lea.vmem %s0, %s440
          %s442 = smul.u32 4, %s24
        $region72: #{tpu_custom_call.1} parent=67 // pred_fallthru
          _
        // Predicated region
        $region73: #{tpu_custom_call.1} parent=67 // pred_check
          %p443 = pneg %p70
        $region74: #{tpu_custom_call.1} parent=67 // pred_check_branch
          %445 = sbr.rel (%p443) target = $region76
        $region75: #{tpu_custom_call.1} parent=67 // pred_region
          %s446 = smul.u32 4, %s24
          %p447 = scmp.lt.s32.totalorder %s446, 7
          %s448 = scalar_select %p447, %s446, 7
          %s449 = smul.addr %s448, 2
          %s450 = smul.addr %s449, 8
          %s451 = scalar_lea.vmem %s1, %s450
          %s452 = smul.u32 4, %s24
        $region76: #{tpu_custom_call.1} parent=67 // pred_fallthru
          _
      $region68: #{tpu_custom_call.1} parent=5 // pred_fallthru
        _
      %p453 = scmp.le.s32.totalorder 1, %s24
      %p454 = scmp.lt.s32.totalorder %s24, 3
      %p455 = pnand %p453, %p454
      %p456 = pneg %p455
      // Predicated region
      $region77: #{tpu_custom_call.1} parent=5 // pred_check
        _
      $region78: #{tpu_custom_call.1} parent=5 // pred_check_branch
        %458 = sbr.rel (%p455) target = $region80
      $region79: #{tpu_custom_call.1} parent=5 // pred_region
        %s459 = ssub.s32 %s24, 1
        %s460 = smul.u32 4, %s29
        %p461 = scmp.lt.s32.totalorder %s460, 7
        %s462 = scalar_select %p461, %s460, 7
        %s463 = smul.addr %s462, 2
        %s464 = smul.addr %s463, 8
        %s465 = scalar_lea.vmem %s0, %s464
        %p466 = pneg %p50
        %p467 = pneg %p47
        %s468 = smul.u32 4, %s29
        %p469 = scmp.lt.s32.totalorder %s468, 7
        %s470 = scalar_select %p469, %s468, 7
        %s471 = smul.addr %s470, 2
        %s472 = smul.addr %s471, 8
        %s473 = scalar_lea.vmem %s1, %s472
        %p474 = pneg %p76
        %p475 = pneg %p73
        %p476 = pneg %p97
        %p477 = pneg %p94
        %p478 = pneg %p118
        %p479 = pneg %p115
        %p480 = pneg %p139
        %p481 = pneg %p136
        %p482 = pneg %p160
        %p483 = pneg %p157
        %p484 = pneg %p181
        %p485 = pneg %p178
        %p486 = pneg %p202
        %p487 = pneg %p199
        %p488 = pneg %p223
        %p489 = pneg %p220
        %p490 = pneg %p244
        %p491 = pneg %p241
        %p492 = pneg %p265
        %p493 = pneg %p262
        %p494 = pneg %p286
        %p495 = pneg %p283
        %p496 = pneg %p307
        %p497 = pneg %p304
        %p498 = pneg %p328
        %p499 = pneg %p325
        %p500 = pneg %p349
        %p501 = pneg %p346
        %p502 = pneg %p375
        %p503 = pneg %p372
        %s504 = sand.u32 %s362, 1
        %s505 = scalar_lea.sflag [#allocation3], %s504
        %s506 = sand.u32 %s362, 1
        %s507 = smul.addr %s506, 64
        %s508 = scalar_lea.vmem [#allocation2], %s507
        %s509 = smul.u32 4, %s29
        %p510 = scmp.lt.s32.totalorder %s509, 7
        %s511 = scalar_select %p510, %s509, 7
        %s512 = smul.addr %s511, 2
        %s513 = smul.addr %s512, 8
        %s514 = scalar_lea.vmem %s0, %s513
        %s515 = smul.u32 4, %s29
        %s516 = smul.u32 4, %s29
        %p517 = scmp.lt.s32.totalorder %s516, 7
        %s518 = scalar_select %p517, %s516, 7
        %s519 = smul.addr %s518, 2
        %s520 = smul.addr %s519, 8
        %s521 = scalar_lea.vmem %s1, %s520
        %s522 = smul.u32 4, %s29
        %s523 = smul.u32 4, %s29
        %v524 = vld [vmem:[%s514] sm:$0xff]
        %v525 = vld [vmem:[%s514 + $0x8] sm:$0xff]
        %v526 = vld [vmem:[%s514 + $0x10] sm:$0xff]
        %v527 = vld [vmem:[%s514 + $0x18] sm:$0xff]
        %v528 = vld [vmem:[%s514 + $0x20] sm:$0xff]
        %v529 = vld [vmem:[%s514 + $0x28] sm:$0xff]
        %v530 = vld [vmem:[%s514 + $0x30] sm:$0xff]
        %v531 = vld [vmem:[%s514 + $0x38] sm:$0xff]
        %v532 = vld [vmem:[%s521] sm:$0xff]
        %v533 = vld [vmem:[%s521 + $0x8] sm:$0xff]
        %v534 = vld [vmem:[%s521 + $0x10] sm:$0xff]
        %v535 = vld [vmem:[%s521 + $0x18] sm:$0xff]
        %v536 = vld [vmem:[%s521 + $0x20] sm:$0xff]
        %v537 = vld [vmem:[%s521 + $0x28] sm:$0xff]
        %v538 = vld [vmem:[%s521 + $0x30] sm:$0xff]
        %v539 = vld [vmem:[%s521 + $0x38] sm:$0xff]
        %v540 = vadd.f32 %v524, %v532
        %v541 = vadd.f32 %v525, %v533
        %v542 = vadd.f32 %v526, %v534
        %v543 = vadd.f32 %v527, %v535
        %v544 = vadd.f32 %v528, %v536
        %v545 = vadd.f32 %v529, %v537
        %v546 = vadd.f32 %v530, %v538
        %v547 = vadd.f32 %v531, %v539
        %v548 = vadd.f32 %v540, %v541
        %549 = vadd.xlane.f32.xlu0 %v548
        %v550 = vpop.xlane.xlu0 %549
        %v551 = vadd.f32 %v542, %v543
        %552 = vadd.xlane.f32.xlu0 %v551
        %v553 = vpop.xlane.xlu0 %552
        %v554 = vadd.f32 %v544, %v545
        %555 = vadd.xlane.f32.xlu0 %v554
        %v556 = vpop.xlane.xlu0 %555
        %v557 = vadd.f32 %v546, %v547
        %558 = vadd.xlane.f32.xlu0 %v557
        %v559 = vpop.xlane.xlu0 %558
        %v560 = vrcp.pop 256.0
        %v561 = vmul.f32 %v550, %v560
        %v562 = vmul.f32 %v553, %v560
        %v563 = vmul.f32 %v556, %v560
        %v564 = vmul.f32 %v559, %v560
        %v565 = vld [vmem:[%s9] sm:$0xff]
        %v566 = vld [vmem:[%s9 + $0x8] sm:$0xff]
        %v567 = vld [vmem:[%s9 + $0x10] sm:$0xff]
        %v568 = vld [vmem:[%s9 + $0x18] sm:$0xff]
        %v569 = vmul.f32 %v565, %v561
        %v570 = vmul.f32 %v566, %v562
        %v571 = vmul.f32 %v567, %v563
        %v572 = vmul.f32 %v568, %v564
        %vm573 = vcmask 31744
        %v574 = vsel %vm573, %v569, 0.0
        %v575 = vsel %vm573, %v570, 0.0
        %v576 = vadd.f32 %v574, %v575
        %v577 = vsel %vm573, %v571, 0.0
        %v578 = vadd.f32 %v576, %v577
        %v579 = vsel %vm573, %v572, 0.0
        %v580 = vadd.f32 %v578, %v579
        %v581 = vrot.slane %v580, 4
        %v582 = vadd.f32 %v580, %v581
        %v583 = vrot.slane %v582, 2
        %v584 = vadd.f32 %v582, %v583
        %v585 = vrot.slane %v584, 1
        %v586 = vadd.f32 %v584, %v585
        %v587 = vld [vmem:[%s10] sm:$0x1]
        %v588 = vadd.f32 %v586, %v587
        %v589 = vmax.f32 %v588, 0.0
        %v590 = vld [vmem:[%s11] sm:$0xff]
        %v591 = vld [vmem:[%s11 + $0x8] sm:$0xff]
        %v592 = vld [vmem:[%s11 + $0x10] sm:$0xff]
        %v593 = vld [vmem:[%s11 + $0x18] sm:$0xff]
        %v594 = vlaneseq
        %v595 = vshrl.u32 %v594, 7
        %v596 = vsub.s32 0, %v595
        %v597 = vrot.slane %v589, %v596
        %v598 = vmul.f32 %v590, %v597
        %v599 = vmul.f32 %v591, %v597
        %v600 = vmul.f32 %v592, %v597
        %v601 = vmul.f32 %v593, %v597
        %v602 = vsel %vm573, %v598, 0.0
        %603 = vadd.xlane.f32.xlu0 %v602
        %v604 = vpop.xlane.xlu0 %603
        %v605 = vsel %vm573, %v599, 0.0
        %606 = vadd.xlane.f32.xlu0 %v605
        %v607 = vpop.xlane.xlu0 %606
        %v608 = vsel %vm573, %v600, 0.0
        %609 = vadd.xlane.f32.xlu0 %v608
        %v610 = vpop.xlane.xlu0 %609
        %v611 = vsel %vm573, %v601, 0.0
        %612 = vadd.xlane.f32.xlu0 %v611
        %v613 = vpop.xlane.xlu0 %612
        %v614 = vld [vmem:[%s12] sm:$0xff]
        %v615 = vld [vmem:[%s12 + $0x8] sm:$0xff]
        %v616 = vld [vmem:[%s12 + $0x10] sm:$0xff]
        %v617 = vld [vmem:[%s12 + $0x18] sm:$0xff]
        %v618 = vadd.f32 %v604, %v614
        %v619 = vadd.f32 %v607, %v615
        %v620 = vadd.f32 %v610, %v616
        %v621 = vadd.f32 %v613, %v617
        %v622 = vadd.f32 %v540, %v542
        %v623 = vrot.slane %v622, 4
        %v624 = vadd.f32 %v622, %v623
        %v625 = vrot.slane %v624, 2
        %v626 = vadd.f32 %v624, %v625
        %v627 = vrot.slane %v626, 1
        %v628 = vadd.f32 %v626, %v627
        %v629 = vadd.f32 %v541, %v543
        %v630 = vrot.slane %v629, 4
        %v631 = vadd.f32 %v629, %v630
        %v632 = vrot.slane %v631, 2
        %v633 = vadd.f32 %v631, %v632
        %v634 = vrot.slane %v633, 1
        %v635 = vadd.f32 %v633, %v634
        %v636 = vrcp.pop 16.0
        %v637 = vmul.f32 %v628, %v636
        %v638 = vmul.f32 %v635, %v636
        %v639 = vmax.f32 %v540, %v542
        %v640 = vrot.slane %v639, 4
        %v641 = vmax.f32 %v639, %v640
        %v642 = vrot.slane %v641, 2
        %v643 = vmax.f32 %v641, %v642
        %v644 = vrot.slane %v643, 1
        %v645 = vmax.f32 %v643, %v644
        %v646 = vmax.f32 %v541, %v543
        %v647 = vrot.slane %v646, 4
        %v648 = vmax.f32 %v646, %v647
        %v649 = vrot.slane %v648, 2
        %v650 = vmax.f32 %v648, %v649
        %v651 = vrot.slane %v650, 1
        %v652 = vmax.f32 %v650, %v651
        %v653 = vadd.f32 %v544, %v546
        %v654 = vrot.slane %v653, 4
        %v655 = vadd.f32 %v653, %v654
        %v656 = vrot.slane %v655, 2
        %v657 = vadd.f32 %v655, %v656
        %v658 = vrot.slane %v657, 1
        %v659 = vadd.f32 %v657, %v658
        %v660 = vadd.f32 %v545, %v547
        %v661 = vrot.slane %v660, 4
        %v662 = vadd.f32 %v660, %v661
        %v663 = vrot.slane %v662, 2
        %v664 = vadd.f32 %v662, %v663
        %v665 = vrot.slane %v664, 1
        %v666 = vadd.f32 %v664, %v665
        %v667 = vmul.f32 %v659, %v636
        %v668 = vmul.f32 %v666, %v636
        %v669 = vmax.f32 %v544, %v546
        %v670 = vrot.slane %v669, 4
        %v671 = vmax.f32 %v669, %v670
        %v672 = vrot.slane %v671, 2
        %v673 = vmax.f32 %v671, %v672
        %v674 = vrot.slane %v673, 1
        %v675 = vmax.f32 %v673, %v674
        %v676 = vmax.f32 %v545, %v547
        %v677 = vrot.slane %v676, 4
        %v678 = vmax.f32 %v676, %v677
        %v679 = vrot.slane %v678, 2
        %v680 = vmax.f32 %v678, %v679
        %v681 = vrot.slane %v680, 1
        %v682 = vmax.f32 %v680, %v681
        %vm683 = vcmask 1040384
        %v684 = vsel %vm683, %v637, %v667
        %v685 = vsel %vm683, %v638, %v668
        %v686 = vsel %vm683, %v645, %v675
        %v687 = vsel %vm683, %v652, %v682
        %v688 = vld [vmem:[%s4] sm:$0xff]
        %v689 = vld [vmem:[%s4 + $0x8] sm:$0xff]
        %v690 = vld [vmem:[%s4 + $0x10] sm:$0xff]
        %v691 = vld [vmem:[%s4 + $0x18] sm:$0xff]
        %v692 = vld [vmem:[%s4 + $0x20] sm:$0xff]
        %v693 = vld [vmem:[%s4 + $0x28] sm:$0xff]
        %v694 = vld [vmem:[%s4 + $0x30] sm:$0xff]
        %v695 = vld [vmem:[%s4 + $0x38] sm:$0xff]
        %v696 = vld [vmem:[%s4 + $0x40] sm:$0xff]
        %v697 = vld [vmem:[%s4 + $0x48] sm:$0xff]
        %v698 = vld [vmem:[%s4 + $0x50] sm:$0xff]
        %v699 = vld [vmem:[%s4 + $0x58] sm:$0xff]
        %v700 = vld [vmem:[%s4 + $0x60] sm:$0xff]
        %v701 = vld [vmem:[%s4 + $0x68] sm:$0xff]
        %v702 = vld [vmem:[%s4 + $0x70] sm:$0xff]
        %v703 = vld [vmem:[%s4 + $0x78] sm:$0xff]
        %v704 = vld [vmem:[%s4 + $0x80] sm:$0xff]
        %v705 = vld [vmem:[%s4 + $0x88] sm:$0xff]
        %v706 = vld [vmem:[%s4 + $0x90] sm:$0xff]
        %v707 = vld [vmem:[%s4 + $0x98] sm:$0xff]
        %v708 = vld [vmem:[%s4 + $0xa0] sm:$0xff]
        %v709 = vld [vmem:[%s4 + $0xa8] sm:$0xff]
        %v710 = vld [vmem:[%s4 + $0xb0] sm:$0xff]
        %v711 = vld [vmem:[%s4 + $0xb8] sm:$0xff]
        %v712 = vld [vmem:[%s4 + $0xc0] sm:$0xff]
        %v713 = vld [vmem:[%s4 + $0xc8] sm:$0xff]
        %v714 = vld [vmem:[%s4 + $0xd0] sm:$0xff]
        %v715 = vld [vmem:[%s4 + $0xd8] sm:$0xff]
        %v716 = vld [vmem:[%s4 + $0xe0] sm:$0xff]
        %v717 = vld [vmem:[%s4 + $0xe8] sm:$0xff]
        %v718 = vld [vmem:[%s4 + $0xf0] sm:$0xff]
        %v719 = vld [vmem:[%s4 + $0xf8] sm:$0xff]
        %v720 = vld [vmem:[%s4 + $0x100] sm:$0xff]
        %v721 = vld [vmem:[%s4 + $0x108] sm:$0xff]
        %v722 = vld [vmem:[%s4 + $0x110] sm:$0xff]
        %v723 = vld [vmem:[%s4 + $0x118] sm:$0xff]
        %v724 = vld [vmem:[%s4 + $0x120] sm:$0xff]
        %v725 = vld [vmem:[%s4 + $0x128] sm:$0xff]
        %v726 = vld [vmem:[%s4 + $0x130] sm:$0xff]
        %v727 = vld [vmem:[%s4 + $0x138] sm:$0xff]
        %v728 = vld [vmem:[%s4 + $0x140] sm:$0xff]
        %v729 = vld [vmem:[%s4 + $0x148] sm:$0xff]
        %v730 = vld [vmem:[%s4 + $0x150] sm:$0xff]
        %v731 = vld [vmem:[%s4 + $0x158] sm:$0xff]
        %v732 = vld [vmem:[%s4 + $0x160] sm:$0xff]
        %v733 = vld [vmem:[%s4 + $0x168] sm:$0xff]
        %v734 = vld [vmem:[%s4 + $0x170] sm:$0xff]
        %v735 = vld [vmem:[%s4 + $0x178] sm:$0xff]
        %v736 = vld [vmem:[%s4 + $0x180] sm:$0xff]
        %v737 = vld [vmem:[%s4 + $0x188] sm:$0xff]
        %v738 = vld [vmem:[%s4 + $0x190] sm:$0xff]
        %v739 = vld [vmem:[%s4 + $0x198] sm:$0xff]
        %v740 = vld [vmem:[%s4 + $0x1a0] sm:$0xff]
        %v741 = vld [vmem:[%s4 + $0x1a8] sm:$0xff]
        %v742 = vld [vmem:[%s4 + $0x1b0] sm:$0xff]
        %v743 = vld [vmem:[%s4 + $0x1b8] sm:$0xff]
        %v744 = vld [vmem:[%s4 + $0x1c0] sm:$0xff]
        %v745 = vld [vmem:[%s4 + $0x1c8] sm:$0xff]
        %v746 = vld [vmem:[%s4 + $0x1d0] sm:$0xff]
        %v747 = vld [vmem:[%s4 + $0x1d8] sm:$0xff]
        %v748 = vld [vmem:[%s4 + $0x1e0] sm:$0xff]
        %v749 = vld [vmem:[%s4 + $0x1e8] sm:$0xff]
        %v750 = vld [vmem:[%s4 + $0x1f0] sm:$0xff]
        %v751 = vld [vmem:[%s4 + $0x1f8] sm:$0xff]
        %v752 = vld [vmem:[%s5] sm:$0xff]
        %v753 = vld [vmem:[%s5 + $0x8] sm:$0xff]
        %v754 = vld [vmem:[%s5 + $0x10] sm:$0xff]
        %v755 = vld [vmem:[%s5 + $0x18] sm:$0xff]
        %v756 = vld [vmem:[%s5 + $0x20] sm:$0xff]
        %v757 = vld [vmem:[%s5 + $0x28] sm:$0xff]
        %v758 = vld [vmem:[%s5 + $0x30] sm:$0xff]
        %v759 = vld [vmem:[%s5 + $0x38] sm:$0xff]
        %v760 = vld [vmem:[%s5 + $0x40] sm:$0xff]
        %v761 = vld [vmem:[%s5 + $0x48] sm:$0xff]
        %v762 = vld [vmem:[%s5 + $0x50] sm:$0xff]
        %v763 = vld [vmem:[%s5 + $0x58] sm:$0xff]
        %v764 = vld [vmem:[%s5 + $0x60] sm:$0xff]
        %v765 = vld [vmem:[%s5 + $0x68] sm:$0xff]
        %v766 = vld [vmem:[%s5 + $0x70] sm:$0xff]
        %v767 = vld [vmem:[%s5 + $0x78] sm:$0xff]
        %v768 = vld [vmem:[%s5 + $0x80] sm:$0xff]
        %v769 = vld [vmem:[%s5 + $0x88] sm:$0xff]
        %v770 = vld [vmem:[%s5 + $0x90] sm:$0xff]
        %v771 = vld [vmem:[%s5 + $0x98] sm:$0xff]
        %v772 = vld [vmem:[%s5 + $0xa0] sm:$0xff]
        %v773 = vld [vmem:[%s5 + $0xa8] sm:$0xff]
        %v774 = vld [vmem:[%s5 + $0xb0] sm:$0xff]
        %v775 = vld [vmem:[%s5 + $0xb8] sm:$0xff]
        %v776 = vld [vmem:[%s5 + $0xc0] sm:$0xff]
        %v777 = vld [vmem:[%s5 + $0xc8] sm:$0xff]
        %v778 = vld [vmem:[%s5 + $0xd0] sm:$0xff]
        %v779 = vld [vmem:[%s5 + $0xd8] sm:$0xff]
        %v780 = vld [vmem:[%s5 + $0xe0] sm:$0xff]
        %v781 = vld [vmem:[%s5 + $0xe8] sm:$0xff]
        %v782 = vld [vmem:[%s5 + $0xf0] sm:$0xff]
        %v783 = vld [vmem:[%s5 + $0xf8] sm:$0xff]
        %v784 = vld [vmem:[%s5 + $0x100] sm:$0xff]
        %v785 = vld [vmem:[%s5 + $0x108] sm:$0xff]
        %v786 = vld [vmem:[%s5 + $0x110] sm:$0xff]
        %v787 = vld [vmem:[%s5 + $0x118] sm:$0xff]
        %v788 = vld [vmem:[%s5 + $0x120] sm:$0xff]
        %v789 = vld [vmem:[%s5 + $0x128] sm:$0xff]
        %v790 = vld [vmem:[%s5 + $0x130] sm:$0xff]
        %v791 = vld [vmem:[%s5 + $0x138] sm:$0xff]
        %v792 = vld [vmem:[%s5 + $0x140] sm:$0xff]
        %v793 = vld [vmem:[%s5 + $0x148] sm:$0xff]
        %v794 = vld [vmem:[%s5 + $0x150] sm:$0xff]
        %v795 = vld [vmem:[%s5 + $0x158] sm:$0xff]
        %v796 = vld [vmem:[%s5 + $0x160] sm:$0xff]
        %v797 = vld [vmem:[%s5 + $0x168] sm:$0xff]
        %v798 = vld [vmem:[%s5 + $0x170] sm:$0xff]
        %v799 = vld [vmem:[%s5 + $0x178] sm:$0xff]
        %v800 = vld [vmem:[%s5 + $0x180] sm:$0xff]
        %v801 = vld [vmem:[%s5 + $0x188] sm:$0xff]
        %v802 = vld [vmem:[%s5 + $0x190] sm:$0xff]
        %v803 = vld [vmem:[%s5 + $0x198] sm:$0xff]
        %v804 = vld [vmem:[%s5 + $0x1a0] sm:$0xff]
        %v805 = vld [vmem:[%s5 + $0x1a8] sm:$0xff]
        %v806 = vld [vmem:[%s5 + $0x1b0] sm:$0xff]
        %v807 = vld [vmem:[%s5 + $0x1b8] sm:$0xff]
        %v808 = vld [vmem:[%s5 + $0x1c0] sm:$0xff]
        %v809 = vld [vmem:[%s5 + $0x1c8] sm:$0xff]
        %v810 = vld [vmem:[%s5 + $0x1d0] sm:$0xff]
        %v811 = vld [vmem:[%s5 + $0x1d8] sm:$0xff]
        %v812 = vld [vmem:[%s5 + $0x1e0] sm:$0xff]
        %v813 = vld [vmem:[%s5 + $0x1e8] sm:$0xff]
        %v814 = vld [vmem:[%s5 + $0x1f0] sm:$0xff]
        %v815 = vld [vmem:[%s5 + $0x1f8] sm:$0xff]
        %816 = vmatprep.subr.mxu0 %v783
        %817 = vmatpush1.msra.mxu0 %v782
        %818 = vmatprep.subr.mxu0 %v781
        %819 = vmatpush1.msra.mxu0 %v780
        %820 = vmatprep.subr.mxu0 %v779
        %821 = vmatpush1.msra.mxu0 %v778
        %822 = vmatprep.subr.mxu0 %v777
        %823 = vmatpush1.msra.mxu0 %v776
        %824 = vmatprep.subr.mxu0 %v775
        %825 = vmatpush1.msra.mxu0 %v774
        %826 = vmatprep.subr.mxu0 %v773
        %827 = vmatpush1.msra.mxu0 %v772
        %828 = vmatprep.subr.mxu0 %v771
        %829 = vmatpush1.msra.mxu0 %v770
        %830 = vmatprep.subr.mxu0 %v769
        %831 = vmatpush1.msra.mxu0 %v768
        %832 = vmatprep.subr.mxu0 %v767
        %833 = vmatpush1.msra.mxu0 %v766
        %834 = vmatprep.subr.mxu0 %v765
        %835 = vmatpush1.msra.mxu0 %v764
        %836 = vmatprep.subr.mxu0 %v763
        %837 = vmatpush1.msra.mxu0 %v762
        %838 = vmatprep.subr.mxu0 %v761
        %839 = vmatpush1.msra.mxu0 %v760
        %840 = vmatprep.subr.mxu0 %v759
        %841 = vmatpush1.msra.mxu0 %v758
        %842 = vmatprep.subr.mxu0 %v757
        %843 = vmatpush1.msra.mxu0 %v756
        %844 = vmatprep.subr.mxu0 %v755
        %845 = vmatpush1.msra.mxu0 %v754
        %846 = vmatprep.subr.mxu0 %v753
        %847 = vmatpush1.msra.mxu0 %v752
        %848 = vmatprep.subr.mxu0 %v815
        %849 = vmatpush2.msra.mxu0 %v814
        %850 = vmatprep.subr.mxu0 %v813
        %851 = vmatpush2.msra.mxu0 %v812
        %852 = vmatprep.subr.mxu0 %v811
        %853 = vmatpush2.msra.mxu0 %v810
        %854 = vmatprep.subr.mxu0 %v809
        %855 = vmatpush2.msra.mxu0 %v808
        %856 = vmatprep.subr.mxu0 %v807
        %857 = vmatpush2.msra.mxu0 %v806
        %858 = vmatprep.subr.mxu0 %v805
        %859 = vmatpush2.msra.mxu0 %v804
        %860 = vmatprep.subr.mxu0 %v803
        %861 = vmatpush2.msra.mxu0 %v802
        %862 = vmatprep.subr.mxu0 %v801
        %863 = vmatpush2.msra.mxu0 %v800
        %864 = vmatprep.subr.mxu0 %v799
        %865 = vmatpush2.msra.mxu0 %v798
        %866 = vmatprep.subr.mxu0 %v797
        %867 = vmatpush2.msra.mxu0 %v796
        %868 = vmatprep.subr.mxu0 %v795
        %869 = vmatpush2.msra.mxu0 %v794
        %870 = vmatprep.subr.mxu0 %v793
        %871 = vmatpush2.msra.mxu0 %v792
        %872 = vmatprep.subr.mxu0 %v791
        %873 = vmatpush2.msra.mxu0 %v790
        %874 = vmatprep.subr.mxu0 %v789
        %875 = vmatpush2.msra.mxu0 %v788
        %876 = vmatprep.subr.mxu0 %v787
        %877 = vmatpush2.msra.mxu0 %v786
        %878 = vmatprep.subr.mxu0 %v785
        %879 = vmatpush2.msra.mxu0 %v784
        %880 = vmatprep.mubr.f32.mxu0 %v687
        %881 = vmatmul.mubr.f32.gmra.mxu0 %v686
        %v882 = vpop.f32.mrf.mxu0
        %v883 = vadd.f32 0.0, %v882
        %v884 = vpop.f32.mrf.mxu0
        %v885 = vadd.f32 0.0, %v884
        %886 = vdwg.mxu0
        %887 = vmatprep.subr.mxu0 %v719
        %888 = vmatpush1.msra.mxu0 %v718
        %889 = vmatprep.subr.mxu0 %v717
        %890 = vmatpush1.msra.mxu0 %v716
        %891 = vmatprep.subr.mxu0 %v715
        %892 = vmatpush1.msra.mxu0 %v714
        %893 = vmatprep.subr.mxu0 %v713
        %894 = vmatpush1.msra.mxu0 %v712
        %895 = vmatprep.subr.mxu0 %v711
        %896 = vmatpush1.msra.mxu0 %v710
        %897 = vmatprep.subr.mxu0 %v709
        %898 = vmatpush1.msra.mxu0 %v708
        %899 = vmatprep.subr.mxu0 %v707
        %900 = vmatpush1.msra.mxu0 %v706
        %901 = vmatprep.subr.mxu0 %v705
        %902 = vmatpush1.msra.mxu0 %v704
        %903 = vmatprep.subr.mxu0 %v703
        %904 = vmatpush1.msra.mxu0 %v702
        %905 = vmatprep.subr.mxu0 %v701
        %906 = vmatpush1.msra.mxu0 %v700
        %907 = vmatprep.subr.mxu0 %v699
        %908 = vmatpush1.msra.mxu0 %v698
        %909 = vmatprep.subr.mxu0 %v697
        %910 = vmatpush1.msra.mxu0 %v696
        %911 = vmatprep.subr.mxu0 %v695
        %912 = vmatpush1.msra.mxu0 %v694
        %913 = vmatprep.subr.mxu0 %v693
        %914 = vmatpush1.msra.mxu0 %v692
        %915 = vmatprep.subr.mxu0 %v691
        %916 = vmatpush1.msra.mxu0 %v690
        %917 = vmatprep.subr.mxu0 %v689
        %918 = vmatpush1.msra.mxu0 %v688
        %919 = vmatprep.subr.mxu0 %v751
        %920 = vmatpush2.msra.mxu0 %v750
        %921 = vmatprep.subr.mxu0 %v749
        %922 = vmatpush2.msra.mxu0 %v748
        %923 = vmatprep.subr.mxu0 %v747
        %924 = vmatpush2.msra.mxu0 %v746
        %925 = vmatprep.subr.mxu0 %v745
        %926 = vmatpush2.msra.mxu0 %v744
        %927 = vmatprep.subr.mxu0 %v743
        %928 = vmatpush2.msra.mxu0 %v742
        %929 = vmatprep.subr.mxu0 %v741
        %930 = vmatpush2.msra.mxu0 %v740
        %931 = vmatprep.subr.mxu0 %v739
        %932 = vmatpush2.msra.mxu0 %v738
        %933 = vmatprep.subr.mxu0 %v737
        %934 = vmatpush2.msra.mxu0 %v736
        %935 = vmatprep.subr.mxu0 %v735
        %936 = vmatpush2.msra.mxu0 %v734
        %937 = vmatprep.subr.mxu0 %v733
        %938 = vmatpush2.msra.mxu0 %v732
        %939 = vmatprep.subr.mxu0 %v731
        %940 = vmatpush2.msra.mxu0 %v730
        %941 = vmatprep.subr.mxu0 %v729
        %942 = vmatpush2.msra.mxu0 %v728
        %943 = vmatprep.subr.mxu0 %v727
        %944 = vmatpush2.msra.mxu0 %v726
        %945 = vmatprep.subr.mxu0 %v725
        %946 = vmatpush2.msra.mxu0 %v724
        %947 = vmatprep.subr.mxu0 %v723
        %948 = vmatpush2.msra.mxu0 %v722
        %949 = vmatprep.subr.mxu0 %v721
        %950 = vmatpush2.msra.mxu0 %v720
        %951 = vmatprep.mubr.f32.mxu0 %v685
        %952 = vmatmul.mubr.f32.gmra.mxu0 %v684
        %v953 = vpop.f32.mrf.mxu0
        %v954 = vadd.f32 %v883, %v953
        %v955 = vpop.f32.mrf.mxu0
        %v956 = vadd.f32 %v885, %v955
        %957 = vdwg.mxu0
        %v958 = vld [vmem:[%s2] sm:$0xff]
        %v959 = vld [vmem:[%s2 + $0x8] sm:$0xff]
        %v960 = vld [vmem:[%s2 + $0x10] sm:$0xff]
        %v961 = vld [vmem:[%s2 + $0x18] sm:$0xff]
        %v962 = vld [vmem:[%s2 + $0x20] sm:$0xff]
        %v963 = vld [vmem:[%s2 + $0x28] sm:$0xff]
        %v964 = vld [vmem:[%s2 + $0x30] sm:$0xff]
        %v965 = vld [vmem:[%s2 + $0x38] sm:$0xff]
        %v966 = vld [vmem:[%s2 + $0x40] sm:$0xff]
        %v967 = vld [vmem:[%s2 + $0x48] sm:$0xff]
        %v968 = vld [vmem:[%s2 + $0x50] sm:$0xff]
        %v969 = vld [vmem:[%s2 + $0x58] sm:$0xff]
        %v970 = vld [vmem:[%s2 + $0x60] sm:$0xff]
        %v971 = vld [vmem:[%s2 + $0x68] sm:$0xff]
        %v972 = vld [vmem:[%s2 + $0x70] sm:$0xff]
        %v973 = vld [vmem:[%s2 + $0x78] sm:$0xff]
        %v974 = vld [vmem:[%s2 + $0x80] sm:$0xff]
        %v975 = vld [vmem:[%s2 + $0x88] sm:$0xff]
        %v976 = vld [vmem:[%s2 + $0x90] sm:$0xff]
        %v977 = vld [vmem:[%s2 + $0x98] sm:$0xff]
        %v978 = vld [vmem:[%s2 + $0xa0] sm:$0xff]
        %v979 = vld [vmem:[%s2 + $0xa8] sm:$0xff]
        %v980 = vld [vmem:[%s2 + $0xb0] sm:$0xff]
        %v981 = vld [vmem:[%s2 + $0xb8] sm:$0xff]
        %v982 = vld [vmem:[%s2 + $0xc0] sm:$0xff]
        %v983 = vld [vmem:[%s2 + $0xc8] sm:$0xff]
        %v984 = vld [vmem:[%s2 + $0xd0] sm:$0xff]
        %v985 = vld [vmem:[%s2 + $0xd8] sm:$0xff]
        %v986 = vld [vmem:[%s2 + $0xe0] sm:$0xff]
        %v987 = vld [vmem:[%s2 + $0xe8] sm:$0xff]
        %v988 = vld [vmem:[%s2 + $0xf0] sm:$0xff]
        %v989 = vld [vmem:[%s2 + $0xf8] sm:$0xff]
        %v990 = vld [vmem:[%s2 + $0x100] sm:$0xff]
        %v991 = vld [vmem:[%s2 + $0x108] sm:$0xff]
        %v992 = vld [vmem:[%s2 + $0x110] sm:$0xff]
        %v993 = vld [vmem:[%s2 + $0x118] sm:$0xff]
        %v994 = vld [vmem:[%s2 + $0x120] sm:$0xff]
        %v995 = vld [vmem:[%s2 + $0x128] sm:$0xff]
        %v996 = vld [vmem:[%s2 + $0x130] sm:$0xff]
        %v997 = vld [vmem:[%s2 + $0x138] sm:$0xff]
        %v998 = vld [vmem:[%s2 + $0x140] sm:$0xff]
        %v999 = vld [vmem:[%s2 + $0x148] sm:$0xff]
        %v1000 = vld [vmem:[%s2 + $0x150] sm:$0xff]
        %v1001 = vld [vmem:[%s2 + $0x158] sm:$0xff]
        %v1002 = vld [vmem:[%s2 + $0x160] sm:$0xff]
        %v1003 = vld [vmem:[%s2 + $0x168] sm:$0xff]
        %v1004 = vld [vmem:[%s2 + $0x170] sm:$0xff]
        %v1005 = vld [vmem:[%s2 + $0x178] sm:$0xff]
        %v1006 = vld [vmem:[%s2 + $0x180] sm:$0xff]
        %v1007 = vld [vmem:[%s2 + $0x188] sm:$0xff]
        %v1008 = vld [vmem:[%s2 + $0x190] sm:$0xff]
        %v1009 = vld [vmem:[%s2 + $0x198] sm:$0xff]
        %v1010 = vld [vmem:[%s2 + $0x1a0] sm:$0xff]
        %v1011 = vld [vmem:[%s2 + $0x1a8] sm:$0xff]
        %v1012 = vld [vmem:[%s2 + $0x1b0] sm:$0xff]
        %v1013 = vld [vmem:[%s2 + $0x1b8] sm:$0xff]
        %v1014 = vld [vmem:[%s2 + $0x1c0] sm:$0xff]
        %v1015 = vld [vmem:[%s2 + $0x1c8] sm:$0xff]
        %v1016 = vld [vmem:[%s2 + $0x1d0] sm:$0xff]
        %v1017 = vld [vmem:[%s2 + $0x1d8] sm:$0xff]
        %v1018 = vld [vmem:[%s2 + $0x1e0] sm:$0xff]
        %v1019 = vld [vmem:[%s2 + $0x1e8] sm:$0xff]
        %v1020 = vld [vmem:[%s2 + $0x1f0] sm:$0xff]
        %v1021 = vld [vmem:[%s2 + $0x1f8] sm:$0xff]
        %v1022 = vld [vmem:[%s2 + $0x200] sm:$0xff]
        %v1023 = vld [vmem:[%s2 + $0x208] sm:$0xff]
        %v1024 = vld [vmem:[%s2 + $0x210] sm:$0xff]
        %v1025 = vld [vmem:[%s2 + $0x218] sm:$0xff]
        %v1026 = vld [vmem:[%s2 + $0x220] sm:$0xff]
        %v1027 = vld [vmem:[%s2 + $0x228] sm:$0xff]
        %v1028 = vld [vmem:[%s2 + $0x230] sm:$0xff]
        %v1029 = vld [vmem:[%s2 + $0x238] sm:$0xff]
        %v1030 = vld [vmem:[%s2 + $0x240] sm:$0xff]
        %v1031 = vld [vmem:[%s2 + $0x248] sm:$0xff]
        %v1032 = vld [vmem:[%s2 + $0x250] sm:$0xff]
        %v1033 = vld [vmem:[%s2 + $0x258] sm:$0xff]
        %v1034 = vld [vmem:[%s2 + $0x260] sm:$0xff]
        %v1035 = vld [vmem:[%s2 + $0x268] sm:$0xff]
        %v1036 = vld [vmem:[%s2 + $0x270] sm:$0xff]
        %v1037 = vld [vmem:[%s2 + $0x278] sm:$0xff]
        %v1038 = vld [vmem:[%s2 + $0x280] sm:$0xff]
        %v1039 = vld [vmem:[%s2 + $0x288] sm:$0xff]
        %v1040 = vld [vmem:[%s2 + $0x290] sm:$0xff]
        %v1041 = vld [vmem:[%s2 + $0x298] sm:$0xff]
        %v1042 = vld [vmem:[%s2 + $0x2a0] sm:$0xff]
        %v1043 = vld [vmem:[%s2 + $0x2a8] sm:$0xff]
        %v1044 = vld [vmem:[%s2 + $0x2b0] sm:$0xff]
        %v1045 = vld [vmem:[%s2 + $0x2b8] sm:$0xff]
        %v1046 = vld [vmem:[%s2 + $0x2c0] sm:$0xff]
        %v1047 = vld [vmem:[%s2 + $0x2c8] sm:$0xff]
        %v1048 = vld [vmem:[%s2 + $0x2d0] sm:$0xff]
        %v1049 = vld [vmem:[%s2 + $0x2d8] sm:$0xff]
        %v1050 = vld [vmem:[%s2 + $0x2e0] sm:$0xff]
        %v1051 = vld [vmem:[%s2 + $0x2e8] sm:$0xff]
        %v1052 = vld [vmem:[%s2 + $0x2f0] sm:$0xff]
        %v1053 = vld [vmem:[%s2 + $0x2f8] sm:$0xff]
        %v1054 = vld [vmem:[%s2 + $0x300] sm:$0xff]
        %v1055 = vld [vmem:[%s2 + $0x308] sm:$0xff]
        %v1056 = vld [vmem:[%s2 + $0x310] sm:$0xff]
        %v1057 = vld [vmem:[%s2 + $0x318] sm:$0xff]
        %v1058 = vld [vmem:[%s2 + $0x320] sm:$0xff]
        %v1059 = vld [vmem:[%s2 + $0x328] sm:$0xff]
        %v1060 = vld [vmem:[%s2 + $0x330] sm:$0xff]
        %v1061 = vld [vmem:[%s2 + $0x338] sm:$0xff]
        %v1062 = vld [vmem:[%s2 + $0x340] sm:$0xff]
        %v1063 = vld [vmem:[%s2 + $0x348] sm:$0xff]
        %v1064 = vld [vmem:[%s2 + $0x350] sm:$0xff]
        %v1065 = vld [vmem:[%s2 + $0x358] sm:$0xff]
        %v1066 = vld [vmem:[%s2 + $0x360] sm:$0xff]
        %v1067 = vld [vmem:[%s2 + $0x368] sm:$0xff]
        %v1068 = vld [vmem:[%s2 + $0x370] sm:$0xff]
        %v1069 = vld [vmem:[%s2 + $0x378] sm:$0xff]
        %v1070 = vld [vmem:[%s2 + $0x380] sm:$0xff]
        %v1071 = vld [vmem:[%s2 + $0x388] sm:$0xff]
        %v1072 = vld [vmem:[%s2 + $0x390] sm:$0xff]
        %v1073 = vld [vmem:[%s2 + $0x398] sm:$0xff]
        %v1074 = vld [vmem:[%s2 + $0x3a0] sm:$0xff]
        %v1075 = vld [vmem:[%s2 + $0x3a8] sm:$0xff]
        %v1076 = vld [vmem:[%s2 + $0x3b0] sm:$0xff]
        %v1077 = vld [vmem:[%s2 + $0x3b8] sm:$0xff]
        %v1078 = vld [vmem:[%s2 + $0x3c0] sm:$0xff]
        %v1079 = vld [vmem:[%s2 + $0x3c8] sm:$0xff]
        %v1080 = vld [vmem:[%s2 + $0x3d0] sm:$0xff]
        %v1081 = vld [vmem:[%s2 + $0x3d8] sm:$0xff]
        %v1082 = vld [vmem:[%s2 + $0x3e0] sm:$0xff]
        %v1083 = vld [vmem:[%s2 + $0x3e8] sm:$0xff]
        %v1084 = vld [vmem:[%s2 + $0x3f0] sm:$0xff]
        %v1085 = vld [vmem:[%s2 + $0x3f8] sm:$0xff]
        %1086 = vmatprep.subr.mxu0 %v1019
        %1087 = vmatpush1.msra.mxu0 %v1018
        %1088 = vmatprep.subr.mxu0 %v1015
        %1089 = vmatpush1.msra.mxu0 %v1014
        %1090 = vmatprep.subr.mxu0 %v1011
        %1091 = vmatpush1.msra.mxu0 %v1010
        %1092 = vmatprep.subr.mxu0 %v1007
        %1093 = vmatpush1.msra.mxu0 %v1006
        %1094 = vmatprep.subr.mxu0 %v1003
        %1095 = vmatpush1.msra.mxu0 %v1002
        %1096 = vmatprep.subr.mxu0 %v999
        %1097 = vmatpush1.msra.mxu0 %v998
        %1098 = vmatprep.subr.mxu0 %v995
        %1099 = vmatpush1.msra.mxu0 %v994
        %1100 = vmatprep.subr.mxu0 %v991
        %1101 = vmatpush1.msra.mxu0 %v990
        %1102 = vmatprep.subr.mxu0 %v987
        %1103 = vmatpush1.msra.mxu0 %v986
        %1104 = vmatprep.subr.mxu0 %v983
        %1105 = vmatpush1.msra.mxu0 %v982
        %1106 = vmatprep.subr.mxu0 %v979
        %1107 = vmatpush1.msra.mxu0 %v978
        %1108 = vmatprep.subr.mxu0 %v975
        %1109 = vmatpush1.msra.mxu0 %v974
        %1110 = vmatprep.subr.mxu0 %v971
        %1111 = vmatpush1.msra.mxu0 %v970
        %1112 = vmatprep.subr.mxu0 %v967
        %1113 = vmatpush1.msra.mxu0 %v966
        %1114 = vmatprep.subr.mxu0 %v963
        %1115 = vmatpush1.msra.mxu0 %v962
        %1116 = vmatprep.subr.mxu0 %v959
        %1117 = vmatpush1.msra.mxu0 %v958
        %1118 = vmatprep.subr.mxu0 %v1083
        %1119 = vmatpush2.msra.mxu0 %v1082
        %1120 = vmatprep.subr.mxu0 %v1079
        %1121 = vmatpush2.msra.mxu0 %v1078
        %1122 = vmatprep.subr.mxu0 %v1075
        %1123 = vmatpush2.msra.mxu0 %v1074
        %1124 = vmatprep.subr.mxu0 %v1071
        %1125 = vmatpush2.msra.mxu0 %v1070
        %1126 = vmatprep.subr.mxu0 %v1067
        %1127 = vmatpush2.msra.mxu0 %v1066
        %1128 = vmatprep.subr.mxu0 %v1063
        %1129 = vmatpush2.msra.mxu0 %v1062
        %1130 = vmatprep.subr.mxu0 %v1059
        %1131 = vmatpush2.msra.mxu0 %v1058
        %1132 = vmatprep.subr.mxu0 %v1055
        %1133 = vmatpush2.msra.mxu0 %v1054
        %1134 = vmatprep.subr.mxu0 %v1051
        %1135 = vmatpush2.msra.mxu0 %v1050
        %1136 = vmatprep.subr.mxu0 %v1047
        %1137 = vmatpush2.msra.mxu0 %v1046
        %1138 = vmatprep.subr.mxu0 %v1043
        %1139 = vmatpush2.msra.mxu0 %v1042
        %1140 = vmatprep.subr.mxu0 %v1039
        %1141 = vmatpush2.msra.mxu0 %v1038
        %1142 = vmatprep.subr.mxu0 %v1035
        %1143 = vmatpush2.msra.mxu0 %v1034
        %1144 = vmatprep.subr.mxu0 %v1031
        %1145 = vmatpush2.msra.mxu0 %v1030
        %1146 = vmatprep.subr.mxu0 %v1027
        %1147 = vmatpush2.msra.mxu0 %v1026
        %1148 = vmatprep.subr.mxu0 %v1023
        %1149 = vmatpush2.msra.mxu0 %v1022
        %1150 = vmatprep.mubr.f32.mxu0 %v541
        %1151 = vmatmul.mubr.f32.gmra.mxu0 %v540
        %v1152 = vpop.f32.mrf.mxu0
        %v1153 = vadd.f32 0.0, %v1152
        %v1154 = vpop.f32.mrf.mxu0
        %v1155 = vadd.f32 0.0, %v1154
        %1156 = vmatprep.mubr.f32.mxu0 %v543
        %1157 = vmatmul.mubr.f32.gmra.mxu0 %v542
        %v1158 = vpop.f32.mrf.mxu0
        %v1159 = vadd.f32 0.0, %v1158
        %v1160 = vpop.f32.mrf.mxu0
        %v1161 = vadd.f32 0.0, %v1160
        %1162 = vmatprep.mubr.f32.mxu0 %v545
        %1163 = vmatmul.mubr.f32.gmra.mxu0 %v544
        %v1164 = vpop.f32.mrf.mxu0
        %v1165 = vadd.f32 0.0, %v1164
        %v1166 = vpop.f32.mrf.mxu0
        %v1167 = vadd.f32 0.0, %v1166
        %1168 = vmatprep.mubr.f32.mxu0 %v547
        %1169 = vmatmul.mubr.f32.gmra.mxu0 %v546
        %v1170 = vpop.f32.mrf.mxu0
        %v1171 = vadd.f32 0.0, %v1170
        %v1172 = vpop.f32.mrf.mxu0
        %v1173 = vadd.f32 0.0, %v1172
        %1174 = vdwg.mxu0
        %1175 = vmatprep.subr.mxu0 %v1021
        %1176 = vmatpush1.msra.mxu0 %v1020
        %1177 = vmatprep.subr.mxu0 %v1017
        %1178 = vmatpush1.msra.mxu0 %v1016
        %1179 = vmatprep.subr.mxu0 %v1013
        %1180 = vmatpush1.msra.mxu0 %v1012
        %1181 = vmatprep.subr.mxu0 %v1009
        %1182 = vmatpush1.msra.mxu0 %v1008
        %1183 = vmatprep.subr.mxu0 %v1005
        %1184 = vmatpush1.msra.mxu0 %v1004
        %1185 = vmatprep.subr.mxu0 %v1001
        %1186 = vmatpush1.msra.mxu0 %v1000
        %1187 = vmatprep.subr.mxu0 %v997
        %1188 = vmatpush1.msra.mxu0 %v996
        %1189 = vmatprep.subr.mxu0 %v993
        %1190 = vmatpush1.msra.mxu0 %v992
        %1191 = vmatprep.subr.mxu0 %v989
        %1192 = vmatpush1.msra.mxu0 %v988
        %1193 = vmatprep.subr.mxu0 %v985
        %1194 = vmatpush1.msra.mxu0 %v984
        %1195 = vmatprep.subr.mxu0 %v981
        %1196 = vmatpush1.msra.mxu0 %v980
        %1197 = vmatprep.subr.mxu0 %v977
        %1198 = vmatpush1.msra.mxu0 %v976
        %1199 = vmatprep.subr.mxu0 %v973
        %1200 = vmatpush1.msra.mxu0 %v972
        %1201 = vmatprep.subr.mxu0 %v969
        %1202 = vmatpush1.msra.mxu0 %v968
        %1203 = vmatprep.subr.mxu0 %v965
        %1204 = vmatpush1.msra.mxu0 %v964
        %1205 = vmatprep.subr.mxu0 %v961
        %1206 = vmatpush1.msra.mxu0 %v960
        %1207 = vmatprep.subr.mxu0 %v1085
        %1208 = vmatpush2.msra.mxu0 %v1084
        %1209 = vmatprep.subr.mxu0 %v1081
        %1210 = vmatpush2.msra.mxu0 %v1080
        %1211 = vmatprep.subr.mxu0 %v1077
        %1212 = vmatpush2.msra.mxu0 %v1076
        %1213 = vmatprep.subr.mxu0 %v1073
        %1214 = vmatpush2.msra.mxu0 %v1072
        %1215 = vmatprep.subr.mxu0 %v1069
        %1216 = vmatpush2.msra.mxu0 %v1068
        %1217 = vmatprep.subr.mxu0 %v1065
        %1218 = vmatpush2.msra.mxu0 %v1064
        %1219 = vmatprep.subr.mxu0 %v1061
        %1220 = vmatpush2.msra.mxu0 %v1060
        %1221 = vmatprep.subr.mxu0 %v1057
        %1222 = vmatpush2.msra.mxu0 %v1056
        %1223 = vmatprep.subr.mxu0 %v1053
        %1224 = vmatpush2.msra.mxu0 %v1052
        %1225 = vmatprep.subr.mxu0 %v1049
        %1226 = vmatpush2.msra.mxu0 %v1048
        %1227 = vmatprep.subr.mxu0 %v1045
        %1228 = vmatpush2.msra.mxu0 %v1044
        %1229 = vmatprep.subr.mxu0 %v1041
        %1230 = vmatpush2.msra.mxu0 %v1040
        %1231 = vmatprep.subr.mxu0 %v1037
        %1232 = vmatpush2.msra.mxu0 %v1036
        %1233 = vmatprep.subr.mxu0 %v1033
        %1234 = vmatpush2.msra.mxu0 %v1032
        %1235 = vmatprep.subr.mxu0 %v1029
        %1236 = vmatpush2.msra.mxu0 %v1028
        %1237 = vmatprep.subr.mxu0 %v1025
        %1238 = vmatpush2.msra.mxu0 %v1024
        %1239 = vmatprep.mubr.f32.mxu0 %v541
        %1240 = vmatmul.mubr.f32.gmra.mxu0 %v540
        %v1241 = vpop.f32.mrf.mxu0
        %v1242 = vadd.f32 0.0, %v1241
        %v1243 = vpop.f32.mrf.mxu0
        %v1244 = vadd.f32 0.0, %v1243
        %1245 = vmatprep.mubr.f32.mxu0 %v543
        %1246 = vmatmul.mubr.f32.gmra.mxu0 %v542
        %v1247 = vpop.f32.mrf.mxu0
        %v1248 = vadd.f32 0.0, %v1247
        %v1249 = vpop.f32.mrf.mxu0
        %v1250 = vadd.f32 0.0, %v1249
        %1251 = vmatprep.mubr.f32.mxu0 %v545
        %1252 = vmatmul.mubr.f32.gmra.mxu0 %v544
        %v1253 = vpop.f32.mrf.mxu0
        %v1254 = vadd.f32 0.0, %v1253
        %v1255 = vpop.f32.mrf.mxu0
        %v1256 = vadd.f32 0.0, %v1255
        %1257 = vmatprep.mubr.f32.mxu0 %v547
        %1258 = vmatmul.mubr.f32.gmra.mxu0 %v546
        %v1259 = vpop.f32.mrf.mxu0
        %v1260 = vadd.f32 0.0, %v1259
        %v1261 = vpop.f32.mrf.mxu0
        %v1262 = vadd.f32 0.0, %v1261
        %1263 = vdwg.mxu0
        %1264 = vmatprep.subr.mxu0 %v1019
        %1265 = vmatpush1.msra.mxu0 %v1018
        %1266 = vmatprep.subr.mxu0 %v1015
        %1267 = vmatpush1.msra.mxu0 %v1014
        %1268 = vmatprep.subr.mxu0 %v1011
        %1269 = vmatpush1.msra.mxu0 %v1010
        %1270 = vmatprep.subr.mxu0 %v1007
        %1271 = vmatpush1.msra.mxu0 %v1006
        %1272 = vmatprep.subr.mxu0 %v1003
        %1273 = vmatpush1.msra.mxu0 %v1002
        %1274 = vmatprep.subr.mxu0 %v999
        %1275 = vmatpush1.msra.mxu0 %v998
        %1276 = vmatprep.subr.mxu0 %v995
        %1277 = vmatpush1.msra.mxu0 %v994
        %1278 = vmatprep.subr.mxu0 %v991
        %1279 = vmatpush1.msra.mxu0 %v990
        %1280 = vmatprep.subr.mxu0 %v987
        %1281 = vmatpush1.msra.mxu0 %v986
        %1282 = vmatprep.subr.mxu0 %v983
        %1283 = vmatpush1.msra.mxu0 %v982
        %1284 = vmatprep.subr.mxu0 %v979
        %1285 = vmatpush1.msra.mxu0 %v978
        %1286 = vmatprep.subr.mxu0 %v975
        %1287 = vmatpush1.msra.mxu0 %v974
        %1288 = vmatprep.subr.mxu0 %v971
        %1289 = vmatpush1.msra.mxu0 %v970
        %1290 = vmatprep.subr.mxu0 %v967
        %1291 = vmatpush1.msra.mxu0 %v966
        %1292 = vmatprep.subr.mxu0 %v963
        %1293 = vmatpush1.msra.mxu0 %v962
        %1294 = vmatprep.subr.mxu0 %v959
        %1295 = vmatpush1.msra.mxu0 %v958
        %1296 = vmatprep.subr.mxu0 %v1083
        %1297 = vmatpush2.msra.mxu0 %v1082
        %1298 = vmatprep.subr.mxu0 %v1079
        %1299 = vmatpush2.msra.mxu0 %v1078
        %1300 = vmatprep.subr.mxu0 %v1075
        %1301 = vmatpush2.msra.mxu0 %v1074
        %1302 = vmatprep.subr.mxu0 %v1071
        %1303 = vmatpush2.msra.mxu0 %v1070
        %1304 = vmatprep.subr.mxu0 %v1067
        %1305 = vmatpush2.msra.mxu0 %v1066
        %1306 = vmatprep.subr.mxu0 %v1063
        %1307 = vmatpush2.msra.mxu0 %v1062
        %1308 = vmatprep.subr.mxu0 %v1059
        %1309 = vmatpush2.msra.mxu0 %v1058
        %1310 = vmatprep.subr.mxu0 %v1055
        %1311 = vmatpush2.msra.mxu0 %v1054
        %1312 = vmatprep.subr.mxu0 %v1051
        %1313 = vmatpush2.msra.mxu0 %v1050
        %1314 = vmatprep.subr.mxu0 %v1047
        %1315 = vmatpush2.msra.mxu0 %v1046
        %1316 = vmatprep.subr.mxu0 %v1043
        %1317 = vmatpush2.msra.mxu0 %v1042
        %1318 = vmatprep.subr.mxu0 %v1039
        %1319 = vmatpush2.msra.mxu0 %v1038
        %1320 = vmatprep.subr.mxu0 %v1035
        %1321 = vmatpush2.msra.mxu0 %v1034
        %1322 = vmatprep.subr.mxu0 %v1031
        %1323 = vmatpush2.msra.mxu0 %v1030
        %1324 = vmatprep.subr.mxu0 %v1027
        %1325 = vmatpush2.msra.mxu0 %v1026
        %1326 = vmatprep.subr.mxu0 %v1023
        %1327 = vmatpush2.msra.mxu0 %v1022
        %1328 = vmatprep.mubr.f32.mxu0 %v956
        %1329 = vmatmul.mubr.f32.gmra.mxu0 %v954
        %v1330 = vpop.f32.mrf.mxu0
        %v1331 = vadd.f32 0.0, %v1330
        %v1332 = vpop.f32.mrf.mxu0
        %v1333 = vadd.f32 0.0, %v1332
        %1334 = vdwg.mxu0
        %1335 = vmatprep.subr.mxu0 %v1021
        %1336 = vmatpush1.msra.mxu0 %v1020
        %1337 = vmatprep.subr.mxu0 %v1017
        %1338 = vmatpush1.msra.mxu0 %v1016
        %1339 = vmatprep.subr.mxu0 %v1013
        %1340 = vmatpush1.msra.mxu0 %v1012
        %1341 = vmatprep.subr.mxu0 %v1009
        %1342 = vmatpush1.msra.mxu0 %v1008
        %1343 = vmatprep.subr.mxu0 %v1005
        %1344 = vmatpush1.msra.mxu0 %v1004
        %1345 = vmatprep.subr.mxu0 %v1001
        %1346 = vmatpush1.msra.mxu0 %v1000
        %1347 = vmatprep.subr.mxu0 %v997
        %1348 = vmatpush1.msra.mxu0 %v996
        %1349 = vmatprep.subr.mxu0 %v993
        %1350 = vmatpush1.msra.mxu0 %v992
        %1351 = vmatprep.subr.mxu0 %v989
        %1352 = vmatpush1.msra.mxu0 %v988
        %1353 = vmatprep.subr.mxu0 %v985
        %1354 = vmatpush1.msra.mxu0 %v984
        %1355 = vmatprep.subr.mxu0 %v981
        %1356 = vmatpush1.msra.mxu0 %v980
        %1357 = vmatprep.subr.mxu0 %v977
        %1358 = vmatpush1.msra.mxu0 %v976
        %1359 = vmatprep.subr.mxu0 %v973
        %1360 = vmatpush1.msra.mxu0 %v972
        %1361 = vmatprep.subr.mxu0 %v969
        %1362 = vmatpush1.msra.mxu0 %v968
        %1363 = vmatprep.subr.mxu0 %v965
        %1364 = vmatpush1.msra.mxu0 %v964
        %1365 = vmatprep.subr.mxu0 %v961
        %1366 = vmatpush1.msra.mxu0 %v960
        %1367 = vmatprep.subr.mxu0 %v1085
        %1368 = vmatpush2.msra.mxu0 %v1084
        %1369 = vmatprep.subr.mxu0 %v1081
        %1370 = vmatpush2.msra.mxu0 %v1080
        %1371 = vmatprep.subr.mxu0 %v1077
        %1372 = vmatpush2.msra.mxu0 %v1076
        %1373 = vmatprep.subr.mxu0 %v1073
        %1374 = vmatpush2.msra.mxu0 %v1072
        %1375 = vmatprep.subr.mxu0 %v1069
        %1376 = vmatpush2.msra.mxu0 %v1068
        %1377 = vmatprep.subr.mxu0 %v1065
        %1378 = vmatpush2.msra.mxu0 %v1064
        %1379 = vmatprep.subr.mxu0 %v1061
        %1380 = vmatpush2.msra.mxu0 %v1060
        %1381 = vmatprep.subr.mxu0 %v1057
        %1382 = vmatpush2.msra.mxu0 %v1056
        %1383 = vmatprep.subr.mxu0 %v1053
        %1384 = vmatpush2.msra.mxu0 %v1052
        %1385 = vmatprep.subr.mxu0 %v1049
        %1386 = vmatpush2.msra.mxu0 %v1048
        %1387 = vmatprep.subr.mxu0 %v1045
        %1388 = vmatpush2.msra.mxu0 %v1044
        %1389 = vmatprep.subr.mxu0 %v1041
        %1390 = vmatpush2.msra.mxu0 %v1040
        %1391 = vmatprep.subr.mxu0 %v1037
        %1392 = vmatpush2.msra.mxu0 %v1036
        %1393 = vmatprep.subr.mxu0 %v1033
        %1394 = vmatpush2.msra.mxu0 %v1032
        %1395 = vmatprep.subr.mxu0 %v1029
        %1396 = vmatpush2.msra.mxu0 %v1028
        %1397 = vmatprep.subr.mxu0 %v1025
        %1398 = vmatpush2.msra.mxu0 %v1024
        %1399 = vmatprep.mubr.f32.mxu0 %v956
        %1400 = vmatmul.mubr.f32.gmra.mxu0 %v954
        %v1401 = vpop.f32.mrf.mxu0
        %v1402 = vadd.f32 0.0, %v1401
        %v1403 = vpop.f32.mrf.mxu0
        %v1404 = vadd.f32 0.0, %v1403
        %1405 = vdwg.mxu0
        %v1406 = vlaneseq
        %v1407 = vshrl.u32 %v1406, 7
        %v1408 = vsub.s32 0, %v1407
        %v1409 = vrot.slane %v1331, %v1408
        %v1410 = vlaneseq
        %v1411 = vshrl.u32 %v1410, 7
        %v1412 = vsub.s32 0, %v1411
        %v1413 = vrot.slane %v1333, %v1412
        %v1414 = vlaneseq
        %v1415 = vshrl.u32 %v1414, 7
        %v1416 = vsub.s32 0, %v1415
        %v1417 = vrot.slane %v1402, %v1416
        %v1418 = vlaneseq
        %v1419 = vshrl.u32 %v1418, 7
        %v1420 = vsub.s32 0, %v1419
        %v1421 = vrot.slane %v1404, %v1420
        %v1422 = vlaneseq
        %v1423 = vshrl.u32 %v1422, 7
        %v1424 = vsub.s32 1, %v1423
        %v1425 = vrot.slane %v1331, %v1424
        %v1426 = vlaneseq
        %v1427 = vshrl.u32 %v1426, 7
        %v1428 = vsub.s32 1, %v1427
        %v1429 = vrot.slane %v1333, %v1428
        %v1430 = vlaneseq
        %v1431 = vshrl.u32 %v1430, 7
        %v1432 = vsub.s32 1, %v1431
        %v1433 = vrot.slane %v1402, %v1432
        %v1434 = vlaneseq
        %v1435 = vshrl.u32 %v1434, 7
        %v1436 = vsub.s32 1, %v1435
        %v1437 = vrot.slane %v1404, %v1436
        %v1438 = vld [vmem:[%s6] sm:$0xff]
        %v1439 = vld [vmem:[%s6 + $0x8] sm:$0xff]
        %v1440 = vld [vmem:[%s6 + $0x10] sm:$0xff]
        %v1441 = vld [vmem:[%s6 + $0x18] sm:$0xff]
        %v1442 = vld [vmem:[%s6 + $0x20] sm:$0xff]
        %v1443 = vld [vmem:[%s6 + $0x28] sm:$0xff]
        %v1444 = vld [vmem:[%s6 + $0x30] sm:$0xff]
        %v1445 = vld [vmem:[%s6 + $0x38] sm:$0xff]
        %1447 = vset.pattern.permute.xlu0 0
        %1448 = vperm.xlu0 %1447, %v1438
        %v1449 = vpop.permute.xlu0 %1448
        %1452 = vset.pattern.permute.xlu0 0
        %1453 = vperm.xlu0 %1452, %v1439
        %v1454 = vpop.permute.xlu0 %1453
        %1457 = vset.pattern.permute.xlu0 0
        %1458 = vperm.xlu0 %1457, %v1440
        %v1459 = vpop.permute.xlu0 %1458
        %1462 = vset.pattern.permute.xlu0 0
        %1463 = vperm.xlu0 %1462, %v1441
        %v1464 = vpop.permute.xlu0 %1463
        %1467 = vset.pattern.permute.xlu0 0
        %1468 = vperm.xlu0 %1467, %v1442
        %v1469 = vpop.permute.xlu0 %1468
        %1472 = vset.pattern.permute.xlu0 0
        %1473 = vperm.xlu0 %1472, %v1443
        %v1474 = vpop.permute.xlu0 %1473
        %1477 = vset.pattern.permute.xlu0 0
        %1478 = vperm.xlu0 %1477, %v1444
        %v1479 = vpop.permute.xlu0 %1478
        %1482 = vset.pattern.permute.xlu0 0
        %1483 = vperm.xlu0 %1482, %v1445
        %v1484 = vpop.permute.xlu0 %1483
        %v1486 = vmul.f32 %v1449, %v1153
        %v1487 = vmul.f32 %v1449, %v1155
        %v1488 = vmul.f32 %v1449, %v1242
        %v1489 = vmul.f32 %v1454, %v1159
        %v1490 = vmul.f32 %v1454, %v1161
        %v1491 = vmul.f32 %v1454, %v1248
        %v1492 = vmul.f32 %v1459, %v1165
        %v1493 = vmul.f32 %v1459, %v1167
        %v1494 = vmul.f32 %v1459, %v1254
        %v1495 = vmul.f32 %v1464, %v1171
        %v1496 = vmul.f32 %v1464, %v1173
        %v1497 = vmul.f32 %v1464, %v1260
        %v1498 = vmul.f32 %v1469, %v1409
        %v1499 = vmul.f32 %v1469, %v1413
        %v1500 = vmul.f32 %v1469, %v1417
        %v1501 = vmul.f32 %v1474, %v1409
        %v1502 = vmul.f32 %v1474, %v1413
        %v1503 = vmul.f32 %v1474, %v1417
        %v1504 = vmul.f32 %v1479, %v1425
        %v1505 = vmul.f32 %v1479, %v1429
        %v1506 = vmul.f32 %v1479, %v1433
        %v1507 = vmul.f32 %v1484, %v1425
        %v1508 = vmul.f32 %v1484, %v1429
        %v1509 = vmul.f32 %v1484, %v1433
        %v1510 = vadd.f32 %v1486, 0.0
        %v1511 = vadd.f32 %v1487, 0.0
        %v1512 = vadd.f32 %v1488, 0.0
        %v1513 = vadd.f32 %v1489, 0.0
        %v1514 = vadd.f32 %v1490, 0.0
        %v1515 = vadd.f32 %v1491, 0.0
        %v1516 = vadd.f32 %v1492, 0.0
        %v1517 = vadd.f32 %v1493, 0.0
        %v1518 = vadd.f32 %v1494, 0.0
        %v1519 = vadd.f32 %v1495, 0.0
        %v1520 = vadd.f32 %v1496, 0.0
        %v1521 = vadd.f32 %v1497, 0.0
        %v1522 = vadd.f32 %v1498, 0.0
        %v1523 = vadd.f32 %v1499, 0.0
        %v1524 = vadd.f32 %v1500, 0.0
        %v1525 = vadd.f32 %v1501, 0.0
        %v1526 = vadd.f32 %v1502, 0.0
        %v1527 = vadd.f32 %v1503, 0.0
        %v1528 = vadd.f32 %v1504, 0.0
        %v1529 = vadd.f32 %v1505, 0.0
        %v1530 = vadd.f32 %v1506, 0.0
        %v1531 = vadd.f32 %v1507, 0.0
        %v1532 = vadd.f32 %v1508, 0.0
        %v1533 = vadd.f32 %v1509, 0.0
        %1534 = vset.pattern.permute.xlu0 1
        %1535 = vperm.xlu0 %1534, %v1438
        %v1536 = vpop.permute.xlu0 %1535
        %1538 = vset.pattern.permute.xlu0 1
        %1539 = vperm.xlu0 %1538, %v1439
        %v1540 = vpop.permute.xlu0 %1539
        %1542 = vset.pattern.permute.xlu0 1
        %1543 = vperm.xlu0 %1542, %v1440
        %v1544 = vpop.permute.xlu0 %1543
        %1546 = vset.pattern.permute.xlu0 1
        %1547 = vperm.xlu0 %1546, %v1441
        %v1548 = vpop.permute.xlu0 %1547
        %1550 = vset.pattern.permute.xlu0 1
        %1551 = vperm.xlu0 %1550, %v1442
        %v1552 = vpop.permute.xlu0 %1551
        %1554 = vset.pattern.permute.xlu0 1
        %1555 = vperm.xlu0 %1554, %v1443
        %v1556 = vpop.permute.xlu0 %1555
        %1558 = vset.pattern.permute.xlu0 1
        %1559 = vperm.xlu0 %1558, %v1444
        %v1560 = vpop.permute.xlu0 %1559
        %1562 = vset.pattern.permute.xlu0 1
        %1563 = vperm.xlu0 %1562, %v1445
        %v1564 = vpop.permute.xlu0 %1563
        %v1566 = vmul.f32 %v1536, %v1153
        %v1567 = vmul.f32 %v1536, %v1155
        %v1568 = vmul.f32 %v1536, %v1242
        %v1569 = vmul.f32 %v1540, %v1159
        %v1570 = vmul.f32 %v1540, %v1161
        %v1571 = vmul.f32 %v1540, %v1248
        %v1572 = vmul.f32 %v1544, %v1165
        %v1573 = vmul.f32 %v1544, %v1167
        %v1574 = vmul.f32 %v1544, %v1254
        %v1575 = vmul.f32 %v1548, %v1171
        %v1576 = vmul.f32 %v1548, %v1173
        %v1577 = vmul.f32 %v1548, %v1260
        %v1578 = vmul.f32 %v1552, %v1409
        %v1579 = vmul.f32 %v1552, %v1413
        %v1580 = vmul.f32 %v1552, %v1417
        %v1581 = vmul.f32 %v1556, %v1409
        %v1582 = vmul.f32 %v1556, %v1413
        %v1583 = vmul.f32 %v1556, %v1417
        %v1584 = vmul.f32 %v1560, %v1425
        %v1585 = vmul.f32 %v1560, %v1429
        %v1586 = vmul.f32 %v1560, %v1433
        %v1587 = vmul.f32 %v1564, %v1425
        %v1588 = vmul.f32 %v1564, %v1429
        %v1589 = vmul.f32 %v1564, %v1433
        %1614 = vrot.lane.b32.xlu0 %v1566, 127
        %v1615 = vpop.permute.xlu0 %1614
        %1616 = vrot.lane.b32.xlu0 %v1567, 127
        %v1617 = vpop.permute.xlu0 %1616
        %1618 = vrot.lane.b32.xlu0 %v1568, 127
        %v1619 = vpop.permute.xlu0 %1618
        %1620 = vrot.lane.b32.xlu0 %v1569, 127
        %v1621 = vpop.permute.xlu0 %1620
        %1622 = vrot.lane.b32.xlu0 %v1570, 127
        %v1623 = vpop.permute.xlu0 %1622
        %1624 = vrot.lane.b32.xlu0 %v1571, 127
        %v1625 = vpop.permute.xlu0 %1624
        %1626 = vrot.lane.b32.xlu0 %v1572, 127
        %v1627 = vpop.permute.xlu0 %1626
        %1628 = vrot.lane.b32.xlu0 %v1573, 127
        %v1629 = vpop.permute.xlu0 %1628
        %1630 = vrot.lane.b32.xlu0 %v1574, 127
        %v1631 = vpop.permute.xlu0 %1630
        %1632 = vrot.lane.b32.xlu0 %v1575, 127
        %v1633 = vpop.permute.xlu0 %1632
        %1634 = vrot.lane.b32.xlu0 %v1576, 127
        %v1635 = vpop.permute.xlu0 %1634
        %1636 = vrot.lane.b32.xlu0 %v1577, 127
        %v1637 = vpop.permute.xlu0 %1636
        %1638 = vrot.lane.b32.xlu0 %v1578, 127
        %v1639 = vpop.permute.xlu0 %1638
        %1640 = vrot.lane.b32.xlu0 %v1579, 127
        %v1641 = vpop.permute.xlu0 %1640
        %1642 = vrot.lane.b32.xlu0 %v1580, 127
        %v1643 = vpop.permute.xlu0 %1642
        %1644 = vrot.lane.b32.xlu0 %v1581, 127
        %v1645 = vpop.permute.xlu0 %1644
        %1646 = vrot.lane.b32.xlu0 %v1582, 127
        %v1647 = vpop.permute.xlu0 %1646
        %1648 = vrot.lane.b32.xlu0 %v1583, 127
        %v1649 = vpop.permute.xlu0 %1648
        %1650 = vrot.lane.b32.xlu0 %v1584, 127
        %v1651 = vpop.permute.xlu0 %1650
        %1652 = vrot.lane.b32.xlu0 %v1585, 127
        %v1653 = vpop.permute.xlu0 %1652
        %1654 = vrot.lane.b32.xlu0 %v1586, 127
        %v1655 = vpop.permute.xlu0 %1654
        %1656 = vrot.lane.b32.xlu0 %v1587, 127
        %v1657 = vpop.permute.xlu0 %1656
        %1658 = vrot.lane.b32.xlu0 %v1588, 127
        %v1659 = vpop.permute.xlu0 %1658
        %1660 = vrot.lane.b32.xlu0 %v1589, 127
        %v1661 = vpop.permute.xlu0 %1660
        %vm1662 = vcmask 1039360
        %v1663 = vsel %vm1662, %v1615, %v1617
        %v1664 = vsel %vm1662, %v1617, %v1619
        %v1665 = vsel %vm1662, %v1621, %v1623
        %v1666 = vsel %vm1662, %v1623, %v1625
        %v1667 = vsel %vm1662, %v1627, %v1629
        %v1668 = vsel %vm1662, %v1629, %v1631
        %v1669 = vsel %vm1662, %v1633, %v1635
        %v1670 = vsel %vm1662, %v1635, %v1637
        %v1671 = vsel %vm1662, %v1639, %v1641
        %v1672 = vsel %vm1662, %v1641, %v1643
        %v1673 = vsel %vm1662, %v1645, %v1647
        %v1674 = vsel %vm1662, %v1647, %v1649
        %v1675 = vsel %vm1662, %v1651, %v1653
        %v1676 = vsel %vm1662, %v1653, %v1655
        %v1677 = vsel %vm1662, %v1657, %v1659
        %v1678 = vsel %vm1662, %v1659, %v1661
        %v1703 = vadd.f32 %v1510, %v1663
        %v1704 = vadd.f32 %v1511, %v1664
        %v1705 = vadd.f32 %v1512, %v1619
        %v1706 = vadd.f32 %v1513, %v1665
        %v1707 = vadd.f32 %v1514, %v1666
        %v1708 = vadd.f32 %v1515, %v1625
        %v1709 = vadd.f32 %v1516, %v1667
        %v1710 = vadd.f32 %v1517, %v1668
        %v1711 = vadd.f32 %v1518, %v1631
        %v1712 = vadd.f32 %v1519, %v1669
        %v1713 = vadd.f32 %v1520, %v1670
        %v1714 = vadd.f32 %v1521, %v1637
        %v1715 = vadd.f32 %v1522, %v1671
        %v1716 = vadd.f32 %v1523, %v1672
        %v1717 = vadd.f32 %v1524, %v1643
        %v1718 = vadd.f32 %v1525, %v1673
        %v1719 = vadd.f32 %v1526, %v1674
        %v1720 = vadd.f32 %v1527, %v1649
        %v1721 = vadd.f32 %v1528, %v1675
        %v1722 = vadd.f32 %v1529, %v1676
        %v1723 = vadd.f32 %v1530, %v1655
        %v1724 = vadd.f32 %v1531, %v1677
        %v1725 = vadd.f32 %v1532, %v1678
        %v1726 = vadd.f32 %v1533, %v1661
        %1727 = vset.pattern.permute.xlu0 2
        %1728 = vperm.xlu0 %1727, %v1438
        %v1729 = vpop.permute.xlu0 %1728
        %1731 = vset.pattern.permute.xlu0 2
        %1732 = vperm.xlu0 %1731, %v1439
        %v1733 = vpop.permute.xlu0 %1732
        %1735 = vset.pattern.permute.xlu0 2
        %1736 = vperm.xlu0 %1735, %v1440
        %v1737 = vpop.permute.xlu0 %1736
        %1739 = vset.pattern.permute.xlu0 2
        %1740 = vperm.xlu0 %1739, %v1441
        %v1741 = vpop.permute.xlu0 %1740
        %1743 = vset.pattern.permute.xlu0 2
        %1744 = vperm.xlu0 %1743, %v1442
        %v1745 = vpop.permute.xlu0 %1744
        %1747 = vset.pattern.permute.xlu0 2
        %1748 = vperm.xlu0 %1747, %v1443
        %v1749 = vpop.permute.xlu0 %1748
        %1751 = vset.pattern.permute.xlu0 2
        %1752 = vperm.xlu0 %1751, %v1444
        %v1753 = vpop.permute.xlu0 %1752
        %1755 = vset.pattern.permute.xlu0 2
        %1756 = vperm.xlu0 %1755, %v1445
        %v1757 = vpop.permute.xlu0 %1756
        %v1759 = vmul.f32 %v1729, %v1153
        %v1760 = vmul.f32 %v1729, %v1155
        %v1761 = vmul.f32 %v1729, %v1242
        %v1762 = vmul.f32 %v1733, %v1159
        %v1763 = vmul.f32 %v1733, %v1161
        %v1764 = vmul.f32 %v1733, %v1248
        %v1765 = vmul.f32 %v1737, %v1165
        %v1766 = vmul.f32 %v1737, %v1167
        %v1767 = vmul.f32 %v1737, %v1254
        %v1768 = vmul.f32 %v1741, %v1171
        %v1769 = vmul.f32 %v1741, %v1173
        %v1770 = vmul.f32 %v1741, %v1260
        %v1771 = vmul.f32 %v1745, %v1409
        %v1772 = vmul.f32 %v1745, %v1413
        %v1773 = vmul.f32 %v1745, %v1417
        %v1774 = vmul.f32 %v1749, %v1409
        %v1775 = vmul.f32 %v1749, %v1413
        %v1776 = vmul.f32 %v1749, %v1417
        %v1777 = vmul.f32 %v1753, %v1425
        %v1778 = vmul.f32 %v1753, %v1429
        %v1779 = vmul.f32 %v1753, %v1433
        %v1780 = vmul.f32 %v1757, %v1425
        %v1781 = vmul.f32 %v1757, %v1429
        %v1782 = vmul.f32 %v1757, %v1433
        %1807 = vrot.lane.b32.xlu0 %v1759, 126
        %v1808 = vpop.permute.xlu0 %1807
        %1809 = vrot.lane.b32.xlu0 %v1760, 126
        %v1810 = vpop.permute.xlu0 %1809
        %1811 = vrot.lane.b32.xlu0 %v1761, 126
        %v1812 = vpop.permute.xlu0 %1811
        %1813 = vrot.lane.b32.xlu0 %v1762, 126
        %v1814 = vpop.permute.xlu0 %1813
        %1815 = vrot.lane.b32.xlu0 %v1763, 126
        %v1816 = vpop.permute.xlu0 %1815
        %1817 = vrot.lane.b32.xlu0 %v1764, 126
        %v1818 = vpop.permute.xlu0 %1817
        %1819 = vrot.lane.b32.xlu0 %v1765, 126
        %v1820 = vpop.permute.xlu0 %1819
        %1821 = vrot.lane.b32.xlu0 %v1766, 126
        %v1822 = vpop.permute.xlu0 %1821
        %1823 = vrot.lane.b32.xlu0 %v1767, 126
        %v1824 = vpop.permute.xlu0 %1823
        %1825 = vrot.lane.b32.xlu0 %v1768, 126
        %v1826 = vpop.permute.xlu0 %1825
        %1827 = vrot.lane.b32.xlu0 %v1769, 126
        %v1828 = vpop.permute.xlu0 %1827
        %1829 = vrot.lane.b32.xlu0 %v1770, 126
        %v1830 = vpop.permute.xlu0 %1829
        %1831 = vrot.lane.b32.xlu0 %v1771, 126
        %v1832 = vpop.permute.xlu0 %1831
        %1833 = vrot.lane.b32.xlu0 %v1772, 126
        %v1834 = vpop.permute.xlu0 %1833
        %1835 = vrot.lane.b32.xlu0 %v1773, 126
        %v1836 = vpop.permute.xlu0 %1835
        %1837 = vrot.lane.b32.xlu0 %v1774, 126
        %v1838 = vpop.permute.xlu0 %1837
        %1839 = vrot.lane.b32.xlu0 %v1775, 126
        %v1840 = vpop.permute.xlu0 %1839
        %1841 = vrot.lane.b32.xlu0 %v1776, 126
        %v1842 = vpop.permute.xlu0 %1841
        %1843 = vrot.lane.b32.xlu0 %v1777, 126
        %v1844 = vpop.permute.xlu0 %1843
        %1845 = vrot.lane.b32.xlu0 %v1778, 126
        %v1846 = vpop.permute.xlu0 %1845
        %1847 = vrot.lane.b32.xlu0 %v1779, 126
        %v1848 = vpop.permute.xlu0 %1847
        %1849 = vrot.lane.b32.xlu0 %v1780, 126
        %v1850 = vpop.permute.xlu0 %1849
        %1851 = vrot.lane.b32.xlu0 %v1781, 126
        %v1852 = vpop.permute.xlu0 %1851
        %1853 = vrot.lane.b32.xlu0 %v1782, 126
        %v1854 = vpop.permute.xlu0 %1853
        %vm1855 = vcmask 1031168
        %v1856 = vsel %vm1855, %v1808, %v1810
        %v1857 = vsel %vm1855, %v1810, %v1812
        %v1858 = vsel %vm1855, %v1814, %v1816
        %v1859 = vsel %vm1855, %v1816, %v1818
        %v1860 = vsel %vm1855, %v1820, %v1822
        %v1861 = vsel %vm1855, %v1822, %v1824
        %v1862 = vsel %vm1855, %v1826, %v1828
        %v1863 = vsel %vm1855, %v1828, %v1830
        %v1864 = vsel %vm1855, %v1832, %v1834
        %v1865 = vsel %vm1855, %v1834, %v1836
        %v1866 = vsel %vm1855, %v1838, %v1840
        %v1867 = vsel %vm1855, %v1840, %v1842
        %v1868 = vsel %vm1855, %v1844, %v1846
        %v1869 = vsel %vm1855, %v1846, %v1848
        %v1870 = vsel %vm1855, %v1850, %v1852
        %v1871 = vsel %vm1855, %v1852, %v1854
        %v1896 = vadd.f32 %v1703, %v1856
        %v1897 = vadd.f32 %v1704, %v1857
        %v1898 = vadd.f32 %v1705, %v1812
        %v1899 = vadd.f32 %v1706, %v1858
        %v1900 = vadd.f32 %v1707, %v1859
        %v1901 = vadd.f32 %v1708, %v1818
        %v1902 = vadd.f32 %v1709, %v1860
        %v1903 = vadd.f32 %v1710, %v1861
        %v1904 = vadd.f32 %v1711, %v1824
        %v1905 = vadd.f32 %v1712, %v1862
        %v1906 = vadd.f32 %v1713, %v1863
        %v1907 = vadd.f32 %v1714, %v1830
        %v1908 = vadd.f32 %v1715, %v1864
        %v1909 = vadd.f32 %v1716, %v1865
        %v1910 = vadd.f32 %v1717, %v1836
        %v1911 = vadd.f32 %v1718, %v1866
        %v1912 = vadd.f32 %v1719, %v1867
        %v1913 = vadd.f32 %v1720, %v1842
        %v1914 = vadd.f32 %v1721, %v1868
        %v1915 = vadd.f32 %v1722, %v1869
        %v1916 = vadd.f32 %v1723, %v1848
        %v1917 = vadd.f32 %v1724, %v1870
        %v1918 = vadd.f32 %v1725, %v1871
        %v1919 = vadd.f32 %v1726, %v1854
        %1920 = vset.pattern.permute.xlu0 3
        %1921 = vperm.xlu0 %1920, %v1438
        %v1922 = vpop.permute.xlu0 %1921
        %1924 = vset.pattern.permute.xlu0 3
        %1925 = vperm.xlu0 %1924, %v1439
        %v1926 = vpop.permute.xlu0 %1925
        %1928 = vset.pattern.permute.xlu0 3
        %1929 = vperm.xlu0 %1928, %v1440
        %v1930 = vpop.permute.xlu0 %1929
        %1932 = vset.pattern.permute.xlu0 3
        %1933 = vperm.xlu0 %1932, %v1441
        %v1934 = vpop.permute.xlu0 %1933
        %1936 = vset.pattern.permute.xlu0 3
        %1937 = vperm.xlu0 %1936, %v1442
        %v1938 = vpop.permute.xlu0 %1937
        %1940 = vset.pattern.permute.xlu0 3
        %1941 = vperm.xlu0 %1940, %v1443
        %v1942 = vpop.permute.xlu0 %1941
        %1944 = vset.pattern.permute.xlu0 3
        %1945 = vperm.xlu0 %1944, %v1444
        %v1946 = vpop.permute.xlu0 %1945
        %1948 = vset.pattern.permute.xlu0 3
        %1949 = vperm.xlu0 %1948, %v1445
        %v1950 = vpop.permute.xlu0 %1949
        %v1952 = vmul.f32 %v1922, %v1153
        %v1953 = vmul.f32 %v1922, %v1155
        %v1954 = vmul.f32 %v1922, %v1242
        %v1955 = vmul.f32 %v1926, %v1159
        %v1956 = vmul.f32 %v1926, %v1161
        %v1957 = vmul.f32 %v1926, %v1248
        %v1958 = vmul.f32 %v1930, %v1165
        %v1959 = vmul.f32 %v1930, %v1167
        %v1960 = vmul.f32 %v1930, %v1254
        %v1961 = vmul.f32 %v1934, %v1171
        %v1962 = vmul.f32 %v1934, %v1173
        %v1963 = vmul.f32 %v1934, %v1260
        %v1964 = vmul.f32 %v1938, %v1409
        %v1965 = vmul.f32 %v1938, %v1413
        %v1966 = vmul.f32 %v1938, %v1417
        %v1967 = vmul.f32 %v1942, %v1409
        %v1968 = vmul.f32 %v1942, %v1413
        %v1969 = vmul.f32 %v1942, %v1417
        %v1970 = vmul.f32 %v1946, %v1425
        %v1971 = vmul.f32 %v1946, %v1429
        %v1972 = vmul.f32 %v1946, %v1433
        %v1973 = vmul.f32 %v1950, %v1425
        %v1974 = vmul.f32 %v1950, %v1429
        %v1975 = vmul.f32 %v1950, %v1433
        %2000 = vrot.lane.b32.xlu0 %v1952, 125
        %v2001 = vpop.permute.xlu0 %2000
        %2002 = vrot.lane.b32.xlu0 %v1953, 125
        %v2003 = vpop.permute.xlu0 %2002
        %2004 = vrot.lane.b32.xlu0 %v1954, 125
        %v2005 = vpop.permute.xlu0 %2004
        %2006 = vrot.lane.b32.xlu0 %v1955, 125
        %v2007 = vpop.permute.xlu0 %2006
        %2008 = vrot.lane.b32.xlu0 %v1956, 125
        %v2009 = vpop.permute.xlu0 %2008
        %2010 = vrot.lane.b32.xlu0 %v1957, 125
        %v2011 = vpop.permute.xlu0 %2010
        %2012 = vrot.lane.b32.xlu0 %v1958, 125
        %v2013 = vpop.permute.xlu0 %2012
        %2014 = vrot.lane.b32.xlu0 %v1959, 125
        %v2015 = vpop.permute.xlu0 %2014
        %2016 = vrot.lane.b32.xlu0 %v1960, 125
        %v2017 = vpop.permute.xlu0 %2016
        %2018 = vrot.lane.b32.xlu0 %v1961, 125
        %v2019 = vpop.permute.xlu0 %2018
        %2020 = vrot.lane.b32.xlu0 %v1962, 125
        %v2021 = vpop.permute.xlu0 %2020
        %2022 = vrot.lane.b32.xlu0 %v1963, 125
        %v2023 = vpop.permute.xlu0 %2022
        %2024 = vrot.lane.b32.xlu0 %v1964, 125
        %v2025 = vpop.permute.xlu0 %2024
        %2026 = vrot.lane.b32.xlu0 %v1965, 125
        %v2027 = vpop.permute.xlu0 %2026
        %2028 = vrot.lane.b32.xlu0 %v1966, 125
        %v2029 = vpop.permute.xlu0 %2028
        %2030 = vrot.lane.b32.xlu0 %v1967, 125
        %v2031 = vpop.permute.xlu0 %2030
        %2032 = vrot.lane.b32.xlu0 %v1968, 125
        %v2033 = vpop.permute.xlu0 %2032
        %2034 = vrot.lane.b32.xlu0 %v1969, 125
        %v2035 = vpop.permute.xlu0 %2034
        %2036 = vrot.lane.b32.xlu0 %v1970, 125
        %v2037 = vpop.permute.xlu0 %2036
        %2038 = vrot.lane.b32.xlu0 %v1971, 125
        %v2039 = vpop.permute.xlu0 %2038
        %2040 = vrot.lane.b32.xlu0 %v1972, 125
        %v2041 = vpop.permute.xlu0 %2040
        %2042 = vrot.lane.b32.xlu0 %v1973, 125
        %v2043 = vpop.permute.xlu0 %2042
        %2044 = vrot.lane.b32.xlu0 %v1974, 125
        %v2045 = vpop.permute.xlu0 %2044
        %2046 = vrot.lane.b32.xlu0 %v1975, 125
        %v2047 = vpop.permute.xlu0 %2046
        %vm2048 = vcmask 1022976
        %v2049 = vsel %vm2048, %v2001, %v2003
        %v2050 = vsel %vm2048, %v2003, %v2005
        %v2051 = vsel %vm2048, %v2007, %v2009
        %v2052 = vsel %vm2048, %v2009, %v2011
        %v2053 = vsel %vm2048, %v2013, %v2015
        %v2054 = vsel %vm2048, %v2015, %v2017
        %v2055 = vsel %vm2048, %v2019, %v2021
        %v2056 = vsel %vm2048, %v2021, %v2023
        %v2057 = vsel %vm2048, %v2025, %v2027
        %v2058 = vsel %vm2048, %v2027, %v2029
        %v2059 = vsel %vm2048, %v2031, %v2033
        %v2060 = vsel %vm2048, %v2033, %v2035
        %v2061 = vsel %vm2048, %v2037, %v2039
        %v2062 = vsel %vm2048, %v2039, %v2041
        %v2063 = vsel %vm2048, %v2043, %v2045
        %v2064 = vsel %vm2048, %v2045, %v2047
        %v2089 = vadd.f32 %v1896, %v2049
        %v2090 = vadd.f32 %v1897, %v2050
        %v2091 = vadd.f32 %v1898, %v2005
        %v2092 = vadd.f32 %v1899, %v2051
        %v2093 = vadd.f32 %v1900, %v2052
        %v2094 = vadd.f32 %v1901, %v2011
        %v2095 = vadd.f32 %v1902, %v2053
        %v2096 = vadd.f32 %v1903, %v2054
        %v2097 = vadd.f32 %v1904, %v2017
        %v2098 = vadd.f32 %v1905, %v2055
        %v2099 = vadd.f32 %v1906, %v2056
        %v2100 = vadd.f32 %v1907, %v2023
        %v2101 = vadd.f32 %v1908, %v2057
        %v2102 = vadd.f32 %v1909, %v2058
        %v2103 = vadd.f32 %v1910, %v2029
        %v2104 = vadd.f32 %v1911, %v2059
        %v2105 = vadd.f32 %v1912, %v2060
        %v2106 = vadd.f32 %v1913, %v2035
        %v2107 = vadd.f32 %v1914, %v2061
        %v2108 = vadd.f32 %v1915, %v2062
        %v2109 = vadd.f32 %v1916, %v2041
        %v2110 = vadd.f32 %v1917, %v2063
        %v2111 = vadd.f32 %v1918, %v2064
        %v2112 = vadd.f32 %v1919, %v2047
        %2113 = vset.pattern.permute.xlu0 4
        %2114 = vperm.xlu0 %2113, %v1438
        %v2115 = vpop.permute.xlu0 %2114
        %2117 = vset.pattern.permute.xlu0 4
        %2118 = vperm.xlu0 %2117, %v1439
        %v2119 = vpop.permute.xlu0 %2118
        %2121 = vset.pattern.permute.xlu0 4
        %2122 = vperm.xlu0 %2121, %v1440
        %v2123 = vpop.permute.xlu0 %2122
        %2125 = vset.pattern.permute.xlu0 4
        %2126 = vperm.xlu0 %2125, %v1441
        %v2127 = vpop.permute.xlu0 %2126
        %2129 = vset.pattern.permute.xlu0 4
        %2130 = vperm.xlu0 %2129, %v1442
        %v2131 = vpop.permute.xlu0 %2130
        %2133 = vset.pattern.permute.xlu0 4
        %2134 = vperm.xlu0 %2133, %v1443
        %v2135 = vpop.permute.xlu0 %2134
        %2137 = vset.pattern.permute.xlu0 4
        %2138 = vperm.xlu0 %2137, %v1444
        %v2139 = vpop.permute.xlu0 %2138
        %2141 = vset.pattern.permute.xlu0 4
        %2142 = vperm.xlu0 %2141, %v1445
        %v2143 = vpop.permute.xlu0 %2142
        %v2145 = vmul.f32 %v2115, %v1153
        %v2146 = vmul.f32 %v2115, %v1155
        %v2147 = vmul.f32 %v2115, %v1242
        %v2148 = vmul.f32 %v2119, %v1159
        %v2149 = vmul.f32 %v2119, %v1161
        %v2150 = vmul.f32 %v2119, %v1248
        %v2151 = vmul.f32 %v2123, %v1165
        %v2152 = vmul.f32 %v2123, %v1167
        %v2153 = vmul.f32 %v2123, %v1254
        %v2154 = vmul.f32 %v2127, %v1171
        %v2155 = vmul.f32 %v2127, %v1173
        %v2156 = vmul.f32 %v2127, %v1260
        %v2157 = vmul.f32 %v2131, %v1409
        %v2158 = vmul.f32 %v2131, %v1413
        %v2159 = vmul.f32 %v2131, %v1417
        %v2160 = vmul.f32 %v2135, %v1409
        %v2161 = vmul.f32 %v2135, %v1413
        %v2162 = vmul.f32 %v2135, %v1417
        %v2163 = vmul.f32 %v2139, %v1425
        %v2164 = vmul.f32 %v2139, %v1429
        %v2165 = vmul.f32 %v2139, %v1433
        %v2166 = vmul.f32 %v2143, %v1425
        %v2167 = vmul.f32 %v2143, %v1429
        %v2168 = vmul.f32 %v2143, %v1433
        %2193 = vrot.lane.b32.xlu0 %v2145, 124
        %v2194 = vpop.permute.xlu0 %2193
        %2195 = vrot.lane.b32.xlu0 %v2146, 124
        %v2196 = vpop.permute.xlu0 %2195
        %2197 = vrot.lane.b32.xlu0 %v2147, 124
        %v2198 = vpop.permute.xlu0 %2197
        %2199 = vrot.lane.b32.xlu0 %v2148, 124
        %v2200 = vpop.permute.xlu0 %2199
        %2201 = vrot.lane.b32.xlu0 %v2149, 124
        %v2202 = vpop.permute.xlu0 %2201
        %2203 = vrot.lane.b32.xlu0 %v2150, 124
        %v2204 = vpop.permute.xlu0 %2203
        %2205 = vrot.lane.b32.xlu0 %v2151, 124
        %v2206 = vpop.permute.xlu0 %2205
        %2207 = vrot.lane.b32.xlu0 %v2152, 124
        %v2208 = vpop.permute.xlu0 %2207
        %2209 = vrot.lane.b32.xlu0 %v2153, 124
        %v2210 = vpop.permute.xlu0 %2209
        %2211 = vrot.lane.b32.xlu0 %v2154, 124
        %v2212 = vpop.permute.xlu0 %2211
        %2213 = vrot.lane.b32.xlu0 %v2155, 124
        %v2214 = vpop.permute.xlu0 %2213
        %2215 = vrot.lane.b32.xlu0 %v2156, 124
        %v2216 = vpop.permute.xlu0 %2215
        %2217 = vrot.lane.b32.xlu0 %v2157, 124
        %v2218 = vpop.permute.xlu0 %2217
        %2219 = vrot.lane.b32.xlu0 %v2158, 124
        %v2220 = vpop.permute.xlu0 %2219
        %2221 = vrot.lane.b32.xlu0 %v2159, 124
        %v2222 = vpop.permute.xlu0 %2221
        %2223 = vrot.lane.b32.xlu0 %v2160, 124
        %v2224 = vpop.permute.xlu0 %2223
        %2225 = vrot.lane.b32.xlu0 %v2161, 124
        %v2226 = vpop.permute.xlu0 %2225
        %2227 = vrot.lane.b32.xlu0 %v2162, 124
        %v2228 = vpop.permute.xlu0 %2227
        %2229 = vrot.lane.b32.xlu0 %v2163, 124
        %v2230 = vpop.permute.xlu0 %2229
        %2231 = vrot.lane.b32.xlu0 %v2164, 124
        %v2232 = vpop.permute.xlu0 %2231
        %2233 = vrot.lane.b32.xlu0 %v2165, 124
        %v2234 = vpop.permute.xlu0 %2233
        %2235 = vrot.lane.b32.xlu0 %v2166, 124
        %v2236 = vpop.permute.xlu0 %2235
        %2237 = vrot.lane.b32.xlu0 %v2167, 124
        %v2238 = vpop.permute.xlu0 %2237
        %2239 = vrot.lane.b32.xlu0 %v2168, 124
        %v2240 = vpop.permute.xlu0 %2239
        %vm2241 = vcmask 1014784
        %v2242 = vsel %vm2241, %v2194, %v2196
        %v2243 = vsel %vm2241, %v2196, %v2198
        %v2244 = vsel %vm2241, %v2200, %v2202
        %v2245 = vsel %vm2241, %v2202, %v2204
        %v2246 = vsel %vm2241, %v2206, %v2208
        %v2247 = vsel %vm2241, %v2208, %v2210
        %v2248 = vsel %vm2241, %v2212, %v2214
        %v2249 = vsel %vm2241, %v2214, %v2216
        %v2250 = vsel %vm2241, %v2218, %v2220
        %v2251 = vsel %vm2241, %v2220, %v2222
        %v2252 = vsel %vm2241, %v2224, %v2226
        %v2253 = vsel %vm2241, %v2226, %v2228
        %v2254 = vsel %vm2241, %v2230, %v2232
        %v2255 = vsel %vm2241, %v2232, %v2234
        %v2256 = vsel %vm2241, %v2236, %v2238
        %v2257 = vsel %vm2241, %v2238, %v2240
        %v2282 = vadd.f32 %v2089, %v2242
        %v2283 = vadd.f32 %v2090, %v2243
        %v2284 = vadd.f32 %v2091, %v2198
        %v2285 = vadd.f32 %v2092, %v2244
        %v2286 = vadd.f32 %v2093, %v2245
        %v2287 = vadd.f32 %v2094, %v2204
        %v2288 = vadd.f32 %v2095, %v2246
        %v2289 = vadd.f32 %v2096, %v2247
        %v2290 = vadd.f32 %v2097, %v2210
        %v2291 = vadd.f32 %v2098, %v2248
        %v2292 = vadd.f32 %v2099, %v2249
        %v2293 = vadd.f32 %v2100, %v2216
        %v2294 = vadd.f32 %v2101, %v2250
        %v2295 = vadd.f32 %v2102, %v2251
        %v2296 = vadd.f32 %v2103, %v2222
        %v2297 = vadd.f32 %v2104, %v2252
        %v2298 = vadd.f32 %v2105, %v2253
        %v2299 = vadd.f32 %v2106, %v2228
        %v2300 = vadd.f32 %v2107, %v2254
        %v2301 = vadd.f32 %v2108, %v2255
        %v2302 = vadd.f32 %v2109, %v2234
        %v2303 = vadd.f32 %v2110, %v2256
        %v2304 = vadd.f32 %v2111, %v2257
        %v2305 = vadd.f32 %v2112, %v2240
        %2306 = vset.pattern.permute.xlu0 5
        %2307 = vperm.xlu0 %2306, %v1438
        %v2308 = vpop.permute.xlu0 %2307
        %2310 = vset.pattern.permute.xlu0 5
        %2311 = vperm.xlu0 %2310, %v1439
        %v2312 = vpop.permute.xlu0 %2311
        %2314 = vset.pattern.permute.xlu0 5
        %2315 = vperm.xlu0 %2314, %v1440
        %v2316 = vpop.permute.xlu0 %2315
        %2318 = vset.pattern.permute.xlu0 5
        %2319 = vperm.xlu0 %2318, %v1441
        %v2320 = vpop.permute.xlu0 %2319
        %2322 = vset.pattern.permute.xlu0 5
        %2323 = vperm.xlu0 %2322, %v1442
        %v2324 = vpop.permute.xlu0 %2323
        %2326 = vset.pattern.permute.xlu0 5
        %2327 = vperm.xlu0 %2326, %v1443
        %v2328 = vpop.permute.xlu0 %2327
        %2330 = vset.pattern.permute.xlu0 5
        %2331 = vperm.xlu0 %2330, %v1444
        %v2332 = vpop.permute.xlu0 %2331
        %2334 = vset.pattern.permute.xlu0 5
        %2335 = vperm.xlu0 %2334, %v1445
        %v2336 = vpop.permute.xlu0 %2335
        %v2338 = vmul.f32 %v2308, %v1153
        %v2339 = vmul.f32 %v2308, %v1155
        %v2340 = vmul.f32 %v2308, %v1242
        %v2341 = vmul.f32 %v2312, %v1159
        %v2342 = vmul.f32 %v2312, %v1161
        %v2343 = vmul.f32 %v2312, %v1248
        %v2344 = vmul.f32 %v2316, %v1165
        %v2345 = vmul.f32 %v2316, %v1167
        %v2346 = vmul.f32 %v2316, %v1254
        %v2347 = vmul.f32 %v2320, %v1171
        %v2348 = vmul.f32 %v2320, %v1173
        %v2349 = vmul.f32 %v2320, %v1260
        %v2350 = vmul.f32 %v2324, %v1409
        %v2351 = vmul.f32 %v2324, %v1413
        %v2352 = vmul.f32 %v2324, %v1417
        %v2353 = vmul.f32 %v2328, %v1409
        %v2354 = vmul.f32 %v2328, %v1413
        %v2355 = vmul.f32 %v2328, %v1417
        %v2356 = vmul.f32 %v2332, %v1425
        %v2357 = vmul.f32 %v2332, %v1429
        %v2358 = vmul.f32 %v2332, %v1433
        %v2359 = vmul.f32 %v2336, %v1425
        %v2360 = vmul.f32 %v2336, %v1429
        %v2361 = vmul.f32 %v2336, %v1433
        %2386 = vrot.lane.b32.xlu0 %v2338, 123
        %v2387 = vpop.permute.xlu0 %2386
        %2388 = vrot.lane.b32.xlu0 %v2339, 123
        %v2389 = vpop.permute.xlu0 %2388
        %2390 = vrot.lane.b32.xlu0 %v2340, 123
        %v2391 = vpop.permute.xlu0 %2390
        %2392 = vrot.lane.b32.xlu0 %v2341, 123
        %v2393 = vpop.permute.xlu0 %2392
        %2394 = vrot.lane.b32.xlu0 %v2342, 123
        %v2395 = vpop.permute.xlu0 %2394
        %2396 = vrot.lane.b32.xlu0 %v2343, 123
        %v2397 = vpop.permute.xlu0 %2396
        %2398 = vrot.lane.b32.xlu0 %v2344, 123
        %v2399 = vpop.permute.xlu0 %2398
        %2400 = vrot.lane.b32.xlu0 %v2345, 123
        %v2401 = vpop.permute.xlu0 %2400
        %2402 = vrot.lane.b32.xlu0 %v2346, 123
        %v2403 = vpop.permute.xlu0 %2402
        %2404 = vrot.lane.b32.xlu0 %v2347, 123
        %v2405 = vpop.permute.xlu0 %2404
        %2406 = vrot.lane.b32.xlu0 %v2348, 123
        %v2407 = vpop.permute.xlu0 %2406
        %2408 = vrot.lane.b32.xlu0 %v2349, 123
        %v2409 = vpop.permute.xlu0 %2408
        %2410 = vrot.lane.b32.xlu0 %v2350, 123
        %v2411 = vpop.permute.xlu0 %2410
        %2412 = vrot.lane.b32.xlu0 %v2351, 123
        %v2413 = vpop.permute.xlu0 %2412
        %2414 = vrot.lane.b32.xlu0 %v2352, 123
        %v2415 = vpop.permute.xlu0 %2414
        %2416 = vrot.lane.b32.xlu0 %v2353, 123
        %v2417 = vpop.permute.xlu0 %2416
        %2418 = vrot.lane.b32.xlu0 %v2354, 123
        %v2419 = vpop.permute.xlu0 %2418
        %2420 = vrot.lane.b32.xlu0 %v2355, 123
        %v2421 = vpop.permute.xlu0 %2420
        %2422 = vrot.lane.b32.xlu0 %v2356, 123
        %v2423 = vpop.permute.xlu0 %2422
        %2424 = vrot.lane.b32.xlu0 %v2357, 123
        %v2425 = vpop.permute.xlu0 %2424
        %2426 = vrot.lane.b32.xlu0 %v2358, 123
        %v2427 = vpop.permute.xlu0 %2426
        %2428 = vrot.lane.b32.xlu0 %v2359, 123
        %v2429 = vpop.permute.xlu0 %2428
        %2430 = vrot.lane.b32.xlu0 %v2360, 123
        %v2431 = vpop.permute.xlu0 %2430
        %2432 = vrot.lane.b32.xlu0 %v2361, 123
        %v2433 = vpop.permute.xlu0 %2432
        %vm2434 = vcmask 1006592
        %v2435 = vsel %vm2434, %v2387, %v2389
        %v2436 = vsel %vm2434, %v2389, %v2391
        %v2437 = vsel %vm2434, %v2393, %v2395
        %v2438 = vsel %vm2434, %v2395, %v2397
        %v2439 = vsel %vm2434, %v2399, %v2401
        %v2440 = vsel %vm2434, %v2401, %v2403
        %v2441 = vsel %vm2434, %v2405, %v2407
        %v2442 = vsel %vm2434, %v2407, %v2409
        %v2443 = vsel %vm2434, %v2411, %v2413
        %v2444 = vsel %vm2434, %v2413, %v2415
        %v2445 = vsel %vm2434, %v2417, %v2419
        %v2446 = vsel %vm2434, %v2419, %v2421
        %v2447 = vsel %vm2434, %v2423, %v2425
        %v2448 = vsel %vm2434, %v2425, %v2427
        %v2449 = vsel %vm2434, %v2429, %v2431
        %v2450 = vsel %vm2434, %v2431, %v2433
        %v2475 = vadd.f32 %v2282, %v2435
        %v2476 = vadd.f32 %v2283, %v2436
        %v2477 = vadd.f32 %v2284, %v2391
        %v2478 = vadd.f32 %v2285, %v2437
        %v2479 = vadd.f32 %v2286, %v2438
        %v2480 = vadd.f32 %v2287, %v2397
        %v2481 = vadd.f32 %v2288, %v2439
        %v2482 = vadd.f32 %v2289, %v2440
        %v2483 = vadd.f32 %v2290, %v2403
        %v2484 = vadd.f32 %v2291, %v2441
        %v2485 = vadd.f32 %v2292, %v2442
        %v2486 = vadd.f32 %v2293, %v2409
        %v2487 = vadd.f32 %v2294, %v2443
        %v2488 = vadd.f32 %v2295, %v2444
        %v2489 = vadd.f32 %v2296, %v2415
        %v2490 = vadd.f32 %v2297, %v2445
        %v2491 = vadd.f32 %v2298, %v2446
        %v2492 = vadd.f32 %v2299, %v2421
        %v2493 = vadd.f32 %v2300, %v2447
        %v2494 = vadd.f32 %v2301, %v2448
        %v2495 = vadd.f32 %v2302, %v2427
        %v2496 = vadd.f32 %v2303, %v2449
        %v2497 = vadd.f32 %v2304, %v2450
        %v2498 = vadd.f32 %v2305, %v2433
        %2499 = vset.pattern.permute.xlu0 6
        %2500 = vperm.xlu0 %2499, %v1438
        %v2501 = vpop.permute.xlu0 %2500
        %2503 = vset.pattern.permute.xlu0 6
        %2504 = vperm.xlu0 %2503, %v1439
        %v2505 = vpop.permute.xlu0 %2504
        %2507 = vset.pattern.permute.xlu0 6
        %2508 = vperm.xlu0 %2507, %v1440
        %v2509 = vpop.permute.xlu0 %2508
        %2511 = vset.pattern.permute.xlu0 6
        %2512 = vperm.xlu0 %2511, %v1441
        %v2513 = vpop.permute.xlu0 %2512
        %2515 = vset.pattern.permute.xlu0 6
        %2516 = vperm.xlu0 %2515, %v1442
        %v2517 = vpop.permute.xlu0 %2516
        %2519 = vset.pattern.permute.xlu0 6
        %2520 = vperm.xlu0 %2519, %v1443
        %v2521 = vpop.permute.xlu0 %2520
        %2523 = vset.pattern.permute.xlu0 6
        %2524 = vperm.xlu0 %2523, %v1444
        %v2525 = vpop.permute.xlu0 %2524
        %2527 = vset.pattern.permute.xlu0 6
        %2528 = vperm.xlu0 %2527, %v1445
        %v2529 = vpop.permute.xlu0 %2528
        %v2531 = vmul.f32 %v2501, %v1153
        %v2532 = vmul.f32 %v2501, %v1155
        %v2533 = vmul.f32 %v2501, %v1242
        %v2534 = vmul.f32 %v2505, %v1159
        %v2535 = vmul.f32 %v2505, %v1161
        %v2536 = vmul.f32 %v2505, %v1248
        %v2537 = vmul.f32 %v2509, %v1165
        %v2538 = vmul.f32 %v2509, %v1167
        %v2539 = vmul.f32 %v2509, %v1254
        %v2540 = vmul.f32 %v2513, %v1171
        %v2541 = vmul.f32 %v2513, %v1173
        %v2542 = vmul.f32 %v2513, %v1260
        %v2543 = vmul.f32 %v2517, %v1409
        %v2544 = vmul.f32 %v2517, %v1413
        %v2545 = vmul.f32 %v2517, %v1417
        %v2546 = vmul.f32 %v2521, %v1409
        %v2547 = vmul.f32 %v2521, %v1413
        %v2548 = vmul.f32 %v2521, %v1417
        %v2549 = vmul.f32 %v2525, %v1425
        %v2550 = vmul.f32 %v2525, %v1429
        %v2551 = vmul.f32 %v2525, %v1433
        %v2552 = vmul.f32 %v2529, %v1425
        %v2553 = vmul.f32 %v2529, %v1429
        %v2554 = vmul.f32 %v2529, %v1433
        %2579 = vrot.lane.b32.xlu0 %v2531, 122
        %v2580 = vpop.permute.xlu0 %2579
        %2581 = vrot.lane.b32.xlu0 %v2532, 122
        %v2582 = vpop.permute.xlu0 %2581
        %2583 = vrot.lane.b32.xlu0 %v2533, 122
        %v2584 = vpop.permute.xlu0 %2583
        %2585 = vrot.lane.b32.xlu0 %v2534, 122
        %v2586 = vpop.permute.xlu0 %2585
        %2587 = vrot.lane.b32.xlu0 %v2535, 122
        %v2588 = vpop.permute.xlu0 %2587
        %2589 = vrot.lane.b32.xlu0 %v2536, 122
        %v2590 = vpop.permute.xlu0 %2589
        %2591 = vrot.lane.b32.xlu0 %v2537, 122
        %v2592 = vpop.permute.xlu0 %2591
        %2593 = vrot.lane.b32.xlu0 %v2538, 122
        %v2594 = vpop.permute.xlu0 %2593
        %2595 = vrot.lane.b32.xlu0 %v2539, 122
        %v2596 = vpop.permute.xlu0 %2595
        %2597 = vrot.lane.b32.xlu0 %v2540, 122
        %v2598 = vpop.permute.xlu0 %2597
        %2599 = vrot.lane.b32.xlu0 %v2541, 122
        %v2600 = vpop.permute.xlu0 %2599
        %2601 = vrot.lane.b32.xlu0 %v2542, 122
        %v2602 = vpop.permute.xlu0 %2601
        %2603 = vrot.lane.b32.xlu0 %v2543, 122
        %v2604 = vpop.permute.xlu0 %2603
        %2605 = vrot.lane.b32.xlu0 %v2544, 122
        %v2606 = vpop.permute.xlu0 %2605
        %2607 = vrot.lane.b32.xlu0 %v2545, 122
        %v2608 = vpop.permute.xlu0 %2607
        %2609 = vrot.lane.b32.xlu0 %v2546, 122
        %v2610 = vpop.permute.xlu0 %2609
        %2611 = vrot.lane.b32.xlu0 %v2547, 122
        %v2612 = vpop.permute.xlu0 %2611
        %2613 = vrot.lane.b32.xlu0 %v2548, 122
        %v2614 = vpop.permute.xlu0 %2613
        %2615 = vrot.lane.b32.xlu0 %v2549, 122
        %v2616 = vpop.permute.xlu0 %2615
        %2617 = vrot.lane.b32.xlu0 %v2550, 122
        %v2618 = vpop.permute.xlu0 %2617
        %2619 = vrot.lane.b32.xlu0 %v2551, 122
        %v2620 = vpop.permute.xlu0 %2619
        %2621 = vrot.lane.b32.xlu0 %v2552, 122
        %v2622 = vpop.permute.xlu0 %2621
        %2623 = vrot.lane.b32.xlu0 %v2553, 122
        %v2624 = vpop.permute.xlu0 %2623
        %2625 = vrot.lane.b32.xlu0 %v2554, 122
        %v2626 = vpop.permute.xlu0 %2625
        %vm2627 = vcmask 998400
        %v2628 = vsel %vm2627, %v2580, %v2582
        %v2629 = vsel %vm2627, %v2582, %v2584
        %v2630 = vsel %vm2627, %v2586, %v2588
        %v2631 = vsel %vm2627, %v2588, %v2590
        %v2632 = vsel %vm2627, %v2592, %v2594
        %v2633 = vsel %vm2627, %v2594, %v2596
        %v2634 = vsel %vm2627, %v2598, %v2600
        %v2635 = vsel %vm2627, %v2600, %v2602
        %v2636 = vsel %vm2627, %v2604, %v2606
        %v2637 = vsel %vm2627, %v2606, %v2608
        %v2638 = vsel %vm2627, %v2610, %v2612
        %v2639 = vsel %vm2627, %v2612, %v2614
        %v2640 = vsel %vm2627, %v2616, %v2618
        %v2641 = vsel %vm2627, %v2618, %v2620
        %v2642 = vsel %vm2627, %v2622, %v2624
        %v2643 = vsel %vm2627, %v2624, %v2626
        %v2668 = vadd.f32 %v2475, %v2628
        %v2669 = vadd.f32 %v2476, %v2629
        %v2670 = vadd.f32 %v2477, %v2584
        %v2671 = vadd.f32 %v2478, %v2630
        %v2672 = vadd.f32 %v2479, %v2631
        %v2673 = vadd.f32 %v2480, %v2590
        %v2674 = vadd.f32 %v2481, %v2632
        %v2675 = vadd.f32 %v2482, %v2633
        %v2676 = vadd.f32 %v2483, %v2596
        %v2677 = vadd.f32 %v2484, %v2634
        %v2678 = vadd.f32 %v2485, %v2635
        %v2679 = vadd.f32 %v2486, %v2602
        %v2680 = vadd.f32 %v2487, %v2636
        %v2681 = vadd.f32 %v2488, %v2637
        %v2682 = vadd.f32 %v2489, %v2608
        %v2683 = vadd.f32 %v2490, %v2638
        %v2684 = vadd.f32 %v2491, %v2639
        %v2685 = vadd.f32 %v2492, %v2614
        %v2686 = vadd.f32 %v2493, %v2640
        %v2687 = vadd.f32 %v2494, %v2641
        %v2688 = vadd.f32 %v2495, %v2620
        %v2689 = vadd.f32 %v2496, %v2642
        %v2690 = vadd.f32 %v2497, %v2643
        %v2691 = vadd.f32 %v2498, %v2626
        %2692 = vset.pattern.permute.xlu0 7
        %2693 = vperm.xlu0 %2692, %v1438
        %v2694 = vpop.permute.xlu0 %2693
        %2696 = vset.pattern.permute.xlu0 7
        %2697 = vperm.xlu0 %2696, %v1439
        %v2698 = vpop.permute.xlu0 %2697
        %2700 = vset.pattern.permute.xlu0 7
        %2701 = vperm.xlu0 %2700, %v1440
        %v2702 = vpop.permute.xlu0 %2701
        %2704 = vset.pattern.permute.xlu0 7
        %2705 = vperm.xlu0 %2704, %v1441
        %v2706 = vpop.permute.xlu0 %2705
        %2708 = vset.pattern.permute.xlu0 7
        %2709 = vperm.xlu0 %2708, %v1442
        %v2710 = vpop.permute.xlu0 %2709
        %2712 = vset.pattern.permute.xlu0 7
        %2713 = vperm.xlu0 %2712, %v1443
        %v2714 = vpop.permute.xlu0 %2713
        %2716 = vset.pattern.permute.xlu0 7
        %2717 = vperm.xlu0 %2716, %v1444
        %v2718 = vpop.permute.xlu0 %2717
        %2720 = vset.pattern.permute.xlu0 7
        %2721 = vperm.xlu0 %2720, %v1445
        %v2722 = vpop.permute.xlu0 %2721
        %v2724 = vmul.f32 %v2694, %v1153
        %v2725 = vmul.f32 %v2694, %v1155
        %v2726 = vmul.f32 %v2694, %v1242
        %v2727 = vmul.f32 %v2698, %v1159
        %v2728 = vmul.f32 %v2698, %v1161
        %v2729 = vmul.f32 %v2698, %v1248
        %v2730 = vmul.f32 %v2702, %v1165
        %v2731 = vmul.f32 %v2702, %v1167
        %v2732 = vmul.f32 %v2702, %v1254
        %v2733 = vmul.f32 %v2706, %v1171
        %v2734 = vmul.f32 %v2706, %v1173
        %v2735 = vmul.f32 %v2706, %v1260
        %v2736 = vmul.f32 %v2710, %v1409
        %v2737 = vmul.f32 %v2710, %v1413
        %v2738 = vmul.f32 %v2710, %v1417
        %v2739 = vmul.f32 %v2714, %v1409
        %v2740 = vmul.f32 %v2714, %v1413
        %v2741 = vmul.f32 %v2714, %v1417
        %v2742 = vmul.f32 %v2718, %v1425
        %v2743 = vmul.f32 %v2718, %v1429
        %v2744 = vmul.f32 %v2718, %v1433
        %v2745 = vmul.f32 %v2722, %v1425
        %v2746 = vmul.f32 %v2722, %v1429
        %v2747 = vmul.f32 %v2722, %v1433
        %v2748 = vadd.f32 %v2724, 0.0
        %v2749 = vadd.f32 %v2725, 0.0
        %v2750 = vadd.f32 %v2726, 0.0
        %v2751 = vadd.f32 %v2727, 0.0
        %v2752 = vadd.f32 %v2728, 0.0
        %v2753 = vadd.f32 %v2729, 0.0
        %v2754 = vadd.f32 %v2730, 0.0
        %v2755 = vadd.f32 %v2731, 0.0
        %v2756 = vadd.f32 %v2732, 0.0
        %v2757 = vadd.f32 %v2733, 0.0
        %v2758 = vadd.f32 %v2734, 0.0
        %v2759 = vadd.f32 %v2735, 0.0
        %v2760 = vadd.f32 %v2736, 0.0
        %v2761 = vadd.f32 %v2737, 0.0
        %v2762 = vadd.f32 %v2738, 0.0
        %v2763 = vadd.f32 %v2739, 0.0
        %v2764 = vadd.f32 %v2740, 0.0
        %v2765 = vadd.f32 %v2741, 0.0
        %v2766 = vadd.f32 %v2742, 0.0
        %v2767 = vadd.f32 %v2743, 0.0
        %v2768 = vadd.f32 %v2744, 0.0
        %v2769 = vadd.f32 %v2745, 0.0
        %v2770 = vadd.f32 %v2746, 0.0
        %v2771 = vadd.f32 %v2747, 0.0
        %2772 = vset.pattern.permute.xlu0 8
        %2773 = vperm.xlu0 %2772, %v1438
        %v2774 = vpop.permute.xlu0 %2773
        %2776 = vset.pattern.permute.xlu0 8
        %2777 = vperm.xlu0 %2776, %v1439
        %v2778 = vpop.permute.xlu0 %2777
        %2780 = vset.pattern.permute.xlu0 8
        %2781 = vperm.xlu0 %2780, %v1440
        %v2782 = vpop.permute.xlu0 %2781
        %2784 = vset.pattern.permute.xlu0 8
        %2785 = vperm.xlu0 %2784, %v1441
        %v2786 = vpop.permute.xlu0 %2785
        %2788 = vset.pattern.permute.xlu0 8
        %2789 = vperm.xlu0 %2788, %v1442
        %v2790 = vpop.permute.xlu0 %2789
        %2792 = vset.pattern.permute.xlu0 8
        %2793 = vperm.xlu0 %2792, %v1443
        %v2794 = vpop.permute.xlu0 %2793
        %2796 = vset.pattern.permute.xlu0 8
        %2797 = vperm.xlu0 %2796, %v1444
        %v2798 = vpop.permute.xlu0 %2797
        %2800 = vset.pattern.permute.xlu0 8
        %2801 = vperm.xlu0 %2800, %v1445
        %v2802 = vpop.permute.xlu0 %2801
        %v2804 = vmul.f32 %v2774, %v1153
        %v2805 = vmul.f32 %v2774, %v1155
        %v2806 = vmul.f32 %v2774, %v1242
        %v2807 = vmul.f32 %v2778, %v1159
        %v2808 = vmul.f32 %v2778, %v1161
        %v2809 = vmul.f32 %v2778, %v1248
        %v2810 = vmul.f32 %v2782, %v1165
        %v2811 = vmul.f32 %v2782, %v1167
        %v2812 = vmul.f32 %v2782, %v1254
        %v2813 = vmul.f32 %v2786, %v1171
        %v2814 = vmul.f32 %v2786, %v1173
        %v2815 = vmul.f32 %v2786, %v1260
        %v2816 = vmul.f32 %v2790, %v1409
        %v2817 = vmul.f32 %v2790, %v1413
        %v2818 = vmul.f32 %v2790, %v1417
        %v2819 = vmul.f32 %v2794, %v1409
        %v2820 = vmul.f32 %v2794, %v1413
        %v2821 = vmul.f32 %v2794, %v1417
        %v2822 = vmul.f32 %v2798, %v1425
        %v2823 = vmul.f32 %v2798, %v1429
        %v2824 = vmul.f32 %v2798, %v1433
        %v2825 = vmul.f32 %v2802, %v1425
        %v2826 = vmul.f32 %v2802, %v1429
        %v2827 = vmul.f32 %v2802, %v1433
        %2852 = vrot.lane.b32.xlu0 %v2804, 127
        %v2853 = vpop.permute.xlu0 %2852
        %2854 = vrot.lane.b32.xlu0 %v2805, 127
        %v2855 = vpop.permute.xlu0 %2854
        %2856 = vrot.lane.b32.xlu0 %v2806, 127
        %v2857 = vpop.permute.xlu0 %2856
        %2858 = vrot.lane.b32.xlu0 %v2807, 127
        %v2859 = vpop.permute.xlu0 %2858
        %2860 = vrot.lane.b32.xlu0 %v2808, 127
        %v2861 = vpop.permute.xlu0 %2860
        %2862 = vrot.lane.b32.xlu0 %v2809, 127
        %v2863 = vpop.permute.xlu0 %2862
        %2864 = vrot.lane.b32.xlu0 %v2810, 127
        %v2865 = vpop.permute.xlu0 %2864
        %2866 = vrot.lane.b32.xlu0 %v2811, 127
        %v2867 = vpop.permute.xlu0 %2866
        %2868 = vrot.lane.b32.xlu0 %v2812, 127
        %v2869 = vpop.permute.xlu0 %2868
        %2870 = vrot.lane.b32.xlu0 %v2813, 127
        %v2871 = vpop.permute.xlu0 %2870
        %2872 = vrot.lane.b32.xlu0 %v2814, 127
        %v2873 = vpop.permute.xlu0 %2872
        %2874 = vrot.lane.b32.xlu0 %v2815, 127
        %v2875 = vpop.permute.xlu0 %2874
        %2876 = vrot.lane.b32.xlu0 %v2816, 127
        %v2877 = vpop.permute.xlu0 %2876
        %2878 = vrot.lane.b32.xlu0 %v2817, 127
        %v2879 = vpop.permute.xlu0 %2878
        %2880 = vrot.lane.b32.xlu0 %v2818, 127
        %v2881 = vpop.permute.xlu0 %2880
        %2882 = vrot.lane.b32.xlu0 %v2819, 127
        %v2883 = vpop.permute.xlu0 %2882
        %2884 = vrot.lane.b32.xlu0 %v2820, 127
        %v2885 = vpop.permute.xlu0 %2884
        %2886 = vrot.lane.b32.xlu0 %v2821, 127
        %v2887 = vpop.permute.xlu0 %2886
        %2888 = vrot.lane.b32.xlu0 %v2822, 127
        %v2889 = vpop.permute.xlu0 %2888
        %2890 = vrot.lane.b32.xlu0 %v2823, 127
        %v2891 = vpop.permute.xlu0 %2890
        %2892 = vrot.lane.b32.xlu0 %v2824, 127
        %v2893 = vpop.permute.xlu0 %2892
        %2894 = vrot.lane.b32.xlu0 %v2825, 127
        %v2895 = vpop.permute.xlu0 %2894
        %2896 = vrot.lane.b32.xlu0 %v2826, 127
        %v2897 = vpop.permute.xlu0 %2896
        %2898 = vrot.lane.b32.xlu0 %v2827, 127
        %v2899 = vpop.permute.xlu0 %2898
        %v2900 = vsel %vm1662, %v2853, %v2855
        %v2901 = vsel %vm1662, %v2855, %v2857
        %v2902 = vsel %vm1662, %v2859, %v2861
        %v2903 = vsel %vm1662, %v2861, %v2863
        %v2904 = vsel %vm1662, %v2865, %v2867
        %v2905 = vsel %vm1662, %v2867, %v2869
        %v2906 = vsel %vm1662, %v2871, %v2873
        %v2907 = vsel %vm1662, %v2873, %v2875
        %v2908 = vsel %vm1662, %v2877, %v2879
        %v2909 = vsel %vm1662, %v2879, %v2881
        %v2910 = vsel %vm1662, %v2883, %v2885
        %v2911 = vsel %vm1662, %v2885, %v2887
        %v2912 = vsel %vm1662, %v2889, %v2891
        %v2913 = vsel %vm1662, %v2891, %v2893
        %v2914 = vsel %vm1662, %v2895, %v2897
        %v2915 = vsel %vm1662, %v2897, %v2899
        %v2940 = vadd.f32 %v2748, %v2900
        %v2941 = vadd.f32 %v2749, %v2901
        %v2942 = vadd.f32 %v2750, %v2857
        %v2943 = vadd.f32 %v2751, %v2902
        %v2944 = vadd.f32 %v2752, %v2903
        %v2945 = vadd.f32 %v2753, %v2863
        %v2946 = vadd.f32 %v2754, %v2904
        %v2947 = vadd.f32 %v2755, %v2905
        %v2948 = vadd.f32 %v2756, %v2869
        %v2949 = vadd.f32 %v2757, %v2906
        %v2950 = vadd.f32 %v2758, %v2907
        %v2951 = vadd.f32 %v2759, %v2875
        %v2952 = vadd.f32 %v2760, %v2908
        %v2953 = vadd.f32 %v2761, %v2909
        %v2954 = vadd.f32 %v2762, %v2881
        %v2955 = vadd.f32 %v2763, %v2910
        %v2956 = vadd.f32 %v2764, %v2911
        %v2957 = vadd.f32 %v2765, %v2887
        %v2958 = vadd.f32 %v2766, %v2912
        %v2959 = vadd.f32 %v2767, %v2913
        %v2960 = vadd.f32 %v2768, %v2893
        %v2961 = vadd.f32 %v2769, %v2914
        %v2962 = vadd.f32 %v2770, %v2915
        %v2963 = vadd.f32 %v2771, %v2899
        %2964 = vset.pattern.permute.xlu0 9
        %2965 = vperm.xlu0 %2964, %v1438
        %v2966 = vpop.permute.xlu0 %2965
        %2968 = vset.pattern.permute.xlu0 9
        %2969 = vperm.xlu0 %2968, %v1439
        %v2970 = vpop.permute.xlu0 %2969
        %2972 = vset.pattern.permute.xlu0 9
        %2973 = vperm.xlu0 %2972, %v1440
        %v2974 = vpop.permute.xlu0 %2973
        %2976 = vset.pattern.permute.xlu0 9
        %2977 = vperm.xlu0 %2976, %v1441
        %v2978 = vpop.permute.xlu0 %2977
        %2980 = vset.pattern.permute.xlu0 9
        %2981 = vperm.xlu0 %2980, %v1442
        %v2982 = vpop.permute.xlu0 %2981
        %2984 = vset.pattern.permute.xlu0 9
        %2985 = vperm.xlu0 %2984, %v1443
        %v2986 = vpop.permute.xlu0 %2985
        %2988 = vset.pattern.permute.xlu0 9
        %2989 = vperm.xlu0 %2988, %v1444
        %v2990 = vpop.permute.xlu0 %2989
        %2992 = vset.pattern.permute.xlu0 9
        %2993 = vperm.xlu0 %2992, %v1445
        %v2994 = vpop.permute.xlu0 %2993
        %v2996 = vmul.f32 %v2966, %v1153
        %v2997 = vmul.f32 %v2966, %v1155
        %v2998 = vmul.f32 %v2966, %v1242
        %v2999 = vmul.f32 %v2970, %v1159
        %v3000 = vmul.f32 %v2970, %v1161
        %v3001 = vmul.f32 %v2970, %v1248
        %v3002 = vmul.f32 %v2974, %v1165
        %v3003 = vmul.f32 %v2974, %v1167
        %v3004 = vmul.f32 %v2974, %v1254
        %v3005 = vmul.f32 %v2978, %v1171
        %v3006 = vmul.f32 %v2978, %v1173
        %v3007 = vmul.f32 %v2978, %v1260
        %v3008 = vmul.f32 %v2982, %v1409
        %v3009 = vmul.f32 %v2982, %v1413
        %v3010 = vmul.f32 %v2982, %v1417
        %v3011 = vmul.f32 %v2986, %v1409
        %v3012 = vmul.f32 %v2986, %v1413
        %v3013 = vmul.f32 %v2986, %v1417
        %v3014 = vmul.f32 %v2990, %v1425
        %v3015 = vmul.f32 %v2990, %v1429
        %v3016 = vmul.f32 %v2990, %v1433
        %v3017 = vmul.f32 %v2994, %v1425
        %v3018 = vmul.f32 %v2994, %v1429
        %v3019 = vmul.f32 %v2994, %v1433
        %3044 = vrot.lane.b32.xlu0 %v2996, 126
        %v3045 = vpop.permute.xlu0 %3044
        %3046 = vrot.lane.b32.xlu0 %v2997, 126
        %v3047 = vpop.permute.xlu0 %3046
        %3048 = vrot.lane.b32.xlu0 %v2998, 126
        %v3049 = vpop.permute.xlu0 %3048
        %3050 = vrot.lane.b32.xlu0 %v2999, 126
        %v3051 = vpop.permute.xlu0 %3050
        %3052 = vrot.lane.b32.xlu0 %v3000, 126
        %v3053 = vpop.permute.xlu0 %3052
        %3054 = vrot.lane.b32.xlu0 %v3001, 126
        %v3055 = vpop.permute.xlu0 %3054
        %3056 = vrot.lane.b32.xlu0 %v3002, 126
        %v3057 = vpop.permute.xlu0 %3056
        %3058 = vrot.lane.b32.xlu0 %v3003, 126
        %v3059 = vpop.permute.xlu0 %3058
        %3060 = vrot.lane.b32.xlu0 %v3004, 126
        %v3061 = vpop.permute.xlu0 %3060
        %3062 = vrot.lane.b32.xlu0 %v3005, 126
        %v3063 = vpop.permute.xlu0 %3062
        %3064 = vrot.lane.b32.xlu0 %v3006, 126
        %v3065 = vpop.permute.xlu0 %3064
        %3066 = vrot.lane.b32.xlu0 %v3007, 126
        %v3067 = vpop.permute.xlu0 %3066
        %3068 = vrot.lane.b32.xlu0 %v3008, 126
        %v3069 = vpop.permute.xlu0 %3068
        %3070 = vrot.lane.b32.xlu0 %v3009, 126
        %v3071 = vpop.permute.xlu0 %3070
        %3072 = vrot.lane.b32.xlu0 %v3010, 126
        %v3073 = vpop.permute.xlu0 %3072
        %3074 = vrot.lane.b32.xlu0 %v3011, 126
        %v3075 = vpop.permute.xlu0 %3074
        %3076 = vrot.lane.b32.xlu0 %v3012, 126
        %v3077 = vpop.permute.xlu0 %3076
        %3078 = vrot.lane.b32.xlu0 %v3013, 126
        %v3079 = vpop.permute.xlu0 %3078
        %3080 = vrot.lane.b32.xlu0 %v3014, 126
        %v3081 = vpop.permute.xlu0 %3080
        %3082 = vrot.lane.b32.xlu0 %v3015, 126
        %v3083 = vpop.permute.xlu0 %3082
        %3084 = vrot.lane.b32.xlu0 %v3016, 126
        %v3085 = vpop.permute.xlu0 %3084
        %3086 = vrot.lane.b32.xlu0 %v3017, 126
        %v3087 = vpop.permute.xlu0 %3086
        %3088 = vrot.lane.b32.xlu0 %v3018, 126
        %v3089 = vpop.permute.xlu0 %3088
        %3090 = vrot.lane.b32.xlu0 %v3019, 126
        %v3091 = vpop.permute.xlu0 %3090
        %v3092 = vsel %vm1855, %v3045, %v3047
        %v3093 = vsel %vm1855, %v3047, %v3049
        %v3094 = vsel %vm1855, %v3051, %v3053
        %v3095 = vsel %vm1855, %v3053, %v3055
        %v3096 = vsel %vm1855, %v3057, %v3059
        %v3097 = vsel %vm1855, %v3059, %v3061
        %v3098 = vsel %vm1855, %v3063, %v3065
        %v3099 = vsel %vm1855, %v3065, %v3067
        %v3100 = vsel %vm1855, %v3069, %v3071
        %v3101 = vsel %vm1855, %v3071, %v3073
        %v3102 = vsel %vm1855, %v3075, %v3077
        %v3103 = vsel %vm1855, %v3077, %v3079
        %v3104 = vsel %vm1855, %v3081, %v3083
        %v3105 = vsel %vm1855, %v3083, %v3085
        %v3106 = vsel %vm1855, %v3087, %v3089
        %v3107 = vsel %vm1855, %v3089, %v3091
        %v3132 = vadd.f32 %v2940, %v3092
        %v3133 = vadd.f32 %v2941, %v3093
        %v3134 = vadd.f32 %v2942, %v3049
        %v3135 = vadd.f32 %v2943, %v3094
        %v3136 = vadd.f32 %v2944, %v3095
        %v3137 = vadd.f32 %v2945, %v3055
        %v3138 = vadd.f32 %v2946, %v3096
        %v3139 = vadd.f32 %v2947, %v3097
        %v3140 = vadd.f32 %v2948, %v3061
        %v3141 = vadd.f32 %v2949, %v3098
        %v3142 = vadd.f32 %v2950, %v3099
        %v3143 = vadd.f32 %v2951, %v3067
        %v3144 = vadd.f32 %v2952, %v3100
        %v3145 = vadd.f32 %v2953, %v3101
        %v3146 = vadd.f32 %v2954, %v3073
        %v3147 = vadd.f32 %v2955, %v3102
        %v3148 = vadd.f32 %v2956, %v3103
        %v3149 = vadd.f32 %v2957, %v3079
        %v3150 = vadd.f32 %v2958, %v3104
        %v3151 = vadd.f32 %v2959, %v3105
        %v3152 = vadd.f32 %v2960, %v3085
        %v3153 = vadd.f32 %v2961, %v3106
        %v3154 = vadd.f32 %v2962, %v3107
        %v3155 = vadd.f32 %v2963, %v3091
        %3156 = vset.pattern.permute.xlu0 10
        %3157 = vperm.xlu0 %3156, %v1438
        %v3158 = vpop.permute.xlu0 %3157
        %3160 = vset.pattern.permute.xlu0 10
        %3161 = vperm.xlu0 %3160, %v1439
        %v3162 = vpop.permute.xlu0 %3161
        %3164 = vset.pattern.permute.xlu0 10
        %3165 = vperm.xlu0 %3164, %v1440
        %v3166 = vpop.permute.xlu0 %3165
        %3168 = vset.pattern.permute.xlu0 10
        %3169 = vperm.xlu0 %3168, %v1441
        %v3170 = vpop.permute.xlu0 %3169
        %3172 = vset.pattern.permute.xlu0 10
        %3173 = vperm.xlu0 %3172, %v1442
        %v3174 = vpop.permute.xlu0 %3173
        %3176 = vset.pattern.permute.xlu0 10
        %3177 = vperm.xlu0 %3176, %v1443
        %v3178 = vpop.permute.xlu0 %3177
        %3180 = vset.pattern.permute.xlu0 10
        %3181 = vperm.xlu0 %3180, %v1444
        %v3182 = vpop.permute.xlu0 %3181
        %3184 = vset.pattern.permute.xlu0 10
        %3185 = vperm.xlu0 %3184, %v1445
        %v3186 = vpop.permute.xlu0 %3185
        %v3188 = vmul.f32 %v3158, %v1153
        %v3189 = vmul.f32 %v3158, %v1155
        %v3190 = vmul.f32 %v3158, %v1242
        %v3191 = vmul.f32 %v3162, %v1159
        %v3192 = vmul.f32 %v3162, %v1161
        %v3193 = vmul.f32 %v3162, %v1248
        %v3194 = vmul.f32 %v3166, %v1165
        %v3195 = vmul.f32 %v3166, %v1167
        %v3196 = vmul.f32 %v3166, %v1254
        %v3197 = vmul.f32 %v3170, %v1171
        %v3198 = vmul.f32 %v3170, %v1173
        %v3199 = vmul.f32 %v3170, %v1260
        %v3200 = vmul.f32 %v3174, %v1409
        %v3201 = vmul.f32 %v3174, %v1413
        %v3202 = vmul.f32 %v3174, %v1417
        %v3203 = vmul.f32 %v3178, %v1409
        %v3204 = vmul.f32 %v3178, %v1413
        %v3205 = vmul.f32 %v3178, %v1417
        %v3206 = vmul.f32 %v3182, %v1425
        %v3207 = vmul.f32 %v3182, %v1429
        %v3208 = vmul.f32 %v3182, %v1433
        %v3209 = vmul.f32 %v3186, %v1425
        %v3210 = vmul.f32 %v3186, %v1429
        %v3211 = vmul.f32 %v3186, %v1433
        %3236 = vrot.lane.b32.xlu0 %v3188, 125
        %v3237 = vpop.permute.xlu0 %3236
        %3238 = vrot.lane.b32.xlu0 %v3189, 125
        %v3239 = vpop.permute.xlu0 %3238
        %3240 = vrot.lane.b32.xlu0 %v3190, 125
        %v3241 = vpop.permute.xlu0 %3240
        %3242 = vrot.lane.b32.xlu0 %v3191, 125
        %v3243 = vpop.permute.xlu0 %3242
        %3244 = vrot.lane.b32.xlu0 %v3192, 125
        %v3245 = vpop.permute.xlu0 %3244
        %3246 = vrot.lane.b32.xlu0 %v3193, 125
        %v3247 = vpop.permute.xlu0 %3246
        %3248 = vrot.lane.b32.xlu0 %v3194, 125
        %v3249 = vpop.permute.xlu0 %3248
        %3250 = vrot.lane.b32.xlu0 %v3195, 125
        %v3251 = vpop.permute.xlu0 %3250
        %3252 = vrot.lane.b32.xlu0 %v3196, 125
        %v3253 = vpop.permute.xlu0 %3252
        %3254 = vrot.lane.b32.xlu0 %v3197, 125
        %v3255 = vpop.permute.xlu0 %3254
        %3256 = vrot.lane.b32.xlu0 %v3198, 125
        %v3257 = vpop.permute.xlu0 %3256
        %3258 = vrot.lane.b32.xlu0 %v3199, 125
        %v3259 = vpop.permute.xlu0 %3258
        %3260 = vrot.lane.b32.xlu0 %v3200, 125
        %v3261 = vpop.permute.xlu0 %3260
        %3262 = vrot.lane.b32.xlu0 %v3201, 125
        %v3263 = vpop.permute.xlu0 %3262
        %3264 = vrot.lane.b32.xlu0 %v3202, 125
        %v3265 = vpop.permute.xlu0 %3264
        %3266 = vrot.lane.b32.xlu0 %v3203, 125
        %v3267 = vpop.permute.xlu0 %3266
        %3268 = vrot.lane.b32.xlu0 %v3204, 125
        %v3269 = vpop.permute.xlu0 %3268
        %3270 = vrot.lane.b32.xlu0 %v3205, 125
        %v3271 = vpop.permute.xlu0 %3270
        %3272 = vrot.lane.b32.xlu0 %v3206, 125
        %v3273 = vpop.permute.xlu0 %3272
        %3274 = vrot.lane.b32.xlu0 %v3207, 125
        %v3275 = vpop.permute.xlu0 %3274
        %3276 = vrot.lane.b32.xlu0 %v3208, 125
        %v3277 = vpop.permute.xlu0 %3276
        %3278 = vrot.lane.b32.xlu0 %v3209, 125
        %v3279 = vpop.permute.xlu0 %3278
        %3280 = vrot.lane.b32.xlu0 %v3210, 125
        %v3281 = vpop.permute.xlu0 %3280
        %3282 = vrot.lane.b32.xlu0 %v3211, 125
        %v3283 = vpop.permute.xlu0 %3282
        %v3284 = vsel %vm2048, %v3237, %v3239
        %v3285 = vsel %vm2048, %v3239, %v3241
        %v3286 = vsel %vm2048, %v3243, %v3245
        %v3287 = vsel %vm2048, %v3245, %v3247
        %v3288 = vsel %vm2048, %v3249, %v3251
        %v3289 = vsel %vm2048, %v3251, %v3253
        %v3290 = vsel %vm2048, %v3255, %v3257
        %v3291 = vsel %vm2048, %v3257, %v3259
        %v3292 = vsel %vm2048, %v3261, %v3263
        %v3293 = vsel %vm2048, %v3263, %v3265
        %v3294 = vsel %vm2048, %v3267, %v3269
        %v3295 = vsel %vm2048, %v3269, %v3271
        %v3296 = vsel %vm2048, %v3273, %v3275
        %v3297 = vsel %vm2048, %v3275, %v3277
        %v3298 = vsel %vm2048, %v3279, %v3281
        %v3299 = vsel %vm2048, %v3281, %v3283
        %v3324 = vadd.f32 %v3132, %v3284
        %v3325 = vadd.f32 %v3133, %v3285
        %v3326 = vadd.f32 %v3134, %v3241
        %v3327 = vadd.f32 %v3135, %v3286
        %v3328 = vadd.f32 %v3136, %v3287
        %v3329 = vadd.f32 %v3137, %v3247
        %v3330 = vadd.f32 %v3138, %v3288
        %v3331 = vadd.f32 %v3139, %v3289
        %v3332 = vadd.f32 %v3140, %v3253
        %v3333 = vadd.f32 %v3141, %v3290
        %v3334 = vadd.f32 %v3142, %v3291
        %v3335 = vadd.f32 %v3143, %v3259
        %v3336 = vadd.f32 %v3144, %v3292
        %v3337 = vadd.f32 %v3145, %v3293
        %v3338 = vadd.f32 %v3146, %v3265
        %v3339 = vadd.f32 %v3147, %v3294
        %v3340 = vadd.f32 %v3148, %v3295
        %v3341 = vadd.f32 %v3149, %v3271
        %v3342 = vadd.f32 %v3150, %v3296
        %v3343 = vadd.f32 %v3151, %v3297
        %v3344 = vadd.f32 %v3152, %v3277
        %v3345 = vadd.f32 %v3153, %v3298
        %v3346 = vadd.f32 %v3154, %v3299
        %v3347 = vadd.f32 %v3155, %v3283
        %3348 = vset.pattern.permute.xlu0 11
        %3349 = vperm.xlu0 %3348, %v1438
        %v3350 = vpop.permute.xlu0 %3349
        %3352 = vset.pattern.permute.xlu0 11
        %3353 = vperm.xlu0 %3352, %v1439
        %v3354 = vpop.permute.xlu0 %3353
        %3356 = vset.pattern.permute.xlu0 11
        %3357 = vperm.xlu0 %3356, %v1440
        %v3358 = vpop.permute.xlu0 %3357
        %3360 = vset.pattern.permute.xlu0 11
        %3361 = vperm.xlu0 %3360, %v1441
        %v3362 = vpop.permute.xlu0 %3361
        %3364 = vset.pattern.permute.xlu0 11
        %3365 = vperm.xlu0 %3364, %v1442
        %v3366 = vpop.permute.xlu0 %3365
        %3368 = vset.pattern.permute.xlu0 11
        %3369 = vperm.xlu0 %3368, %v1443
        %v3370 = vpop.permute.xlu0 %3369
        %3372 = vset.pattern.permute.xlu0 11
        %3373 = vperm.xlu0 %3372, %v1444
        %v3374 = vpop.permute.xlu0 %3373
        %3376 = vset.pattern.permute.xlu0 11
        %3377 = vperm.xlu0 %3376, %v1445
        %v3378 = vpop.permute.xlu0 %3377
        %v3380 = vmul.f32 %v3350, %v1153
        %v3381 = vmul.f32 %v3350, %v1155
        %v3382 = vmul.f32 %v3350, %v1242
        %v3383 = vmul.f32 %v3354, %v1159
        %v3384 = vmul.f32 %v3354, %v1161
        %v3385 = vmul.f32 %v3354, %v1248
        %v3386 = vmul.f32 %v3358, %v1165
        %v3387 = vmul.f32 %v3358, %v1167
        %v3388 = vmul.f32 %v3358, %v1254
        %v3389 = vmul.f32 %v3362, %v1171
        %v3390 = vmul.f32 %v3362, %v1173
        %v3391 = vmul.f32 %v3362, %v1260
        %v3392 = vmul.f32 %v3366, %v1409
        %v3393 = vmul.f32 %v3366, %v1413
        %v3394 = vmul.f32 %v3366, %v1417
        %v3395 = vmul.f32 %v3370, %v1409
        %v3396 = vmul.f32 %v3370, %v1413
        %v3397 = vmul.f32 %v3370, %v1417
        %v3398 = vmul.f32 %v3374, %v1425
        %v3399 = vmul.f32 %v3374, %v1429
        %v3400 = vmul.f32 %v3374, %v1433
        %v3401 = vmul.f32 %v3378, %v1425
        %v3402 = vmul.f32 %v3378, %v1429
        %v3403 = vmul.f32 %v3378, %v1433
        %3428 = vrot.lane.b32.xlu0 %v3380, 124
        %v3429 = vpop.permute.xlu0 %3428
        %3430 = vrot.lane.b32.xlu0 %v3381, 124
        %v3431 = vpop.permute.xlu0 %3430
        %3432 = vrot.lane.b32.xlu0 %v3382, 124
        %v3433 = vpop.permute.xlu0 %3432
        %3434 = vrot.lane.b32.xlu0 %v3383, 124
        %v3435 = vpop.permute.xlu0 %3434
        %3436 = vrot.lane.b32.xlu0 %v3384, 124
        %v3437 = vpop.permute.xlu0 %3436
        %3438 = vrot.lane.b32.xlu0 %v3385, 124
        %v3439 = vpop.permute.xlu0 %3438
        %3440 = vrot.lane.b32.xlu0 %v3386, 124
        %v3441 = vpop.permute.xlu0 %3440
        %3442 = vrot.lane.b32.xlu0 %v3387, 124
        %v3443 = vpop.permute.xlu0 %3442
        %3444 = vrot.lane.b32.xlu0 %v3388, 124
        %v3445 = vpop.permute.xlu0 %3444
        %3446 = vrot.lane.b32.xlu0 %v3389, 124
        %v3447 = vpop.permute.xlu0 %3446
        %3448 = vrot.lane.b32.xlu0 %v3390, 124
        %v3449 = vpop.permute.xlu0 %3448
        %3450 = vrot.lane.b32.xlu0 %v3391, 124
        %v3451 = vpop.permute.xlu0 %3450
        %3452 = vrot.lane.b32.xlu0 %v3392, 124
        %v3453 = vpop.permute.xlu0 %3452
        %3454 = vrot.lane.b32.xlu0 %v3393, 124
        %v3455 = vpop.permute.xlu0 %3454
        %3456 = vrot.lane.b32.xlu0 %v3394, 124
        %v3457 = vpop.permute.xlu0 %3456
        %3458 = vrot.lane.b32.xlu0 %v3395, 124
        %v3459 = vpop.permute.xlu0 %3458
        %3460 = vrot.lane.b32.xlu0 %v3396, 124
        %v3461 = vpop.permute.xlu0 %3460
        %3462 = vrot.lane.b32.xlu0 %v3397, 124
        %v3463 = vpop.permute.xlu0 %3462
        %3464 = vrot.lane.b32.xlu0 %v3398, 124
        %v3465 = vpop.permute.xlu0 %3464
        %3466 = vrot.lane.b32.xlu0 %v3399, 124
        %v3467 = vpop.permute.xlu0 %3466
        %3468 = vrot.lane.b32.xlu0 %v3400, 124
        %v3469 = vpop.permute.xlu0 %3468
        %3470 = vrot.lane.b32.xlu0 %v3401, 124
        %v3471 = vpop.permute.xlu0 %3470
        %3472 = vrot.lane.b32.xlu0 %v3402, 124
        %v3473 = vpop.permute.xlu0 %3472
        %3474 = vrot.lane.b32.xlu0 %v3403, 124
        %v3475 = vpop.permute.xlu0 %3474
        %v3476 = vsel %vm2241, %v3429, %v3431
        %v3477 = vsel %vm2241, %v3431, %v3433
        %v3478 = vsel %vm2241, %v3435, %v3437
        %v3479 = vsel %vm2241, %v3437, %v3439
        %v3480 = vsel %vm2241, %v3441, %v3443
        %v3481 = vsel %vm2241, %v3443, %v3445
        %v3482 = vsel %vm2241, %v3447, %v3449
        %v3483 = vsel %vm2241, %v3449, %v3451
        %v3484 = vsel %vm2241, %v3453, %v3455
        %v3485 = vsel %vm2241, %v3455, %v3457
        %v3486 = vsel %vm2241, %v3459, %v3461
        %v3487 = vsel %vm2241, %v3461, %v3463
        %v3488 = vsel %vm2241, %v3465, %v3467
        %v3489 = vsel %vm2241, %v3467, %v3469
        %v3490 = vsel %vm2241, %v3471, %v3473
        %v3491 = vsel %vm2241, %v3473, %v3475
        %v3516 = vadd.f32 %v3324, %v3476
        %v3517 = vadd.f32 %v3325, %v3477
        %v3518 = vadd.f32 %v3326, %v3433
        %v3519 = vadd.f32 %v3327, %v3478
        %v3520 = vadd.f32 %v3328, %v3479
        %v3521 = vadd.f32 %v3329, %v3439
        %v3522 = vadd.f32 %v3330, %v3480
        %v3523 = vadd.f32 %v3331, %v3481
        %v3524 = vadd.f32 %v3332, %v3445
        %v3525 = vadd.f32 %v3333, %v3482
        %v3526 = vadd.f32 %v3334, %v3483
        %v3527 = vadd.f32 %v3335, %v3451
        %v3528 = vadd.f32 %v3336, %v3484
        %v3529 = vadd.f32 %v3337, %v3485
        %v3530 = vadd.f32 %v3338, %v3457
        %v3531 = vadd.f32 %v3339, %v3486
        %v3532 = vadd.f32 %v3340, %v3487
        %v3533 = vadd.f32 %v3341, %v3463
        %v3534 = vadd.f32 %v3342, %v3488
        %v3535 = vadd.f32 %v3343, %v3489
        %v3536 = vadd.f32 %v3344, %v3469
        %v3537 = vadd.f32 %v3345, %v3490
        %v3538 = vadd.f32 %v3346, %v3491
        %v3539 = vadd.f32 %v3347, %v3475
        %3540 = vset.pattern.permute.xlu0 12
        %3541 = vperm.xlu0 %3540, %v1438
        %v3542 = vpop.permute.xlu0 %3541
        %3544 = vset.pattern.permute.xlu0 12
        %3545 = vperm.xlu0 %3544, %v1439
        %v3546 = vpop.permute.xlu0 %3545
        %3548 = vset.pattern.permute.xlu0 12
        %3549 = vperm.xlu0 %3548, %v1440
        %v3550 = vpop.permute.xlu0 %3549
        %3552 = vset.pattern.permute.xlu0 12
        %3553 = vperm.xlu0 %3552, %v1441
        %v3554 = vpop.permute.xlu0 %3553
        %3556 = vset.pattern.permute.xlu0 12
        %3557 = vperm.xlu0 %3556, %v1442
        %v3558 = vpop.permute.xlu0 %3557
        %3560 = vset.pattern.permute.xlu0 12
        %3561 = vperm.xlu0 %3560, %v1443
        %v3562 = vpop.permute.xlu0 %3561
        %3564 = vset.pattern.permute.xlu0 12
        %3565 = vperm.xlu0 %3564, %v1444
        %v3566 = vpop.permute.xlu0 %3565
        %3568 = vset.pattern.permute.xlu0 12
        %3569 = vperm.xlu0 %3568, %v1445
        %v3570 = vpop.permute.xlu0 %3569
        %v3572 = vmul.f32 %v3542, %v1153
        %v3573 = vmul.f32 %v3542, %v1155
        %v3574 = vmul.f32 %v3542, %v1242
        %v3575 = vmul.f32 %v3546, %v1159
        %v3576 = vmul.f32 %v3546, %v1161
        %v3577 = vmul.f32 %v3546, %v1248
        %v3578 = vmul.f32 %v3550, %v1165
        %v3579 = vmul.f32 %v3550, %v1167
        %v3580 = vmul.f32 %v3550, %v1254
        %v3581 = vmul.f32 %v3554, %v1171
        %v3582 = vmul.f32 %v3554, %v1173
        %v3583 = vmul.f32 %v3554, %v1260
        %v3584 = vmul.f32 %v3558, %v1409
        %v3585 = vmul.f32 %v3558, %v1413
        %v3586 = vmul.f32 %v3558, %v1417
        %v3587 = vmul.f32 %v3562, %v1409
        %v3588 = vmul.f32 %v3562, %v1413
        %v3589 = vmul.f32 %v3562, %v1417
        %v3590 = vmul.f32 %v3566, %v1425
        %v3591 = vmul.f32 %v3566, %v1429
        %v3592 = vmul.f32 %v3566, %v1433
        %v3593 = vmul.f32 %v3570, %v1425
        %v3594 = vmul.f32 %v3570, %v1429
        %v3595 = vmul.f32 %v3570, %v1433
        %3620 = vrot.lane.b32.xlu0 %v3572, 123
        %v3621 = vpop.permute.xlu0 %3620
        %3622 = vrot.lane.b32.xlu0 %v3573, 123
        %v3623 = vpop.permute.xlu0 %3622
        %3624 = vrot.lane.b32.xlu0 %v3574, 123
        %v3625 = vpop.permute.xlu0 %3624
        %3626 = vrot.lane.b32.xlu0 %v3575, 123
        %v3627 = vpop.permute.xlu0 %3626
        %3628 = vrot.lane.b32.xlu0 %v3576, 123
        %v3629 = vpop.permute.xlu0 %3628
        %3630 = vrot.lane.b32.xlu0 %v3577, 123
        %v3631 = vpop.permute.xlu0 %3630
        %3632 = vrot.lane.b32.xlu0 %v3578, 123
        %v3633 = vpop.permute.xlu0 %3632
        %3634 = vrot.lane.b32.xlu0 %v3579, 123
        %v3635 = vpop.permute.xlu0 %3634
        %3636 = vrot.lane.b32.xlu0 %v3580, 123
        %v3637 = vpop.permute.xlu0 %3636
        %3638 = vrot.lane.b32.xlu0 %v3581, 123
        %v3639 = vpop.permute.xlu0 %3638
        %3640 = vrot.lane.b32.xlu0 %v3582, 123
        %v3641 = vpop.permute.xlu0 %3640
        %3642 = vrot.lane.b32.xlu0 %v3583, 123
        %v3643 = vpop.permute.xlu0 %3642
        %3644 = vrot.lane.b32.xlu0 %v3584, 123
        %v3645 = vpop.permute.xlu0 %3644
        %3646 = vrot.lane.b32.xlu0 %v3585, 123
        %v3647 = vpop.permute.xlu0 %3646
        %3648 = vrot.lane.b32.xlu0 %v3586, 123
        %v3649 = vpop.permute.xlu0 %3648
        %3650 = vrot.lane.b32.xlu0 %v3587, 123
        %v3651 = vpop.permute.xlu0 %3650
        %3652 = vrot.lane.b32.xlu0 %v3588, 123
        %v3653 = vpop.permute.xlu0 %3652
        %3654 = vrot.lane.b32.xlu0 %v3589, 123
        %v3655 = vpop.permute.xlu0 %3654
        %3656 = vrot.lane.b32.xlu0 %v3590, 123
        %v3657 = vpop.permute.xlu0 %3656
        %3658 = vrot.lane.b32.xlu0 %v3591, 123
        %v3659 = vpop.permute.xlu0 %3658
        %3660 = vrot.lane.b32.xlu0 %v3592, 123
        %v3661 = vpop.permute.xlu0 %3660
        %3662 = vrot.lane.b32.xlu0 %v3593, 123
        %v3663 = vpop.permute.xlu0 %3662
        %3664 = vrot.lane.b32.xlu0 %v3594, 123
        %v3665 = vpop.permute.xlu0 %3664
        %3666 = vrot.lane.b32.xlu0 %v3595, 123
        %v3667 = vpop.permute.xlu0 %3666
        %v3668 = vsel %vm2434, %v3621, %v3623
        %v3669 = vsel %vm2434, %v3623, %v3625
        %v3670 = vsel %vm2434, %v3627, %v3629
        %v3671 = vsel %vm2434, %v3629, %v3631
        %v3672 = vsel %vm2434, %v3633, %v3635
        %v3673 = vsel %vm2434, %v3635, %v3637
        %v3674 = vsel %vm2434, %v3639, %v3641
        %v3675 = vsel %vm2434, %v3641, %v3643
        %v3676 = vsel %vm2434, %v3645, %v3647
        %v3677 = vsel %vm2434, %v3647, %v3649
        %v3678 = vsel %vm2434, %v3651, %v3653
        %v3679 = vsel %vm2434, %v3653, %v3655
        %v3680 = vsel %vm2434, %v3657, %v3659
        %v3681 = vsel %vm2434, %v3659, %v3661
        %v3682 = vsel %vm2434, %v3663, %v3665
        %v3683 = vsel %vm2434, %v3665, %v3667
        %v3708 = vadd.f32 %v3516, %v3668
        %v3709 = vadd.f32 %v3517, %v3669
        %v3710 = vadd.f32 %v3518, %v3625
        %v3711 = vadd.f32 %v3519, %v3670
        %v3712 = vadd.f32 %v3520, %v3671
        %v3713 = vadd.f32 %v3521, %v3631
        %v3714 = vadd.f32 %v3522, %v3672
        %v3715 = vadd.f32 %v3523, %v3673
        %v3716 = vadd.f32 %v3524, %v3637
        %v3717 = vadd.f32 %v3525, %v3674
        %v3718 = vadd.f32 %v3526, %v3675
        %v3719 = vadd.f32 %v3527, %v3643
        %v3720 = vadd.f32 %v3528, %v3676
        %v3721 = vadd.f32 %v3529, %v3677
        %v3722 = vadd.f32 %v3530, %v3649
        %v3723 = vadd.f32 %v3531, %v3678
        %v3724 = vadd.f32 %v3532, %v3679
        %v3725 = vadd.f32 %v3533, %v3655
        %v3726 = vadd.f32 %v3534, %v3680
        %v3727 = vadd.f32 %v3535, %v3681
        %v3728 = vadd.f32 %v3536, %v3661
        %v3729 = vadd.f32 %v3537, %v3682
        %v3730 = vadd.f32 %v3538, %v3683
        %v3731 = vadd.f32 %v3539, %v3667
        %3732 = vset.pattern.permute.xlu0 13
        %3733 = vperm.xlu0 %3732, %v1438
        %v3734 = vpop.permute.xlu0 %3733
        %3736 = vset.pattern.permute.xlu0 13
        %3737 = vperm.xlu0 %3736, %v1439
        %v3738 = vpop.permute.xlu0 %3737
        %3740 = vset.pattern.permute.xlu0 13
        %3741 = vperm.xlu0 %3740, %v1440
        %v3742 = vpop.permute.xlu0 %3741
        %3744 = vset.pattern.permute.xlu0 13
        %3745 = vperm.xlu0 %3744, %v1441
        %v3746 = vpop.permute.xlu0 %3745
        %3748 = vset.pattern.permute.xlu0 13
        %3749 = vperm.xlu0 %3748, %v1442
        %v3750 = vpop.permute.xlu0 %3749
        %3752 = vset.pattern.permute.xlu0 13
        %3753 = vperm.xlu0 %3752, %v1443
        %v3754 = vpop.permute.xlu0 %3753
        %3756 = vset.pattern.permute.xlu0 13
        %3757 = vperm.xlu0 %3756, %v1444
        %v3758 = vpop.permute.xlu0 %3757
        %3760 = vset.pattern.permute.xlu0 13
        %3761 = vperm.xlu0 %3760, %v1445
        %v3762 = vpop.permute.xlu0 %3761
        %v3764 = vmul.f32 %v3734, %v1153
        %v3765 = vmul.f32 %v3734, %v1155
        %v3766 = vmul.f32 %v3734, %v1242
        %v3767 = vmul.f32 %v3738, %v1159
        %v3768 = vmul.f32 %v3738, %v1161
        %v3769 = vmul.f32 %v3738, %v1248
        %v3770 = vmul.f32 %v3742, %v1165
        %v3771 = vmul.f32 %v3742, %v1167
        %v3772 = vmul.f32 %v3742, %v1254
        %v3773 = vmul.f32 %v3746, %v1171
        %v3774 = vmul.f32 %v3746, %v1173
        %v3775 = vmul.f32 %v3746, %v1260
        %v3776 = vmul.f32 %v3750, %v1409
        %v3777 = vmul.f32 %v3750, %v1413
        %v3778 = vmul.f32 %v3750, %v1417
        %v3779 = vmul.f32 %v3754, %v1409
        %v3780 = vmul.f32 %v3754, %v1413
        %v3781 = vmul.f32 %v3754, %v1417
        %v3782 = vmul.f32 %v3758, %v1425
        %v3783 = vmul.f32 %v3758, %v1429
        %v3784 = vmul.f32 %v3758, %v1433
        %v3785 = vmul.f32 %v3762, %v1425
        %v3786 = vmul.f32 %v3762, %v1429
        %v3787 = vmul.f32 %v3762, %v1433
        %3812 = vrot.lane.b32.xlu0 %v3764, 122
        %v3813 = vpop.permute.xlu0 %3812
        %3814 = vrot.lane.b32.xlu0 %v3765, 122
        %v3815 = vpop.permute.xlu0 %3814
        %3816 = vrot.lane.b32.xlu0 %v3766, 122
        %v3817 = vpop.permute.xlu0 %3816
        %3818 = vrot.lane.b32.xlu0 %v3767, 122
        %v3819 = vpop.permute.xlu0 %3818
        %3820 = vrot.lane.b32.xlu0 %v3768, 122
        %v3821 = vpop.permute.xlu0 %3820
        %3822 = vrot.lane.b32.xlu0 %v3769, 122
        %v3823 = vpop.permute.xlu0 %3822
        %3824 = vrot.lane.b32.xlu0 %v3770, 122
        %v3825 = vpop.permute.xlu0 %3824
        %3826 = vrot.lane.b32.xlu0 %v3771, 122
        %v3827 = vpop.permute.xlu0 %3826
        %3828 = vrot.lane.b32.xlu0 %v3772, 122
        %v3829 = vpop.permute.xlu0 %3828
        %3830 = vrot.lane.b32.xlu0 %v3773, 122
        %v3831 = vpop.permute.xlu0 %3830
        %3832 = vrot.lane.b32.xlu0 %v3774, 122
        %v3833 = vpop.permute.xlu0 %3832
        %3834 = vrot.lane.b32.xlu0 %v3775, 122
        %v3835 = vpop.permute.xlu0 %3834
        %3836 = vrot.lane.b32.xlu0 %v3776, 122
        %v3837 = vpop.permute.xlu0 %3836
        %3838 = vrot.lane.b32.xlu0 %v3777, 122
        %v3839 = vpop.permute.xlu0 %3838
        %3840 = vrot.lane.b32.xlu0 %v3778, 122
        %v3841 = vpop.permute.xlu0 %3840
        %3842 = vrot.lane.b32.xlu0 %v3779, 122
        %v3843 = vpop.permute.xlu0 %3842
        %3844 = vrot.lane.b32.xlu0 %v3780, 122
        %v3845 = vpop.permute.xlu0 %3844
        %3846 = vrot.lane.b32.xlu0 %v3781, 122
        %v3847 = vpop.permute.xlu0 %3846
        %3848 = vrot.lane.b32.xlu0 %v3782, 122
        %v3849 = vpop.permute.xlu0 %3848
        %3850 = vrot.lane.b32.xlu0 %v3783, 122
        %v3851 = vpop.permute.xlu0 %3850
        %3852 = vrot.lane.b32.xlu0 %v3784, 122
        %v3853 = vpop.permute.xlu0 %3852
        %3854 = vrot.lane.b32.xlu0 %v3785, 122
        %v3855 = vpop.permute.xlu0 %3854
        %3856 = vrot.lane.b32.xlu0 %v3786, 122
        %v3857 = vpop.permute.xlu0 %3856
        %3858 = vrot.lane.b32.xlu0 %v3787, 122
        %v3859 = vpop.permute.xlu0 %3858
        %v3860 = vsel %vm2627, %v3813, %v3815
        %v3861 = vsel %vm2627, %v3815, %v3817
        %v3862 = vsel %vm2627, %v3819, %v3821
        %v3863 = vsel %vm2627, %v3821, %v3823
        %v3864 = vsel %vm2627, %v3825, %v3827
        %v3865 = vsel %vm2627, %v3827, %v3829
        %v3866 = vsel %vm2627, %v3831, %v3833
        %v3867 = vsel %vm2627, %v3833, %v3835
        %v3868 = vsel %vm2627, %v3837, %v3839
        %v3869 = vsel %vm2627, %v3839, %v3841
        %v3870 = vsel %vm2627, %v3843, %v3845
        %v3871 = vsel %vm2627, %v3845, %v3847
        %v3872 = vsel %vm2627, %v3849, %v3851
        %v3873 = vsel %vm2627, %v3851, %v3853
        %v3874 = vsel %vm2627, %v3855, %v3857
        %v3875 = vsel %vm2627, %v3857, %v3859
        %v3900 = vadd.f32 %v3708, %v3860
        %v3901 = vadd.f32 %v3709, %v3861
        %v3902 = vadd.f32 %v3710, %v3817
        %v3903 = vadd.f32 %v3711, %v3862
        %v3904 = vadd.f32 %v3712, %v3863
        %v3905 = vadd.f32 %v3713, %v3823
        %v3906 = vadd.f32 %v3714, %v3864
        %v3907 = vadd.f32 %v3715, %v3865
        %v3908 = vadd.f32 %v3716, %v3829
        %v3909 = vadd.f32 %v3717, %v3866
        %v3910 = vadd.f32 %v3718, %v3867
        %v3911 = vadd.f32 %v3719, %v3835
        %v3912 = vadd.f32 %v3720, %v3868
        %v3913 = vadd.f32 %v3721, %v3869
        %v3914 = vadd.f32 %v3722, %v3841
        %v3915 = vadd.f32 %v3723, %v3870
        %v3916 = vadd.f32 %v3724, %v3871
        %v3917 = vadd.f32 %v3725, %v3847
        %v3918 = vadd.f32 %v3726, %v3872
        %v3919 = vadd.f32 %v3727, %v3873
        %v3920 = vadd.f32 %v3728, %v3853
        %v3921 = vadd.f32 %v3729, %v3874
        %v3922 = vadd.f32 %v3730, %v3875
        %v3923 = vadd.f32 %v3731, %v3859
        %3924 = vset.pattern.permute.xlu0 14
        %3925 = vperm.xlu0 %3924, %v1438
        %v3926 = vpop.permute.xlu0 %3925
        %3928 = vset.pattern.permute.xlu0 14
        %3929 = vperm.xlu0 %3928, %v1439
        %v3930 = vpop.permute.xlu0 %3929
        %3932 = vset.pattern.permute.xlu0 14
        %3933 = vperm.xlu0 %3932, %v1440
        %v3934 = vpop.permute.xlu0 %3933
        %3936 = vset.pattern.permute.xlu0 14
        %3937 = vperm.xlu0 %3936, %v1441
        %v3938 = vpop.permute.xlu0 %3937
        %3940 = vset.pattern.permute.xlu0 14
        %3941 = vperm.xlu0 %3940, %v1442
        %v3942 = vpop.permute.xlu0 %3941
        %3944 = vset.pattern.permute.xlu0 14
        %3945 = vperm.xlu0 %3944, %v1443
        %v3946 = vpop.permute.xlu0 %3945
        %3948 = vset.pattern.permute.xlu0 14
        %3949 = vperm.xlu0 %3948, %v1444
        %v3950 = vpop.permute.xlu0 %3949
        %3952 = vset.pattern.permute.xlu0 14
        %3953 = vperm.xlu0 %3952, %v1445
        %v3954 = vpop.permute.xlu0 %3953
        %v3956 = vmul.f32 %v3926, %v1153
        %v3957 = vmul.f32 %v3926, %v1155
        %v3958 = vmul.f32 %v3926, %v1242
        %v3959 = vmul.f32 %v3926, %v1244
        %v3960 = vmul.f32 %v3930, %v1159
        %v3961 = vmul.f32 %v3930, %v1161
        %v3962 = vmul.f32 %v3930, %v1248
        %v3963 = vmul.f32 %v3930, %v1250
        %v3964 = vmul.f32 %v3934, %v1165
        %v3965 = vmul.f32 %v3934, %v1167
        %v3966 = vmul.f32 %v3934, %v1254
        %v3967 = vmul.f32 %v3934, %v1256
        %v3968 = vmul.f32 %v3938, %v1171
        %v3969 = vmul.f32 %v3938, %v1173
        %v3970 = vmul.f32 %v3938, %v1260
        %v3971 = vmul.f32 %v3938, %v1262
        %v3972 = vmul.f32 %v3942, %v1409
        %v3973 = vmul.f32 %v3942, %v1413
        %v3974 = vmul.f32 %v3942, %v1417
        %v3975 = vmul.f32 %v3942, %v1421
        %v3976 = vmul.f32 %v3946, %v1409
        %v3977 = vmul.f32 %v3946, %v1413
        %v3978 = vmul.f32 %v3946, %v1417
        %v3979 = vmul.f32 %v3946, %v1421
        %v3980 = vmul.f32 %v3950, %v1425
        %v3981 = vmul.f32 %v3950, %v1429
        %v3982 = vmul.f32 %v3950, %v1433
        %v3983 = vmul.f32 %v3950, %v1437
        %v3984 = vmul.f32 %v3954, %v1425
        %v3985 = vmul.f32 %v3954, %v1429
        %v3986 = vmul.f32 %v3954, %v1433
        %v3987 = vmul.f32 %v3954, %v1437
        %4020 = vrot.lane.b32.xlu0 %v3956, 84
        %v4021 = vpop.permute.xlu0 %4020
        %4022 = vrot.lane.b32.xlu0 %v3957, 84
        %v4023 = vpop.permute.xlu0 %4022
        %4024 = vrot.lane.b32.xlu0 %v3958, 84
        %v4025 = vpop.permute.xlu0 %4024
        %4026 = vrot.lane.b32.xlu0 %v3959, 84
        %v4027 = vpop.permute.xlu0 %4026
        %4028 = vrot.lane.b32.xlu0 %v3960, 84
        %v4029 = vpop.permute.xlu0 %4028
        %4030 = vrot.lane.b32.xlu0 %v3961, 84
        %v4031 = vpop.permute.xlu0 %4030
        %4032 = vrot.lane.b32.xlu0 %v3962, 84
        %v4033 = vpop.permute.xlu0 %4032
        %4034 = vrot.lane.b32.xlu0 %v3963, 84
        %v4035 = vpop.permute.xlu0 %4034
        %4036 = vrot.lane.b32.xlu0 %v3964, 84
        %v4037 = vpop.permute.xlu0 %4036
        %4038 = vrot.lane.b32.xlu0 %v3965, 84
        %v4039 = vpop.permute.xlu0 %4038
        %4040 = vrot.lane.b32.xlu0 %v3966, 84
        %v4041 = vpop.permute.xlu0 %4040
        %4042 = vrot.lane.b32.xlu0 %v3967, 84
        %v4043 = vpop.permute.xlu0 %4042
        %4044 = vrot.lane.b32.xlu0 %v3968, 84
        %v4045 = vpop.permute.xlu0 %4044
        %4046 = vrot.lane.b32.xlu0 %v3969, 84
        %v4047 = vpop.permute.xlu0 %4046
        %4048 = vrot.lane.b32.xlu0 %v3970, 84
        %v4049 = vpop.permute.xlu0 %4048
        %4050 = vrot.lane.b32.xlu0 %v3971, 84
        %v4051 = vpop.permute.xlu0 %4050
        %4052 = vrot.lane.b32.xlu0 %v3972, 84
        %v4053 = vpop.permute.xlu0 %4052
        %4054 = vrot.lane.b32.xlu0 %v3973, 84
        %v4055 = vpop.permute.xlu0 %4054
        %4056 = vrot.lane.b32.xlu0 %v3974, 84
        %v4057 = vpop.permute.xlu0 %4056
        %4058 = vrot.lane.b32.xlu0 %v3975, 84
        %v4059 = vpop.permute.xlu0 %4058
        %4060 = vrot.lane.b32.xlu0 %v3976, 84
        %v4061 = vpop.permute.xlu0 %4060
        %4062 = vrot.lane.b32.xlu0 %v3977, 84
        %v4063 = vpop.permute.xlu0 %4062
        %4064 = vrot.lane.b32.xlu0 %v3978, 84
        %v4065 = vpop.permute.xlu0 %4064
        %4066 = vrot.lane.b32.xlu0 %v3979, 84
        %v4067 = vpop.permute.xlu0 %4066
        %4068 = vrot.lane.b32.xlu0 %v3980, 84
        %v4069 = vpop.permute.xlu0 %4068
        %4070 = vrot.lane.b32.xlu0 %v3981, 84
        %v4071 = vpop.permute.xlu0 %4070
        %4072 = vrot.lane.b32.xlu0 %v3982, 84
        %v4073 = vpop.permute.xlu0 %4072
        %4074 = vrot.lane.b32.xlu0 %v3983, 84
        %v4075 = vpop.permute.xlu0 %4074
        %4076 = vrot.lane.b32.xlu0 %v3984, 84
        %v4077 = vpop.permute.xlu0 %4076
        %4078 = vrot.lane.b32.xlu0 %v3985, 84
        %v4079 = vpop.permute.xlu0 %4078
        %4080 = vrot.lane.b32.xlu0 %v3986, 84
        %v4081 = vpop.permute.xlu0 %4080
        %4082 = vrot.lane.b32.xlu0 %v3987, 84
        %v4083 = vpop.permute.xlu0 %4082
        %vm4084 = vcmask 687104
        %v4085 = vsel %vm4084, %v4021, %v4023
        %v4086 = vsel %vm4084, %v4023, %v4025
        %v4087 = vsel %vm4084, %v4025, %v4027
        %v4088 = vsel %vm4084, %v4029, %v4031
        %v4089 = vsel %vm4084, %v4031, %v4033
        %v4090 = vsel %vm4084, %v4033, %v4035
        %v4091 = vsel %vm4084, %v4037, %v4039
        %v4092 = vsel %vm4084, %v4039, %v4041
        %v4093 = vsel %vm4084, %v4041, %v4043
        %v4094 = vsel %vm4084, %v4045, %v4047
        %v4095 = vsel %vm4084, %v4047, %v4049
        %v4096 = vsel %vm4084, %v4049, %v4051
        %v4097 = vsel %vm4084, %v4053, %v4055
        %v4098 = vsel %vm4084, %v4055, %v4057
        %v4099 = vsel %vm4084, %v4057, %v4059
        %v4100 = vsel %vm4084, %v4061, %v4063
        %v4101 = vsel %vm4084, %v4063, %v4065
        %v4102 = vsel %vm4084, %v4065, %v4067
        %v4103 = vsel %vm4084, %v4069, %v4071
        %v4104 = vsel %vm4084, %v4071, %v4073
        %v4105 = vsel %vm4084, %v4073, %v4075
        %v4106 = vsel %vm4084, %v4077, %v4079
        %v4107 = vsel %vm4084, %v4079, %v4081
        %v4108 = vsel %vm4084, %v4081, %v4083
        %v4133 = vadd.f32 %v2668, %v4085
        %v4134 = vadd.f32 %v2669, %v4086
        %v4135 = vadd.f32 %v2670, %v4087
        %v4136 = vadd.f32 %v2671, %v4088
        %v4137 = vadd.f32 %v2672, %v4089
        %v4138 = vadd.f32 %v2673, %v4090
        %v4139 = vadd.f32 %v2674, %v4091
        %v4140 = vadd.f32 %v2675, %v4092
        %v4141 = vadd.f32 %v2676, %v4093
        %v4142 = vadd.f32 %v2677, %v4094
        %v4143 = vadd.f32 %v2678, %v4095
        %v4144 = vadd.f32 %v2679, %v4096
        %v4145 = vadd.f32 %v2680, %v4097
        %v4146 = vadd.f32 %v2681, %v4098
        %v4147 = vadd.f32 %v2682, %v4099
        %v4148 = vadd.f32 %v2683, %v4100
        %v4149 = vadd.f32 %v2684, %v4101
        %v4150 = vadd.f32 %v2685, %v4102
        %v4151 = vadd.f32 %v2686, %v4103
        %v4152 = vadd.f32 %v2687, %v4104
        %v4153 = vadd.f32 %v2688, %v4105
        %v4154 = vadd.f32 %v2689, %v4106
        %v4155 = vadd.f32 %v2690, %v4107
        %v4156 = vadd.f32 %v2691, %v4108
        %4157 = vset.pattern.permute.xlu0 15
        %4158 = vperm.xlu0 %4157, %v1438
        %v4159 = vpop.permute.xlu0 %4158
        %4161 = vset.pattern.permute.xlu0 15
        %4162 = vperm.xlu0 %4161, %v1439
        %v4163 = vpop.permute.xlu0 %4162
        %4165 = vset.pattern.permute.xlu0 15
        %4166 = vperm.xlu0 %4165, %v1440
        %v4167 = vpop.permute.xlu0 %4166
        %4169 = vset.pattern.permute.xlu0 15
        %4170 = vperm.xlu0 %4169, %v1441
        %v4171 = vpop.permute.xlu0 %4170
        %4173 = vset.pattern.permute.xlu0 15
        %4174 = vperm.xlu0 %4173, %v1442
        %v4175 = vpop.permute.xlu0 %4174
        %4177 = vset.pattern.permute.xlu0 15
        %4178 = vperm.xlu0 %4177, %v1443
        %v4179 = vpop.permute.xlu0 %4178
        %4181 = vset.pattern.permute.xlu0 15
        %4182 = vperm.xlu0 %4181, %v1444
        %v4183 = vpop.permute.xlu0 %4182
        %4185 = vset.pattern.permute.xlu0 15
        %4186 = vperm.xlu0 %4185, %v1445
        %v4187 = vpop.permute.xlu0 %4186
        %v4189 = vmul.f32 %v4159, %v1153
        %v4190 = vmul.f32 %v4159, %v1155
        %v4191 = vmul.f32 %v4159, %v1242
        %v4192 = vmul.f32 %v4159, %v1244
        %v4193 = vmul.f32 %v4163, %v1159
        %v4194 = vmul.f32 %v4163, %v1161
        %v4195 = vmul.f32 %v4163, %v1248
        %v4196 = vmul.f32 %v4163, %v1250
        %v4197 = vmul.f32 %v4167, %v1165
        %v4198 = vmul.f32 %v4167, %v1167
        %v4199 = vmul.f32 %v4167, %v1254
        %v4200 = vmul.f32 %v4167, %v1256
        %v4201 = vmul.f32 %v4171, %v1171
        %v4202 = vmul.f32 %v4171, %v1173
        %v4203 = vmul.f32 %v4171, %v1260
        %v4204 = vmul.f32 %v4171, %v1262
        %v4205 = vmul.f32 %v4175, %v1409
        %v4206 = vmul.f32 %v4175, %v1413
        %v4207 = vmul.f32 %v4175, %v1417
        %v4208 = vmul.f32 %v4175, %v1421
        %v4209 = vmul.f32 %v4179, %v1409
        %v4210 = vmul.f32 %v4179, %v1413
        %v4211 = vmul.f32 %v4179, %v1417
        %v4212 = vmul.f32 %v4179, %v1421
        %v4213 = vmul.f32 %v4183, %v1425
        %v4214 = vmul.f32 %v4183, %v1429
        %v4215 = vmul.f32 %v4183, %v1433
        %v4216 = vmul.f32 %v4183, %v1437
        %v4217 = vmul.f32 %v4187, %v1425
        %v4218 = vmul.f32 %v4187, %v1429
        %v4219 = vmul.f32 %v4187, %v1433
        %v4220 = vmul.f32 %v4187, %v1437
        %4253 = vrot.lane.b32.xlu0 %v4189, 83
        %v4254 = vpop.permute.xlu0 %4253
        %4255 = vrot.lane.b32.xlu0 %v4190, 83
        %v4256 = vpop.permute.xlu0 %4255
        %4257 = vrot.lane.b32.xlu0 %v4191, 83
        %v4258 = vpop.permute.xlu0 %4257
        %4259 = vrot.lane.b32.xlu0 %v4192, 83
        %v4260 = vpop.permute.xlu0 %4259
        %4261 = vrot.lane.b32.xlu0 %v4193, 83
        %v4262 = vpop.permute.xlu0 %4261
        %4263 = vrot.lane.b32.xlu0 %v4194, 83
        %v4264 = vpop.permute.xlu0 %4263
        %4265 = vrot.lane.b32.xlu0 %v4195, 83
        %v4266 = vpop.permute.xlu0 %4265
        %4267 = vrot.lane.b32.xlu0 %v4196, 83
        %v4268 = vpop.permute.xlu0 %4267
        %4269 = vrot.lane.b32.xlu0 %v4197, 83
        %v4270 = vpop.permute.xlu0 %4269
        %4271 = vrot.lane.b32.xlu0 %v4198, 83
        %v4272 = vpop.permute.xlu0 %4271
        %4273 = vrot.lane.b32.xlu0 %v4199, 83
        %v4274 = vpop.permute.xlu0 %4273
        %4275 = vrot.lane.b32.xlu0 %v4200, 83
        %v4276 = vpop.permute.xlu0 %4275
        %4277 = vrot.lane.b32.xlu0 %v4201, 83
        %v4278 = vpop.permute.xlu0 %4277
        %4279 = vrot.lane.b32.xlu0 %v4202, 83
        %v4280 = vpop.permute.xlu0 %4279
        %4281 = vrot.lane.b32.xlu0 %v4203, 83
        %v4282 = vpop.permute.xlu0 %4281
        %4283 = vrot.lane.b32.xlu0 %v4204, 83
        %v4284 = vpop.permute.xlu0 %4283
        %4285 = vrot.lane.b32.xlu0 %v4205, 83
        %v4286 = vpop.permute.xlu0 %4285
        %4287 = vrot.lane.b32.xlu0 %v4206, 83
        %v4288 = vpop.permute.xlu0 %4287
        %4289 = vrot.lane.b32.xlu0 %v4207, 83
        %v4290 = vpop.permute.xlu0 %4289
        %4291 = vrot.lane.b32.xlu0 %v4208, 83
        %v4292 = vpop.permute.xlu0 %4291
        %4293 = vrot.lane.b32.xlu0 %v4209, 83
        %v4294 = vpop.permute.xlu0 %4293
        %4295 = vrot.lane.b32.xlu0 %v4210, 83
        %v4296 = vpop.permute.xlu0 %4295
        %4297 = vrot.lane.b32.xlu0 %v4211, 83
        %v4298 = vpop.permute.xlu0 %4297
        %4299 = vrot.lane.b32.xlu0 %v4212, 83
        %v4300 = vpop.permute.xlu0 %4299
        %4301 = vrot.lane.b32.xlu0 %v4213, 83
        %v4302 = vpop.permute.xlu0 %4301
        %4303 = vrot.lane.b32.xlu0 %v4214, 83
        %v4304 = vpop.permute.xlu0 %4303
        %4305 = vrot.lane.b32.xlu0 %v4215, 83
        %v4306 = vpop.permute.xlu0 %4305
        %4307 = vrot.lane.b32.xlu0 %v4216, 83
        %v4308 = vpop.permute.xlu0 %4307
        %4309 = vrot.lane.b32.xlu0 %v4217, 83
        %v4310 = vpop.permute.xlu0 %4309
        %4311 = vrot.lane.b32.xlu0 %v4218, 83
        %v4312 = vpop.permute.xlu0 %4311
        %4313 = vrot.lane.b32.xlu0 %v4219, 83
        %v4314 = vpop.permute.xlu0 %4313
        %4315 = vrot.lane.b32.xlu0 %v4220, 83
        %v4316 = vpop.permute.xlu0 %4315
        %vm4317 = vcmask 678912
        %v4318 = vsel %vm4317, %v4254, %v4256
        %v4319 = vsel %vm4317, %v4256, %v4258
        %v4320 = vsel %vm4317, %v4258, %v4260
        %v4321 = vsel %vm4317, %v4262, %v4264
        %v4322 = vsel %vm4317, %v4264, %v4266
        %v4323 = vsel %vm4317, %v4266, %v4268
        %v4324 = vsel %vm4317, %v4270, %v4272
        %v4325 = vsel %vm4317, %v4272, %v4274
        %v4326 = vsel %vm4317, %v4274, %v4276
        %v4327 = vsel %vm4317, %v4278, %v4280
        %v4328 = vsel %vm4317, %v4280, %v4282
        %v4329 = vsel %vm4317, %v4282, %v4284
        %v4330 = vsel %vm4317, %v4286, %v4288
        %v4331 = vsel %vm4317, %v4288, %v4290
        %v4332 = vsel %vm4317, %v4290, %v4292
        %v4333 = vsel %vm4317, %v4294, %v4296
        %v4334 = vsel %vm4317, %v4296, %v4298
        %v4335 = vsel %vm4317, %v4298, %v4300
        %v4336 = vsel %vm4317, %v4302, %v4304
        %v4337 = vsel %vm4317, %v4304, %v4306
        %v4338 = vsel %vm4317, %v4306, %v4308
        %v4339 = vsel %vm4317, %v4310, %v4312
        %v4340 = vsel %vm4317, %v4312, %v4314
        %v4341 = vsel %vm4317, %v4314, %v4316
        %v4366 = vadd.f32 %v4133, %v4318
        %v4367 = vadd.f32 %v4134, %v4319
        %v4368 = vadd.f32 %v4135, %v4320
        %v4369 = vadd.f32 %v4136, %v4321
        %v4370 = vadd.f32 %v4137, %v4322
        %v4371 = vadd.f32 %v4138, %v4323
        %v4372 = vadd.f32 %v4139, %v4324
        %v4373 = vadd.f32 %v4140, %v4325
        %v4374 = vadd.f32 %v4141, %v4326
        %v4375 = vadd.f32 %v4142, %v4327
        %v4376 = vadd.f32 %v4143, %v4328
        %v4377 = vadd.f32 %v4144, %v4329
        %v4378 = vadd.f32 %v4145, %v4330
        %v4379 = vadd.f32 %v4146, %v4331
        %v4380 = vadd.f32 %v4147, %v4332
        %v4381 = vadd.f32 %v4148, %v4333
        %v4382 = vadd.f32 %v4149, %v4334
        %v4383 = vadd.f32 %v4150, %v4335
        %v4384 = vadd.f32 %v4151, %v4336
        %v4385 = vadd.f32 %v4152, %v4337
        %v4386 = vadd.f32 %v4153, %v4338
        %v4387 = vadd.f32 %v4154, %v4339
        %v4388 = vadd.f32 %v4155, %v4340
        %v4389 = vadd.f32 %v4156, %v4341
        %4390 = vset.pattern.permute.xlu0 16
        %4391 = vperm.xlu0 %4390, %v1438
        %v4392 = vpop.permute.xlu0 %4391
        %4394 = vset.pattern.permute.xlu0 16
        %4395 = vperm.xlu0 %4394, %v1439
        %v4396 = vpop.permute.xlu0 %4395
        %4398 = vset.pattern.permute.xlu0 16
        %4399 = vperm.xlu0 %4398, %v1440
        %v4400 = vpop.permute.xlu0 %4399
        %4402 = vset.pattern.permute.xlu0 16
        %4403 = vperm.xlu0 %4402, %v1441
        %v4404 = vpop.permute.xlu0 %4403
        %4406 = vset.pattern.permute.xlu0 16
        %4407 = vperm.xlu0 %4406, %v1442
        %v4408 = vpop.permute.xlu0 %4407
        %4410 = vset.pattern.permute.xlu0 16
        %4411 = vperm.xlu0 %4410, %v1443
        %v4412 = vpop.permute.xlu0 %4411
        %4414 = vset.pattern.permute.xlu0 16
        %4415 = vperm.xlu0 %4414, %v1444
        %v4416 = vpop.permute.xlu0 %4415
        %4418 = vset.pattern.permute.xlu0 16
        %4419 = vperm.xlu0 %4418, %v1445
        %v4420 = vpop.permute.xlu0 %4419
        %v4422 = vmul.f32 %v4392, %v1153
        %v4423 = vmul.f32 %v4392, %v1155
        %v4424 = vmul.f32 %v4392, %v1242
        %v4425 = vmul.f32 %v4392, %v1244
        %v4426 = vmul.f32 %v4396, %v1159
        %v4427 = vmul.f32 %v4396, %v1161
        %v4428 = vmul.f32 %v4396, %v1248
        %v4429 = vmul.f32 %v4396, %v1250
        %v4430 = vmul.f32 %v4400, %v1165
        %v4431 = vmul.f32 %v4400, %v1167
        %v4432 = vmul.f32 %v4400, %v1254
        %v4433 = vmul.f32 %v4400, %v1256
        %v4434 = vmul.f32 %v4404, %v1171
        %v4435 = vmul.f32 %v4404, %v1173
        %v4436 = vmul.f32 %v4404, %v1260
        %v4437 = vmul.f32 %v4404, %v1262
        %v4438 = vmul.f32 %v4408, %v1409
        %v4439 = vmul.f32 %v4408, %v1413
        %v4440 = vmul.f32 %v4408, %v1417
        %v4441 = vmul.f32 %v4408, %v1421
        %v4442 = vmul.f32 %v4412, %v1409
        %v4443 = vmul.f32 %v4412, %v1413
        %v4444 = vmul.f32 %v4412, %v1417
        %v4445 = vmul.f32 %v4412, %v1421
        %v4446 = vmul.f32 %v4416, %v1425
        %v4447 = vmul.f32 %v4416, %v1429
        %v4448 = vmul.f32 %v4416, %v1433
        %v4449 = vmul.f32 %v4416, %v1437
        %v4450 = vmul.f32 %v4420, %v1425
        %v4451 = vmul.f32 %v4420, %v1429
        %v4452 = vmul.f32 %v4420, %v1433
        %v4453 = vmul.f32 %v4420, %v1437
        %4486 = vrot.lane.b32.xlu0 %v4422, 82
        %v4487 = vpop.permute.xlu0 %4486
        %4488 = vrot.lane.b32.xlu0 %v4423, 82
        %v4489 = vpop.permute.xlu0 %4488
        %4490 = vrot.lane.b32.xlu0 %v4424, 82
        %v4491 = vpop.permute.xlu0 %4490
        %4492 = vrot.lane.b32.xlu0 %v4425, 82
        %v4493 = vpop.permute.xlu0 %4492
        %4494 = vrot.lane.b32.xlu0 %v4426, 82
        %v4495 = vpop.permute.xlu0 %4494
        %4496 = vrot.lane.b32.xlu0 %v4427, 82
        %v4497 = vpop.permute.xlu0 %4496
        %4498 = vrot.lane.b32.xlu0 %v4428, 82
        %v4499 = vpop.permute.xlu0 %4498
        %4500 = vrot.lane.b32.xlu0 %v4429, 82
        %v4501 = vpop.permute.xlu0 %4500
        %4502 = vrot.lane.b32.xlu0 %v4430, 82
        %v4503 = vpop.permute.xlu0 %4502
        %4504 = vrot.lane.b32.xlu0 %v4431, 82
        %v4505 = vpop.permute.xlu0 %4504
        %4506 = vrot.lane.b32.xlu0 %v4432, 82
        %v4507 = vpop.permute.xlu0 %4506
        %4508 = vrot.lane.b32.xlu0 %v4433, 82
        %v4509 = vpop.permute.xlu0 %4508
        %4510 = vrot.lane.b32.xlu0 %v4434, 82
        %v4511 = vpop.permute.xlu0 %4510
        %4512 = vrot.lane.b32.xlu0 %v4435, 82
        %v4513 = vpop.permute.xlu0 %4512
        %4514 = vrot.lane.b32.xlu0 %v4436, 82
        %v4515 = vpop.permute.xlu0 %4514
        %4516 = vrot.lane.b32.xlu0 %v4437, 82
        %v4517 = vpop.permute.xlu0 %4516
        %4518 = vrot.lane.b32.xlu0 %v4438, 82
        %v4519 = vpop.permute.xlu0 %4518
        %4520 = vrot.lane.b32.xlu0 %v4439, 82
        %v4521 = vpop.permute.xlu0 %4520
        %4522 = vrot.lane.b32.xlu0 %v4440, 82
        %v4523 = vpop.permute.xlu0 %4522
        %4524 = vrot.lane.b32.xlu0 %v4441, 82
        %v4525 = vpop.permute.xlu0 %4524
        %4526 = vrot.lane.b32.xlu0 %v4442, 82
        %v4527 = vpop.permute.xlu0 %4526
        %4528 = vrot.lane.b32.xlu0 %v4443, 82
        %v4529 = vpop.permute.xlu0 %4528
        %4530 = vrot.lane.b32.xlu0 %v4444, 82
        %v4531 = vpop.permute.xlu0 %4530
        %4532 = vrot.lane.b32.xlu0 %v4445, 82
        %v4533 = vpop.permute.xlu0 %4532
        %4534 = vrot.lane.b32.xlu0 %v4446, 82
        %v4535 = vpop.permute.xlu0 %4534
        %4536 = vrot.lane.b32.xlu0 %v4447, 82
        %v4537 = vpop.permute.xlu0 %4536
        %4538 = vrot.lane.b32.xlu0 %v4448, 82
        %v4539 = vpop.permute.xlu0 %4538
        %4540 = vrot.lane.b32.xlu0 %v4449, 82
        %v4541 = vpop.permute.xlu0 %4540
        %4542 = vrot.lane.b32.xlu0 %v4450, 82
        %v4543 = vpop.permute.xlu0 %4542
        %4544 = vrot.lane.b32.xlu0 %v4451, 82
        %v4545 = vpop.permute.xlu0 %4544
        %4546 = vrot.lane.b32.xlu0 %v4452, 82
        %v4547 = vpop.permute.xlu0 %4546
        %4548 = vrot.lane.b32.xlu0 %v4453, 82
        %v4549 = vpop.permute.xlu0 %4548
        %vm4550 = vcmask 670720
        %v4551 = vsel %vm4550, %v4487, %v4489
        %v4552 = vsel %vm4550, %v4489, %v4491
        %v4553 = vsel %vm4550, %v4491, %v4493
        %v4554 = vsel %vm4550, %v4495, %v4497
        %v4555 = vsel %vm4550, %v4497, %v4499
        %v4556 = vsel %vm4550, %v4499, %v4501
        %v4557 = vsel %vm4550, %v4503, %v4505
        %v4558 = vsel %vm4550, %v4505, %v4507
        %v4559 = vsel %vm4550, %v4507, %v4509
        %v4560 = vsel %vm4550, %v4511, %v4513
        %v4561 = vsel %vm4550, %v4513, %v4515
        %v4562 = vsel %vm4550, %v4515, %v4517
        %v4563 = vsel %vm4550, %v4519, %v4521
        %v4564 = vsel %vm4550, %v4521, %v4523
        %v4565 = vsel %vm4550, %v4523, %v4525
        %v4566 = vsel %vm4550, %v4527, %v4529
        %v4567 = vsel %vm4550, %v4529, %v4531
        %v4568 = vsel %vm4550, %v4531, %v4533
        %v4569 = vsel %vm4550, %v4535, %v4537
        %v4570 = vsel %vm4550, %v4537, %v4539
        %v4571 = vsel %vm4550, %v4539, %v4541
        %v4572 = vsel %vm4550, %v4543, %v4545
        %v4573 = vsel %vm4550, %v4545, %v4547
        %v4574 = vsel %vm4550, %v4547, %v4549
        %v4599 = vadd.f32 %v4366, %v4551
        %v4600 = vadd.f32 %v4367, %v4552
        %v4601 = vadd.f32 %v4368, %v4553
        %v4602 = vadd.f32 %v4369, %v4554
        %v4603 = vadd.f32 %v4370, %v4555
        %v4604 = vadd.f32 %v4371, %v4556
        %v4605 = vadd.f32 %v4372, %v4557
        %v4606 = vadd.f32 %v4373, %v4558
        %v4607 = vadd.f32 %v4374, %v4559
        %v4608 = vadd.f32 %v4375, %v4560
        %v4609 = vadd.f32 %v4376, %v4561
        %v4610 = vadd.f32 %v4377, %v4562
        %v4611 = vadd.f32 %v4378, %v4563
        %v4612 = vadd.f32 %v4379, %v4564
        %v4613 = vadd.f32 %v4380, %v4565
        %v4614 = vadd.f32 %v4381, %v4566
        %v4615 = vadd.f32 %v4382, %v4567
        %v4616 = vadd.f32 %v4383, %v4568
        %v4617 = vadd.f32 %v4384, %v4569
        %v4618 = vadd.f32 %v4385, %v4570
        %v4619 = vadd.f32 %v4386, %v4571
        %v4620 = vadd.f32 %v4387, %v4572
        %v4621 = vadd.f32 %v4388, %v4573
        %v4622 = vadd.f32 %v4389, %v4574
        %4623 = vset.pattern.permute.xlu0 17
        %4624 = vperm.xlu0 %4623, %v1438
        %v4625 = vpop.permute.xlu0 %4624
        %4627 = vset.pattern.permute.xlu0 17
        %4628 = vperm.xlu0 %4627, %v1439
        %v4629 = vpop.permute.xlu0 %4628
        %4631 = vset.pattern.permute.xlu0 17
        %4632 = vperm.xlu0 %4631, %v1440
        %v4633 = vpop.permute.xlu0 %4632
        %4635 = vset.pattern.permute.xlu0 17
        %4636 = vperm.xlu0 %4635, %v1441
        %v4637 = vpop.permute.xlu0 %4636
        %4639 = vset.pattern.permute.xlu0 17
        %4640 = vperm.xlu0 %4639, %v1442
        %v4641 = vpop.permute.xlu0 %4640
        %4643 = vset.pattern.permute.xlu0 17
        %4644 = vperm.xlu0 %4643, %v1443
        %v4645 = vpop.permute.xlu0 %4644
        %4647 = vset.pattern.permute.xlu0 17
        %4648 = vperm.xlu0 %4647, %v1444
        %v4649 = vpop.permute.xlu0 %4648
        %4651 = vset.pattern.permute.xlu0 17
        %4652 = vperm.xlu0 %4651, %v1445
        %v4653 = vpop.permute.xlu0 %4652
        %v4655 = vmul.f32 %v4625, %v1153
        %v4656 = vmul.f32 %v4625, %v1155
        %v4657 = vmul.f32 %v4625, %v1242
        %v4658 = vmul.f32 %v4625, %v1244
        %v4659 = vmul.f32 %v4629, %v1159
        %v4660 = vmul.f32 %v4629, %v1161
        %v4661 = vmul.f32 %v4629, %v1248
        %v4662 = vmul.f32 %v4629, %v1250
        %v4663 = vmul.f32 %v4633, %v1165
        %v4664 = vmul.f32 %v4633, %v1167
        %v4665 = vmul.f32 %v4633, %v1254
        %v4666 = vmul.f32 %v4633, %v1256
        %v4667 = vmul.f32 %v4637, %v1171
        %v4668 = vmul.f32 %v4637, %v1173
        %v4669 = vmul.f32 %v4637, %v1260
        %v4670 = vmul.f32 %v4637, %v1262
        %v4671 = vmul.f32 %v4641, %v1409
        %v4672 = vmul.f32 %v4641, %v1413
        %v4673 = vmul.f32 %v4641, %v1417
        %v4674 = vmul.f32 %v4641, %v1421
        %v4675 = vmul.f32 %v4645, %v1409
        %v4676 = vmul.f32 %v4645, %v1413
        %v4677 = vmul.f32 %v4645, %v1417
        %v4678 = vmul.f32 %v4645, %v1421
        %v4679 = vmul.f32 %v4649, %v1425
        %v4680 = vmul.f32 %v4649, %v1429
        %v4681 = vmul.f32 %v4649, %v1433
        %v4682 = vmul.f32 %v4649, %v1437
        %v4683 = vmul.f32 %v4653, %v1425
        %v4684 = vmul.f32 %v4653, %v1429
        %v4685 = vmul.f32 %v4653, %v1433
        %v4686 = vmul.f32 %v4653, %v1437
        %4719 = vrot.lane.b32.xlu0 %v4655, 81
        %v4720 = vpop.permute.xlu0 %4719
        %4721 = vrot.lane.b32.xlu0 %v4656, 81
        %v4722 = vpop.permute.xlu0 %4721
        %4723 = vrot.lane.b32.xlu0 %v4657, 81
        %v4724 = vpop.permute.xlu0 %4723
        %4725 = vrot.lane.b32.xlu0 %v4658, 81
        %v4726 = vpop.permute.xlu0 %4725
        %4727 = vrot.lane.b32.xlu0 %v4659, 81
        %v4728 = vpop.permute.xlu0 %4727
        %4729 = vrot.lane.b32.xlu0 %v4660, 81
        %v4730 = vpop.permute.xlu0 %4729
        %4731 = vrot.lane.b32.xlu0 %v4661, 81
        %v4732 = vpop.permute.xlu0 %4731
        %4733 = vrot.lane.b32.xlu0 %v4662, 81
        %v4734 = vpop.permute.xlu0 %4733
        %4735 = vrot.lane.b32.xlu0 %v4663, 81
        %v4736 = vpop.permute.xlu0 %4735
        %4737 = vrot.lane.b32.xlu0 %v4664, 81
        %v4738 = vpop.permute.xlu0 %4737
        %4739 = vrot.lane.b32.xlu0 %v4665, 81
        %v4740 = vpop.permute.xlu0 %4739
        %4741 = vrot.lane.b32.xlu0 %v4666, 81
        %v4742 = vpop.permute.xlu0 %4741
        %4743 = vrot.lane.b32.xlu0 %v4667, 81
        %v4744 = vpop.permute.xlu0 %4743
        %4745 = vrot.lane.b32.xlu0 %v4668, 81
        %v4746 = vpop.permute.xlu0 %4745
        %4747 = vrot.lane.b32.xlu0 %v4669, 81
        %v4748 = vpop.permute.xlu0 %4747
        %4749 = vrot.lane.b32.xlu0 %v4670, 81
        %v4750 = vpop.permute.xlu0 %4749
        %4751 = vrot.lane.b32.xlu0 %v4671, 81
        %v4752 = vpop.permute.xlu0 %4751
        %4753 = vrot.lane.b32.xlu0 %v4672, 81
        %v4754 = vpop.permute.xlu0 %4753
        %4755 = vrot.lane.b32.xlu0 %v4673, 81
        %v4756 = vpop.permute.xlu0 %4755
        %4757 = vrot.lane.b32.xlu0 %v4674, 81
        %v4758 = vpop.permute.xlu0 %4757
        %4759 = vrot.lane.b32.xlu0 %v4675, 81
        %v4760 = vpop.permute.xlu0 %4759
        %4761 = vrot.lane.b32.xlu0 %v4676, 81
        %v4762 = vpop.permute.xlu0 %4761
        %4763 = vrot.lane.b32.xlu0 %v4677, 81
        %v4764 = vpop.permute.xlu0 %4763
        %4765 = vrot.lane.b32.xlu0 %v4678, 81
        %v4766 = vpop.permute.xlu0 %4765
        %4767 = vrot.lane.b32.xlu0 %v4679, 81
        %v4768 = vpop.permute.xlu0 %4767
        %4769 = vrot.lane.b32.xlu0 %v4680, 81
        %v4770 = vpop.permute.xlu0 %4769
        %4771 = vrot.lane.b32.xlu0 %v4681, 81
        %v4772 = vpop.permute.xlu0 %4771
        %4773 = vrot.lane.b32.xlu0 %v4682, 81
        %v4774 = vpop.permute.xlu0 %4773
        %4775 = vrot.lane.b32.xlu0 %v4683, 81
        %v4776 = vpop.permute.xlu0 %4775
        %4777 = vrot.lane.b32.xlu0 %v4684, 81
        %v4778 = vpop.permute.xlu0 %4777
        %4779 = vrot.lane.b32.xlu0 %v4685, 81
        %v4780 = vpop.permute.xlu0 %4779
        %4781 = vrot.lane.b32.xlu0 %v4686, 81
        %v4782 = vpop.permute.xlu0 %4781
        %vm4783 = vcmask 662528
        %v4784 = vsel %vm4783, %v4720, %v4722
        %v4785 = vsel %vm4783, %v4722, %v4724
        %v4786 = vsel %vm4783, %v4724, %v4726
        %v4787 = vsel %vm4783, %v4728, %v4730
        %v4788 = vsel %vm4783, %v4730, %v4732
        %v4789 = vsel %vm4783, %v4732, %v4734
        %v4790 = vsel %vm4783, %v4736, %v4738
        %v4791 = vsel %vm4783, %v4738, %v4740
        %v4792 = vsel %vm4783, %v4740, %v4742
        %v4793 = vsel %vm4783, %v4744, %v4746
        %v4794 = vsel %vm4783, %v4746, %v4748
        %v4795 = vsel %vm4783, %v4748, %v4750
        %v4796 = vsel %vm4783, %v4752, %v4754
        %v4797 = vsel %vm4783, %v4754, %v4756
        %v4798 = vsel %vm4783, %v4756, %v4758
        %v4799 = vsel %vm4783, %v4760, %v4762
        %v4800 = vsel %vm4783, %v4762, %v4764
        %v4801 = vsel %vm4783, %v4764, %v4766
        %v4802 = vsel %vm4783, %v4768, %v4770
        %v4803 = vsel %vm4783, %v4770, %v4772
        %v4804 = vsel %vm4783, %v4772, %v4774
        %v4805 = vsel %vm4783, %v4776, %v4778
        %v4806 = vsel %vm4783, %v4778, %v4780
        %v4807 = vsel %vm4783, %v4780, %v4782
        %v4832 = vadd.f32 %v4599, %v4784
        %v4833 = vadd.f32 %v4600, %v4785
        %v4834 = vadd.f32 %v4601, %v4786
        %v4835 = vadd.f32 %v4602, %v4787
        %v4836 = vadd.f32 %v4603, %v4788
        %v4837 = vadd.f32 %v4604, %v4789
        %v4838 = vadd.f32 %v4605, %v4790
        %v4839 = vadd.f32 %v4606, %v4791
        %v4840 = vadd.f32 %v4607, %v4792
        %v4841 = vadd.f32 %v4608, %v4793
        %v4842 = vadd.f32 %v4609, %v4794
        %v4843 = vadd.f32 %v4610, %v4795
        %v4844 = vadd.f32 %v4611, %v4796
        %v4845 = vadd.f32 %v4612, %v4797
        %v4846 = vadd.f32 %v4613, %v4798
        %v4847 = vadd.f32 %v4614, %v4799
        %v4848 = vadd.f32 %v4615, %v4800
        %v4849 = vadd.f32 %v4616, %v4801
        %v4850 = vadd.f32 %v4617, %v4802
        %v4851 = vadd.f32 %v4618, %v4803
        %v4852 = vadd.f32 %v4619, %v4804
        %v4853 = vadd.f32 %v4620, %v4805
        %v4854 = vadd.f32 %v4621, %v4806
        %v4855 = vadd.f32 %v4622, %v4807
        %4856 = vset.pattern.permute.xlu0 18
        %4857 = vperm.xlu0 %4856, %v1438
        %v4858 = vpop.permute.xlu0 %4857
        %4860 = vset.pattern.permute.xlu0 18
        %4861 = vperm.xlu0 %4860, %v1439
        %v4862 = vpop.permute.xlu0 %4861
        %4864 = vset.pattern.permute.xlu0 18
        %4865 = vperm.xlu0 %4864, %v1440
        %v4866 = vpop.permute.xlu0 %4865
        %4868 = vset.pattern.permute.xlu0 18
        %4869 = vperm.xlu0 %4868, %v1441
        %v4870 = vpop.permute.xlu0 %4869
        %4872 = vset.pattern.permute.xlu0 18
        %4873 = vperm.xlu0 %4872, %v1442
        %v4874 = vpop.permute.xlu0 %4873
        %4876 = vset.pattern.permute.xlu0 18
        %4877 = vperm.xlu0 %4876, %v1443
        %v4878 = vpop.permute.xlu0 %4877
        %4880 = vset.pattern.permute.xlu0 18
        %4881 = vperm.xlu0 %4880, %v1444
        %v4882 = vpop.permute.xlu0 %4881
        %4884 = vset.pattern.permute.xlu0 18
        %4885 = vperm.xlu0 %4884, %v1445
        %v4886 = vpop.permute.xlu0 %4885
        %v4888 = vmul.f32 %v4858, %v1153
        %v4889 = vmul.f32 %v4858, %v1155
        %v4890 = vmul.f32 %v4858, %v1242
        %v4891 = vmul.f32 %v4858, %v1244
        %v4892 = vmul.f32 %v4862, %v1159
        %v4893 = vmul.f32 %v4862, %v1161
        %v4894 = vmul.f32 %v4862, %v1248
        %v4895 = vmul.f32 %v4862, %v1250
        %v4896 = vmul.f32 %v4866, %v1165
        %v4897 = vmul.f32 %v4866, %v1167
        %v4898 = vmul.f32 %v4866, %v1254
        %v4899 = vmul.f32 %v4866, %v1256
        %v4900 = vmul.f32 %v4870, %v1171
        %v4901 = vmul.f32 %v4870, %v1173
        %v4902 = vmul.f32 %v4870, %v1260
        %v4903 = vmul.f32 %v4870, %v1262
        %v4904 = vmul.f32 %v4874, %v1409
        %v4905 = vmul.f32 %v4874, %v1413
        %v4906 = vmul.f32 %v4874, %v1417
        %v4907 = vmul.f32 %v4874, %v1421
        %v4908 = vmul.f32 %v4878, %v1409
        %v4909 = vmul.f32 %v4878, %v1413
        %v4910 = vmul.f32 %v4878, %v1417
        %v4911 = vmul.f32 %v4878, %v1421
        %v4912 = vmul.f32 %v4882, %v1425
        %v4913 = vmul.f32 %v4882, %v1429
        %v4914 = vmul.f32 %v4882, %v1433
        %v4915 = vmul.f32 %v4882, %v1437
        %v4916 = vmul.f32 %v4886, %v1425
        %v4917 = vmul.f32 %v4886, %v1429
        %v4918 = vmul.f32 %v4886, %v1433
        %v4919 = vmul.f32 %v4886, %v1437
        %4952 = vrot.lane.b32.xlu0 %v4888, 80
        %v4953 = vpop.permute.xlu0 %4952
        %4954 = vrot.lane.b32.xlu0 %v4889, 80
        %v4955 = vpop.permute.xlu0 %4954
        %4956 = vrot.lane.b32.xlu0 %v4890, 80
        %v4957 = vpop.permute.xlu0 %4956
        %4958 = vrot.lane.b32.xlu0 %v4891, 80
        %v4959 = vpop.permute.xlu0 %4958
        %4960 = vrot.lane.b32.xlu0 %v4892, 80
        %v4961 = vpop.permute.xlu0 %4960
        %4962 = vrot.lane.b32.xlu0 %v4893, 80
        %v4963 = vpop.permute.xlu0 %4962
        %4964 = vrot.lane.b32.xlu0 %v4894, 80
        %v4965 = vpop.permute.xlu0 %4964
        %4966 = vrot.lane.b32.xlu0 %v4895, 80
        %v4967 = vpop.permute.xlu0 %4966
        %4968 = vrot.lane.b32.xlu0 %v4896, 80
        %v4969 = vpop.permute.xlu0 %4968
        %4970 = vrot.lane.b32.xlu0 %v4897, 80
        %v4971 = vpop.permute.xlu0 %4970
        %4972 = vrot.lane.b32.xlu0 %v4898, 80
        %v4973 = vpop.permute.xlu0 %4972
        %4974 = vrot.lane.b32.xlu0 %v4899, 80
        %v4975 = vpop.permute.xlu0 %4974
        %4976 = vrot.lane.b32.xlu0 %v4900, 80
        %v4977 = vpop.permute.xlu0 %4976
        %4978 = vrot.lane.b32.xlu0 %v4901, 80
        %v4979 = vpop.permute.xlu0 %4978
        %4980 = vrot.lane.b32.xlu0 %v4902, 80
        %v4981 = vpop.permute.xlu0 %4980
        %4982 = vrot.lane.b32.xlu0 %v4903, 80
        %v4983 = vpop.permute.xlu0 %4982
        %4984 = vrot.lane.b32.xlu0 %v4904, 80
        %v4985 = vpop.permute.xlu0 %4984
        %4986 = vrot.lane.b32.xlu0 %v4905, 80
        %v4987 = vpop.permute.xlu0 %4986
        %4988 = vrot.lane.b32.xlu0 %v4906, 80
        %v4989 = vpop.permute.xlu0 %4988
        %4990 = vrot.lane.b32.xlu0 %v4907, 80
        %v4991 = vpop.permute.xlu0 %4990
        %4992 = vrot.lane.b32.xlu0 %v4908, 80
        %v4993 = vpop.permute.xlu0 %4992
        %4994 = vrot.lane.b32.xlu0 %v4909, 80
        %v4995 = vpop.permute.xlu0 %4994
        %4996 = vrot.lane.b32.xlu0 %v4910, 80
        %v4997 = vpop.permute.xlu0 %4996
        %4998 = vrot.lane.b32.xlu0 %v4911, 80
        %v4999 = vpop.permute.xlu0 %4998
        %5000 = vrot.lane.b32.xlu0 %v4912, 80
        %v5001 = vpop.permute.xlu0 %5000
        %5002 = vrot.lane.b32.xlu0 %v4913, 80
        %v5003 = vpop.permute.xlu0 %5002
        %5004 = vrot.lane.b32.xlu0 %v4914, 80
        %v5005 = vpop.permute.xlu0 %5004
        %5006 = vrot.lane.b32.xlu0 %v4915, 80
        %v5007 = vpop.permute.xlu0 %5006
        %5008 = vrot.lane.b32.xlu0 %v4916, 80
        %v5009 = vpop.permute.xlu0 %5008
        %5010 = vrot.lane.b32.xlu0 %v4917, 80
        %v5011 = vpop.permute.xlu0 %5010
        %5012 = vrot.lane.b32.xlu0 %v4918, 80
        %v5013 = vpop.permute.xlu0 %5012
        %5014 = vrot.lane.b32.xlu0 %v4919, 80
        %v5015 = vpop.permute.xlu0 %5014
        %vm5016 = vcmask 654336
        %v5017 = vsel %vm5016, %v4953, %v4955
        %v5018 = vsel %vm5016, %v4955, %v4957
        %v5019 = vsel %vm5016, %v4957, %v4959
        %v5020 = vsel %vm5016, %v4961, %v4963
        %v5021 = vsel %vm5016, %v4963, %v4965
        %v5022 = vsel %vm5016, %v4965, %v4967
        %v5023 = vsel %vm5016, %v4969, %v4971
        %v5024 = vsel %vm5016, %v4971, %v4973
        %v5025 = vsel %vm5016, %v4973, %v4975
        %v5026 = vsel %vm5016, %v4977, %v4979
        %v5027 = vsel %vm5016, %v4979, %v4981
        %v5028 = vsel %vm5016, %v4981, %v4983
        %v5029 = vsel %vm5016, %v4985, %v4987
        %v5030 = vsel %vm5016, %v4987, %v4989
        %v5031 = vsel %vm5016, %v4989, %v4991
        %v5032 = vsel %vm5016, %v4993, %v4995
        %v5033 = vsel %vm5016, %v4995, %v4997
        %v5034 = vsel %vm5016, %v4997, %v4999
        %v5035 = vsel %vm5016, %v5001, %v5003
        %v5036 = vsel %vm5016, %v5003, %v5005
        %v5037 = vsel %vm5016, %v5005, %v5007
        %v5038 = vsel %vm5016, %v5009, %v5011
        %v5039 = vsel %vm5016, %v5011, %v5013
        %v5040 = vsel %vm5016, %v5013, %v5015
        %v5065 = vadd.f32 %v4832, %v5017
        %v5066 = vadd.f32 %v4833, %v5018
        %v5067 = vadd.f32 %v4834, %v5019
        %v5068 = vadd.f32 %v4835, %v5020
        %v5069 = vadd.f32 %v4836, %v5021
        %v5070 = vadd.f32 %v4837, %v5022
        %v5071 = vadd.f32 %v4838, %v5023
        %v5072 = vadd.f32 %v4839, %v5024
        %v5073 = vadd.f32 %v4840, %v5025
        %v5074 = vadd.f32 %v4841, %v5026
        %v5075 = vadd.f32 %v4842, %v5027
        %v5076 = vadd.f32 %v4843, %v5028
        %v5077 = vadd.f32 %v4844, %v5029
        %v5078 = vadd.f32 %v4845, %v5030
        %v5079 = vadd.f32 %v4846, %v5031
        %v5080 = vadd.f32 %v4847, %v5032
        %v5081 = vadd.f32 %v4848, %v5033
        %v5082 = vadd.f32 %v4849, %v5034
        %v5083 = vadd.f32 %v4850, %v5035
        %v5084 = vadd.f32 %v4851, %v5036
        %v5085 = vadd.f32 %v4852, %v5037
        %v5086 = vadd.f32 %v4853, %v5038
        %v5087 = vadd.f32 %v4854, %v5039
        %v5088 = vadd.f32 %v4855, %v5040
        %5089 = vset.pattern.permute.xlu0 19
        %5090 = vperm.xlu0 %5089, %v1438
        %v5091 = vpop.permute.xlu0 %5090
        %5093 = vset.pattern.permute.xlu0 19
        %5094 = vperm.xlu0 %5093, %v1439
        %v5095 = vpop.permute.xlu0 %5094
        %5097 = vset.pattern.permute.xlu0 19
        %5098 = vperm.xlu0 %5097, %v1440
        %v5099 = vpop.permute.xlu0 %5098
        %5101 = vset.pattern.permute.xlu0 19
        %5102 = vperm.xlu0 %5101, %v1441
        %v5103 = vpop.permute.xlu0 %5102
        %5105 = vset.pattern.permute.xlu0 19
        %5106 = vperm.xlu0 %5105, %v1442
        %v5107 = vpop.permute.xlu0 %5106
        %5109 = vset.pattern.permute.xlu0 19
        %5110 = vperm.xlu0 %5109, %v1443
        %v5111 = vpop.permute.xlu0 %5110
        %5113 = vset.pattern.permute.xlu0 19
        %5114 = vperm.xlu0 %5113, %v1444
        %v5115 = vpop.permute.xlu0 %5114
        %5117 = vset.pattern.permute.xlu0 19
        %5118 = vperm.xlu0 %5117, %v1445
        %v5119 = vpop.permute.xlu0 %5118
        %v5121 = vmul.f32 %v5091, %v1153
        %v5122 = vmul.f32 %v5091, %v1155
        %v5123 = vmul.f32 %v5091, %v1242
        %v5124 = vmul.f32 %v5091, %v1244
        %v5125 = vmul.f32 %v5095, %v1159
        %v5126 = vmul.f32 %v5095, %v1161
        %v5127 = vmul.f32 %v5095, %v1248
        %v5128 = vmul.f32 %v5095, %v1250
        %v5129 = vmul.f32 %v5099, %v1165
        %v5130 = vmul.f32 %v5099, %v1167
        %v5131 = vmul.f32 %v5099, %v1254
        %v5132 = vmul.f32 %v5099, %v1256
        %v5133 = vmul.f32 %v5103, %v1171
        %v5134 = vmul.f32 %v5103, %v1173
        %v5135 = vmul.f32 %v5103, %v1260
        %v5136 = vmul.f32 %v5103, %v1262
        %v5137 = vmul.f32 %v5107, %v1409
        %v5138 = vmul.f32 %v5107, %v1413
        %v5139 = vmul.f32 %v5107, %v1417
        %v5140 = vmul.f32 %v5107, %v1421
        %v5141 = vmul.f32 %v5111, %v1409
        %v5142 = vmul.f32 %v5111, %v1413
        %v5143 = vmul.f32 %v5111, %v1417
        %v5144 = vmul.f32 %v5111, %v1421
        %v5145 = vmul.f32 %v5115, %v1425
        %v5146 = vmul.f32 %v5115, %v1429
        %v5147 = vmul.f32 %v5115, %v1433
        %v5148 = vmul.f32 %v5115, %v1437
        %v5149 = vmul.f32 %v5119, %v1425
        %v5150 = vmul.f32 %v5119, %v1429
        %v5151 = vmul.f32 %v5119, %v1433
        %v5152 = vmul.f32 %v5119, %v1437
        %5185 = vrot.lane.b32.xlu0 %v5121, 79
        %v5186 = vpop.permute.xlu0 %5185
        %5187 = vrot.lane.b32.xlu0 %v5122, 79
        %v5188 = vpop.permute.xlu0 %5187
        %5189 = vrot.lane.b32.xlu0 %v5123, 79
        %v5190 = vpop.permute.xlu0 %5189
        %5191 = vrot.lane.b32.xlu0 %v5124, 79
        %v5192 = vpop.permute.xlu0 %5191
        %5193 = vrot.lane.b32.xlu0 %v5125, 79
        %v5194 = vpop.permute.xlu0 %5193
        %5195 = vrot.lane.b32.xlu0 %v5126, 79
        %v5196 = vpop.permute.xlu0 %5195
        %5197 = vrot.lane.b32.xlu0 %v5127, 79
        %v5198 = vpop.permute.xlu0 %5197
        %5199 = vrot.lane.b32.xlu0 %v5128, 79
        %v5200 = vpop.permute.xlu0 %5199
        %5201 = vrot.lane.b32.xlu0 %v5129, 79
        %v5202 = vpop.permute.xlu0 %5201
        %5203 = vrot.lane.b32.xlu0 %v5130, 79
        %v5204 = vpop.permute.xlu0 %5203
        %5205 = vrot.lane.b32.xlu0 %v5131, 79
        %v5206 = vpop.permute.xlu0 %5205
        %5207 = vrot.lane.b32.xlu0 %v5132, 79
        %v5208 = vpop.permute.xlu0 %5207
        %5209 = vrot.lane.b32.xlu0 %v5133, 79
        %v5210 = vpop.permute.xlu0 %5209
        %5211 = vrot.lane.b32.xlu0 %v5134, 79
        %v5212 = vpop.permute.xlu0 %5211
        %5213 = vrot.lane.b32.xlu0 %v5135, 79
        %v5214 = vpop.permute.xlu0 %5213
        %5215 = vrot.lane.b32.xlu0 %v5136, 79
        %v5216 = vpop.permute.xlu0 %5215
        %5217 = vrot.lane.b32.xlu0 %v5137, 79
        %v5218 = vpop.permute.xlu0 %5217
        %5219 = vrot.lane.b32.xlu0 %v5138, 79
        %v5220 = vpop.permute.xlu0 %5219
        %5221 = vrot.lane.b32.xlu0 %v5139, 79
        %v5222 = vpop.permute.xlu0 %5221
        %5223 = vrot.lane.b32.xlu0 %v5140, 79
        %v5224 = vpop.permute.xlu0 %5223
        %5225 = vrot.lane.b32.xlu0 %v5141, 79
        %v5226 = vpop.permute.xlu0 %5225
        %5227 = vrot.lane.b32.xlu0 %v5142, 79
        %v5228 = vpop.permute.xlu0 %5227
        %5229 = vrot.lane.b32.xlu0 %v5143, 79
        %v5230 = vpop.permute.xlu0 %5229
        %5231 = vrot.lane.b32.xlu0 %v5144, 79
        %v5232 = vpop.permute.xlu0 %5231
        %5233 = vrot.lane.b32.xlu0 %v5145, 79
        %v5234 = vpop.permute.xlu0 %5233
        %5235 = vrot.lane.b32.xlu0 %v5146, 79
        %v5236 = vpop.permute.xlu0 %5235
        %5237 = vrot.lane.b32.xlu0 %v5147, 79
        %v5238 = vpop.permute.xlu0 %5237
        %5239 = vrot.lane.b32.xlu0 %v5148, 79
        %v5240 = vpop.permute.xlu0 %5239
        %5241 = vrot.lane.b32.xlu0 %v5149, 79
        %v5242 = vpop.permute.xlu0 %5241
        %5243 = vrot.lane.b32.xlu0 %v5150, 79
        %v5244 = vpop.permute.xlu0 %5243
        %5245 = vrot.lane.b32.xlu0 %v5151, 79
        %v5246 = vpop.permute.xlu0 %5245
        %5247 = vrot.lane.b32.xlu0 %v5152, 79
        %v5248 = vpop.permute.xlu0 %5247
        %vm5249 = vcmask 646144
        %v5250 = vsel %vm5249, %v5186, %v5188
        %v5251 = vsel %vm5249, %v5188, %v5190
        %v5252 = vsel %vm5249, %v5190, %v5192
        %v5253 = vsel %vm5249, %v5194, %v5196
        %v5254 = vsel %vm5249, %v5196, %v5198
        %v5255 = vsel %vm5249, %v5198, %v5200
        %v5256 = vsel %vm5249, %v5202, %v5204
        %v5257 = vsel %vm5249, %v5204, %v5206
        %v5258 = vsel %vm5249, %v5206, %v5208
        %v5259 = vsel %vm5249, %v5210, %v5212
        %v5260 = vsel %vm5249, %v5212, %v5214
        %v5261 = vsel %vm5249, %v5214, %v5216
        %v5262 = vsel %vm5249, %v5218, %v5220
        %v5263 = vsel %vm5249, %v5220, %v5222
        %v5264 = vsel %vm5249, %v5222, %v5224
        %v5265 = vsel %vm5249, %v5226, %v5228
        %v5266 = vsel %vm5249, %v5228, %v5230
        %v5267 = vsel %vm5249, %v5230, %v5232
        %v5268 = vsel %vm5249, %v5234, %v5236
        %v5269 = vsel %vm5249, %v5236, %v5238
        %v5270 = vsel %vm5249, %v5238, %v5240
        %v5271 = vsel %vm5249, %v5242, %v5244
        %v5272 = vsel %vm5249, %v5244, %v5246
        %v5273 = vsel %vm5249, %v5246, %v5248
        %v5298 = vadd.f32 %v5065, %v5250
        %v5299 = vadd.f32 %v5066, %v5251
        %v5300 = vadd.f32 %v5067, %v5252
        %v5301 = vadd.f32 %v5068, %v5253
        %v5302 = vadd.f32 %v5069, %v5254
        %v5303 = vadd.f32 %v5070, %v5255
        %v5304 = vadd.f32 %v5071, %v5256
        %v5305 = vadd.f32 %v5072, %v5257
        %v5306 = vadd.f32 %v5073, %v5258
        %v5307 = vadd.f32 %v5074, %v5259
        %v5308 = vadd.f32 %v5075, %v5260
        %v5309 = vadd.f32 %v5076, %v5261
        %v5310 = vadd.f32 %v5077, %v5262
        %v5311 = vadd.f32 %v5078, %v5263
        %v5312 = vadd.f32 %v5079, %v5264
        %v5313 = vadd.f32 %v5080, %v5265
        %v5314 = vadd.f32 %v5081, %v5266
        %v5315 = vadd.f32 %v5082, %v5267
        %v5316 = vadd.f32 %v5083, %v5268
        %v5317 = vadd.f32 %v5084, %v5269
        %v5318 = vadd.f32 %v5085, %v5270
        %v5319 = vadd.f32 %v5086, %v5271
        %v5320 = vadd.f32 %v5087, %v5272
        %v5321 = vadd.f32 %v5088, %v5273
        %5322 = vset.pattern.permute.xlu0 20
        %5323 = vperm.xlu0 %5322, %v1438
        %v5324 = vpop.permute.xlu0 %5323
        %5326 = vset.pattern.permute.xlu0 20
        %5327 = vperm.xlu0 %5326, %v1439
        %v5328 = vpop.permute.xlu0 %5327
        %5330 = vset.pattern.permute.xlu0 20
        %5331 = vperm.xlu0 %5330, %v1440
        %v5332 = vpop.permute.xlu0 %5331
        %5334 = vset.pattern.permute.xlu0 20
        %5335 = vperm.xlu0 %5334, %v1441
        %v5336 = vpop.permute.xlu0 %5335
        %5338 = vset.pattern.permute.xlu0 20
        %5339 = vperm.xlu0 %5338, %v1442
        %v5340 = vpop.permute.xlu0 %5339
        %5342 = vset.pattern.permute.xlu0 20
        %5343 = vperm.xlu0 %5342, %v1443
        %v5344 = vpop.permute.xlu0 %5343
        %5346 = vset.pattern.permute.xlu0 20
        %5347 = vperm.xlu0 %5346, %v1444
        %v5348 = vpop.permute.xlu0 %5347
        %5350 = vset.pattern.permute.xlu0 20
        %5351 = vperm.xlu0 %5350, %v1445
        %v5352 = vpop.permute.xlu0 %5351
        %v5354 = vmul.f32 %v5324, %v1153
        %v5355 = vmul.f32 %v5324, %v1155
        %v5356 = vmul.f32 %v5324, %v1242
        %v5357 = vmul.f32 %v5324, %v1244
        %v5358 = vmul.f32 %v5328, %v1159
        %v5359 = vmul.f32 %v5328, %v1161
        %v5360 = vmul.f32 %v5328, %v1248
        %v5361 = vmul.f32 %v5328, %v1250
        %v5362 = vmul.f32 %v5332, %v1165
        %v5363 = vmul.f32 %v5332, %v1167
        %v5364 = vmul.f32 %v5332, %v1254
        %v5365 = vmul.f32 %v5332, %v1256
        %v5366 = vmul.f32 %v5336, %v1171
        %v5367 = vmul.f32 %v5336, %v1173
        %v5368 = vmul.f32 %v5336, %v1260
        %v5369 = vmul.f32 %v5336, %v1262
        %v5370 = vmul.f32 %v5340, %v1409
        %v5371 = vmul.f32 %v5340, %v1413
        %v5372 = vmul.f32 %v5340, %v1417
        %v5373 = vmul.f32 %v5340, %v1421
        %v5374 = vmul.f32 %v5344, %v1409
        %v5375 = vmul.f32 %v5344, %v1413
        %v5376 = vmul.f32 %v5344, %v1417
        %v5377 = vmul.f32 %v5344, %v1421
        %v5378 = vmul.f32 %v5348, %v1425
        %v5379 = vmul.f32 %v5348, %v1429
        %v5380 = vmul.f32 %v5348, %v1433
        %v5381 = vmul.f32 %v5348, %v1437
        %v5382 = vmul.f32 %v5352, %v1425
        %v5383 = vmul.f32 %v5352, %v1429
        %v5384 = vmul.f32 %v5352, %v1433
        %v5385 = vmul.f32 %v5352, %v1437
        %5418 = vrot.lane.b32.xlu0 %v5354, 78
        %v5419 = vpop.permute.xlu0 %5418
        %5420 = vrot.lane.b32.xlu0 %v5355, 78
        %v5421 = vpop.permute.xlu0 %5420
        %5422 = vrot.lane.b32.xlu0 %v5356, 78
        %v5423 = vpop.permute.xlu0 %5422
        %5424 = vrot.lane.b32.xlu0 %v5357, 78
        %v5425 = vpop.permute.xlu0 %5424
        %5426 = vrot.lane.b32.xlu0 %v5358, 78
        %v5427 = vpop.permute.xlu0 %5426
        %5428 = vrot.lane.b32.xlu0 %v5359, 78
        %v5429 = vpop.permute.xlu0 %5428
        %5430 = vrot.lane.b32.xlu0 %v5360, 78
        %v5431 = vpop.permute.xlu0 %5430
        %5432 = vrot.lane.b32.xlu0 %v5361, 78
        %v5433 = vpop.permute.xlu0 %5432
        %5434 = vrot.lane.b32.xlu0 %v5362, 78
        %v5435 = vpop.permute.xlu0 %5434
        %5436 = vrot.lane.b32.xlu0 %v5363, 78
        %v5437 = vpop.permute.xlu0 %5436
        %5438 = vrot.lane.b32.xlu0 %v5364, 78
        %v5439 = vpop.permute.xlu0 %5438
        %5440 = vrot.lane.b32.xlu0 %v5365, 78
        %v5441 = vpop.permute.xlu0 %5440
        %5442 = vrot.lane.b32.xlu0 %v5366, 78
        %v5443 = vpop.permute.xlu0 %5442
        %5444 = vrot.lane.b32.xlu0 %v5367, 78
        %v5445 = vpop.permute.xlu0 %5444
        %5446 = vrot.lane.b32.xlu0 %v5368, 78
        %v5447 = vpop.permute.xlu0 %5446
        %5448 = vrot.lane.b32.xlu0 %v5369, 78
        %v5449 = vpop.permute.xlu0 %5448
        %5450 = vrot.lane.b32.xlu0 %v5370, 78
        %v5451 = vpop.permute.xlu0 %5450
        %5452 = vrot.lane.b32.xlu0 %v5371, 78
        %v5453 = vpop.permute.xlu0 %5452
        %5454 = vrot.lane.b32.xlu0 %v5372, 78
        %v5455 = vpop.permute.xlu0 %5454
        %5456 = vrot.lane.b32.xlu0 %v5373, 78
        %v5457 = vpop.permute.xlu0 %5456
        %5458 = vrot.lane.b32.xlu0 %v5374, 78
        %v5459 = vpop.permute.xlu0 %5458
        %5460 = vrot.lane.b32.xlu0 %v5375, 78
        %v5461 = vpop.permute.xlu0 %5460
        %5462 = vrot.lane.b32.xlu0 %v5376, 78
        %v5463 = vpop.permute.xlu0 %5462
        %5464 = vrot.lane.b32.xlu0 %v5377, 78
        %v5465 = vpop.permute.xlu0 %5464
        %5466 = vrot.lane.b32.xlu0 %v5378, 78
        %v5467 = vpop.permute.xlu0 %5466
        %5468 = vrot.lane.b32.xlu0 %v5379, 78
        %v5469 = vpop.permute.xlu0 %5468
        %5470 = vrot.lane.b32.xlu0 %v5380, 78
        %v5471 = vpop.permute.xlu0 %5470
        %5472 = vrot.lane.b32.xlu0 %v5381, 78
        %v5473 = vpop.permute.xlu0 %5472
        %5474 = vrot.lane.b32.xlu0 %v5382, 78
        %v5475 = vpop.permute.xlu0 %5474
        %5476 = vrot.lane.b32.xlu0 %v5383, 78
        %v5477 = vpop.permute.xlu0 %5476
        %5478 = vrot.lane.b32.xlu0 %v5384, 78
        %v5479 = vpop.permute.xlu0 %5478
        %5480 = vrot.lane.b32.xlu0 %v5385, 78
        %v5481 = vpop.permute.xlu0 %5480
        %vm5482 = vcmask 637952
        %v5483 = vsel %vm5482, %v5419, %v5421
        %v5484 = vsel %vm5482, %v5421, %v5423
        %v5485 = vsel %vm5482, %v5423, %v5425
        %v5486 = vsel %vm5482, %v5427, %v5429
        %v5487 = vsel %vm5482, %v5429, %v5431
        %v5488 = vsel %vm5482, %v5431, %v5433
        %v5489 = vsel %vm5482, %v5435, %v5437
        %v5490 = vsel %vm5482, %v5437, %v5439
        %v5491 = vsel %vm5482, %v5439, %v5441
        %v5492 = vsel %vm5482, %v5443, %v5445
        %v5493 = vsel %vm5482, %v5445, %v5447
        %v5494 = vsel %vm5482, %v5447, %v5449
        %v5495 = vsel %vm5482, %v5451, %v5453
        %v5496 = vsel %vm5482, %v5453, %v5455
        %v5497 = vsel %vm5482, %v5455, %v5457
        %v5498 = vsel %vm5482, %v5459, %v5461
        %v5499 = vsel %vm5482, %v5461, %v5463
        %v5500 = vsel %vm5482, %v5463, %v5465
        %v5501 = vsel %vm5482, %v5467, %v5469
        %v5502 = vsel %vm5482, %v5469, %v5471
        %v5503 = vsel %vm5482, %v5471, %v5473
        %v5504 = vsel %vm5482, %v5475, %v5477
        %v5505 = vsel %vm5482, %v5477, %v5479
        %v5506 = vsel %vm5482, %v5479, %v5481
        %v5531 = vadd.f32 %v5298, %v5483
        %v5532 = vadd.f32 %v5299, %v5484
        %v5533 = vadd.f32 %v5300, %v5485
        %v5534 = vadd.f32 %v5301, %v5486
        %v5535 = vadd.f32 %v5302, %v5487
        %v5536 = vadd.f32 %v5303, %v5488
        %v5537 = vadd.f32 %v5304, %v5489
        %v5538 = vadd.f32 %v5305, %v5490
        %v5539 = vadd.f32 %v5306, %v5491
        %v5540 = vadd.f32 %v5307, %v5492
        %v5541 = vadd.f32 %v5308, %v5493
        %v5542 = vadd.f32 %v5309, %v5494
        %v5543 = vadd.f32 %v5310, %v5495
        %v5544 = vadd.f32 %v5311, %v5496
        %v5545 = vadd.f32 %v5312, %v5497
        %v5546 = vadd.f32 %v5313, %v5498
        %v5547 = vadd.f32 %v5314, %v5499
        %v5548 = vadd.f32 %v5315, %v5500
        %v5549 = vadd.f32 %v5316, %v5501
        %v5550 = vadd.f32 %v5317, %v5502
        %v5551 = vadd.f32 %v5318, %v5503
        %v5552 = vadd.f32 %v5319, %v5504
        %v5553 = vadd.f32 %v5320, %v5505
        %v5554 = vadd.f32 %v5321, %v5506
        %5555 = vset.pattern.permute.xlu0 21
        %5556 = vperm.xlu0 %5555, %v1438
        %v5557 = vpop.permute.xlu0 %5556
        %5559 = vset.pattern.permute.xlu0 21
        %5560 = vperm.xlu0 %5559, %v1439
        %v5561 = vpop.permute.xlu0 %5560
        %5563 = vset.pattern.permute.xlu0 21
        %5564 = vperm.xlu0 %5563, %v1440
        %v5565 = vpop.permute.xlu0 %5564
        %5567 = vset.pattern.permute.xlu0 21
        %5568 = vperm.xlu0 %5567, %v1441
        %v5569 = vpop.permute.xlu0 %5568
        %5571 = vset.pattern.permute.xlu0 21
        %5572 = vperm.xlu0 %5571, %v1442
        %v5573 = vpop.permute.xlu0 %5572
        %5575 = vset.pattern.permute.xlu0 21
        %5576 = vperm.xlu0 %5575, %v1443
        %v5577 = vpop.permute.xlu0 %5576
        %5579 = vset.pattern.permute.xlu0 21
        %5580 = vperm.xlu0 %5579, %v1444
        %v5581 = vpop.permute.xlu0 %5580
        %5583 = vset.pattern.permute.xlu0 21
        %5584 = vperm.xlu0 %5583, %v1445
        %v5585 = vpop.permute.xlu0 %5584
        %v5587 = vmul.f32 %v5557, %v1153
        %v5588 = vmul.f32 %v5557, %v1155
        %v5589 = vmul.f32 %v5557, %v1242
        %v5590 = vmul.f32 %v5557, %v1244
        %v5591 = vmul.f32 %v5561, %v1159
        %v5592 = vmul.f32 %v5561, %v1161
        %v5593 = vmul.f32 %v5561, %v1248
        %v5594 = vmul.f32 %v5561, %v1250
        %v5595 = vmul.f32 %v5565, %v1165
        %v5596 = vmul.f32 %v5565, %v1167
        %v5597 = vmul.f32 %v5565, %v1254
        %v5598 = vmul.f32 %v5565, %v1256
        %v5599 = vmul.f32 %v5569, %v1171
        %v5600 = vmul.f32 %v5569, %v1173
        %v5601 = vmul.f32 %v5569, %v1260
        %v5602 = vmul.f32 %v5569, %v1262
        %v5603 = vmul.f32 %v5573, %v1409
        %v5604 = vmul.f32 %v5573, %v1413
        %v5605 = vmul.f32 %v5573, %v1417
        %v5606 = vmul.f32 %v5573, %v1421
        %v5607 = vmul.f32 %v5577, %v1409
        %v5608 = vmul.f32 %v5577, %v1413
        %v5609 = vmul.f32 %v5577, %v1417
        %v5610 = vmul.f32 %v5577, %v1421
        %v5611 = vmul.f32 %v5581, %v1425
        %v5612 = vmul.f32 %v5581, %v1429
        %v5613 = vmul.f32 %v5581, %v1433
        %v5614 = vmul.f32 %v5581, %v1437
        %v5615 = vmul.f32 %v5585, %v1425
        %v5616 = vmul.f32 %v5585, %v1429
        %v5617 = vmul.f32 %v5585, %v1433
        %v5618 = vmul.f32 %v5585, %v1437
        %5651 = vrot.lane.b32.xlu0 %v5587, 84
        %v5652 = vpop.permute.xlu0 %5651
        %5653 = vrot.lane.b32.xlu0 %v5588, 84
        %v5654 = vpop.permute.xlu0 %5653
        %5655 = vrot.lane.b32.xlu0 %v5589, 84
        %v5656 = vpop.permute.xlu0 %5655
        %5657 = vrot.lane.b32.xlu0 %v5590, 84
        %v5658 = vpop.permute.xlu0 %5657
        %5659 = vrot.lane.b32.xlu0 %v5591, 84
        %v5660 = vpop.permute.xlu0 %5659
        %5661 = vrot.lane.b32.xlu0 %v5592, 84
        %v5662 = vpop.permute.xlu0 %5661
        %5663 = vrot.lane.b32.xlu0 %v5593, 84
        %v5664 = vpop.permute.xlu0 %5663
        %5665 = vrot.lane.b32.xlu0 %v5594, 84
        %v5666 = vpop.permute.xlu0 %5665
        %5667 = vrot.lane.b32.xlu0 %v5595, 84
        %v5668 = vpop.permute.xlu0 %5667
        %5669 = vrot.lane.b32.xlu0 %v5596, 84
        %v5670 = vpop.permute.xlu0 %5669
        %5671 = vrot.lane.b32.xlu0 %v5597, 84
        %v5672 = vpop.permute.xlu0 %5671
        %5673 = vrot.lane.b32.xlu0 %v5598, 84
        %v5674 = vpop.permute.xlu0 %5673
        %5675 = vrot.lane.b32.xlu0 %v5599, 84
        %v5676 = vpop.permute.xlu0 %5675
        %5677 = vrot.lane.b32.xlu0 %v5600, 84
        %v5678 = vpop.permute.xlu0 %5677
        %5679 = vrot.lane.b32.xlu0 %v5601, 84
        %v5680 = vpop.permute.xlu0 %5679
        %5681 = vrot.lane.b32.xlu0 %v5602, 84
        %v5682 = vpop.permute.xlu0 %5681
        %5683 = vrot.lane.b32.xlu0 %v5603, 84
        %v5684 = vpop.permute.xlu0 %5683
        %5685 = vrot.lane.b32.xlu0 %v5604, 84
        %v5686 = vpop.permute.xlu0 %5685
        %5687 = vrot.lane.b32.xlu0 %v5605, 84
        %v5688 = vpop.permute.xlu0 %5687
        %5689 = vrot.lane.b32.xlu0 %v5606, 84
        %v5690 = vpop.permute.xlu0 %5689
        %5691 = vrot.lane.b32.xlu0 %v5607, 84
        %v5692 = vpop.permute.xlu0 %5691
        %5693 = vrot.lane.b32.xlu0 %v5608, 84
        %v5694 = vpop.permute.xlu0 %5693
        %5695 = vrot.lane.b32.xlu0 %v5609, 84
        %v5696 = vpop.permute.xlu0 %5695
        %5697 = vrot.lane.b32.xlu0 %v5610, 84
        %v5698 = vpop.permute.xlu0 %5697
        %5699 = vrot.lane.b32.xlu0 %v5611, 84
        %v5700 = vpop.permute.xlu0 %5699
        %5701 = vrot.lane.b32.xlu0 %v5612, 84
        %v5702 = vpop.permute.xlu0 %5701
        %5703 = vrot.lane.b32.xlu0 %v5613, 84
        %v5704 = vpop.permute.xlu0 %5703
        %5705 = vrot.lane.b32.xlu0 %v5614, 84
        %v5706 = vpop.permute.xlu0 %5705
        %5707 = vrot.lane.b32.xlu0 %v5615, 84
        %v5708 = vpop.permute.xlu0 %5707
        %5709 = vrot.lane.b32.xlu0 %v5616, 84
        %v5710 = vpop.permute.xlu0 %5709
        %5711 = vrot.lane.b32.xlu0 %v5617, 84
        %v5712 = vpop.permute.xlu0 %5711
        %5713 = vrot.lane.b32.xlu0 %v5618, 84
        %v5714 = vpop.permute.xlu0 %5713
        %v5715 = vsel %vm4084, %v5652, %v5654
        %v5716 = vsel %vm4084, %v5654, %v5656
        %v5717 = vsel %vm4084, %v5656, %v5658
        %v5718 = vsel %vm4084, %v5660, %v5662
        %v5719 = vsel %vm4084, %v5662, %v5664
        %v5720 = vsel %vm4084, %v5664, %v5666
        %v5721 = vsel %vm4084, %v5668, %v5670
        %v5722 = vsel %vm4084, %v5670, %v5672
        %v5723 = vsel %vm4084, %v5672, %v5674
        %v5724 = vsel %vm4084, %v5676, %v5678
        %v5725 = vsel %vm4084, %v5678, %v5680
        %v5726 = vsel %vm4084, %v5680, %v5682
        %v5727 = vsel %vm4084, %v5684, %v5686
        %v5728 = vsel %vm4084, %v5686, %v5688
        %v5729 = vsel %vm4084, %v5688, %v5690
        %v5730 = vsel %vm4084, %v5692, %v5694
        %v5731 = vsel %vm4084, %v5694, %v5696
        %v5732 = vsel %vm4084, %v5696, %v5698
        %v5733 = vsel %vm4084, %v5700, %v5702
        %v5734 = vsel %vm4084, %v5702, %v5704
        %v5735 = vsel %vm4084, %v5704, %v5706
        %v5736 = vsel %vm4084, %v5708, %v5710
        %v5737 = vsel %vm4084, %v5710, %v5712
        %v5738 = vsel %vm4084, %v5712, %v5714
        %v5763 = vadd.f32 %v3900, %v5715
        %v5764 = vadd.f32 %v3901, %v5716
        %v5765 = vadd.f32 %v3902, %v5717
        %v5766 = vadd.f32 %v3903, %v5718
        %v5767 = vadd.f32 %v3904, %v5719
        %v5768 = vadd.f32 %v3905, %v5720
        %v5769 = vadd.f32 %v3906, %v5721
        %v5770 = vadd.f32 %v3907, %v5722
        %v5771 = vadd.f32 %v3908, %v5723
        %v5772 = vadd.f32 %v3909, %v5724
        %v5773 = vadd.f32 %v3910, %v5725
        %v5774 = vadd.f32 %v3911, %v5726
        %v5775 = vadd.f32 %v3912, %v5727
        %v5776 = vadd.f32 %v3913, %v5728
        %v5777 = vadd.f32 %v3914, %v5729
        %v5778 = vadd.f32 %v3915, %v5730
        %v5779 = vadd.f32 %v3916, %v5731
        %v5780 = vadd.f32 %v3917, %v5732
        %v5781 = vadd.f32 %v3918, %v5733
        %v5782 = vadd.f32 %v3919, %v5734
        %v5783 = vadd.f32 %v3920, %v5735
        %v5784 = vadd.f32 %v3921, %v5736
        %v5785 = vadd.f32 %v3922, %v5737
        %v5786 = vadd.f32 %v3923, %v5738
        %5787 = vset.pattern.permute.xlu0 22
        %5788 = vperm.xlu0 %5787, %v1438
        %v5789 = vpop.permute.xlu0 %5788
        %5791 = vset.pattern.permute.xlu0 22
        %5792 = vperm.xlu0 %5791, %v1439
        %v5793 = vpop.permute.xlu0 %5792
        %5795 = vset.pattern.permute.xlu0 22
        %5796 = vperm.xlu0 %5795, %v1440
        %v5797 = vpop.permute.xlu0 %5796
        %5799 = vset.pattern.permute.xlu0 22
        %5800 = vperm.xlu0 %5799, %v1441
        %v5801 = vpop.permute.xlu0 %5800
        %5803 = vset.pattern.permute.xlu0 22
        %5804 = vperm.xlu0 %5803, %v1442
        %v5805 = vpop.permute.xlu0 %5804
        %5807 = vset.pattern.permute.xlu0 22
        %5808 = vperm.xlu0 %5807, %v1443
        %v5809 = vpop.permute.xlu0 %5808
        %5811 = vset.pattern.permute.xlu0 22
        %5812 = vperm.xlu0 %5811, %v1444
        %v5813 = vpop.permute.xlu0 %5812
        %5815 = vset.pattern.permute.xlu0 22
        %5816 = vperm.xlu0 %5815, %v1445
        %v5817 = vpop.permute.xlu0 %5816
        %v5819 = vmul.f32 %v5789, %v1153
        %v5820 = vmul.f32 %v5789, %v1155
        %v5821 = vmul.f32 %v5789, %v1242
        %v5822 = vmul.f32 %v5789, %v1244
        %v5823 = vmul.f32 %v5793, %v1159
        %v5824 = vmul.f32 %v5793, %v1161
        %v5825 = vmul.f32 %v5793, %v1248
        %v5826 = vmul.f32 %v5793, %v1250
        %v5827 = vmul.f32 %v5797, %v1165
        %v5828 = vmul.f32 %v5797, %v1167
        %v5829 = vmul.f32 %v5797, %v1254
        %v5830 = vmul.f32 %v5797, %v1256
        %v5831 = vmul.f32 %v5801, %v1171
        %v5832 = vmul.f32 %v5801, %v1173
        %v5833 = vmul.f32 %v5801, %v1260
        %v5834 = vmul.f32 %v5801, %v1262
        %v5835 = vmul.f32 %v5805, %v1409
        %v5836 = vmul.f32 %v5805, %v1413
        %v5837 = vmul.f32 %v5805, %v1417
        %v5838 = vmul.f32 %v5805, %v1421
        %v5839 = vmul.f32 %v5809, %v1409
        %v5840 = vmul.f32 %v5809, %v1413
        %v5841 = vmul.f32 %v5809, %v1417
        %v5842 = vmul.f32 %v5809, %v1421
        %v5843 = vmul.f32 %v5813, %v1425
        %v5844 = vmul.f32 %v5813, %v1429
        %v5845 = vmul.f32 %v5813, %v1433
        %v5846 = vmul.f32 %v5813, %v1437
        %v5847 = vmul.f32 %v5817, %v1425
        %v5848 = vmul.f32 %v5817, %v1429
        %v5849 = vmul.f32 %v5817, %v1433
        %v5850 = vmul.f32 %v5817, %v1437
        %5883 = vrot.lane.b32.xlu0 %v5819, 83
        %v5884 = vpop.permute.xlu0 %5883
        %5885 = vrot.lane.b32.xlu0 %v5820, 83
        %v5886 = vpop.permute.xlu0 %5885
        %5887 = vrot.lane.b32.xlu0 %v5821, 83
        %v5888 = vpop.permute.xlu0 %5887
        %5889 = vrot.lane.b32.xlu0 %v5822, 83
        %v5890 = vpop.permute.xlu0 %5889
        %5891 = vrot.lane.b32.xlu0 %v5823, 83
        %v5892 = vpop.permute.xlu0 %5891
        %5893 = vrot.lane.b32.xlu0 %v5824, 83
        %v5894 = vpop.permute.xlu0 %5893
        %5895 = vrot.lane.b32.xlu0 %v5825, 83
        %v5896 = vpop.permute.xlu0 %5895
        %5897 = vrot.lane.b32.xlu0 %v5826, 83
        %v5898 = vpop.permute.xlu0 %5897
        %5899 = vrot.lane.b32.xlu0 %v5827, 83
        %v5900 = vpop.permute.xlu0 %5899
        %5901 = vrot.lane.b32.xlu0 %v5828, 83
        %v5902 = vpop.permute.xlu0 %5901
        %5903 = vrot.lane.b32.xlu0 %v5829, 83
        %v5904 = vpop.permute.xlu0 %5903
        %5905 = vrot.lane.b32.xlu0 %v5830, 83
        %v5906 = vpop.permute.xlu0 %5905
        %5907 = vrot.lane.b32.xlu0 %v5831, 83
        %v5908 = vpop.permute.xlu0 %5907
        %5909 = vrot.lane.b32.xlu0 %v5832, 83
        %v5910 = vpop.permute.xlu0 %5909
        %5911 = vrot.lane.b32.xlu0 %v5833, 83
        %v5912 = vpop.permute.xlu0 %5911
        %5913 = vrot.lane.b32.xlu0 %v5834, 83
        %v5914 = vpop.permute.xlu0 %5913
        %5915 = vrot.lane.b32.xlu0 %v5835, 83
        %v5916 = vpop.permute.xlu0 %5915
        %5917 = vrot.lane.b32.xlu0 %v5836, 83
        %v5918 = vpop.permute.xlu0 %5917
        %5919 = vrot.lane.b32.xlu0 %v5837, 83
        %v5920 = vpop.permute.xlu0 %5919
        %5921 = vrot.lane.b32.xlu0 %v5838, 83
        %v5922 = vpop.permute.xlu0 %5921
        %5923 = vrot.lane.b32.xlu0 %v5839, 83
        %v5924 = vpop.permute.xlu0 %5923
        %5925 = vrot.lane.b32.xlu0 %v5840, 83
        %v5926 = vpop.permute.xlu0 %5925
        %5927 = vrot.lane.b32.xlu0 %v5841, 83
        %v5928 = vpop.permute.xlu0 %5927
        %5929 = vrot.lane.b32.xlu0 %v5842, 83
        %v5930 = vpop.permute.xlu0 %5929
        %5931 = vrot.lane.b32.xlu0 %v5843, 83
        %v5932 = vpop.permute.xlu0 %5931
        %5933 = vrot.lane.b32.xlu0 %v5844, 83
        %v5934 = vpop.permute.xlu0 %5933
        %5935 = vrot.lane.b32.xlu0 %v5845, 83
        %v5936 = vpop.permute.xlu0 %5935
        %5937 = vrot.lane.b32.xlu0 %v5846, 83
        %v5938 = vpop.permute.xlu0 %5937
        %5939 = vrot.lane.b32.xlu0 %v5847, 83
        %v5940 = vpop.permute.xlu0 %5939
        %5941 = vrot.lane.b32.xlu0 %v5848, 83
        %v5942 = vpop.permute.xlu0 %5941
        %5943 = vrot.lane.b32.xlu0 %v5849, 83
        %v5944 = vpop.permute.xlu0 %5943
        %5945 = vrot.lane.b32.xlu0 %v5850, 83
        %v5946 = vpop.permute.xlu0 %5945
        %v5947 = vsel %vm4317, %v5884, %v5886
        %v5948 = vsel %vm4317, %v5886, %v5888
        %v5949 = vsel %vm4317, %v5888, %v5890
        %v5950 = vsel %vm4317, %v5892, %v5894
        %v5951 = vsel %vm4317, %v5894, %v5896
        %v5952 = vsel %vm4317, %v5896, %v5898
        %v5953 = vsel %vm4317, %v5900, %v5902
        %v5954 = vsel %vm4317, %v5902, %v5904
        %v5955 = vsel %vm4317, %v5904, %v5906
        %v5956 = vsel %vm4317, %v5908, %v5910
        %v5957 = vsel %vm4317, %v5910, %v5912
        %v5958 = vsel %vm4317, %v5912, %v5914
        %v5959 = vsel %vm4317, %v5916, %v5918
        %v5960 = vsel %vm4317, %v5918, %v5920
        %v5961 = vsel %vm4317, %v5920, %v5922
        %v5962 = vsel %vm4317, %v5924, %v5926
        %v5963 = vsel %vm4317, %v5926, %v5928
        %v5964 = vsel %vm4317, %v5928, %v5930
        %v5965 = vsel %vm4317, %v5932, %v5934
        %v5966 = vsel %vm4317, %v5934, %v5936
        %v5967 = vsel %vm4317, %v5936, %v5938
        %v5968 = vsel %vm4317, %v5940, %v5942
        %v5969 = vsel %vm4317, %v5942, %v5944
        %v5970 = vsel %vm4317, %v5944, %v5946
        %v5995 = vadd.f32 %v5763, %v5947
        %v5996 = vadd.f32 %v5764, %v5948
        %v5997 = vadd.f32 %v5765, %v5949
        %v5998 = vadd.f32 %v5766, %v5950
        %v5999 = vadd.f32 %v5767, %v5951
        %v6000 = vadd.f32 %v5768, %v5952
        %v6001 = vadd.f32 %v5769, %v5953
        %v6002 = vadd.f32 %v5770, %v5954
        %v6003 = vadd.f32 %v5771, %v5955
        %v6004 = vadd.f32 %v5772, %v5956
        %v6005 = vadd.f32 %v5773, %v5957
        %v6006 = vadd.f32 %v5774, %v5958
        %v6007 = vadd.f32 %v5775, %v5959
        %v6008 = vadd.f32 %v5776, %v5960
        %v6009 = vadd.f32 %v5777, %v5961
        %v6010 = vadd.f32 %v5778, %v5962
        %v6011 = vadd.f32 %v5779, %v5963
        %v6012 = vadd.f32 %v5780, %v5964
        %v6013 = vadd.f32 %v5781, %v5965
        %v6014 = vadd.f32 %v5782, %v5966
        %v6015 = vadd.f32 %v5783, %v5967
        %v6016 = vadd.f32 %v5784, %v5968
        %v6017 = vadd.f32 %v5785, %v5969
        %v6018 = vadd.f32 %v5786, %v5970
        %6019 = vset.pattern.permute.xlu0 23
        %6020 = vperm.xlu0 %6019, %v1438
        %v6021 = vpop.permute.xlu0 %6020
        %6023 = vset.pattern.permute.xlu0 23
        %6024 = vperm.xlu0 %6023, %v1439
        %v6025 = vpop.permute.xlu0 %6024
        %6027 = vset.pattern.permute.xlu0 23
        %6028 = vperm.xlu0 %6027, %v1440
        %v6029 = vpop.permute.xlu0 %6028
        %6031 = vset.pattern.permute.xlu0 23
        %6032 = vperm.xlu0 %6031, %v1441
        %v6033 = vpop.permute.xlu0 %6032
        %6035 = vset.pattern.permute.xlu0 23
        %6036 = vperm.xlu0 %6035, %v1442
        %v6037 = vpop.permute.xlu0 %6036
        %6039 = vset.pattern.permute.xlu0 23
        %6040 = vperm.xlu0 %6039, %v1443
        %v6041 = vpop.permute.xlu0 %6040
        %6043 = vset.pattern.permute.xlu0 23
        %6044 = vperm.xlu0 %6043, %v1444
        %v6045 = vpop.permute.xlu0 %6044
        %6047 = vset.pattern.permute.xlu0 23
        %6048 = vperm.xlu0 %6047, %v1445
        %v6049 = vpop.permute.xlu0 %6048
        %v6051 = vmul.f32 %v6021, %v1153
        %v6052 = vmul.f32 %v6021, %v1155
        %v6053 = vmul.f32 %v6021, %v1242
        %v6054 = vmul.f32 %v6021, %v1244
        %v6055 = vmul.f32 %v6025, %v1159
        %v6056 = vmul.f32 %v6025, %v1161
        %v6057 = vmul.f32 %v6025, %v1248
        %v6058 = vmul.f32 %v6025, %v1250
        %v6059 = vmul.f32 %v6029, %v1165
        %v6060 = vmul.f32 %v6029, %v1167
        %v6061 = vmul.f32 %v6029, %v1254
        %v6062 = vmul.f32 %v6029, %v1256
        %v6063 = vmul.f32 %v6033, %v1171
        %v6064 = vmul.f32 %v6033, %v1173
        %v6065 = vmul.f32 %v6033, %v1260
        %v6066 = vmul.f32 %v6033, %v1262
        %v6067 = vmul.f32 %v6037, %v1409
        %v6068 = vmul.f32 %v6037, %v1413
        %v6069 = vmul.f32 %v6037, %v1417
        %v6070 = vmul.f32 %v6037, %v1421
        %v6071 = vmul.f32 %v6041, %v1409
        %v6072 = vmul.f32 %v6041, %v1413
        %v6073 = vmul.f32 %v6041, %v1417
        %v6074 = vmul.f32 %v6041, %v1421
        %v6075 = vmul.f32 %v6045, %v1425
        %v6076 = vmul.f32 %v6045, %v1429
        %v6077 = vmul.f32 %v6045, %v1433
        %v6078 = vmul.f32 %v6045, %v1437
        %v6079 = vmul.f32 %v6049, %v1425
        %v6080 = vmul.f32 %v6049, %v1429
        %v6081 = vmul.f32 %v6049, %v1433
        %v6082 = vmul.f32 %v6049, %v1437
        %6115 = vrot.lane.b32.xlu0 %v6051, 82
        %v6116 = vpop.permute.xlu0 %6115
        %6117 = vrot.lane.b32.xlu0 %v6052, 82
        %v6118 = vpop.permute.xlu0 %6117
        %6119 = vrot.lane.b32.xlu0 %v6053, 82
        %v6120 = vpop.permute.xlu0 %6119
        %6121 = vrot.lane.b32.xlu0 %v6054, 82
        %v6122 = vpop.permute.xlu0 %6121
        %6123 = vrot.lane.b32.xlu0 %v6055, 82
        %v6124 = vpop.permute.xlu0 %6123
        %6125 = vrot.lane.b32.xlu0 %v6056, 82
        %v6126 = vpop.permute.xlu0 %6125
        %6127 = vrot.lane.b32.xlu0 %v6057, 82
        %v6128 = vpop.permute.xlu0 %6127
        %6129 = vrot.lane.b32.xlu0 %v6058, 82
        %v6130 = vpop.permute.xlu0 %6129
        %6131 = vrot.lane.b32.xlu0 %v6059, 82
        %v6132 = vpop.permute.xlu0 %6131
        %6133 = vrot.lane.b32.xlu0 %v6060, 82
        %v6134 = vpop.permute.xlu0 %6133
        %6135 = vrot.lane.b32.xlu0 %v6061, 82
        %v6136 = vpop.permute.xlu0 %6135
        %6137 = vrot.lane.b32.xlu0 %v6062, 82
        %v6138 = vpop.permute.xlu0 %6137
        %6139 = vrot.lane.b32.xlu0 %v6063, 82
        %v6140 = vpop.permute.xlu0 %6139
        %6141 = vrot.lane.b32.xlu0 %v6064, 82
        %v6142 = vpop.permute.xlu0 %6141
        %6143 = vrot.lane.b32.xlu0 %v6065, 82
        %v6144 = vpop.permute.xlu0 %6143
        %6145 = vrot.lane.b32.xlu0 %v6066, 82
        %v6146 = vpop.permute.xlu0 %6145
        %6147 = vrot.lane.b32.xlu0 %v6067, 82
        %v6148 = vpop.permute.xlu0 %6147
        %6149 = vrot.lane.b32.xlu0 %v6068, 82
        %v6150 = vpop.permute.xlu0 %6149
        %6151 = vrot.lane.b32.xlu0 %v6069, 82
        %v6152 = vpop.permute.xlu0 %6151
        %6153 = vrot.lane.b32.xlu0 %v6070, 82
        %v6154 = vpop.permute.xlu0 %6153
        %6155 = vrot.lane.b32.xlu0 %v6071, 82
        %v6156 = vpop.permute.xlu0 %6155
        %6157 = vrot.lane.b32.xlu0 %v6072, 82
        %v6158 = vpop.permute.xlu0 %6157
        %6159 = vrot.lane.b32.xlu0 %v6073, 82
        %v6160 = vpop.permute.xlu0 %6159
        %6161 = vrot.lane.b32.xlu0 %v6074, 82
        %v6162 = vpop.permute.xlu0 %6161
        %6163 = vrot.lane.b32.xlu0 %v6075, 82
        %v6164 = vpop.permute.xlu0 %6163
        %6165 = vrot.lane.b32.xlu0 %v6076, 82
        %v6166 = vpop.permute.xlu0 %6165
        %6167 = vrot.lane.b32.xlu0 %v6077, 82
        %v6168 = vpop.permute.xlu0 %6167
        %6169 = vrot.lane.b32.xlu0 %v6078, 82
        %v6170 = vpop.permute.xlu0 %6169
        %6171 = vrot.lane.b32.xlu0 %v6079, 82
        %v6172 = vpop.permute.xlu0 %6171
        %6173 = vrot.lane.b32.xlu0 %v6080, 82
        %v6174 = vpop.permute.xlu0 %6173
        %6175 = vrot.lane.b32.xlu0 %v6081, 82
        %v6176 = vpop.permute.xlu0 %6175
        %6177 = vrot.lane.b32.xlu0 %v6082, 82
        %v6178 = vpop.permute.xlu0 %6177
        %v6179 = vsel %vm4550, %v6116, %v6118
        %v6180 = vsel %vm4550, %v6118, %v6120
        %v6181 = vsel %vm4550, %v6120, %v6122
        %v6182 = vsel %vm4550, %v6124, %v6126
        %v6183 = vsel %vm4550, %v6126, %v6128
        %v6184 = vsel %vm4550, %v6128, %v6130
        %v6185 = vsel %vm4550, %v6132, %v6134
        %v6186 = vsel %vm4550, %v6134, %v6136
        %v6187 = vsel %vm4550, %v6136, %v6138
        %v6188 = vsel %vm4550, %v6140, %v6142
        %v6189 = vsel %vm4550, %v6142, %v6144
        %v6190 = vsel %vm4550, %v6144, %v6146
        %v6191 = vsel %vm4550, %v6148, %v6150
        %v6192 = vsel %vm4550, %v6150, %v6152
        %v6193 = vsel %vm4550, %v6152, %v6154
        %v6194 = vsel %vm4550, %v6156, %v6158
        %v6195 = vsel %vm4550, %v6158, %v6160
        %v6196 = vsel %vm4550, %v6160, %v6162
        %v6197 = vsel %vm4550, %v6164, %v6166
        %v6198 = vsel %vm4550, %v6166, %v6168
        %v6199 = vsel %vm4550, %v6168, %v6170
        %v6200 = vsel %vm4550, %v6172, %v6174
        %v6201 = vsel %vm4550, %v6174, %v6176
        %v6202 = vsel %vm4550, %v6176, %v6178
        %v6227 = vadd.f32 %v5995, %v6179
        %v6228 = vadd.f32 %v5996, %v6180
        %v6229 = vadd.f32 %v5997, %v6181
        %v6230 = vadd.f32 %v5998, %v6182
        %v6231 = vadd.f32 %v5999, %v6183
        %v6232 = vadd.f32 %v6000, %v6184
        %v6233 = vadd.f32 %v6001, %v6185
        %v6234 = vadd.f32 %v6002, %v6186
        %v6235 = vadd.f32 %v6003, %v6187
        %v6236 = vadd.f32 %v6004, %v6188
        %v6237 = vadd.f32 %v6005, %v6189
        %v6238 = vadd.f32 %v6006, %v6190
        %v6239 = vadd.f32 %v6007, %v6191
        %v6240 = vadd.f32 %v6008, %v6192
        %v6241 = vadd.f32 %v6009, %v6193
        %v6242 = vadd.f32 %v6010, %v6194
        %v6243 = vadd.f32 %v6011, %v6195
        %v6244 = vadd.f32 %v6012, %v6196
        %v6245 = vadd.f32 %v6013, %v6197
        %v6246 = vadd.f32 %v6014, %v6198
        %v6247 = vadd.f32 %v6015, %v6199
        %v6248 = vadd.f32 %v6016, %v6200
        %v6249 = vadd.f32 %v6017, %v6201
        %v6250 = vadd.f32 %v6018, %v6202
        %6251 = vset.pattern.permute.xlu0 24
        %6252 = vperm.xlu0 %6251, %v1438
        %v6253 = vpop.permute.xlu0 %6252
        %6255 = vset.pattern.permute.xlu0 24
        %6256 = vperm.xlu0 %6255, %v1439
        %v6257 = vpop.permute.xlu0 %6256
        %6259 = vset.pattern.permute.xlu0 24
        %6260 = vperm.xlu0 %6259, %v1440
        %v6261 = vpop.permute.xlu0 %6260
        %6263 = vset.pattern.permute.xlu0 24
        %6264 = vperm.xlu0 %6263, %v1441
        %v6265 = vpop.permute.xlu0 %6264
        %6267 = vset.pattern.permute.xlu0 24
        %6268 = vperm.xlu0 %6267, %v1442
        %v6269 = vpop.permute.xlu0 %6268
        %6271 = vset.pattern.permute.xlu0 24
        %6272 = vperm.xlu0 %6271, %v1443
        %v6273 = vpop.permute.xlu0 %6272
        %6275 = vset.pattern.permute.xlu0 24
        %6276 = vperm.xlu0 %6275, %v1444
        %v6277 = vpop.permute.xlu0 %6276
        %6279 = vset.pattern.permute.xlu0 24
        %6280 = vperm.xlu0 %6279, %v1445
        %v6281 = vpop.permute.xlu0 %6280
        %v6283 = vmul.f32 %v6253, %v1153
        %v6284 = vmul.f32 %v6253, %v1155
        %v6285 = vmul.f32 %v6253, %v1242
        %v6286 = vmul.f32 %v6253, %v1244
        %v6287 = vmul.f32 %v6257, %v1159
        %v6288 = vmul.f32 %v6257, %v1161
        %v6289 = vmul.f32 %v6257, %v1248
        %v6290 = vmul.f32 %v6257, %v1250
        %v6291 = vmul.f32 %v6261, %v1165
        %v6292 = vmul.f32 %v6261, %v1167
        %v6293 = vmul.f32 %v6261, %v1254
        %v6294 = vmul.f32 %v6261, %v1256
        %v6295 = vmul.f32 %v6265, %v1171
        %v6296 = vmul.f32 %v6265, %v1173
        %v6297 = vmul.f32 %v6265, %v1260
        %v6298 = vmul.f32 %v6265, %v1262
        %v6299 = vmul.f32 %v6269, %v1409
        %v6300 = vmul.f32 %v6269, %v1413
        %v6301 = vmul.f32 %v6269, %v1417
        %v6302 = vmul.f32 %v6269, %v1421
        %v6303 = vmul.f32 %v6273, %v1409
        %v6304 = vmul.f32 %v6273, %v1413
        %v6305 = vmul.f32 %v6273, %v1417
        %v6306 = vmul.f32 %v6273, %v1421
        %v6307 = vmul.f32 %v6277, %v1425
        %v6308 = vmul.f32 %v6277, %v1429
        %v6309 = vmul.f32 %v6277, %v1433
        %v6310 = vmul.f32 %v6277, %v1437
        %v6311 = vmul.f32 %v6281, %v1425
        %v6312 = vmul.f32 %v6281, %v1429
        %v6313 = vmul.f32 %v6281, %v1433
        %v6314 = vmul.f32 %v6281, %v1437
        %6347 = vrot.lane.b32.xlu0 %v6283, 81
        %v6348 = vpop.permute.xlu0 %6347
        %6349 = vrot.lane.b32.xlu0 %v6284, 81
        %v6350 = vpop.permute.xlu0 %6349
        %6351 = vrot.lane.b32.xlu0 %v6285, 81
        %v6352 = vpop.permute.xlu0 %6351
        %6353 = vrot.lane.b32.xlu0 %v6286, 81
        %v6354 = vpop.permute.xlu0 %6353
        %6355 = vrot.lane.b32.xlu0 %v6287, 81
        %v6356 = vpop.permute.xlu0 %6355
        %6357 = vrot.lane.b32.xlu0 %v6288, 81
        %v6358 = vpop.permute.xlu0 %6357
        %6359 = vrot.lane.b32.xlu0 %v6289, 81
        %v6360 = vpop.permute.xlu0 %6359
        %6361 = vrot.lane.b32.xlu0 %v6290, 81
        %v6362 = vpop.permute.xlu0 %6361
        %6363 = vrot.lane.b32.xlu0 %v6291, 81
        %v6364 = vpop.permute.xlu0 %6363
        %6365 = vrot.lane.b32.xlu0 %v6292, 81
        %v6366 = vpop.permute.xlu0 %6365
        %6367 = vrot.lane.b32.xlu0 %v6293, 81
        %v6368 = vpop.permute.xlu0 %6367
        %6369 = vrot.lane.b32.xlu0 %v6294, 81
        %v6370 = vpop.permute.xlu0 %6369
        %6371 = vrot.lane.b32.xlu0 %v6295, 81
        %v6372 = vpop.permute.xlu0 %6371
        %6373 = vrot.lane.b32.xlu0 %v6296, 81
        %v6374 = vpop.permute.xlu0 %6373
        %6375 = vrot.lane.b32.xlu0 %v6297, 81
        %v6376 = vpop.permute.xlu0 %6375
        %6377 = vrot.lane.b32.xlu0 %v6298, 81
        %v6378 = vpop.permute.xlu0 %6377
        %6379 = vrot.lane.b32.xlu0 %v6299, 81
        %v6380 = vpop.permute.xlu0 %6379
        %6381 = vrot.lane.b32.xlu0 %v6300, 81
        %v6382 = vpop.permute.xlu0 %6381
        %6383 = vrot.lane.b32.xlu0 %v6301, 81
        %v6384 = vpop.permute.xlu0 %6383
        %6385 = vrot.lane.b32.xlu0 %v6302, 81
        %v6386 = vpop.permute.xlu0 %6385
        %6387 = vrot.lane.b32.xlu0 %v6303, 81
        %v6388 = vpop.permute.xlu0 %6387
        %6389 = vrot.lane.b32.xlu0 %v6304, 81
        %v6390 = vpop.permute.xlu0 %6389
        %6391 = vrot.lane.b32.xlu0 %v6305, 81
        %v6392 = vpop.permute.xlu0 %6391
        %6393 = vrot.lane.b32.xlu0 %v6306, 81
        %v6394 = vpop.permute.xlu0 %6393
        %6395 = vrot.lane.b32.xlu0 %v6307, 81
        %v6396 = vpop.permute.xlu0 %6395
        %6397 = vrot.lane.b32.xlu0 %v6308, 81
        %v6398 = vpop.permute.xlu0 %6397
        %6399 = vrot.lane.b32.xlu0 %v6309, 81
        %v6400 = vpop.permute.xlu0 %6399
        %6401 = vrot.lane.b32.xlu0 %v6310, 81
        %v6402 = vpop.permute.xlu0 %6401
        %6403 = vrot.lane.b32.xlu0 %v6311, 81
        %v6404 = vpop.permute.xlu0 %6403
        %6405 = vrot.lane.b32.xlu0 %v6312, 81
        %v6406 = vpop.permute.xlu0 %6405
        %6407 = vrot.lane.b32.xlu0 %v6313, 81
        %v6408 = vpop.permute.xlu0 %6407
        %6409 = vrot.lane.b32.xlu0 %v6314, 81
        %v6410 = vpop.permute.xlu0 %6409
        %v6411 = vsel %vm4783, %v6348, %v6350
        %v6412 = vsel %vm4783, %v6350, %v6352
        %v6413 = vsel %vm4783, %v6352, %v6354
        %v6414 = vsel %vm4783, %v6356, %v6358
        %v6415 = vsel %vm4783, %v6358, %v6360
        %v6416 = vsel %vm4783, %v6360, %v6362
        %v6417 = vsel %vm4783, %v6364, %v6366
        %v6418 = vsel %vm4783, %v6366, %v6368
        %v6419 = vsel %vm4783, %v6368, %v6370
        %v6420 = vsel %vm4783, %v6372, %v6374
        %v6421 = vsel %vm4783, %v6374, %v6376
        %v6422 = vsel %vm4783, %v6376, %v6378
        %v6423 = vsel %vm4783, %v6380, %v6382
        %v6424 = vsel %vm4783, %v6382, %v6384
        %v6425 = vsel %vm4783, %v6384, %v6386
        %v6426 = vsel %vm4783, %v6388, %v6390
        %v6427 = vsel %vm4783, %v6390, %v6392
        %v6428 = vsel %vm4783, %v6392, %v6394
        %v6429 = vsel %vm4783, %v6396, %v6398
        %v6430 = vsel %vm4783, %v6398, %v6400
        %v6431 = vsel %vm4783, %v6400, %v6402
        %v6432 = vsel %vm4783, %v6404, %v6406
        %v6433 = vsel %vm4783, %v6406, %v6408
        %v6434 = vsel %vm4783, %v6408, %v6410
        %v6459 = vadd.f32 %v6227, %v6411
        %v6460 = vadd.f32 %v6228, %v6412
        %v6461 = vadd.f32 %v6229, %v6413
        %v6462 = vadd.f32 %v6230, %v6414
        %v6463 = vadd.f32 %v6231, %v6415
        %v6464 = vadd.f32 %v6232, %v6416
        %v6465 = vadd.f32 %v6233, %v6417
        %v6466 = vadd.f32 %v6234, %v6418
        %v6467 = vadd.f32 %v6235, %v6419
        %v6468 = vadd.f32 %v6236, %v6420
        %v6469 = vadd.f32 %v6237, %v6421
        %v6470 = vadd.f32 %v6238, %v6422
        %v6471 = vadd.f32 %v6239, %v6423
        %v6472 = vadd.f32 %v6240, %v6424
        %v6473 = vadd.f32 %v6241, %v6425
        %v6474 = vadd.f32 %v6242, %v6426
        %v6475 = vadd.f32 %v6243, %v6427
        %v6476 = vadd.f32 %v6244, %v6428
        %v6477 = vadd.f32 %v6245, %v6429
        %v6478 = vadd.f32 %v6246, %v6430
        %v6479 = vadd.f32 %v6247, %v6431
        %v6480 = vadd.f32 %v6248, %v6432
        %v6481 = vadd.f32 %v6249, %v6433
        %v6482 = vadd.f32 %v6250, %v6434
        %6483 = vset.pattern.permute.xlu0 25
        %6484 = vperm.xlu0 %6483, %v1438
        %v6485 = vpop.permute.xlu0 %6484
        %6487 = vset.pattern.permute.xlu0 25
        %6488 = vperm.xlu0 %6487, %v1439
        %v6489 = vpop.permute.xlu0 %6488
        %6491 = vset.pattern.permute.xlu0 25
        %6492 = vperm.xlu0 %6491, %v1440
        %v6493 = vpop.permute.xlu0 %6492
        %6495 = vset.pattern.permute.xlu0 25
        %6496 = vperm.xlu0 %6495, %v1441
        %v6497 = vpop.permute.xlu0 %6496
        %6499 = vset.pattern.permute.xlu0 25
        %6500 = vperm.xlu0 %6499, %v1442
        %v6501 = vpop.permute.xlu0 %6500
        %6503 = vset.pattern.permute.xlu0 25
        %6504 = vperm.xlu0 %6503, %v1443
        %v6505 = vpop.permute.xlu0 %6504
        %6507 = vset.pattern.permute.xlu0 25
        %6508 = vperm.xlu0 %6507, %v1444
        %v6509 = vpop.permute.xlu0 %6508
        %6511 = vset.pattern.permute.xlu0 25
        %6512 = vperm.xlu0 %6511, %v1445
        %v6513 = vpop.permute.xlu0 %6512
        %v6515 = vmul.f32 %v6485, %v1153
        %v6516 = vmul.f32 %v6485, %v1155
        %v6517 = vmul.f32 %v6485, %v1242
        %v6518 = vmul.f32 %v6485, %v1244
        %v6519 = vmul.f32 %v6489, %v1159
        %v6520 = vmul.f32 %v6489, %v1161
        %v6521 = vmul.f32 %v6489, %v1248
        %v6522 = vmul.f32 %v6489, %v1250
        %v6523 = vmul.f32 %v6493, %v1165
        %v6524 = vmul.f32 %v6493, %v1167
        %v6525 = vmul.f32 %v6493, %v1254
        %v6526 = vmul.f32 %v6493, %v1256
        %v6527 = vmul.f32 %v6497, %v1171
        %v6528 = vmul.f32 %v6497, %v1173
        %v6529 = vmul.f32 %v6497, %v1260
        %v6530 = vmul.f32 %v6497, %v1262
        %v6531 = vmul.f32 %v6501, %v1409
        %v6532 = vmul.f32 %v6501, %v1413
        %v6533 = vmul.f32 %v6501, %v1417
        %v6534 = vmul.f32 %v6501, %v1421
        %v6535 = vmul.f32 %v6505, %v1409
        %v6536 = vmul.f32 %v6505, %v1413
        %v6537 = vmul.f32 %v6505, %v1417
        %v6538 = vmul.f32 %v6505, %v1421
        %v6539 = vmul.f32 %v6509, %v1425
        %v6540 = vmul.f32 %v6509, %v1429
        %v6541 = vmul.f32 %v6509, %v1433
        %v6542 = vmul.f32 %v6509, %v1437
        %v6543 = vmul.f32 %v6513, %v1425
        %v6544 = vmul.f32 %v6513, %v1429
        %v6545 = vmul.f32 %v6513, %v1433
        %v6546 = vmul.f32 %v6513, %v1437
        %6579 = vrot.lane.b32.xlu0 %v6515, 80
        %v6580 = vpop.permute.xlu0 %6579
        %6581 = vrot.lane.b32.xlu0 %v6516, 80
        %v6582 = vpop.permute.xlu0 %6581
        %6583 = vrot.lane.b32.xlu0 %v6517, 80
        %v6584 = vpop.permute.xlu0 %6583
        %6585 = vrot.lane.b32.xlu0 %v6518, 80
        %v6586 = vpop.permute.xlu0 %6585
        %6587 = vrot.lane.b32.xlu0 %v6519, 80
        %v6588 = vpop.permute.xlu0 %6587
        %6589 = vrot.lane.b32.xlu0 %v6520, 80
        %v6590 = vpop.permute.xlu0 %6589
        %6591 = vrot.lane.b32.xlu0 %v6521, 80
        %v6592 = vpop.permute.xlu0 %6591
        %6593 = vrot.lane.b32.xlu0 %v6522, 80
        %v6594 = vpop.permute.xlu0 %6593
        %6595 = vrot.lane.b32.xlu0 %v6523, 80
        %v6596 = vpop.permute.xlu0 %6595
        %6597 = vrot.lane.b32.xlu0 %v6524, 80
        %v6598 = vpop.permute.xlu0 %6597
        %6599 = vrot.lane.b32.xlu0 %v6525, 80
        %v6600 = vpop.permute.xlu0 %6599
        %6601 = vrot.lane.b32.xlu0 %v6526, 80
        %v6602 = vpop.permute.xlu0 %6601
        %6603 = vrot.lane.b32.xlu0 %v6527, 80
        %v6604 = vpop.permute.xlu0 %6603
        %6605 = vrot.lane.b32.xlu0 %v6528, 80
        %v6606 = vpop.permute.xlu0 %6605
        %6607 = vrot.lane.b32.xlu0 %v6529, 80
        %v6608 = vpop.permute.xlu0 %6607
        %6609 = vrot.lane.b32.xlu0 %v6530, 80
        %v6610 = vpop.permute.xlu0 %6609
        %6611 = vrot.lane.b32.xlu0 %v6531, 80
        %v6612 = vpop.permute.xlu0 %6611
        %6613 = vrot.lane.b32.xlu0 %v6532, 80
        %v6614 = vpop.permute.xlu0 %6613
        %6615 = vrot.lane.b32.xlu0 %v6533, 80
        %v6616 = vpop.permute.xlu0 %6615
        %6617 = vrot.lane.b32.xlu0 %v6534, 80
        %v6618 = vpop.permute.xlu0 %6617
        %6619 = vrot.lane.b32.xlu0 %v6535, 80
        %v6620 = vpop.permute.xlu0 %6619
        %6621 = vrot.lane.b32.xlu0 %v6536, 80
        %v6622 = vpop.permute.xlu0 %6621
        %6623 = vrot.lane.b32.xlu0 %v6537, 80
        %v6624 = vpop.permute.xlu0 %6623
        %6625 = vrot.lane.b32.xlu0 %v6538, 80
        %v6626 = vpop.permute.xlu0 %6625
        %6627 = vrot.lane.b32.xlu0 %v6539, 80
        %v6628 = vpop.permute.xlu0 %6627
        %6629 = vrot.lane.b32.xlu0 %v6540, 80
        %v6630 = vpop.permute.xlu0 %6629
        %6631 = vrot.lane.b32.xlu0 %v6541, 80
        %v6632 = vpop.permute.xlu0 %6631
        %6633 = vrot.lane.b32.xlu0 %v6542, 80
        %v6634 = vpop.permute.xlu0 %6633
        %6635 = vrot.lane.b32.xlu0 %v6543, 80
        %v6636 = vpop.permute.xlu0 %6635
        %6637 = vrot.lane.b32.xlu0 %v6544, 80
        %v6638 = vpop.permute.xlu0 %6637
        %6639 = vrot.lane.b32.xlu0 %v6545, 80
        %v6640 = vpop.permute.xlu0 %6639
        %6641 = vrot.lane.b32.xlu0 %v6546, 80
        %v6642 = vpop.permute.xlu0 %6641
        %v6643 = vsel %vm5016, %v6580, %v6582
        %v6644 = vsel %vm5016, %v6582, %v6584
        %v6645 = vsel %vm5016, %v6584, %v6586
        %v6646 = vsel %vm5016, %v6588, %v6590
        %v6647 = vsel %vm5016, %v6590, %v6592
        %v6648 = vsel %vm5016, %v6592, %v6594
        %v6649 = vsel %vm5016, %v6596, %v6598
        %v6650 = vsel %vm5016, %v6598, %v6600
        %v6651 = vsel %vm5016, %v6600, %v6602
        %v6652 = vsel %vm5016, %v6604, %v6606
        %v6653 = vsel %vm5016, %v6606, %v6608
        %v6654 = vsel %vm5016, %v6608, %v6610
        %v6655 = vsel %vm5016, %v6612, %v6614
        %v6656 = vsel %vm5016, %v6614, %v6616
        %v6657 = vsel %vm5016, %v6616, %v6618
        %v6658 = vsel %vm5016, %v6620, %v6622
        %v6659 = vsel %vm5016, %v6622, %v6624
        %v6660 = vsel %vm5016, %v6624, %v6626
        %v6661 = vsel %vm5016, %v6628, %v6630
        %v6662 = vsel %vm5016, %v6630, %v6632
        %v6663 = vsel %vm5016, %v6632, %v6634
        %v6664 = vsel %vm5016, %v6636, %v6638
        %v6665 = vsel %vm5016, %v6638, %v6640
        %v6666 = vsel %vm5016, %v6640, %v6642
        %v6691 = vadd.f32 %v6459, %v6643
        %v6692 = vadd.f32 %v6460, %v6644
        %v6693 = vadd.f32 %v6461, %v6645
        %v6694 = vadd.f32 %v6462, %v6646
        %v6695 = vadd.f32 %v6463, %v6647
        %v6696 = vadd.f32 %v6464, %v6648
        %v6697 = vadd.f32 %v6465, %v6649
        %v6698 = vadd.f32 %v6466, %v6650
        %v6699 = vadd.f32 %v6467, %v6651
        %v6700 = vadd.f32 %v6468, %v6652
        %v6701 = vadd.f32 %v6469, %v6653
        %v6702 = vadd.f32 %v6470, %v6654
        %v6703 = vadd.f32 %v6471, %v6655
        %v6704 = vadd.f32 %v6472, %v6656
        %v6705 = vadd.f32 %v6473, %v6657
        %v6706 = vadd.f32 %v6474, %v6658
        %v6707 = vadd.f32 %v6475, %v6659
        %v6708 = vadd.f32 %v6476, %v6660
        %v6709 = vadd.f32 %v6477, %v6661
        %v6710 = vadd.f32 %v6478, %v6662
        %v6711 = vadd.f32 %v6479, %v6663
        %v6712 = vadd.f32 %v6480, %v6664
        %v6713 = vadd.f32 %v6481, %v6665
        %v6714 = vadd.f32 %v6482, %v6666
        %6715 = vset.pattern.permute.xlu0 26
        %6716 = vperm.xlu0 %6715, %v1438
        %v6717 = vpop.permute.xlu0 %6716
        %6719 = vset.pattern.permute.xlu0 26
        %6720 = vperm.xlu0 %6719, %v1439
        %v6721 = vpop.permute.xlu0 %6720
        %6723 = vset.pattern.permute.xlu0 26
        %6724 = vperm.xlu0 %6723, %v1440
        %v6725 = vpop.permute.xlu0 %6724
        %6727 = vset.pattern.permute.xlu0 26
        %6728 = vperm.xlu0 %6727, %v1441
        %v6729 = vpop.permute.xlu0 %6728
        %6731 = vset.pattern.permute.xlu0 26
        %6732 = vperm.xlu0 %6731, %v1442
        %v6733 = vpop.permute.xlu0 %6732
        %6735 = vset.pattern.permute.xlu0 26
        %6736 = vperm.xlu0 %6735, %v1443
        %v6737 = vpop.permute.xlu0 %6736
        %6739 = vset.pattern.permute.xlu0 26
        %6740 = vperm.xlu0 %6739, %v1444
        %v6741 = vpop.permute.xlu0 %6740
        %6743 = vset.pattern.permute.xlu0 26
        %6744 = vperm.xlu0 %6743, %v1445
        %v6745 = vpop.permute.xlu0 %6744
        %v6747 = vmul.f32 %v6717, %v1153
        %v6748 = vmul.f32 %v6717, %v1155
        %v6749 = vmul.f32 %v6717, %v1242
        %v6750 = vmul.f32 %v6717, %v1244
        %v6751 = vmul.f32 %v6721, %v1159
        %v6752 = vmul.f32 %v6721, %v1161
        %v6753 = vmul.f32 %v6721, %v1248
        %v6754 = vmul.f32 %v6721, %v1250
        %v6755 = vmul.f32 %v6725, %v1165
        %v6756 = vmul.f32 %v6725, %v1167
        %v6757 = vmul.f32 %v6725, %v1254
        %v6758 = vmul.f32 %v6725, %v1256
        %v6759 = vmul.f32 %v6729, %v1171
        %v6760 = vmul.f32 %v6729, %v1173
        %v6761 = vmul.f32 %v6729, %v1260
        %v6762 = vmul.f32 %v6729, %v1262
        %v6763 = vmul.f32 %v6733, %v1409
        %v6764 = vmul.f32 %v6733, %v1413
        %v6765 = vmul.f32 %v6733, %v1417
        %v6766 = vmul.f32 %v6733, %v1421
        %v6767 = vmul.f32 %v6737, %v1409
        %v6768 = vmul.f32 %v6737, %v1413
        %v6769 = vmul.f32 %v6737, %v1417
        %v6770 = vmul.f32 %v6737, %v1421
        %v6771 = vmul.f32 %v6741, %v1425
        %v6772 = vmul.f32 %v6741, %v1429
        %v6773 = vmul.f32 %v6741, %v1433
        %v6774 = vmul.f32 %v6741, %v1437
        %v6775 = vmul.f32 %v6745, %v1425
        %v6776 = vmul.f32 %v6745, %v1429
        %v6777 = vmul.f32 %v6745, %v1433
        %v6778 = vmul.f32 %v6745, %v1437
        %6811 = vrot.lane.b32.xlu0 %v6747, 79
        %v6812 = vpop.permute.xlu0 %6811
        %6813 = vrot.lane.b32.xlu0 %v6748, 79
        %v6814 = vpop.permute.xlu0 %6813
        %6815 = vrot.lane.b32.xlu0 %v6749, 79
        %v6816 = vpop.permute.xlu0 %6815
        %6817 = vrot.lane.b32.xlu0 %v6750, 79
        %v6818 = vpop.permute.xlu0 %6817
        %6819 = vrot.lane.b32.xlu0 %v6751, 79
        %v6820 = vpop.permute.xlu0 %6819
        %6821 = vrot.lane.b32.xlu0 %v6752, 79
        %v6822 = vpop.permute.xlu0 %6821
        %6823 = vrot.lane.b32.xlu0 %v6753, 79
        %v6824 = vpop.permute.xlu0 %6823
        %6825 = vrot.lane.b32.xlu0 %v6754, 79
        %v6826 = vpop.permute.xlu0 %6825
        %6827 = vrot.lane.b32.xlu0 %v6755, 79
        %v6828 = vpop.permute.xlu0 %6827
        %6829 = vrot.lane.b32.xlu0 %v6756, 79
        %v6830 = vpop.permute.xlu0 %6829
        %6831 = vrot.lane.b32.xlu0 %v6757, 79
        %v6832 = vpop.permute.xlu0 %6831
        %6833 = vrot.lane.b32.xlu0 %v6758, 79
        %v6834 = vpop.permute.xlu0 %6833
        %6835 = vrot.lane.b32.xlu0 %v6759, 79
        %v6836 = vpop.permute.xlu0 %6835
        %6837 = vrot.lane.b32.xlu0 %v6760, 79
        %v6838 = vpop.permute.xlu0 %6837
        %6839 = vrot.lane.b32.xlu0 %v6761, 79
        %v6840 = vpop.permute.xlu0 %6839
        %6841 = vrot.lane.b32.xlu0 %v6762, 79
        %v6842 = vpop.permute.xlu0 %6841
        %6843 = vrot.lane.b32.xlu0 %v6763, 79
        %v6844 = vpop.permute.xlu0 %6843
        %6845 = vrot.lane.b32.xlu0 %v6764, 79
        %v6846 = vpop.permute.xlu0 %6845
        %6847 = vrot.lane.b32.xlu0 %v6765, 79
        %v6848 = vpop.permute.xlu0 %6847
        %6849 = vrot.lane.b32.xlu0 %v6766, 79
        %v6850 = vpop.permute.xlu0 %6849
        %6851 = vrot.lane.b32.xlu0 %v6767, 79
        %v6852 = vpop.permute.xlu0 %6851
        %6853 = vrot.lane.b32.xlu0 %v6768, 79
        %v6854 = vpop.permute.xlu0 %6853
        %6855 = vrot.lane.b32.xlu0 %v6769, 79
        %v6856 = vpop.permute.xlu0 %6855
        %6857 = vrot.lane.b32.xlu0 %v6770, 79
        %v6858 = vpop.permute.xlu0 %6857
        %6859 = vrot.lane.b32.xlu0 %v6771, 79
        %v6860 = vpop.permute.xlu0 %6859
        %6861 = vrot.lane.b32.xlu0 %v6772, 79
        %v6862 = vpop.permute.xlu0 %6861
        %6863 = vrot.lane.b32.xlu0 %v6773, 79
        %v6864 = vpop.permute.xlu0 %6863
        %6865 = vrot.lane.b32.xlu0 %v6774, 79
        %v6866 = vpop.permute.xlu0 %6865
        %6867 = vrot.lane.b32.xlu0 %v6775, 79
        %v6868 = vpop.permute.xlu0 %6867
        %6869 = vrot.lane.b32.xlu0 %v6776, 79
        %v6870 = vpop.permute.xlu0 %6869
        %6871 = vrot.lane.b32.xlu0 %v6777, 79
        %v6872 = vpop.permute.xlu0 %6871
        %6873 = vrot.lane.b32.xlu0 %v6778, 79
        %v6874 = vpop.permute.xlu0 %6873
        %v6875 = vsel %vm5249, %v6812, %v6814
        %v6876 = vsel %vm5249, %v6814, %v6816
        %v6877 = vsel %vm5249, %v6816, %v6818
        %v6878 = vsel %vm5249, %v6820, %v6822
        %v6879 = vsel %vm5249, %v6822, %v6824
        %v6880 = vsel %vm5249, %v6824, %v6826
        %v6881 = vsel %vm5249, %v6828, %v6830
        %v6882 = vsel %vm5249, %v6830, %v6832
        %v6883 = vsel %vm5249, %v6832, %v6834
        %v6884 = vsel %vm5249, %v6836, %v6838
        %v6885 = vsel %vm5249, %v6838, %v6840
        %v6886 = vsel %vm5249, %v6840, %v6842
        %v6887 = vsel %vm5249, %v6844, %v6846
        %v6888 = vsel %vm5249, %v6846, %v6848
        %v6889 = vsel %vm5249, %v6848, %v6850
        %v6890 = vsel %vm5249, %v6852, %v6854
        %v6891 = vsel %vm5249, %v6854, %v6856
        %v6892 = vsel %vm5249, %v6856, %v6858
        %v6893 = vsel %vm5249, %v6860, %v6862
        %v6894 = vsel %vm5249, %v6862, %v6864
        %v6895 = vsel %vm5249, %v6864, %v6866
        %v6896 = vsel %vm5249, %v6868, %v6870
        %v6897 = vsel %vm5249, %v6870, %v6872
        %v6898 = vsel %vm5249, %v6872, %v6874
        %v6923 = vadd.f32 %v6691, %v6875
        %v6924 = vadd.f32 %v6692, %v6876
        %v6925 = vadd.f32 %v6693, %v6877
        %v6926 = vadd.f32 %v6694, %v6878
        %v6927 = vadd.f32 %v6695, %v6879
        %v6928 = vadd.f32 %v6696, %v6880
        %v6929 = vadd.f32 %v6697, %v6881
        %v6930 = vadd.f32 %v6698, %v6882
        %v6931 = vadd.f32 %v6699, %v6883
        %v6932 = vadd.f32 %v6700, %v6884
        %v6933 = vadd.f32 %v6701, %v6885
        %v6934 = vadd.f32 %v6702, %v6886
        %v6935 = vadd.f32 %v6703, %v6887
        %v6936 = vadd.f32 %v6704, %v6888
        %v6937 = vadd.f32 %v6705, %v6889
        %v6938 = vadd.f32 %v6706, %v6890
        %v6939 = vadd.f32 %v6707, %v6891
        %v6940 = vadd.f32 %v6708, %v6892
        %v6941 = vadd.f32 %v6709, %v6893
        %v6942 = vadd.f32 %v6710, %v6894
        %v6943 = vadd.f32 %v6711, %v6895
        %v6944 = vadd.f32 %v6712, %v6896
        %v6945 = vadd.f32 %v6713, %v6897
        %v6946 = vadd.f32 %v6714, %v6898
        %6947 = vset.pattern.permute.xlu0 27
        %6948 = vperm.xlu0 %6947, %v1438
        %v6949 = vpop.permute.xlu0 %6948
        %6951 = vset.pattern.permute.xlu0 27
        %6952 = vperm.xlu0 %6951, %v1439
        %v6953 = vpop.permute.xlu0 %6952
        %6955 = vset.pattern.permute.xlu0 27
        %6956 = vperm.xlu0 %6955, %v1440
        %v6957 = vpop.permute.xlu0 %6956
        %6959 = vset.pattern.permute.xlu0 27
        %6960 = vperm.xlu0 %6959, %v1441
        %v6961 = vpop.permute.xlu0 %6960
        %6963 = vset.pattern.permute.xlu0 27
        %6964 = vperm.xlu0 %6963, %v1442
        %v6965 = vpop.permute.xlu0 %6964
        %6967 = vset.pattern.permute.xlu0 27
        %6968 = vperm.xlu0 %6967, %v1443
        %v6969 = vpop.permute.xlu0 %6968
        %6971 = vset.pattern.permute.xlu0 27
        %6972 = vperm.xlu0 %6971, %v1444
        %v6973 = vpop.permute.xlu0 %6972
        %6975 = vset.pattern.permute.xlu0 27
        %6976 = vperm.xlu0 %6975, %v1445
        %v6977 = vpop.permute.xlu0 %6976
        %v6979 = vmul.f32 %v6949, %v1153
        %v6980 = vmul.f32 %v6949, %v1155
        %v6981 = vmul.f32 %v6949, %v1242
        %v6982 = vmul.f32 %v6949, %v1244
        %v6983 = vmul.f32 %v6953, %v1159
        %v6984 = vmul.f32 %v6953, %v1161
        %v6985 = vmul.f32 %v6953, %v1248
        %v6986 = vmul.f32 %v6953, %v1250
        %v6987 = vmul.f32 %v6957, %v1165
        %v6988 = vmul.f32 %v6957, %v1167
        %v6989 = vmul.f32 %v6957, %v1254
        %v6990 = vmul.f32 %v6957, %v1256
        %v6991 = vmul.f32 %v6961, %v1171
        %v6992 = vmul.f32 %v6961, %v1173
        %v6993 = vmul.f32 %v6961, %v1260
        %v6994 = vmul.f32 %v6961, %v1262
        %v6995 = vmul.f32 %v6965, %v1409
        %v6996 = vmul.f32 %v6965, %v1413
        %v6997 = vmul.f32 %v6965, %v1417
        %v6998 = vmul.f32 %v6965, %v1421
        %v6999 = vmul.f32 %v6969, %v1409
        %v7000 = vmul.f32 %v6969, %v1413
        %v7001 = vmul.f32 %v6969, %v1417
        %v7002 = vmul.f32 %v6969, %v1421
        %v7003 = vmul.f32 %v6973, %v1425
        %v7004 = vmul.f32 %v6973, %v1429
        %v7005 = vmul.f32 %v6973, %v1433
        %v7006 = vmul.f32 %v6973, %v1437
        %v7007 = vmul.f32 %v6977, %v1425
        %v7008 = vmul.f32 %v6977, %v1429
        %v7009 = vmul.f32 %v6977, %v1433
        %v7010 = vmul.f32 %v6977, %v1437
        %7043 = vrot.lane.b32.xlu0 %v6979, 78
        %v7044 = vpop.permute.xlu0 %7043
        %7045 = vrot.lane.b32.xlu0 %v6980, 78
        %v7046 = vpop.permute.xlu0 %7045
        %7047 = vrot.lane.b32.xlu0 %v6981, 78
        %v7048 = vpop.permute.xlu0 %7047
        %7049 = vrot.lane.b32.xlu0 %v6982, 78
        %v7050 = vpop.permute.xlu0 %7049
        %7051 = vrot.lane.b32.xlu0 %v6983, 78
        %v7052 = vpop.permute.xlu0 %7051
        %7053 = vrot.lane.b32.xlu0 %v6984, 78
        %v7054 = vpop.permute.xlu0 %7053
        %7055 = vrot.lane.b32.xlu0 %v6985, 78
        %v7056 = vpop.permute.xlu0 %7055
        %7057 = vrot.lane.b32.xlu0 %v6986, 78
        %v7058 = vpop.permute.xlu0 %7057
        %7059 = vrot.lane.b32.xlu0 %v6987, 78
        %v7060 = vpop.permute.xlu0 %7059
        %7061 = vrot.lane.b32.xlu0 %v6988, 78
        %v7062 = vpop.permute.xlu0 %7061
        %7063 = vrot.lane.b32.xlu0 %v6989, 78
        %v7064 = vpop.permute.xlu0 %7063
        %7065 = vrot.lane.b32.xlu0 %v6990, 78
        %v7066 = vpop.permute.xlu0 %7065
        %7067 = vrot.lane.b32.xlu0 %v6991, 78
        %v7068 = vpop.permute.xlu0 %7067
        %7069 = vrot.lane.b32.xlu0 %v6992, 78
        %v7070 = vpop.permute.xlu0 %7069
        %7071 = vrot.lane.b32.xlu0 %v6993, 78
        %v7072 = vpop.permute.xlu0 %7071
        %7073 = vrot.lane.b32.xlu0 %v6994, 78
        %v7074 = vpop.permute.xlu0 %7073
        %7075 = vrot.lane.b32.xlu0 %v6995, 78
        %v7076 = vpop.permute.xlu0 %7075
        %7077 = vrot.lane.b32.xlu0 %v6996, 78
        %v7078 = vpop.permute.xlu0 %7077
        %7079 = vrot.lane.b32.xlu0 %v6997, 78
        %v7080 = vpop.permute.xlu0 %7079
        %7081 = vrot.lane.b32.xlu0 %v6998, 78
        %v7082 = vpop.permute.xlu0 %7081
        %7083 = vrot.lane.b32.xlu0 %v6999, 78
        %v7084 = vpop.permute.xlu0 %7083
        %7085 = vrot.lane.b32.xlu0 %v7000, 78
        %v7086 = vpop.permute.xlu0 %7085
        %7087 = vrot.lane.b32.xlu0 %v7001, 78
        %v7088 = vpop.permute.xlu0 %7087
        %7089 = vrot.lane.b32.xlu0 %v7002, 78
        %v7090 = vpop.permute.xlu0 %7089
        %7091 = vrot.lane.b32.xlu0 %v7003, 78
        %v7092 = vpop.permute.xlu0 %7091
        %7093 = vrot.lane.b32.xlu0 %v7004, 78
        %v7094 = vpop.permute.xlu0 %7093
        %7095 = vrot.lane.b32.xlu0 %v7005, 78
        %v7096 = vpop.permute.xlu0 %7095
        %7097 = vrot.lane.b32.xlu0 %v7006, 78
        %v7098 = vpop.permute.xlu0 %7097
        %7099 = vrot.lane.b32.xlu0 %v7007, 78
        %v7100 = vpop.permute.xlu0 %7099
        %7101 = vrot.lane.b32.xlu0 %v7008, 78
        %v7102 = vpop.permute.xlu0 %7101
        %7103 = vrot.lane.b32.xlu0 %v7009, 78
        %v7104 = vpop.permute.xlu0 %7103
        %7105 = vrot.lane.b32.xlu0 %v7010, 78
        %v7106 = vpop.permute.xlu0 %7105
        %v7107 = vsel %vm5482, %v7044, %v7046
        %v7108 = vsel %vm5482, %v7046, %v7048
        %v7109 = vsel %vm5482, %v7048, %v7050
        %v7110 = vsel %vm5482, %v7052, %v7054
        %v7111 = vsel %vm5482, %v7054, %v7056
        %v7112 = vsel %vm5482, %v7056, %v7058
        %v7113 = vsel %vm5482, %v7060, %v7062
        %v7114 = vsel %vm5482, %v7062, %v7064
        %v7115 = vsel %vm5482, %v7064, %v7066
        %v7116 = vsel %vm5482, %v7068, %v7070
        %v7117 = vsel %vm5482, %v7070, %v7072
        %v7118 = vsel %vm5482, %v7072, %v7074
        %v7119 = vsel %vm5482, %v7076, %v7078
        %v7120 = vsel %vm5482, %v7078, %v7080
        %v7121 = vsel %vm5482, %v7080, %v7082
        %v7122 = vsel %vm5482, %v7084, %v7086
        %v7123 = vsel %vm5482, %v7086, %v7088
        %v7124 = vsel %vm5482, %v7088, %v7090
        %v7125 = vsel %vm5482, %v7092, %v7094
        %v7126 = vsel %vm5482, %v7094, %v7096
        %v7127 = vsel %vm5482, %v7096, %v7098
        %v7128 = vsel %vm5482, %v7100, %v7102
        %v7129 = vsel %vm5482, %v7102, %v7104
        %v7130 = vsel %vm5482, %v7104, %v7106
        %v7155 = vadd.f32 %v6923, %v7107
        %v7156 = vadd.f32 %v6924, %v7108
        %v7157 = vadd.f32 %v6925, %v7109
        %v7158 = vadd.f32 %v6926, %v7110
        %v7159 = vadd.f32 %v6927, %v7111
        %v7160 = vadd.f32 %v6928, %v7112
        %v7161 = vadd.f32 %v6929, %v7113
        %v7162 = vadd.f32 %v6930, %v7114
        %v7163 = vadd.f32 %v6931, %v7115
        %v7164 = vadd.f32 %v6932, %v7116
        %v7165 = vadd.f32 %v6933, %v7117
        %v7166 = vadd.f32 %v6934, %v7118
        %v7167 = vadd.f32 %v6935, %v7119
        %v7168 = vadd.f32 %v6936, %v7120
        %v7169 = vadd.f32 %v6937, %v7121
        %v7170 = vadd.f32 %v6938, %v7122
        %v7171 = vadd.f32 %v6939, %v7123
        %v7172 = vadd.f32 %v6940, %v7124
        %v7173 = vadd.f32 %v6941, %v7125
        %v7174 = vadd.f32 %v6942, %v7126
        %v7175 = vadd.f32 %v6943, %v7127
        %v7176 = vadd.f32 %v6944, %v7128
        %v7177 = vadd.f32 %v6945, %v7129
        %v7178 = vadd.f32 %v6946, %v7130
        %7179 = vset.pattern.permute.xlu0 28
        %7180 = vperm.xlu0 %7179, %v1438
        %v7181 = vpop.permute.xlu0 %7180
        %7183 = vset.pattern.permute.xlu0 28
        %7184 = vperm.xlu0 %7183, %v1439
        %v7185 = vpop.permute.xlu0 %7184
        %7187 = vset.pattern.permute.xlu0 28
        %7188 = vperm.xlu0 %7187, %v1440
        %v7189 = vpop.permute.xlu0 %7188
        %7191 = vset.pattern.permute.xlu0 28
        %7192 = vperm.xlu0 %7191, %v1441
        %v7193 = vpop.permute.xlu0 %7192
        %7195 = vset.pattern.permute.xlu0 28
        %7196 = vperm.xlu0 %7195, %v1442
        %v7197 = vpop.permute.xlu0 %7196
        %7199 = vset.pattern.permute.xlu0 28
        %7200 = vperm.xlu0 %7199, %v1443
        %v7201 = vpop.permute.xlu0 %7200
        %7203 = vset.pattern.permute.xlu0 28
        %7204 = vperm.xlu0 %7203, %v1444
        %v7205 = vpop.permute.xlu0 %7204
        %7207 = vset.pattern.permute.xlu0 28
        %7208 = vperm.xlu0 %7207, %v1445
        %v7209 = vpop.permute.xlu0 %7208
        %v7211 = vmul.f32 %v7181, %v1153
        %v7212 = vmul.f32 %v7181, %v1155
        %v7213 = vmul.f32 %v7181, %v1242
        %v7214 = vmul.f32 %v7181, %v1244
        %v7215 = vmul.f32 %v7185, %v1159
        %v7216 = vmul.f32 %v7185, %v1161
        %v7217 = vmul.f32 %v7185, %v1248
        %v7218 = vmul.f32 %v7185, %v1250
        %v7219 = vmul.f32 %v7189, %v1165
        %v7220 = vmul.f32 %v7189, %v1167
        %v7221 = vmul.f32 %v7189, %v1254
        %v7222 = vmul.f32 %v7189, %v1256
        %v7223 = vmul.f32 %v7193, %v1171
        %v7224 = vmul.f32 %v7193, %v1173
        %v7225 = vmul.f32 %v7193, %v1260
        %v7226 = vmul.f32 %v7193, %v1262
        %v7227 = vmul.f32 %v7197, %v1409
        %v7228 = vmul.f32 %v7197, %v1413
        %v7229 = vmul.f32 %v7197, %v1417
        %v7230 = vmul.f32 %v7197, %v1421
        %v7231 = vmul.f32 %v7201, %v1409
        %v7232 = vmul.f32 %v7201, %v1413
        %v7233 = vmul.f32 %v7201, %v1417
        %v7234 = vmul.f32 %v7201, %v1421
        %v7235 = vmul.f32 %v7205, %v1425
        %v7236 = vmul.f32 %v7205, %v1429
        %v7237 = vmul.f32 %v7205, %v1433
        %v7238 = vmul.f32 %v7205, %v1437
        %v7239 = vmul.f32 %v7209, %v1425
        %v7240 = vmul.f32 %v7209, %v1429
        %v7241 = vmul.f32 %v7209, %v1433
        %v7242 = vmul.f32 %v7209, %v1437
        %7275 = vrot.lane.b32.xlu0 %v7211, 40
        %v7276 = vpop.permute.xlu0 %7275
        %7277 = vrot.lane.b32.xlu0 %v7212, 40
        %v7278 = vpop.permute.xlu0 %7277
        %7279 = vrot.lane.b32.xlu0 %v7213, 40
        %v7280 = vpop.permute.xlu0 %7279
        %7281 = vrot.lane.b32.xlu0 %v7214, 40
        %v7282 = vpop.permute.xlu0 %7281
        %7283 = vrot.lane.b32.xlu0 %v7215, 40
        %v7284 = vpop.permute.xlu0 %7283
        %7285 = vrot.lane.b32.xlu0 %v7216, 40
        %v7286 = vpop.permute.xlu0 %7285
        %7287 = vrot.lane.b32.xlu0 %v7217, 40
        %v7288 = vpop.permute.xlu0 %7287
        %7289 = vrot.lane.b32.xlu0 %v7218, 40
        %v7290 = vpop.permute.xlu0 %7289
        %7291 = vrot.lane.b32.xlu0 %v7219, 40
        %v7292 = vpop.permute.xlu0 %7291
        %7293 = vrot.lane.b32.xlu0 %v7220, 40
        %v7294 = vpop.permute.xlu0 %7293
        %7295 = vrot.lane.b32.xlu0 %v7221, 40
        %v7296 = vpop.permute.xlu0 %7295
        %7297 = vrot.lane.b32.xlu0 %v7222, 40
        %v7298 = vpop.permute.xlu0 %7297
        %7299 = vrot.lane.b32.xlu0 %v7223, 40
        %v7300 = vpop.permute.xlu0 %7299
        %7301 = vrot.lane.b32.xlu0 %v7224, 40
        %v7302 = vpop.permute.xlu0 %7301
        %7303 = vrot.lane.b32.xlu0 %v7225, 40
        %v7304 = vpop.permute.xlu0 %7303
        %7305 = vrot.lane.b32.xlu0 %v7226, 40
        %v7306 = vpop.permute.xlu0 %7305
        %7307 = vrot.lane.b32.xlu0 %v7227, 40
        %v7308 = vpop.permute.xlu0 %7307
        %7309 = vrot.lane.b32.xlu0 %v7228, 40
        %v7310 = vpop.permute.xlu0 %7309
        %7311 = vrot.lane.b32.xlu0 %v7229, 40
        %v7312 = vpop.permute.xlu0 %7311
        %7313 = vrot.lane.b32.xlu0 %v7230, 40
        %v7314 = vpop.permute.xlu0 %7313
        %7315 = vrot.lane.b32.xlu0 %v7231, 40
        %v7316 = vpop.permute.xlu0 %7315
        %7317 = vrot.lane.b32.xlu0 %v7232, 40
        %v7318 = vpop.permute.xlu0 %7317
        %7319 = vrot.lane.b32.xlu0 %v7233, 40
        %v7320 = vpop.permute.xlu0 %7319
        %7321 = vrot.lane.b32.xlu0 %v7234, 40
        %v7322 = vpop.permute.xlu0 %7321
        %7323 = vrot.lane.b32.xlu0 %v7235, 40
        %v7324 = vpop.permute.xlu0 %7323
        %7325 = vrot.lane.b32.xlu0 %v7236, 40
        %v7326 = vpop.permute.xlu0 %7325
        %7327 = vrot.lane.b32.xlu0 %v7237, 40
        %v7328 = vpop.permute.xlu0 %7327
        %7329 = vrot.lane.b32.xlu0 %v7238, 40
        %v7330 = vpop.permute.xlu0 %7329
        %7331 = vrot.lane.b32.xlu0 %v7239, 40
        %v7332 = vpop.permute.xlu0 %7331
        %7333 = vrot.lane.b32.xlu0 %v7240, 40
        %v7334 = vpop.permute.xlu0 %7333
        %7335 = vrot.lane.b32.xlu0 %v7241, 40
        %v7336 = vpop.permute.xlu0 %7335
        %7337 = vrot.lane.b32.xlu0 %v7242, 40
        %v7338 = vpop.permute.xlu0 %7337
        %vm7339 = vcmask 326656
        %v7340 = vsel %vm7339, %v7276, %v7278
        %v7341 = vsel %vm7339, %v7278, %v7280
        %v7342 = vsel %vm7339, %v7280, %v7282
        %v7343 = vsel %vm7339, %v7284, %v7286
        %v7344 = vsel %vm7339, %v7286, %v7288
        %v7345 = vsel %vm7339, %v7288, %v7290
        %v7346 = vsel %vm7339, %v7292, %v7294
        %v7347 = vsel %vm7339, %v7294, %v7296
        %v7348 = vsel %vm7339, %v7296, %v7298
        %v7349 = vsel %vm7339, %v7300, %v7302
        %v7350 = vsel %vm7339, %v7302, %v7304
        %v7351 = vsel %vm7339, %v7304, %v7306
        %v7352 = vsel %vm7339, %v7308, %v7310
        %v7353 = vsel %vm7339, %v7310, %v7312
        %v7354 = vsel %vm7339, %v7312, %v7314
        %v7355 = vsel %vm7339, %v7316, %v7318
        %v7356 = vsel %vm7339, %v7318, %v7320
        %v7357 = vsel %vm7339, %v7320, %v7322
        %v7358 = vsel %vm7339, %v7324, %v7326
        %v7359 = vsel %vm7339, %v7326, %v7328
        %v7360 = vsel %vm7339, %v7328, %v7330
        %v7361 = vsel %vm7339, %v7332, %v7334
        %v7362 = vsel %vm7339, %v7334, %v7336
        %v7363 = vsel %vm7339, %v7336, %v7338
        %v7388 = vadd.f32 %v5531, %v7340
        %v7389 = vadd.f32 %v5532, %v7341
        %v7390 = vadd.f32 %v5533, %v7342
        %v7391 = vadd.f32 %v5534, %v7343
        %v7392 = vadd.f32 %v5535, %v7344
        %v7393 = vadd.f32 %v5536, %v7345
        %v7394 = vadd.f32 %v5537, %v7346
        %v7395 = vadd.f32 %v5538, %v7347
        %v7396 = vadd.f32 %v5539, %v7348
        %v7397 = vadd.f32 %v5540, %v7349
        %v7398 = vadd.f32 %v5541, %v7350
        %v7399 = vadd.f32 %v5542, %v7351
        %v7400 = vadd.f32 %v5543, %v7352
        %v7401 = vadd.f32 %v5544, %v7353
        %v7402 = vadd.f32 %v5545, %v7354
        %v7403 = vadd.f32 %v5546, %v7355
        %v7404 = vadd.f32 %v5547, %v7356
        %v7405 = vadd.f32 %v5548, %v7357
        %v7406 = vadd.f32 %v5549, %v7358
        %v7407 = vadd.f32 %v5550, %v7359
        %v7408 = vadd.f32 %v5551, %v7360
        %v7409 = vadd.f32 %v5552, %v7361
        %v7410 = vadd.f32 %v5553, %v7362
        %v7411 = vadd.f32 %v5554, %v7363
        %7412 = vset.pattern.permute.xlu0 29
        %7413 = vperm.xlu0 %7412, %v1438
        %v7414 = vpop.permute.xlu0 %7413
        %7416 = vset.pattern.permute.xlu0 29
        %7417 = vperm.xlu0 %7416, %v1439
        %v7418 = vpop.permute.xlu0 %7417
        %7420 = vset.pattern.permute.xlu0 29
        %7421 = vperm.xlu0 %7420, %v1440
        %v7422 = vpop.permute.xlu0 %7421
        %7424 = vset.pattern.permute.xlu0 29
        %7425 = vperm.xlu0 %7424, %v1441
        %v7426 = vpop.permute.xlu0 %7425
        %7428 = vset.pattern.permute.xlu0 29
        %7429 = vperm.xlu0 %7428, %v1442
        %v7430 = vpop.permute.xlu0 %7429
        %7432 = vset.pattern.permute.xlu0 29
        %7433 = vperm.xlu0 %7432, %v1443
        %v7434 = vpop.permute.xlu0 %7433
        %7436 = vset.pattern.permute.xlu0 29
        %7437 = vperm.xlu0 %7436, %v1444
        %v7438 = vpop.permute.xlu0 %7437
        %7440 = vset.pattern.permute.xlu0 29
        %7441 = vperm.xlu0 %7440, %v1445
        %v7442 = vpop.permute.xlu0 %7441
        %v7444 = vmul.f32 %v7414, %v1153
        %v7445 = vmul.f32 %v7414, %v1155
        %v7446 = vmul.f32 %v7414, %v1242
        %v7447 = vmul.f32 %v7414, %v1244
        %v7448 = vmul.f32 %v7418, %v1159
        %v7449 = vmul.f32 %v7418, %v1161
        %v7450 = vmul.f32 %v7418, %v1248
        %v7451 = vmul.f32 %v7418, %v1250
        %v7452 = vmul.f32 %v7422, %v1165
        %v7453 = vmul.f32 %v7422, %v1167
        %v7454 = vmul.f32 %v7422, %v1254
        %v7455 = vmul.f32 %v7422, %v1256
        %v7456 = vmul.f32 %v7426, %v1171
        %v7457 = vmul.f32 %v7426, %v1173
        %v7458 = vmul.f32 %v7426, %v1260
        %v7459 = vmul.f32 %v7426, %v1262
        %v7460 = vmul.f32 %v7430, %v1409
        %v7461 = vmul.f32 %v7430, %v1413
        %v7462 = vmul.f32 %v7430, %v1417
        %v7463 = vmul.f32 %v7430, %v1421
        %v7464 = vmul.f32 %v7434, %v1409
        %v7465 = vmul.f32 %v7434, %v1413
        %v7466 = vmul.f32 %v7434, %v1417
        %v7467 = vmul.f32 %v7434, %v1421
        %v7468 = vmul.f32 %v7438, %v1425
        %v7469 = vmul.f32 %v7438, %v1429
        %v7470 = vmul.f32 %v7438, %v1433
        %v7471 = vmul.f32 %v7438, %v1437
        %v7472 = vmul.f32 %v7442, %v1425
        %v7473 = vmul.f32 %v7442, %v1429
        %v7474 = vmul.f32 %v7442, %v1433
        %v7475 = vmul.f32 %v7442, %v1437
        %7508 = vrot.lane.b32.xlu0 %v7444, 39
        %v7509 = vpop.permute.xlu0 %7508
        %7510 = vrot.lane.b32.xlu0 %v7445, 39
        %v7511 = vpop.permute.xlu0 %7510
        %7512 = vrot.lane.b32.xlu0 %v7446, 39
        %v7513 = vpop.permute.xlu0 %7512
        %7514 = vrot.lane.b32.xlu0 %v7447, 39
        %v7515 = vpop.permute.xlu0 %7514
        %7516 = vrot.lane.b32.xlu0 %v7448, 39
        %v7517 = vpop.permute.xlu0 %7516
        %7518 = vrot.lane.b32.xlu0 %v7449, 39
        %v7519 = vpop.permute.xlu0 %7518
        %7520 = vrot.lane.b32.xlu0 %v7450, 39
        %v7521 = vpop.permute.xlu0 %7520
        %7522 = vrot.lane.b32.xlu0 %v7451, 39
        %v7523 = vpop.permute.xlu0 %7522
        %7524 = vrot.lane.b32.xlu0 %v7452, 39
        %v7525 = vpop.permute.xlu0 %7524
        %7526 = vrot.lane.b32.xlu0 %v7453, 39
        %v7527 = vpop.permute.xlu0 %7526
        %7528 = vrot.lane.b32.xlu0 %v7454, 39
        %v7529 = vpop.permute.xlu0 %7528
        %7530 = vrot.lane.b32.xlu0 %v7455, 39
        %v7531 = vpop.permute.xlu0 %7530
        %7532 = vrot.lane.b32.xlu0 %v7456, 39
        %v7533 = vpop.permute.xlu0 %7532
        %7534 = vrot.lane.b32.xlu0 %v7457, 39
        %v7535 = vpop.permute.xlu0 %7534
        %7536 = vrot.lane.b32.xlu0 %v7458, 39
        %v7537 = vpop.permute.xlu0 %7536
        %7538 = vrot.lane.b32.xlu0 %v7459, 39
        %v7539 = vpop.permute.xlu0 %7538
        %7540 = vrot.lane.b32.xlu0 %v7460, 39
        %v7541 = vpop.permute.xlu0 %7540
        %7542 = vrot.lane.b32.xlu0 %v7461, 39
        %v7543 = vpop.permute.xlu0 %7542
        %7544 = vrot.lane.b32.xlu0 %v7462, 39
        %v7545 = vpop.permute.xlu0 %7544
        %7546 = vrot.lane.b32.xlu0 %v7463, 39
        %v7547 = vpop.permute.xlu0 %7546
        %7548 = vrot.lane.b32.xlu0 %v7464, 39
        %v7549 = vpop.permute.xlu0 %7548
        %7550 = vrot.lane.b32.xlu0 %v7465, 39
        %v7551 = vpop.permute.xlu0 %7550
        %7552 = vrot.lane.b32.xlu0 %v7466, 39
        %v7553 = vpop.permute.xlu0 %7552
        %7554 = vrot.lane.b32.xlu0 %v7467, 39
        %v7555 = vpop.permute.xlu0 %7554
        %7556 = vrot.lane.b32.xlu0 %v7468, 39
        %v7557 = vpop.permute.xlu0 %7556
        %7558 = vrot.lane.b32.xlu0 %v7469, 39
        %v7559 = vpop.permute.xlu0 %7558
        %7560 = vrot.lane.b32.xlu0 %v7470, 39
        %v7561 = vpop.permute.xlu0 %7560
        %7562 = vrot.lane.b32.xlu0 %v7471, 39
        %v7563 = vpop.permute.xlu0 %7562
        %7564 = vrot.lane.b32.xlu0 %v7472, 39
        %v7565 = vpop.permute.xlu0 %7564
        %7566 = vrot.lane.b32.xlu0 %v7473, 39
        %v7567 = vpop.permute.xlu0 %7566
        %7568 = vrot.lane.b32.xlu0 %v7474, 39
        %v7569 = vpop.permute.xlu0 %7568
        %7570 = vrot.lane.b32.xlu0 %v7475, 39
        %v7571 = vpop.permute.xlu0 %7570
        %vm7572 = vcmask 318464
        %v7573 = vsel %vm7572, %v7509, %v7511
        %v7574 = vsel %vm7572, %v7511, %v7513
        %v7575 = vsel %vm7572, %v7513, %v7515
        %v7576 = vsel %vm7572, %v7517, %v7519
        %v7577 = vsel %vm7572, %v7519, %v7521
        %v7578 = vsel %vm7572, %v7521, %v7523
        %v7579 = vsel %vm7572, %v7525, %v7527
        %v7580 = vsel %vm7572, %v7527, %v7529
        %v7581 = vsel %vm7572, %v7529, %v7531
        %v7582 = vsel %vm7572, %v7533, %v7535
        %v7583 = vsel %vm7572, %v7535, %v7537
        %v7584 = vsel %vm7572, %v7537, %v7539
        %v7585 = vsel %vm7572, %v7541, %v7543
        %v7586 = vsel %vm7572, %v7543, %v7545
        %v7587 = vsel %vm7572, %v7545, %v7547
        %v7588 = vsel %vm7572, %v7549, %v7551
        %v7589 = vsel %vm7572, %v7551, %v7553
        %v7590 = vsel %vm7572, %v7553, %v7555
        %v7591 = vsel %vm7572, %v7557, %v7559
        %v7592 = vsel %vm7572, %v7559, %v7561
        %v7593 = vsel %vm7572, %v7561, %v7563
        %v7594 = vsel %vm7572, %v7565, %v7567
        %v7595 = vsel %vm7572, %v7567, %v7569
        %v7596 = vsel %vm7572, %v7569, %v7571
        %v7621 = vadd.f32 %v7388, %v7573
        %v7622 = vadd.f32 %v7389, %v7574
        %v7623 = vadd.f32 %v7390, %v7575
        %v7624 = vadd.f32 %v7391, %v7576
        %v7625 = vadd.f32 %v7392, %v7577
        %v7626 = vadd.f32 %v7393, %v7578
        %v7627 = vadd.f32 %v7394, %v7579
        %v7628 = vadd.f32 %v7395, %v7580
        %v7629 = vadd.f32 %v7396, %v7581
        %v7630 = vadd.f32 %v7397, %v7582
        %v7631 = vadd.f32 %v7398, %v7583
        %v7632 = vadd.f32 %v7399, %v7584
        %v7633 = vadd.f32 %v7400, %v7585
        %v7634 = vadd.f32 %v7401, %v7586
        %v7635 = vadd.f32 %v7402, %v7587
        %v7636 = vadd.f32 %v7403, %v7588
        %v7637 = vadd.f32 %v7404, %v7589
        %v7638 = vadd.f32 %v7405, %v7590
        %v7639 = vadd.f32 %v7406, %v7591
        %v7640 = vadd.f32 %v7407, %v7592
        %v7641 = vadd.f32 %v7408, %v7593
        %v7642 = vadd.f32 %v7409, %v7594
        %v7643 = vadd.f32 %v7410, %v7595
        %v7644 = vadd.f32 %v7411, %v7596
        %7645 = vset.pattern.permute.xlu0 30
        %7646 = vperm.xlu0 %7645, %v1438
        %v7647 = vpop.permute.xlu0 %7646
        %7649 = vset.pattern.permute.xlu0 30
        %7650 = vperm.xlu0 %7649, %v1439
        %v7651 = vpop.permute.xlu0 %7650
        %7653 = vset.pattern.permute.xlu0 30
        %7654 = vperm.xlu0 %7653, %v1440
        %v7655 = vpop.permute.xlu0 %7654
        %7657 = vset.pattern.permute.xlu0 30
        %7658 = vperm.xlu0 %7657, %v1441
        %v7659 = vpop.permute.xlu0 %7658
        %7661 = vset.pattern.permute.xlu0 30
        %7662 = vperm.xlu0 %7661, %v1442
        %v7663 = vpop.permute.xlu0 %7662
        %7665 = vset.pattern.permute.xlu0 30
        %7666 = vperm.xlu0 %7665, %v1443
        %v7667 = vpop.permute.xlu0 %7666
        %7669 = vset.pattern.permute.xlu0 30
        %7670 = vperm.xlu0 %7669, %v1444
        %v7671 = vpop.permute.xlu0 %7670
        %7673 = vset.pattern.permute.xlu0 30
        %7674 = vperm.xlu0 %7673, %v1445
        %v7675 = vpop.permute.xlu0 %7674
        %v7677 = vmul.f32 %v7647, %v1153
        %v7678 = vmul.f32 %v7647, %v1155
        %v7679 = vmul.f32 %v7647, %v1242
        %v7680 = vmul.f32 %v7647, %v1244
        %v7681 = vmul.f32 %v7651, %v1159
        %v7682 = vmul.f32 %v7651, %v1161
        %v7683 = vmul.f32 %v7651, %v1248
        %v7684 = vmul.f32 %v7651, %v1250
        %v7685 = vmul.f32 %v7655, %v1165
        %v7686 = vmul.f32 %v7655, %v1167
        %v7687 = vmul.f32 %v7655, %v1254
        %v7688 = vmul.f32 %v7655, %v1256
        %v7689 = vmul.f32 %v7659, %v1171
        %v7690 = vmul.f32 %v7659, %v1173
        %v7691 = vmul.f32 %v7659, %v1260
        %v7692 = vmul.f32 %v7659, %v1262
        %v7693 = vmul.f32 %v7663, %v1409
        %v7694 = vmul.f32 %v7663, %v1413
        %v7695 = vmul.f32 %v7663, %v1417
        %v7696 = vmul.f32 %v7663, %v1421
        %v7697 = vmul.f32 %v7667, %v1409
        %v7698 = vmul.f32 %v7667, %v1413
        %v7699 = vmul.f32 %v7667, %v1417
        %v7700 = vmul.f32 %v7667, %v1421
        %v7701 = vmul.f32 %v7671, %v1425
        %v7702 = vmul.f32 %v7671, %v1429
        %v7703 = vmul.f32 %v7671, %v1433
        %v7704 = vmul.f32 %v7671, %v1437
        %v7705 = vmul.f32 %v7675, %v1425
        %v7706 = vmul.f32 %v7675, %v1429
        %v7707 = vmul.f32 %v7675, %v1433
        %v7708 = vmul.f32 %v7675, %v1437
        %7741 = vrot.lane.b32.xlu0 %v7677, 38
        %v7742 = vpop.permute.xlu0 %7741
        %7743 = vrot.lane.b32.xlu0 %v7678, 38
        %v7744 = vpop.permute.xlu0 %7743
        %7745 = vrot.lane.b32.xlu0 %v7679, 38
        %v7746 = vpop.permute.xlu0 %7745
        %7747 = vrot.lane.b32.xlu0 %v7680, 38
        %v7748 = vpop.permute.xlu0 %7747
        %7749 = vrot.lane.b32.xlu0 %v7681, 38
        %v7750 = vpop.permute.xlu0 %7749
        %7751 = vrot.lane.b32.xlu0 %v7682, 38
        %v7752 = vpop.permute.xlu0 %7751
        %7753 = vrot.lane.b32.xlu0 %v7683, 38
        %v7754 = vpop.permute.xlu0 %7753
        %7755 = vrot.lane.b32.xlu0 %v7684, 38
        %v7756 = vpop.permute.xlu0 %7755
        %7757 = vrot.lane.b32.xlu0 %v7685, 38
        %v7758 = vpop.permute.xlu0 %7757
        %7759 = vrot.lane.b32.xlu0 %v7686, 38
        %v7760 = vpop.permute.xlu0 %7759
        %7761 = vrot.lane.b32.xlu0 %v7687, 38
        %v7762 = vpop.permute.xlu0 %7761
        %7763 = vrot.lane.b32.xlu0 %v7688, 38
        %v7764 = vpop.permute.xlu0 %7763
        %7765 = vrot.lane.b32.xlu0 %v7689, 38
        %v7766 = vpop.permute.xlu0 %7765
        %7767 = vrot.lane.b32.xlu0 %v7690, 38
        %v7768 = vpop.permute.xlu0 %7767
        %7769 = vrot.lane.b32.xlu0 %v7691, 38
        %v7770 = vpop.permute.xlu0 %7769
        %7771 = vrot.lane.b32.xlu0 %v7692, 38
        %v7772 = vpop.permute.xlu0 %7771
        %7773 = vrot.lane.b32.xlu0 %v7693, 38
        %v7774 = vpop.permute.xlu0 %7773
        %7775 = vrot.lane.b32.xlu0 %v7694, 38
        %v7776 = vpop.permute.xlu0 %7775
        %7777 = vrot.lane.b32.xlu0 %v7695, 38
        %v7778 = vpop.permute.xlu0 %7777
        %7779 = vrot.lane.b32.xlu0 %v7696, 38
        %v7780 = vpop.permute.xlu0 %7779
        %7781 = vrot.lane.b32.xlu0 %v7697, 38
        %v7782 = vpop.permute.xlu0 %7781
        %7783 = vrot.lane.b32.xlu0 %v7698, 38
        %v7784 = vpop.permute.xlu0 %7783
        %7785 = vrot.lane.b32.xlu0 %v7699, 38
        %v7786 = vpop.permute.xlu0 %7785
        %7787 = vrot.lane.b32.xlu0 %v7700, 38
        %v7788 = vpop.permute.xlu0 %7787
        %7789 = vrot.lane.b32.xlu0 %v7701, 38
        %v7790 = vpop.permute.xlu0 %7789
        %7791 = vrot.lane.b32.xlu0 %v7702, 38
        %v7792 = vpop.permute.xlu0 %7791
        %7793 = vrot.lane.b32.xlu0 %v7703, 38
        %v7794 = vpop.permute.xlu0 %7793
        %7795 = vrot.lane.b32.xlu0 %v7704, 38
        %v7796 = vpop.permute.xlu0 %7795
        %7797 = vrot.lane.b32.xlu0 %v7705, 38
        %v7798 = vpop.permute.xlu0 %7797
        %7799 = vrot.lane.b32.xlu0 %v7706, 38
        %v7800 = vpop.permute.xlu0 %7799
        %7801 = vrot.lane.b32.xlu0 %v7707, 38
        %v7802 = vpop.permute.xlu0 %7801
        %7803 = vrot.lane.b32.xlu0 %v7708, 38
        %v7804 = vpop.permute.xlu0 %7803
        %vm7805 = vcmask 310272
        %v7806 = vsel %vm7805, %v7742, %v7744
        %v7807 = vsel %vm7805, %v7744, %v7746
        %v7808 = vsel %vm7805, %v7746, %v7748
        %v7809 = vsel %vm7805, %v7750, %v7752
        %v7810 = vsel %vm7805, %v7752, %v7754
        %v7811 = vsel %vm7805, %v7754, %v7756
        %v7812 = vsel %vm7805, %v7758, %v7760
        %v7813 = vsel %vm7805, %v7760, %v7762
        %v7814 = vsel %vm7805, %v7762, %v7764
        %v7815 = vsel %vm7805, %v7766, %v7768
        %v7816 = vsel %vm7805, %v7768, %v7770
        %v7817 = vsel %vm7805, %v7770, %v7772
        %v7818 = vsel %vm7805, %v7774, %v7776
        %v7819 = vsel %vm7805, %v7776, %v7778
        %v7820 = vsel %vm7805, %v7778, %v7780
        %v7821 = vsel %vm7805, %v7782, %v7784
        %v7822 = vsel %vm7805, %v7784, %v7786
        %v7823 = vsel %vm7805, %v7786, %v7788
        %v7824 = vsel %vm7805, %v7790, %v7792
        %v7825 = vsel %vm7805, %v7792, %v7794
        %v7826 = vsel %vm7805, %v7794, %v7796
        %v7827 = vsel %vm7805, %v7798, %v7800
        %v7828 = vsel %vm7805, %v7800, %v7802
        %v7829 = vsel %vm7805, %v7802, %v7804
        %v7854 = vadd.f32 %v7621, %v7806
        %v7855 = vadd.f32 %v7622, %v7807
        %v7856 = vadd.f32 %v7623, %v7808
        %v7857 = vadd.f32 %v7624, %v7809
        %v7858 = vadd.f32 %v7625, %v7810
        %v7859 = vadd.f32 %v7626, %v7811
        %v7860 = vadd.f32 %v7627, %v7812
        %v7861 = vadd.f32 %v7628, %v7813
        %v7862 = vadd.f32 %v7629, %v7814
        %v7863 = vadd.f32 %v7630, %v7815
        %v7864 = vadd.f32 %v7631, %v7816
        %v7865 = vadd.f32 %v7632, %v7817
        %v7866 = vadd.f32 %v7633, %v7818
        %v7867 = vadd.f32 %v7634, %v7819
        %v7868 = vadd.f32 %v7635, %v7820
        %v7869 = vadd.f32 %v7636, %v7821
        %v7870 = vadd.f32 %v7637, %v7822
        %v7871 = vadd.f32 %v7638, %v7823
        %v7872 = vadd.f32 %v7639, %v7824
        %v7873 = vadd.f32 %v7640, %v7825
        %v7874 = vadd.f32 %v7641, %v7826
        %v7875 = vadd.f32 %v7642, %v7827
        %v7876 = vadd.f32 %v7643, %v7828
        %v7877 = vadd.f32 %v7644, %v7829
        %7878 = vset.pattern.permute.xlu0 31
        %7879 = vperm.xlu0 %7878, %v1438
        %v7880 = vpop.permute.xlu0 %7879
        %7882 = vset.pattern.permute.xlu0 31
        %7883 = vperm.xlu0 %7882, %v1439
        %v7884 = vpop.permute.xlu0 %7883
        %7886 = vset.pattern.permute.xlu0 31
        %7887 = vperm.xlu0 %7886, %v1440
        %v7888 = vpop.permute.xlu0 %7887
        %7890 = vset.pattern.permute.xlu0 31
        %7891 = vperm.xlu0 %7890, %v1441
        %v7892 = vpop.permute.xlu0 %7891
        %7894 = vset.pattern.permute.xlu0 31
        %7895 = vperm.xlu0 %7894, %v1442
        %v7896 = vpop.permute.xlu0 %7895
        %7898 = vset.pattern.permute.xlu0 31
        %7899 = vperm.xlu0 %7898, %v1443
        %v7900 = vpop.permute.xlu0 %7899
        %7902 = vset.pattern.permute.xlu0 31
        %7903 = vperm.xlu0 %7902, %v1444
        %v7904 = vpop.permute.xlu0 %7903
        %7906 = vset.pattern.permute.xlu0 31
        %7907 = vperm.xlu0 %7906, %v1445
        %v7908 = vpop.permute.xlu0 %7907
        %v7910 = vmul.f32 %v7880, %v1153
        %v7911 = vmul.f32 %v7880, %v1155
        %v7912 = vmul.f32 %v7880, %v1242
        %v7913 = vmul.f32 %v7880, %v1244
        %v7914 = vmul.f32 %v7884, %v1159
        %v7915 = vmul.f32 %v7884, %v1161
        %v7916 = vmul.f32 %v7884, %v1248
        %v7917 = vmul.f32 %v7884, %v1250
        %v7918 = vmul.f32 %v7888, %v1165
        %v7919 = vmul.f32 %v7888, %v1167
        %v7920 = vmul.f32 %v7888, %v1254
        %v7921 = vmul.f32 %v7888, %v1256
        %v7922 = vmul.f32 %v7892, %v1171
        %v7923 = vmul.f32 %v7892, %v1173
        %v7924 = vmul.f32 %v7892, %v1260
        %v7925 = vmul.f32 %v7892, %v1262
        %v7926 = vmul.f32 %v7896, %v1409
        %v7927 = vmul.f32 %v7896, %v1413
        %v7928 = vmul.f32 %v7896, %v1417
        %v7929 = vmul.f32 %v7896, %v1421
        %v7930 = vmul.f32 %v7900, %v1409
        %v7931 = vmul.f32 %v7900, %v1413
        %v7932 = vmul.f32 %v7900, %v1417
        %v7933 = vmul.f32 %v7900, %v1421
        %v7934 = vmul.f32 %v7904, %v1425
        %v7935 = vmul.f32 %v7904, %v1429
        %v7936 = vmul.f32 %v7904, %v1433
        %v7937 = vmul.f32 %v7904, %v1437
        %v7938 = vmul.f32 %v7908, %v1425
        %v7939 = vmul.f32 %v7908, %v1429
        %v7940 = vmul.f32 %v7908, %v1433
        %v7941 = vmul.f32 %v7908, %v1437
        %7974 = vrot.lane.b32.xlu0 %v7910, 37
        %v7975 = vpop.permute.xlu0 %7974
        %7976 = vrot.lane.b32.xlu0 %v7911, 37
        %v7977 = vpop.permute.xlu0 %7976
        %7978 = vrot.lane.b32.xlu0 %v7912, 37
        %v7979 = vpop.permute.xlu0 %7978
        %7980 = vrot.lane.b32.xlu0 %v7913, 37
        %v7981 = vpop.permute.xlu0 %7980
        %7982 = vrot.lane.b32.xlu0 %v7914, 37
        %v7983 = vpop.permute.xlu0 %7982
        %7984 = vrot.lane.b32.xlu0 %v7915, 37
        %v7985 = vpop.permute.xlu0 %7984
        %7986 = vrot.lane.b32.xlu0 %v7916, 37
        %v7987 = vpop.permute.xlu0 %7986
        %7988 = vrot.lane.b32.xlu0 %v7917, 37
        %v7989 = vpop.permute.xlu0 %7988
        %7990 = vrot.lane.b32.xlu0 %v7918, 37
        %v7991 = vpop.permute.xlu0 %7990
        %7992 = vrot.lane.b32.xlu0 %v7919, 37
        %v7993 = vpop.permute.xlu0 %7992
        %7994 = vrot.lane.b32.xlu0 %v7920, 37
        %v7995 = vpop.permute.xlu0 %7994
        %7996 = vrot.lane.b32.xlu0 %v7921, 37
        %v7997 = vpop.permute.xlu0 %7996
        %7998 = vrot.lane.b32.xlu0 %v7922, 37
        %v7999 = vpop.permute.xlu0 %7998
        %8000 = vrot.lane.b32.xlu0 %v7923, 37
        %v8001 = vpop.permute.xlu0 %8000
        %8002 = vrot.lane.b32.xlu0 %v7924, 37
        %v8003 = vpop.permute.xlu0 %8002
        %8004 = vrot.lane.b32.xlu0 %v7925, 37
        %v8005 = vpop.permute.xlu0 %8004
        %8006 = vrot.lane.b32.xlu0 %v7926, 37
        %v8007 = vpop.permute.xlu0 %8006
        %8008 = vrot.lane.b32.xlu0 %v7927, 37
        %v8009 = vpop.permute.xlu0 %8008
        %8010 = vrot.lane.b32.xlu0 %v7928, 37
        %v8011 = vpop.permute.xlu0 %8010
        %8012 = vrot.lane.b32.xlu0 %v7929, 37
        %v8013 = vpop.permute.xlu0 %8012
        %8014 = vrot.lane.b32.xlu0 %v7930, 37
        %v8015 = vpop.permute.xlu0 %8014
        %8016 = vrot.lane.b32.xlu0 %v7931, 37
        %v8017 = vpop.permute.xlu0 %8016
        %8018 = vrot.lane.b32.xlu0 %v7932, 37
        %v8019 = vpop.permute.xlu0 %8018
        %8020 = vrot.lane.b32.xlu0 %v7933, 37
        %v8021 = vpop.permute.xlu0 %8020
        %8022 = vrot.lane.b32.xlu0 %v7934, 37
        %v8023 = vpop.permute.xlu0 %8022
        %8024 = vrot.lane.b32.xlu0 %v7935, 37
        %v8025 = vpop.permute.xlu0 %8024
        %8026 = vrot.lane.b32.xlu0 %v7936, 37
        %v8027 = vpop.permute.xlu0 %8026
        %8028 = vrot.lane.b32.xlu0 %v7937, 37
        %v8029 = vpop.permute.xlu0 %8028
        %8030 = vrot.lane.b32.xlu0 %v7938, 37
        %v8031 = vpop.permute.xlu0 %8030
        %8032 = vrot.lane.b32.xlu0 %v7939, 37
        %v8033 = vpop.permute.xlu0 %8032
        %8034 = vrot.lane.b32.xlu0 %v7940, 37
        %v8035 = vpop.permute.xlu0 %8034
        %8036 = vrot.lane.b32.xlu0 %v7941, 37
        %v8037 = vpop.permute.xlu0 %8036
        %vm8038 = vcmask 302080
        %v8039 = vsel %vm8038, %v7975, %v7977
        %v8040 = vsel %vm8038, %v7977, %v7979
        %v8041 = vsel %vm8038, %v7979, %v7981
        %v8042 = vsel %vm8038, %v7983, %v7985
        %v8043 = vsel %vm8038, %v7985, %v7987
        %v8044 = vsel %vm8038, %v7987, %v7989
        %v8045 = vsel %vm8038, %v7991, %v7993
        %v8046 = vsel %vm8038, %v7993, %v7995
        %v8047 = vsel %vm8038, %v7995, %v7997
        %v8048 = vsel %vm8038, %v7999, %v8001
        %v8049 = vsel %vm8038, %v8001, %v8003
        %v8050 = vsel %vm8038, %v8003, %v8005
        %v8051 = vsel %vm8038, %v8007, %v8009
        %v8052 = vsel %vm8038, %v8009, %v8011
        %v8053 = vsel %vm8038, %v8011, %v8013
        %v8054 = vsel %vm8038, %v8015, %v8017
        %v8055 = vsel %vm8038, %v8017, %v8019
        %v8056 = vsel %vm8038, %v8019, %v8021
        %v8057 = vsel %vm8038, %v8023, %v8025
        %v8058 = vsel %vm8038, %v8025, %v8027
        %v8059 = vsel %vm8038, %v8027, %v8029
        %v8060 = vsel %vm8038, %v8031, %v8033
        %v8061 = vsel %vm8038, %v8033, %v8035
        %v8062 = vsel %vm8038, %v8035, %v8037
        %v8087 = vadd.f32 %v7854, %v8039
        %v8088 = vadd.f32 %v7855, %v8040
        %v8089 = vadd.f32 %v7856, %v8041
        %v8090 = vadd.f32 %v7857, %v8042
        %v8091 = vadd.f32 %v7858, %v8043
        %v8092 = vadd.f32 %v7859, %v8044
        %v8093 = vadd.f32 %v7860, %v8045
        %v8094 = vadd.f32 %v7861, %v8046
        %v8095 = vadd.f32 %v7862, %v8047
        %v8096 = vadd.f32 %v7863, %v8048
        %v8097 = vadd.f32 %v7864, %v8049
        %v8098 = vadd.f32 %v7865, %v8050
        %v8099 = vadd.f32 %v7866, %v8051
        %v8100 = vadd.f32 %v7867, %v8052
        %v8101 = vadd.f32 %v7868, %v8053
        %v8102 = vadd.f32 %v7869, %v8054
        %v8103 = vadd.f32 %v7870, %v8055
        %v8104 = vadd.f32 %v7871, %v8056
        %v8105 = vadd.f32 %v7872, %v8057
        %v8106 = vadd.f32 %v7873, %v8058
        %v8107 = vadd.f32 %v7874, %v8059
        %v8108 = vadd.f32 %v7875, %v8060
        %v8109 = vadd.f32 %v7876, %v8061
        %v8110 = vadd.f32 %v7877, %v8062
        %8111 = vset.pattern.permute.xlu0 32
        %8112 = vperm.xlu0 %8111, %v1438
        %v8113 = vpop.permute.xlu0 %8112
        %8115 = vset.pattern.permute.xlu0 32
        %8116 = vperm.xlu0 %8115, %v1439
        %v8117 = vpop.permute.xlu0 %8116
        %8119 = vset.pattern.permute.xlu0 32
        %8120 = vperm.xlu0 %8119, %v1440
        %v8121 = vpop.permute.xlu0 %8120
        %8123 = vset.pattern.permute.xlu0 32
        %8124 = vperm.xlu0 %8123, %v1441
        %v8125 = vpop.permute.xlu0 %8124
        %8127 = vset.pattern.permute.xlu0 32
        %8128 = vperm.xlu0 %8127, %v1442
        %v8129 = vpop.permute.xlu0 %8128
        %8131 = vset.pattern.permute.xlu0 32
        %8132 = vperm.xlu0 %8131, %v1443
        %v8133 = vpop.permute.xlu0 %8132
        %8135 = vset.pattern.permute.xlu0 32
        %8136 = vperm.xlu0 %8135, %v1444
        %v8137 = vpop.permute.xlu0 %8136
        %8139 = vset.pattern.permute.xlu0 32
        %8140 = vperm.xlu0 %8139, %v1445
        %v8141 = vpop.permute.xlu0 %8140
        %v8143 = vmul.f32 %v8113, %v1153
        %v8144 = vmul.f32 %v8113, %v1155
        %v8145 = vmul.f32 %v8113, %v1242
        %v8146 = vmul.f32 %v8113, %v1244
        %v8147 = vmul.f32 %v8117, %v1159
        %v8148 = vmul.f32 %v8117, %v1161
        %v8149 = vmul.f32 %v8117, %v1248
        %v8150 = vmul.f32 %v8117, %v1250
        %v8151 = vmul.f32 %v8121, %v1165
        %v8152 = vmul.f32 %v8121, %v1167
        %v8153 = vmul.f32 %v8121, %v1254
        %v8154 = vmul.f32 %v8121, %v1256
        %v8155 = vmul.f32 %v8125, %v1171
        %v8156 = vmul.f32 %v8125, %v1173
        %v8157 = vmul.f32 %v8125, %v1260
        %v8158 = vmul.f32 %v8125, %v1262
        %v8159 = vmul.f32 %v8129, %v1409
        %v8160 = vmul.f32 %v8129, %v1413
        %v8161 = vmul.f32 %v8129, %v1417
        %v8162 = vmul.f32 %v8129, %v1421
        %v8163 = vmul.f32 %v8133, %v1409
        %v8164 = vmul.f32 %v8133, %v1413
        %v8165 = vmul.f32 %v8133, %v1417
        %v8166 = vmul.f32 %v8133, %v1421
        %v8167 = vmul.f32 %v8137, %v1425
        %v8168 = vmul.f32 %v8137, %v1429
        %v8169 = vmul.f32 %v8137, %v1433
        %v8170 = vmul.f32 %v8137, %v1437
        %v8171 = vmul.f32 %v8141, %v1425
        %v8172 = vmul.f32 %v8141, %v1429
        %v8173 = vmul.f32 %v8141, %v1433
        %v8174 = vmul.f32 %v8141, %v1437
        %8207 = vrot.lane.b32.xlu0 %v8143, 36
        %v8208 = vpop.permute.xlu0 %8207
        %8209 = vrot.lane.b32.xlu0 %v8144, 36
        %v8210 = vpop.permute.xlu0 %8209
        %8211 = vrot.lane.b32.xlu0 %v8145, 36
        %v8212 = vpop.permute.xlu0 %8211
        %8213 = vrot.lane.b32.xlu0 %v8146, 36
        %v8214 = vpop.permute.xlu0 %8213
        %8215 = vrot.lane.b32.xlu0 %v8147, 36
        %v8216 = vpop.permute.xlu0 %8215
        %8217 = vrot.lane.b32.xlu0 %v8148, 36
        %v8218 = vpop.permute.xlu0 %8217
        %8219 = vrot.lane.b32.xlu0 %v8149, 36
        %v8220 = vpop.permute.xlu0 %8219
        %8221 = vrot.lane.b32.xlu0 %v8150, 36
        %v8222 = vpop.permute.xlu0 %8221
        %8223 = vrot.lane.b32.xlu0 %v8151, 36
        %v8224 = vpop.permute.xlu0 %8223
        %8225 = vrot.lane.b32.xlu0 %v8152, 36
        %v8226 = vpop.permute.xlu0 %8225
        %8227 = vrot.lane.b32.xlu0 %v8153, 36
        %v8228 = vpop.permute.xlu0 %8227
        %8229 = vrot.lane.b32.xlu0 %v8154, 36
        %v8230 = vpop.permute.xlu0 %8229
        %8231 = vrot.lane.b32.xlu0 %v8155, 36
        %v8232 = vpop.permute.xlu0 %8231
        %8233 = vrot.lane.b32.xlu0 %v8156, 36
        %v8234 = vpop.permute.xlu0 %8233
        %8235 = vrot.lane.b32.xlu0 %v8157, 36
        %v8236 = vpop.permute.xlu0 %8235
        %8237 = vrot.lane.b32.xlu0 %v8158, 36
        %v8238 = vpop.permute.xlu0 %8237
        %8239 = vrot.lane.b32.xlu0 %v8159, 36
        %v8240 = vpop.permute.xlu0 %8239
        %8241 = vrot.lane.b32.xlu0 %v8160, 36
        %v8242 = vpop.permute.xlu0 %8241
        %8243 = vrot.lane.b32.xlu0 %v8161, 36
        %v8244 = vpop.permute.xlu0 %8243
        %8245 = vrot.lane.b32.xlu0 %v8162, 36
        %v8246 = vpop.permute.xlu0 %8245
        %8247 = vrot.lane.b32.xlu0 %v8163, 36
        %v8248 = vpop.permute.xlu0 %8247
        %8249 = vrot.lane.b32.xlu0 %v8164, 36
        %v8250 = vpop.permute.xlu0 %8249
        %8251 = vrot.lane.b32.xlu0 %v8165, 36
        %v8252 = vpop.permute.xlu0 %8251
        %8253 = vrot.lane.b32.xlu0 %v8166, 36
        %v8254 = vpop.permute.xlu0 %8253
        %8255 = vrot.lane.b32.xlu0 %v8167, 36
        %v8256 = vpop.permute.xlu0 %8255
        %8257 = vrot.lane.b32.xlu0 %v8168, 36
        %v8258 = vpop.permute.xlu0 %8257
        %8259 = vrot.lane.b32.xlu0 %v8169, 36
        %v8260 = vpop.permute.xlu0 %8259
        %8261 = vrot.lane.b32.xlu0 %v8170, 36
        %v8262 = vpop.permute.xlu0 %8261
        %8263 = vrot.lane.b32.xlu0 %v8171, 36
        %v8264 = vpop.permute.xlu0 %8263
        %8265 = vrot.lane.b32.xlu0 %v8172, 36
        %v8266 = vpop.permute.xlu0 %8265
        %8267 = vrot.lane.b32.xlu0 %v8173, 36
        %v8268 = vpop.permute.xlu0 %8267
        %8269 = vrot.lane.b32.xlu0 %v8174, 36
        %v8270 = vpop.permute.xlu0 %8269
        %vm8271 = vcmask 293888
        %v8272 = vsel %vm8271, %v8208, %v8210
        %v8273 = vsel %vm8271, %v8210, %v8212
        %v8274 = vsel %vm8271, %v8212, %v8214
        %v8275 = vsel %vm8271, %v8216, %v8218
        %v8276 = vsel %vm8271, %v8218, %v8220
        %v8277 = vsel %vm8271, %v8220, %v8222
        %v8278 = vsel %vm8271, %v8224, %v8226
        %v8279 = vsel %vm8271, %v8226, %v8228
        %v8280 = vsel %vm8271, %v8228, %v8230
        %v8281 = vsel %vm8271, %v8232, %v8234
        %v8282 = vsel %vm8271, %v8234, %v8236
        %v8283 = vsel %vm8271, %v8236, %v8238
        %v8284 = vsel %vm8271, %v8240, %v8242
        %v8285 = vsel %vm8271, %v8242, %v8244
        %v8286 = vsel %vm8271, %v8244, %v8246
        %v8287 = vsel %vm8271, %v8248, %v8250
        %v8288 = vsel %vm8271, %v8250, %v8252
        %v8289 = vsel %vm8271, %v8252, %v8254
        %v8290 = vsel %vm8271, %v8256, %v8258
        %v8291 = vsel %vm8271, %v8258, %v8260
        %v8292 = vsel %vm8271, %v8260, %v8262
        %v8293 = vsel %vm8271, %v8264, %v8266
        %v8294 = vsel %vm8271, %v8266, %v8268
        %v8295 = vsel %vm8271, %v8268, %v8270
        %v8320 = vadd.f32 %v8087, %v8272
        %v8321 = vadd.f32 %v8088, %v8273
        %v8322 = vadd.f32 %v8089, %v8274
        %v8323 = vadd.f32 %v8090, %v8275
        %v8324 = vadd.f32 %v8091, %v8276
        %v8325 = vadd.f32 %v8092, %v8277
        %v8326 = vadd.f32 %v8093, %v8278
        %v8327 = vadd.f32 %v8094, %v8279
        %v8328 = vadd.f32 %v8095, %v8280
        %v8329 = vadd.f32 %v8096, %v8281
        %v8330 = vadd.f32 %v8097, %v8282
        %v8331 = vadd.f32 %v8098, %v8283
        %v8332 = vadd.f32 %v8099, %v8284
        %v8333 = vadd.f32 %v8100, %v8285
        %v8334 = vadd.f32 %v8101, %v8286
        %v8335 = vadd.f32 %v8102, %v8287
        %v8336 = vadd.f32 %v8103, %v8288
        %v8337 = vadd.f32 %v8104, %v8289
        %v8338 = vadd.f32 %v8105, %v8290
        %v8339 = vadd.f32 %v8106, %v8291
        %v8340 = vadd.f32 %v8107, %v8292
        %v8341 = vadd.f32 %v8108, %v8293
        %v8342 = vadd.f32 %v8109, %v8294
        %v8343 = vadd.f32 %v8110, %v8295
        %8344 = vset.pattern.permute.xlu0 33
        %8345 = vperm.xlu0 %8344, %v1438
        %v8346 = vpop.permute.xlu0 %8345
        %8348 = vset.pattern.permute.xlu0 33
        %8349 = vperm.xlu0 %8348, %v1439
        %v8350 = vpop.permute.xlu0 %8349
        %8352 = vset.pattern.permute.xlu0 33
        %8353 = vperm.xlu0 %8352, %v1440
        %v8354 = vpop.permute.xlu0 %8353
        %8356 = vset.pattern.permute.xlu0 33
        %8357 = vperm.xlu0 %8356, %v1441
        %v8358 = vpop.permute.xlu0 %8357
        %8360 = vset.pattern.permute.xlu0 33
        %8361 = vperm.xlu0 %8360, %v1442
        %v8362 = vpop.permute.xlu0 %8361
        %8364 = vset.pattern.permute.xlu0 33
        %8365 = vperm.xlu0 %8364, %v1443
        %v8366 = vpop.permute.xlu0 %8365
        %8368 = vset.pattern.permute.xlu0 33
        %8369 = vperm.xlu0 %8368, %v1444
        %v8370 = vpop.permute.xlu0 %8369
        %8372 = vset.pattern.permute.xlu0 33
        %8373 = vperm.xlu0 %8372, %v1445
        %v8374 = vpop.permute.xlu0 %8373
        %v8376 = vmul.f32 %v8346, %v1153
        %v8377 = vmul.f32 %v8346, %v1155
        %v8378 = vmul.f32 %v8346, %v1242
        %v8379 = vmul.f32 %v8346, %v1244
        %v8380 = vmul.f32 %v8350, %v1159
        %v8381 = vmul.f32 %v8350, %v1161
        %v8382 = vmul.f32 %v8350, %v1248
        %v8383 = vmul.f32 %v8350, %v1250
        %v8384 = vmul.f32 %v8354, %v1165
        %v8385 = vmul.f32 %v8354, %v1167
        %v8386 = vmul.f32 %v8354, %v1254
        %v8387 = vmul.f32 %v8354, %v1256
        %v8388 = vmul.f32 %v8358, %v1171
        %v8389 = vmul.f32 %v8358, %v1173
        %v8390 = vmul.f32 %v8358, %v1260
        %v8391 = vmul.f32 %v8358, %v1262
        %v8392 = vmul.f32 %v8362, %v1409
        %v8393 = vmul.f32 %v8362, %v1413
        %v8394 = vmul.f32 %v8362, %v1417
        %v8395 = vmul.f32 %v8362, %v1421
        %v8396 = vmul.f32 %v8366, %v1409
        %v8397 = vmul.f32 %v8366, %v1413
        %v8398 = vmul.f32 %v8366, %v1417
        %v8399 = vmul.f32 %v8366, %v1421
        %v8400 = vmul.f32 %v8370, %v1425
        %v8401 = vmul.f32 %v8370, %v1429
        %v8402 = vmul.f32 %v8370, %v1433
        %v8403 = vmul.f32 %v8370, %v1437
        %v8404 = vmul.f32 %v8374, %v1425
        %v8405 = vmul.f32 %v8374, %v1429
        %v8406 = vmul.f32 %v8374, %v1433
        %v8407 = vmul.f32 %v8374, %v1437
        %8440 = vrot.lane.b32.xlu0 %v8376, 35
        %v8441 = vpop.permute.xlu0 %8440
        %8442 = vrot.lane.b32.xlu0 %v8377, 35
        %v8443 = vpop.permute.xlu0 %8442
        %8444 = vrot.lane.b32.xlu0 %v8378, 35
        %v8445 = vpop.permute.xlu0 %8444
        %8446 = vrot.lane.b32.xlu0 %v8379, 35
        %v8447 = vpop.permute.xlu0 %8446
        %8448 = vrot.lane.b32.xlu0 %v8380, 35
        %v8449 = vpop.permute.xlu0 %8448
        %8450 = vrot.lane.b32.xlu0 %v8381, 35
        %v8451 = vpop.permute.xlu0 %8450
        %8452 = vrot.lane.b32.xlu0 %v8382, 35
        %v8453 = vpop.permute.xlu0 %8452
        %8454 = vrot.lane.b32.xlu0 %v8383, 35
        %v8455 = vpop.permute.xlu0 %8454
        %8456 = vrot.lane.b32.xlu0 %v8384, 35
        %v8457 = vpop.permute.xlu0 %8456
        %8458 = vrot.lane.b32.xlu0 %v8385, 35
        %v8459 = vpop.permute.xlu0 %8458
        %8460 = vrot.lane.b32.xlu0 %v8386, 35
        %v8461 = vpop.permute.xlu0 %8460
        %8462 = vrot.lane.b32.xlu0 %v8387, 35
        %v8463 = vpop.permute.xlu0 %8462
        %8464 = vrot.lane.b32.xlu0 %v8388, 35
        %v8465 = vpop.permute.xlu0 %8464
        %8466 = vrot.lane.b32.xlu0 %v8389, 35
        %v8467 = vpop.permute.xlu0 %8466
        %8468 = vrot.lane.b32.xlu0 %v8390, 35
        %v8469 = vpop.permute.xlu0 %8468
        %8470 = vrot.lane.b32.xlu0 %v8391, 35
        %v8471 = vpop.permute.xlu0 %8470
        %8472 = vrot.lane.b32.xlu0 %v8392, 35
        %v8473 = vpop.permute.xlu0 %8472
        %8474 = vrot.lane.b32.xlu0 %v8393, 35
        %v8475 = vpop.permute.xlu0 %8474
        %8476 = vrot.lane.b32.xlu0 %v8394, 35
        %v8477 = vpop.permute.xlu0 %8476
        %8478 = vrot.lane.b32.xlu0 %v8395, 35
        %v8479 = vpop.permute.xlu0 %8478
        %8480 = vrot.lane.b32.xlu0 %v8396, 35
        %v8481 = vpop.permute.xlu0 %8480
        %8482 = vrot.lane.b32.xlu0 %v8397, 35
        %v8483 = vpop.permute.xlu0 %8482
        %8484 = vrot.lane.b32.xlu0 %v8398, 35
        %v8485 = vpop.permute.xlu0 %8484
        %8486 = vrot.lane.b32.xlu0 %v8399, 35
        %v8487 = vpop.permute.xlu0 %8486
        %8488 = vrot.lane.b32.xlu0 %v8400, 35
        %v8489 = vpop.permute.xlu0 %8488
        %8490 = vrot.lane.b32.xlu0 %v8401, 35
        %v8491 = vpop.permute.xlu0 %8490
        %8492 = vrot.lane.b32.xlu0 %v8402, 35
        %v8493 = vpop.permute.xlu0 %8492
        %8494 = vrot.lane.b32.xlu0 %v8403, 35
        %v8495 = vpop.permute.xlu0 %8494
        %8496 = vrot.lane.b32.xlu0 %v8404, 35
        %v8497 = vpop.permute.xlu0 %8496
        %8498 = vrot.lane.b32.xlu0 %v8405, 35
        %v8499 = vpop.permute.xlu0 %8498
        %8500 = vrot.lane.b32.xlu0 %v8406, 35
        %v8501 = vpop.permute.xlu0 %8500
        %8502 = vrot.lane.b32.xlu0 %v8407, 35
        %v8503 = vpop.permute.xlu0 %8502
        %vm8504 = vcmask 285696
        %v8505 = vsel %vm8504, %v8441, %v8443
        %v8506 = vsel %vm8504, %v8443, %v8445
        %v8507 = vsel %vm8504, %v8445, %v8447
        %v8508 = vsel %vm8504, %v8449, %v8451
        %v8509 = vsel %vm8504, %v8451, %v8453
        %v8510 = vsel %vm8504, %v8453, %v8455
        %v8511 = vsel %vm8504, %v8457, %v8459
        %v8512 = vsel %vm8504, %v8459, %v8461
        %v8513 = vsel %vm8504, %v8461, %v8463
        %v8514 = vsel %vm8504, %v8465, %v8467
        %v8515 = vsel %vm8504, %v8467, %v8469
        %v8516 = vsel %vm8504, %v8469, %v8471
        %v8517 = vsel %vm8504, %v8473, %v8475
        %v8518 = vsel %vm8504, %v8475, %v8477
        %v8519 = vsel %vm8504, %v8477, %v8479
        %v8520 = vsel %vm8504, %v8481, %v8483
        %v8521 = vsel %vm8504, %v8483, %v8485
        %v8522 = vsel %vm8504, %v8485, %v8487
        %v8523 = vsel %vm8504, %v8489, %v8491
        %v8524 = vsel %vm8504, %v8491, %v8493
        %v8525 = vsel %vm8504, %v8493, %v8495
        %v8526 = vsel %vm8504, %v8497, %v8499
        %v8527 = vsel %vm8504, %v8499, %v8501
        %v8528 = vsel %vm8504, %v8501, %v8503
        %v8553 = vadd.f32 %v8320, %v8505
        %v8554 = vadd.f32 %v8321, %v8506
        %v8555 = vadd.f32 %v8322, %v8507
        %v8556 = vadd.f32 %v8323, %v8508
        %v8557 = vadd.f32 %v8324, %v8509
        %v8558 = vadd.f32 %v8325, %v8510
        %v8559 = vadd.f32 %v8326, %v8511
        %v8560 = vadd.f32 %v8327, %v8512
        %v8561 = vadd.f32 %v8328, %v8513
        %v8562 = vadd.f32 %v8329, %v8514
        %v8563 = vadd.f32 %v8330, %v8515
        %v8564 = vadd.f32 %v8331, %v8516
        %v8565 = vadd.f32 %v8332, %v8517
        %v8566 = vadd.f32 %v8333, %v8518
        %v8567 = vadd.f32 %v8334, %v8519
        %v8568 = vadd.f32 %v8335, %v8520
        %v8569 = vadd.f32 %v8336, %v8521
        %v8570 = vadd.f32 %v8337, %v8522
        %v8571 = vadd.f32 %v8338, %v8523
        %v8572 = vadd.f32 %v8339, %v8524
        %v8573 = vadd.f32 %v8340, %v8525
        %v8574 = vadd.f32 %v8341, %v8526
        %v8575 = vadd.f32 %v8342, %v8527
        %v8576 = vadd.f32 %v8343, %v8528
        %8577 = vset.pattern.permute.xlu0 34
        %8578 = vperm.xlu0 %8577, %v1438
        %v8579 = vpop.permute.xlu0 %8578
        %8581 = vset.pattern.permute.xlu0 34
        %8582 = vperm.xlu0 %8581, %v1439
        %v8583 = vpop.permute.xlu0 %8582
        %8585 = vset.pattern.permute.xlu0 34
        %8586 = vperm.xlu0 %8585, %v1440
        %v8587 = vpop.permute.xlu0 %8586
        %8589 = vset.pattern.permute.xlu0 34
        %8590 = vperm.xlu0 %8589, %v1441
        %v8591 = vpop.permute.xlu0 %8590
        %8593 = vset.pattern.permute.xlu0 34
        %8594 = vperm.xlu0 %8593, %v1442
        %v8595 = vpop.permute.xlu0 %8594
        %8597 = vset.pattern.permute.xlu0 34
        %8598 = vperm.xlu0 %8597, %v1443
        %v8599 = vpop.permute.xlu0 %8598
        %8601 = vset.pattern.permute.xlu0 34
        %8602 = vperm.xlu0 %8601, %v1444
        %v8603 = vpop.permute.xlu0 %8602
        %8605 = vset.pattern.permute.xlu0 34
        %8606 = vperm.xlu0 %8605, %v1445
        %v8607 = vpop.permute.xlu0 %8606
        %v8609 = vmul.f32 %v8579, %v1153
        %v8610 = vmul.f32 %v8579, %v1155
        %v8611 = vmul.f32 %v8579, %v1242
        %v8612 = vmul.f32 %v8579, %v1244
        %v8613 = vmul.f32 %v8583, %v1159
        %v8614 = vmul.f32 %v8583, %v1161
        %v8615 = vmul.f32 %v8583, %v1248
        %v8616 = vmul.f32 %v8583, %v1250
        %v8617 = vmul.f32 %v8587, %v1165
        %v8618 = vmul.f32 %v8587, %v1167
        %v8619 = vmul.f32 %v8587, %v1254
        %v8620 = vmul.f32 %v8587, %v1256
        %v8621 = vmul.f32 %v8591, %v1171
        %v8622 = vmul.f32 %v8591, %v1173
        %v8623 = vmul.f32 %v8591, %v1260
        %v8624 = vmul.f32 %v8591, %v1262
        %v8625 = vmul.f32 %v8595, %v1409
        %v8626 = vmul.f32 %v8595, %v1413
        %v8627 = vmul.f32 %v8595, %v1417
        %v8628 = vmul.f32 %v8595, %v1421
        %v8629 = vmul.f32 %v8599, %v1409
        %v8630 = vmul.f32 %v8599, %v1413
        %v8631 = vmul.f32 %v8599, %v1417
        %v8632 = vmul.f32 %v8599, %v1421
        %v8633 = vmul.f32 %v8603, %v1425
        %v8634 = vmul.f32 %v8603, %v1429
        %v8635 = vmul.f32 %v8603, %v1433
        %v8636 = vmul.f32 %v8603, %v1437
        %v8637 = vmul.f32 %v8607, %v1425
        %v8638 = vmul.f32 %v8607, %v1429
        %v8639 = vmul.f32 %v8607, %v1433
        %v8640 = vmul.f32 %v8607, %v1437
        %8673 = vrot.lane.b32.xlu0 %v8609, 34
        %v8674 = vpop.permute.xlu0 %8673
        %8675 = vrot.lane.b32.xlu0 %v8610, 34
        %v8676 = vpop.permute.xlu0 %8675
        %8677 = vrot.lane.b32.xlu0 %v8611, 34
        %v8678 = vpop.permute.xlu0 %8677
        %8679 = vrot.lane.b32.xlu0 %v8612, 34
        %v8680 = vpop.permute.xlu0 %8679
        %8681 = vrot.lane.b32.xlu0 %v8613, 34
        %v8682 = vpop.permute.xlu0 %8681
        %8683 = vrot.lane.b32.xlu0 %v8614, 34
        %v8684 = vpop.permute.xlu0 %8683
        %8685 = vrot.lane.b32.xlu0 %v8615, 34
        %v8686 = vpop.permute.xlu0 %8685
        %8687 = vrot.lane.b32.xlu0 %v8616, 34
        %v8688 = vpop.permute.xlu0 %8687
        %8689 = vrot.lane.b32.xlu0 %v8617, 34
        %v8690 = vpop.permute.xlu0 %8689
        %8691 = vrot.lane.b32.xlu0 %v8618, 34
        %v8692 = vpop.permute.xlu0 %8691
        %8693 = vrot.lane.b32.xlu0 %v8619, 34
        %v8694 = vpop.permute.xlu0 %8693
        %8695 = vrot.lane.b32.xlu0 %v8620, 34
        %v8696 = vpop.permute.xlu0 %8695
        %8697 = vrot.lane.b32.xlu0 %v8621, 34
        %v8698 = vpop.permute.xlu0 %8697
        %8699 = vrot.lane.b32.xlu0 %v8622, 34
        %v8700 = vpop.permute.xlu0 %8699
        %8701 = vrot.lane.b32.xlu0 %v8623, 34
        %v8702 = vpop.permute.xlu0 %8701
        %8703 = vrot.lane.b32.xlu0 %v8624, 34
        %v8704 = vpop.permute.xlu0 %8703
        %8705 = vrot.lane.b32.xlu0 %v8625, 34
        %v8706 = vpop.permute.xlu0 %8705
        %8707 = vrot.lane.b32.xlu0 %v8626, 34
        %v8708 = vpop.permute.xlu0 %8707
        %8709 = vrot.lane.b32.xlu0 %v8627, 34
        %v8710 = vpop.permute.xlu0 %8709
        %8711 = vrot.lane.b32.xlu0 %v8628, 34
        %v8712 = vpop.permute.xlu0 %8711
        %8713 = vrot.lane.b32.xlu0 %v8629, 34
        %v8714 = vpop.permute.xlu0 %8713
        %8715 = vrot.lane.b32.xlu0 %v8630, 34
        %v8716 = vpop.permute.xlu0 %8715
        %8717 = vrot.lane.b32.xlu0 %v8631, 34
        %v8718 = vpop.permute.xlu0 %8717
        %8719 = vrot.lane.b32.xlu0 %v8632, 34
        %v8720 = vpop.permute.xlu0 %8719
        %8721 = vrot.lane.b32.xlu0 %v8633, 34
        %v8722 = vpop.permute.xlu0 %8721
        %8723 = vrot.lane.b32.xlu0 %v8634, 34
        %v8724 = vpop.permute.xlu0 %8723
        %8725 = vrot.lane.b32.xlu0 %v8635, 34
        %v8726 = vpop.permute.xlu0 %8725
        %8727 = vrot.lane.b32.xlu0 %v8636, 34
        %v8728 = vpop.permute.xlu0 %8727
        %8729 = vrot.lane.b32.xlu0 %v8637, 34
        %v8730 = vpop.permute.xlu0 %8729
        %8731 = vrot.lane.b32.xlu0 %v8638, 34
        %v8732 = vpop.permute.xlu0 %8731
        %8733 = vrot.lane.b32.xlu0 %v8639, 34
        %v8734 = vpop.permute.xlu0 %8733
        %8735 = vrot.lane.b32.xlu0 %v8640, 34
        %v8736 = vpop.permute.xlu0 %8735
        %vm8737 = vcmask 277504
        %v8738 = vsel %vm8737, %v8674, %v8676
        %v8739 = vsel %vm8737, %v8676, %v8678
        %v8740 = vsel %vm8737, %v8678, %v8680
        %v8741 = vsel %vm8737, %v8682, %v8684
        %v8742 = vsel %vm8737, %v8684, %v8686
        %v8743 = vsel %vm8737, %v8686, %v8688
        %v8744 = vsel %vm8737, %v8690, %v8692
        %v8745 = vsel %vm8737, %v8692, %v8694
        %v8746 = vsel %vm8737, %v8694, %v8696
        %v8747 = vsel %vm8737, %v8698, %v8700
        %v8748 = vsel %vm8737, %v8700, %v8702
        %v8749 = vsel %vm8737, %v8702, %v8704
        %v8750 = vsel %vm8737, %v8706, %v8708
        %v8751 = vsel %vm8737, %v8708, %v8710
        %v8752 = vsel %vm8737, %v8710, %v8712
        %v8753 = vsel %vm8737, %v8714, %v8716
        %v8754 = vsel %vm8737, %v8716, %v8718
        %v8755 = vsel %vm8737, %v8718, %v8720
        %v8756 = vsel %vm8737, %v8722, %v8724
        %v8757 = vsel %vm8737, %v8724, %v8726
        %v8758 = vsel %vm8737, %v8726, %v8728
        %v8759 = vsel %vm8737, %v8730, %v8732
        %v8760 = vsel %vm8737, %v8732, %v8734
        %v8761 = vsel %vm8737, %v8734, %v8736
        %v8786 = vadd.f32 %v8553, %v8738
        %v8787 = vadd.f32 %v8554, %v8739
        %v8788 = vadd.f32 %v8555, %v8740
        %v8789 = vadd.f32 %v8556, %v8741
        %v8790 = vadd.f32 %v8557, %v8742
        %v8791 = vadd.f32 %v8558, %v8743
        %v8792 = vadd.f32 %v8559, %v8744
        %v8793 = vadd.f32 %v8560, %v8745
        %v8794 = vadd.f32 %v8561, %v8746
        %v8795 = vadd.f32 %v8562, %v8747
        %v8796 = vadd.f32 %v8563, %v8748
        %v8797 = vadd.f32 %v8564, %v8749
        %v8798 = vadd.f32 %v8565, %v8750
        %v8799 = vadd.f32 %v8566, %v8751
        %v8800 = vadd.f32 %v8567, %v8752
        %v8801 = vadd.f32 %v8568, %v8753
        %v8802 = vadd.f32 %v8569, %v8754
        %v8803 = vadd.f32 %v8570, %v8755
        %v8804 = vadd.f32 %v8571, %v8756
        %v8805 = vadd.f32 %v8572, %v8757
        %v8806 = vadd.f32 %v8573, %v8758
        %v8807 = vadd.f32 %v8574, %v8759
        %v8808 = vadd.f32 %v8575, %v8760
        %v8809 = vadd.f32 %v8576, %v8761
        %8810 = vset.pattern.permute.xlu0 35
        %8811 = vperm.xlu0 %8810, %v1438
        %v8812 = vpop.permute.xlu0 %8811
        %8814 = vset.pattern.permute.xlu0 35
        %8815 = vperm.xlu0 %8814, %v1439
        %v8816 = vpop.permute.xlu0 %8815
        %8818 = vset.pattern.permute.xlu0 35
        %8819 = vperm.xlu0 %8818, %v1440
        %v8820 = vpop.permute.xlu0 %8819
        %8822 = vset.pattern.permute.xlu0 35
        %8823 = vperm.xlu0 %8822, %v1441
        %v8824 = vpop.permute.xlu0 %8823
        %8826 = vset.pattern.permute.xlu0 35
        %8827 = vperm.xlu0 %8826, %v1442
        %v8828 = vpop.permute.xlu0 %8827
        %8830 = vset.pattern.permute.xlu0 35
        %8831 = vperm.xlu0 %8830, %v1443
        %v8832 = vpop.permute.xlu0 %8831
        %8834 = vset.pattern.permute.xlu0 35
        %8835 = vperm.xlu0 %8834, %v1444
        %v8836 = vpop.permute.xlu0 %8835
        %8838 = vset.pattern.permute.xlu0 35
        %8839 = vperm.xlu0 %8838, %v1445
        %v8840 = vpop.permute.xlu0 %8839
        %v8842 = vmul.f32 %v8812, %v1153
        %v8843 = vmul.f32 %v8812, %v1155
        %v8844 = vmul.f32 %v8812, %v1242
        %v8845 = vmul.f32 %v8812, %v1244
        %v8846 = vmul.f32 %v8816, %v1159
        %v8847 = vmul.f32 %v8816, %v1161
        %v8848 = vmul.f32 %v8816, %v1248
        %v8849 = vmul.f32 %v8816, %v1250
        %v8850 = vmul.f32 %v8820, %v1165
        %v8851 = vmul.f32 %v8820, %v1167
        %v8852 = vmul.f32 %v8820, %v1254
        %v8853 = vmul.f32 %v8820, %v1256
        %v8854 = vmul.f32 %v8824, %v1171
        %v8855 = vmul.f32 %v8824, %v1173
        %v8856 = vmul.f32 %v8824, %v1260
        %v8857 = vmul.f32 %v8824, %v1262
        %v8858 = vmul.f32 %v8828, %v1409
        %v8859 = vmul.f32 %v8828, %v1413
        %v8860 = vmul.f32 %v8828, %v1417
        %v8861 = vmul.f32 %v8828, %v1421
        %v8862 = vmul.f32 %v8832, %v1409
        %v8863 = vmul.f32 %v8832, %v1413
        %v8864 = vmul.f32 %v8832, %v1417
        %v8865 = vmul.f32 %v8832, %v1421
        %v8866 = vmul.f32 %v8836, %v1425
        %v8867 = vmul.f32 %v8836, %v1429
        %v8868 = vmul.f32 %v8836, %v1433
        %v8869 = vmul.f32 %v8836, %v1437
        %v8870 = vmul.f32 %v8840, %v1425
        %v8871 = vmul.f32 %v8840, %v1429
        %v8872 = vmul.f32 %v8840, %v1433
        %v8873 = vmul.f32 %v8840, %v1437
        %8906 = vrot.lane.b32.xlu0 %v8842, 40
        %v8907 = vpop.permute.xlu0 %8906
        %8908 = vrot.lane.b32.xlu0 %v8843, 40
        %v8909 = vpop.permute.xlu0 %8908
        %8910 = vrot.lane.b32.xlu0 %v8844, 40
        %v8911 = vpop.permute.xlu0 %8910
        %8912 = vrot.lane.b32.xlu0 %v8845, 40
        %v8913 = vpop.permute.xlu0 %8912
        %8914 = vrot.lane.b32.xlu0 %v8846, 40
        %v8915 = vpop.permute.xlu0 %8914
        %8916 = vrot.lane.b32.xlu0 %v8847, 40
        %v8917 = vpop.permute.xlu0 %8916
        %8918 = vrot.lane.b32.xlu0 %v8848, 40
        %v8919 = vpop.permute.xlu0 %8918
        %8920 = vrot.lane.b32.xlu0 %v8849, 40
        %v8921 = vpop.permute.xlu0 %8920
        %8922 = vrot.lane.b32.xlu0 %v8850, 40
        %v8923 = vpop.permute.xlu0 %8922
        %8924 = vrot.lane.b32.xlu0 %v8851, 40
        %v8925 = vpop.permute.xlu0 %8924
        %8926 = vrot.lane.b32.xlu0 %v8852, 40
        %v8927 = vpop.permute.xlu0 %8926
        %8928 = vrot.lane.b32.xlu0 %v8853, 40
        %v8929 = vpop.permute.xlu0 %8928
        %8930 = vrot.lane.b32.xlu0 %v8854, 40
        %v8931 = vpop.permute.xlu0 %8930
        %8932 = vrot.lane.b32.xlu0 %v8855, 40
        %v8933 = vpop.permute.xlu0 %8932
        %8934 = vrot.lane.b32.xlu0 %v8856, 40
        %v8935 = vpop.permute.xlu0 %8934
        %8936 = vrot.lane.b32.xlu0 %v8857, 40
        %v8937 = vpop.permute.xlu0 %8936
        %8938 = vrot.lane.b32.xlu0 %v8858, 40
        %v8939 = vpop.permute.xlu0 %8938
        %8940 = vrot.lane.b32.xlu0 %v8859, 40
        %v8941 = vpop.permute.xlu0 %8940
        %8942 = vrot.lane.b32.xlu0 %v8860, 40
        %v8943 = vpop.permute.xlu0 %8942
        %8944 = vrot.lane.b32.xlu0 %v8861, 40
        %v8945 = vpop.permute.xlu0 %8944
        %8946 = vrot.lane.b32.xlu0 %v8862, 40
        %v8947 = vpop.permute.xlu0 %8946
        %8948 = vrot.lane.b32.xlu0 %v8863, 40
        %v8949 = vpop.permute.xlu0 %8948
        %8950 = vrot.lane.b32.xlu0 %v8864, 40
        %v8951 = vpop.permute.xlu0 %8950
        %8952 = vrot.lane.b32.xlu0 %v8865, 40
        %v8953 = vpop.permute.xlu0 %8952
        %8954 = vrot.lane.b32.xlu0 %v8866, 40
        %v8955 = vpop.permute.xlu0 %8954
        %8956 = vrot.lane.b32.xlu0 %v8867, 40
        %v8957 = vpop.permute.xlu0 %8956
        %8958 = vrot.lane.b32.xlu0 %v8868, 40
        %v8959 = vpop.permute.xlu0 %8958
        %8960 = vrot.lane.b32.xlu0 %v8869, 40
        %v8961 = vpop.permute.xlu0 %8960
        %8962 = vrot.lane.b32.xlu0 %v8870, 40
        %v8963 = vpop.permute.xlu0 %8962
        %8964 = vrot.lane.b32.xlu0 %v8871, 40
        %v8965 = vpop.permute.xlu0 %8964
        %8966 = vrot.lane.b32.xlu0 %v8872, 40
        %v8967 = vpop.permute.xlu0 %8966
        %8968 = vrot.lane.b32.xlu0 %v8873, 40
        %v8969 = vpop.permute.xlu0 %8968
        %v8970 = vsel %vm7339, %v8907, %v8909
        %v8971 = vsel %vm7339, %v8909, %v8911
        %v8972 = vsel %vm7339, %v8911, %v8913
        %v8973 = vsel %vm7339, %v8915, %v8917
        %v8974 = vsel %vm7339, %v8917, %v8919
        %v8975 = vsel %vm7339, %v8919, %v8921
        %v8976 = vsel %vm7339, %v8923, %v8925
        %v8977 = vsel %vm7339, %v8925, %v8927
        %v8978 = vsel %vm7339, %v8927, %v8929
        %v8979 = vsel %vm7339, %v8931, %v8933
        %v8980 = vsel %vm7339, %v8933, %v8935
        %v8981 = vsel %vm7339, %v8935, %v8937
        %v8982 = vsel %vm7339, %v8939, %v8941
        %v8983 = vsel %vm7339, %v8941, %v8943
        %v8984 = vsel %vm7339, %v8943, %v8945
        %v8985 = vsel %vm7339, %v8947, %v8949
        %v8986 = vsel %vm7339, %v8949, %v8951
        %v8987 = vsel %vm7339, %v8951, %v8953
        %v8988 = vsel %vm7339, %v8955, %v8957
        %v8989 = vsel %vm7339, %v8957, %v8959
        %v8990 = vsel %vm7339, %v8959, %v8961
        %v8991 = vsel %vm7339, %v8963, %v8965
        %v8992 = vsel %vm7339, %v8965, %v8967
        %v8993 = vsel %vm7339, %v8967, %v8969
        %v9018 = vadd.f32 %v7155, %v8970
        %v9019 = vadd.f32 %v7156, %v8971
        %v9020 = vadd.f32 %v7157, %v8972
        %v9021 = vadd.f32 %v7158, %v8973
        %v9022 = vadd.f32 %v7159, %v8974
        %v9023 = vadd.f32 %v7160, %v8975
        %v9024 = vadd.f32 %v7161, %v8976
        %v9025 = vadd.f32 %v7162, %v8977
        %v9026 = vadd.f32 %v7163, %v8978
        %v9027 = vadd.f32 %v7164, %v8979
        %v9028 = vadd.f32 %v7165, %v8980
        %v9029 = vadd.f32 %v7166, %v8981
        %v9030 = vadd.f32 %v7167, %v8982
        %v9031 = vadd.f32 %v7168, %v8983
        %v9032 = vadd.f32 %v7169, %v8984
        %v9033 = vadd.f32 %v7170, %v8985
        %v9034 = vadd.f32 %v7171, %v8986
        %v9035 = vadd.f32 %v7172, %v8987
        %v9036 = vadd.f32 %v7173, %v8988
        %v9037 = vadd.f32 %v7174, %v8989
        %v9038 = vadd.f32 %v7175, %v8990
        %v9039 = vadd.f32 %v7176, %v8991
        %v9040 = vadd.f32 %v7177, %v8992
        %v9041 = vadd.f32 %v7178, %v8993
        %9042 = vset.pattern.permute.xlu0 36
        %9043 = vperm.xlu0 %9042, %v1438
        %v9044 = vpop.permute.xlu0 %9043
        %9046 = vset.pattern.permute.xlu0 36
        %9047 = vperm.xlu0 %9046, %v1439
        %v9048 = vpop.permute.xlu0 %9047
        %9050 = vset.pattern.permute.xlu0 36
        %9051 = vperm.xlu0 %9050, %v1440
        %v9052 = vpop.permute.xlu0 %9051
        %9054 = vset.pattern.permute.xlu0 36
        %9055 = vperm.xlu0 %9054, %v1441
        %v9056 = vpop.permute.xlu0 %9055
        %9058 = vset.pattern.permute.xlu0 36
        %9059 = vperm.xlu0 %9058, %v1442
        %v9060 = vpop.permute.xlu0 %9059
        %9062 = vset.pattern.permute.xlu0 36
        %9063 = vperm.xlu0 %9062, %v1443
        %v9064 = vpop.permute.xlu0 %9063
        %9066 = vset.pattern.permute.xlu0 36
        %9067 = vperm.xlu0 %9066, %v1444
        %v9068 = vpop.permute.xlu0 %9067
        %9070 = vset.pattern.permute.xlu0 36
        %9071 = vperm.xlu0 %9070, %v1445
        %v9072 = vpop.permute.xlu0 %9071
        %v9074 = vmul.f32 %v9044, %v1153
        %v9075 = vmul.f32 %v9044, %v1155
        %v9076 = vmul.f32 %v9044, %v1242
        %v9077 = vmul.f32 %v9044, %v1244
        %v9078 = vmul.f32 %v9048, %v1159
        %v9079 = vmul.f32 %v9048, %v1161
        %v9080 = vmul.f32 %v9048, %v1248
        %v9081 = vmul.f32 %v9048, %v1250
        %v9082 = vmul.f32 %v9052, %v1165
        %v9083 = vmul.f32 %v9052, %v1167
        %v9084 = vmul.f32 %v9052, %v1254
        %v9085 = vmul.f32 %v9052, %v1256
        %v9086 = vmul.f32 %v9056, %v1171
        %v9087 = vmul.f32 %v9056, %v1173
        %v9088 = vmul.f32 %v9056, %v1260
        %v9089 = vmul.f32 %v9056, %v1262
        %v9090 = vmul.f32 %v9060, %v1409
        %v9091 = vmul.f32 %v9060, %v1413
        %v9092 = vmul.f32 %v9060, %v1417
        %v9093 = vmul.f32 %v9060, %v1421
        %v9094 = vmul.f32 %v9064, %v1409
        %v9095 = vmul.f32 %v9064, %v1413
        %v9096 = vmul.f32 %v9064, %v1417
        %v9097 = vmul.f32 %v9064, %v1421
        %v9098 = vmul.f32 %v9068, %v1425
        %v9099 = vmul.f32 %v9068, %v1429
        %v9100 = vmul.f32 %v9068, %v1433
        %v9101 = vmul.f32 %v9068, %v1437
        %v9102 = vmul.f32 %v9072, %v1425
        %v9103 = vmul.f32 %v9072, %v1429
        %v9104 = vmul.f32 %v9072, %v1433
        %v9105 = vmul.f32 %v9072, %v1437
        %9138 = vrot.lane.b32.xlu0 %v9074, 39
        %v9139 = vpop.permute.xlu0 %9138
        %9140 = vrot.lane.b32.xlu0 %v9075, 39
        %v9141 = vpop.permute.xlu0 %9140
        %9142 = vrot.lane.b32.xlu0 %v9076, 39
        %v9143 = vpop.permute.xlu0 %9142
        %9144 = vrot.lane.b32.xlu0 %v9077, 39
        %v9145 = vpop.permute.xlu0 %9144
        %9146 = vrot.lane.b32.xlu0 %v9078, 39
        %v9147 = vpop.permute.xlu0 %9146
        %9148 = vrot.lane.b32.xlu0 %v9079, 39
        %v9149 = vpop.permute.xlu0 %9148
        %9150 = vrot.lane.b32.xlu0 %v9080, 39
        %v9151 = vpop.permute.xlu0 %9150
        %9152 = vrot.lane.b32.xlu0 %v9081, 39
        %v9153 = vpop.permute.xlu0 %9152
        %9154 = vrot.lane.b32.xlu0 %v9082, 39
        %v9155 = vpop.permute.xlu0 %9154
        %9156 = vrot.lane.b32.xlu0 %v9083, 39
        %v9157 = vpop.permute.xlu0 %9156
        %9158 = vrot.lane.b32.xlu0 %v9084, 39
        %v9159 = vpop.permute.xlu0 %9158
        %9160 = vrot.lane.b32.xlu0 %v9085, 39
        %v9161 = vpop.permute.xlu0 %9160
        %9162 = vrot.lane.b32.xlu0 %v9086, 39
        %v9163 = vpop.permute.xlu0 %9162
        %9164 = vrot.lane.b32.xlu0 %v9087, 39
        %v9165 = vpop.permute.xlu0 %9164
        %9166 = vrot.lane.b32.xlu0 %v9088, 39
        %v9167 = vpop.permute.xlu0 %9166
        %9168 = vrot.lane.b32.xlu0 %v9089, 39
        %v9169 = vpop.permute.xlu0 %9168
        %9170 = vrot.lane.b32.xlu0 %v9090, 39
        %v9171 = vpop.permute.xlu0 %9170
        %9172 = vrot.lane.b32.xlu0 %v9091, 39
        %v9173 = vpop.permute.xlu0 %9172
        %9174 = vrot.lane.b32.xlu0 %v9092, 39
        %v9175 = vpop.permute.xlu0 %9174
        %9176 = vrot.lane.b32.xlu0 %v9093, 39
        %v9177 = vpop.permute.xlu0 %9176
        %9178 = vrot.lane.b32.xlu0 %v9094, 39
        %v9179 = vpop.permute.xlu0 %9178
        %9180 = vrot.lane.b32.xlu0 %v9095, 39
        %v9181 = vpop.permute.xlu0 %9180
        %9182 = vrot.lane.b32.xlu0 %v9096, 39
        %v9183 = vpop.permute.xlu0 %9182
        %9184 = vrot.lane.b32.xlu0 %v9097, 39
        %v9185 = vpop.permute.xlu0 %9184
        %9186 = vrot.lane.b32.xlu0 %v9098, 39
        %v9187 = vpop.permute.xlu0 %9186
        %9188 = vrot.lane.b32.xlu0 %v9099, 39
        %v9189 = vpop.permute.xlu0 %9188
        %9190 = vrot.lane.b32.xlu0 %v9100, 39
        %v9191 = vpop.permute.xlu0 %9190
        %9192 = vrot.lane.b32.xlu0 %v9101, 39
        %v9193 = vpop.permute.xlu0 %9192
        %9194 = vrot.lane.b32.xlu0 %v9102, 39
        %v9195 = vpop.permute.xlu0 %9194
        %9196 = vrot.lane.b32.xlu0 %v9103, 39
        %v9197 = vpop.permute.xlu0 %9196
        %9198 = vrot.lane.b32.xlu0 %v9104, 39
        %v9199 = vpop.permute.xlu0 %9198
        %9200 = vrot.lane.b32.xlu0 %v9105, 39
        %v9201 = vpop.permute.xlu0 %9200
        %v9202 = vsel %vm7572, %v9139, %v9141
        %v9203 = vsel %vm7572, %v9141, %v9143
        %v9204 = vsel %vm7572, %v9143, %v9145
        %v9205 = vsel %vm7572, %v9147, %v9149
        %v9206 = vsel %vm7572, %v9149, %v9151
        %v9207 = vsel %vm7572, %v9151, %v9153
        %v9208 = vsel %vm7572, %v9155, %v9157
        %v9209 = vsel %vm7572, %v9157, %v9159
        %v9210 = vsel %vm7572, %v9159, %v9161
        %v9211 = vsel %vm7572, %v9163, %v9165
        %v9212 = vsel %vm7572, %v9165, %v9167
        %v9213 = vsel %vm7572, %v9167, %v9169
        %v9214 = vsel %vm7572, %v9171, %v9173
        %v9215 = vsel %vm7572, %v9173, %v9175
        %v9216 = vsel %vm7572, %v9175, %v9177
        %v9217 = vsel %vm7572, %v9179, %v9181
        %v9218 = vsel %vm7572, %v9181, %v9183
        %v9219 = vsel %vm7572, %v9183, %v9185
        %v9220 = vsel %vm7572, %v9187, %v9189
        %v9221 = vsel %vm7572, %v9189, %v9191
        %v9222 = vsel %vm7572, %v9191, %v9193
        %v9223 = vsel %vm7572, %v9195, %v9197
        %v9224 = vsel %vm7572, %v9197, %v9199
        %v9225 = vsel %vm7572, %v9199, %v9201
        %v9250 = vadd.f32 %v9018, %v9202
        %v9251 = vadd.f32 %v9019, %v9203
        %v9252 = vadd.f32 %v9020, %v9204
        %v9253 = vadd.f32 %v9021, %v9205
        %v9254 = vadd.f32 %v9022, %v9206
        %v9255 = vadd.f32 %v9023, %v9207
        %v9256 = vadd.f32 %v9024, %v9208
        %v9257 = vadd.f32 %v9025, %v9209
        %v9258 = vadd.f32 %v9026, %v9210
        %v9259 = vadd.f32 %v9027, %v9211
        %v9260 = vadd.f32 %v9028, %v9212
        %v9261 = vadd.f32 %v9029, %v9213
        %v9262 = vadd.f32 %v9030, %v9214
        %v9263 = vadd.f32 %v9031, %v9215
        %v9264 = vadd.f32 %v9032, %v9216
        %v9265 = vadd.f32 %v9033, %v9217
        %v9266 = vadd.f32 %v9034, %v9218
        %v9267 = vadd.f32 %v9035, %v9219
        %v9268 = vadd.f32 %v9036, %v9220
        %v9269 = vadd.f32 %v9037, %v9221
        %v9270 = vadd.f32 %v9038, %v9222
        %v9271 = vadd.f32 %v9039, %v9223
        %v9272 = vadd.f32 %v9040, %v9224
        %v9273 = vadd.f32 %v9041, %v9225
        %9274 = vset.pattern.permute.xlu0 37
        %9275 = vperm.xlu0 %9274, %v1438
        %v9276 = vpop.permute.xlu0 %9275
        %9278 = vset.pattern.permute.xlu0 37
        %9279 = vperm.xlu0 %9278, %v1439
        %v9280 = vpop.permute.xlu0 %9279
        %9282 = vset.pattern.permute.xlu0 37
        %9283 = vperm.xlu0 %9282, %v1440
        %v9284 = vpop.permute.xlu0 %9283
        %9286 = vset.pattern.permute.xlu0 37
        %9287 = vperm.xlu0 %9286, %v1441
        %v9288 = vpop.permute.xlu0 %9287
        %9290 = vset.pattern.permute.xlu0 37
        %9291 = vperm.xlu0 %9290, %v1442
        %v9292 = vpop.permute.xlu0 %9291
        %9294 = vset.pattern.permute.xlu0 37
        %9295 = vperm.xlu0 %9294, %v1443
        %v9296 = vpop.permute.xlu0 %9295
        %9298 = vset.pattern.permute.xlu0 37
        %9299 = vperm.xlu0 %9298, %v1444
        %v9300 = vpop.permute.xlu0 %9299
        %9302 = vset.pattern.permute.xlu0 37
        %9303 = vperm.xlu0 %9302, %v1445
        %v9304 = vpop.permute.xlu0 %9303
        %v9306 = vmul.f32 %v9276, %v1153
        %v9307 = vmul.f32 %v9276, %v1155
        %v9308 = vmul.f32 %v9276, %v1242
        %v9309 = vmul.f32 %v9276, %v1244
        %v9310 = vmul.f32 %v9280, %v1159
        %v9311 = vmul.f32 %v9280, %v1161
        %v9312 = vmul.f32 %v9280, %v1248
        %v9313 = vmul.f32 %v9280, %v1250
        %v9314 = vmul.f32 %v9284, %v1165
        %v9315 = vmul.f32 %v9284, %v1167
        %v9316 = vmul.f32 %v9284, %v1254
        %v9317 = vmul.f32 %v9284, %v1256
        %v9318 = vmul.f32 %v9288, %v1171
        %v9319 = vmul.f32 %v9288, %v1173
        %v9320 = vmul.f32 %v9288, %v1260
        %v9321 = vmul.f32 %v9288, %v1262
        %v9322 = vmul.f32 %v9292, %v1409
        %v9323 = vmul.f32 %v9292, %v1413
        %v9324 = vmul.f32 %v9292, %v1417
        %v9325 = vmul.f32 %v9292, %v1421
        %v9326 = vmul.f32 %v9296, %v1409
        %v9327 = vmul.f32 %v9296, %v1413
        %v9328 = vmul.f32 %v9296, %v1417
        %v9329 = vmul.f32 %v9296, %v1421
        %v9330 = vmul.f32 %v9300, %v1425
        %v9331 = vmul.f32 %v9300, %v1429
        %v9332 = vmul.f32 %v9300, %v1433
        %v9333 = vmul.f32 %v9300, %v1437
        %v9334 = vmul.f32 %v9304, %v1425
        %v9335 = vmul.f32 %v9304, %v1429
        %v9336 = vmul.f32 %v9304, %v1433
        %v9337 = vmul.f32 %v9304, %v1437
        %9370 = vrot.lane.b32.xlu0 %v9306, 38
        %v9371 = vpop.permute.xlu0 %9370
        %9372 = vrot.lane.b32.xlu0 %v9307, 38
        %v9373 = vpop.permute.xlu0 %9372
        %9374 = vrot.lane.b32.xlu0 %v9308, 38
        %v9375 = vpop.permute.xlu0 %9374
        %9376 = vrot.lane.b32.xlu0 %v9309, 38
        %v9377 = vpop.permute.xlu0 %9376
        %9378 = vrot.lane.b32.xlu0 %v9310, 38
        %v9379 = vpop.permute.xlu0 %9378
        %9380 = vrot.lane.b32.xlu0 %v9311, 38
        %v9381 = vpop.permute.xlu0 %9380
        %9382 = vrot.lane.b32.xlu0 %v9312, 38
        %v9383 = vpop.permute.xlu0 %9382
        %9384 = vrot.lane.b32.xlu0 %v9313, 38
        %v9385 = vpop.permute.xlu0 %9384
        %9386 = vrot.lane.b32.xlu0 %v9314, 38
        %v9387 = vpop.permute.xlu0 %9386
        %9388 = vrot.lane.b32.xlu0 %v9315, 38
        %v9389 = vpop.permute.xlu0 %9388
        %9390 = vrot.lane.b32.xlu0 %v9316, 38
        %v9391 = vpop.permute.xlu0 %9390
        %9392 = vrot.lane.b32.xlu0 %v9317, 38
        %v9393 = vpop.permute.xlu0 %9392
        %9394 = vrot.lane.b32.xlu0 %v9318, 38
        %v9395 = vpop.permute.xlu0 %9394
        %9396 = vrot.lane.b32.xlu0 %v9319, 38
        %v9397 = vpop.permute.xlu0 %9396
        %9398 = vrot.lane.b32.xlu0 %v9320, 38
        %v9399 = vpop.permute.xlu0 %9398
        %9400 = vrot.lane.b32.xlu0 %v9321, 38
        %v9401 = vpop.permute.xlu0 %9400
        %9402 = vrot.lane.b32.xlu0 %v9322, 38
        %v9403 = vpop.permute.xlu0 %9402
        %9404 = vrot.lane.b32.xlu0 %v9323, 38
        %v9405 = vpop.permute.xlu0 %9404
        %9406 = vrot.lane.b32.xlu0 %v9324, 38
        %v9407 = vpop.permute.xlu0 %9406
        %9408 = vrot.lane.b32.xlu0 %v9325, 38
        %v9409 = vpop.permute.xlu0 %9408
        %9410 = vrot.lane.b32.xlu0 %v9326, 38
        %v9411 = vpop.permute.xlu0 %9410
        %9412 = vrot.lane.b32.xlu0 %v9327, 38
        %v9413 = vpop.permute.xlu0 %9412
        %9414 = vrot.lane.b32.xlu0 %v9328, 38
        %v9415 = vpop.permute.xlu0 %9414
        %9416 = vrot.lane.b32.xlu0 %v9329, 38
        %v9417 = vpop.permute.xlu0 %9416
        %9418 = vrot.lane.b32.xlu0 %v9330, 38
        %v9419 = vpop.permute.xlu0 %9418
        %9420 = vrot.lane.b32.xlu0 %v9331, 38
        %v9421 = vpop.permute.xlu0 %9420
        %9422 = vrot.lane.b32.xlu0 %v9332, 38
        %v9423 = vpop.permute.xlu0 %9422
        %9424 = vrot.lane.b32.xlu0 %v9333, 38
        %v9425 = vpop.permute.xlu0 %9424
        %9426 = vrot.lane.b32.xlu0 %v9334, 38
        %v9427 = vpop.permute.xlu0 %9426
        %9428 = vrot.lane.b32.xlu0 %v9335, 38
        %v9429 = vpop.permute.xlu0 %9428
        %9430 = vrot.lane.b32.xlu0 %v9336, 38
        %v9431 = vpop.permute.xlu0 %9430
        %9432 = vrot.lane.b32.xlu0 %v9337, 38
        %v9433 = vpop.permute.xlu0 %9432
        %v9434 = vsel %vm7805, %v9371, %v9373
        %v9435 = vsel %vm7805, %v9373, %v9375
        %v9436 = vsel %vm7805, %v9375, %v9377
        %v9437 = vsel %vm7805, %v9379, %v9381
        %v9438 = vsel %vm7805, %v9381, %v9383
        %v9439 = vsel %vm7805, %v9383, %v9385
        %v9440 = vsel %vm7805, %v9387, %v9389
        %v9441 = vsel %vm7805, %v9389, %v9391
        %v9442 = vsel %vm7805, %v9391, %v9393
        %v9443 = vsel %vm7805, %v9395, %v9397
        %v9444 = vsel %vm7805, %v9397, %v9399
        %v9445 = vsel %vm7805, %v9399, %v9401
        %v9446 = vsel %vm7805, %v9403, %v9405
        %v9447 = vsel %vm7805, %v9405, %v9407
        %v9448 = vsel %vm7805, %v9407, %v9409
        %v9449 = vsel %vm7805, %v9411, %v9413
        %v9450 = vsel %vm7805, %v9413, %v9415
        %v9451 = vsel %vm7805, %v9415, %v9417
        %v9452 = vsel %vm7805, %v9419, %v9421
        %v9453 = vsel %vm7805, %v9421, %v9423
        %v9454 = vsel %vm7805, %v9423, %v9425
        %v9455 = vsel %vm7805, %v9427, %v9429
        %v9456 = vsel %vm7805, %v9429, %v9431
        %v9457 = vsel %vm7805, %v9431, %v9433
        %v9482 = vadd.f32 %v9250, %v9434
        %v9483 = vadd.f32 %v9251, %v9435
        %v9484 = vadd.f32 %v9252, %v9436
        %v9485 = vadd.f32 %v9253, %v9437
        %v9486 = vadd.f32 %v9254, %v9438
        %v9487 = vadd.f32 %v9255, %v9439
        %v9488 = vadd.f32 %v9256, %v9440
        %v9489 = vadd.f32 %v9257, %v9441
        %v9490 = vadd.f32 %v9258, %v9442
        %v9491 = vadd.f32 %v9259, %v9443
        %v9492 = vadd.f32 %v9260, %v9444
        %v9493 = vadd.f32 %v9261, %v9445
        %v9494 = vadd.f32 %v9262, %v9446
        %v9495 = vadd.f32 %v9263, %v9447
        %v9496 = vadd.f32 %v9264, %v9448
        %v9497 = vadd.f32 %v9265, %v9449
        %v9498 = vadd.f32 %v9266, %v9450
        %v9499 = vadd.f32 %v9267, %v9451
        %v9500 = vadd.f32 %v9268, %v9452
        %v9501 = vadd.f32 %v9269, %v9453
        %v9502 = vadd.f32 %v9270, %v9454
        %v9503 = vadd.f32 %v9271, %v9455
        %v9504 = vadd.f32 %v9272, %v9456
        %v9505 = vadd.f32 %v9273, %v9457
        %9506 = vset.pattern.permute.xlu0 38
        %9507 = vperm.xlu0 %9506, %v1438
        %v9508 = vpop.permute.xlu0 %9507
        %9510 = vset.pattern.permute.xlu0 38
        %9511 = vperm.xlu0 %9510, %v1439
        %v9512 = vpop.permute.xlu0 %9511
        %9514 = vset.pattern.permute.xlu0 38
        %9515 = vperm.xlu0 %9514, %v1440
        %v9516 = vpop.permute.xlu0 %9515
        %9518 = vset.pattern.permute.xlu0 38
        %9519 = vperm.xlu0 %9518, %v1441
        %v9520 = vpop.permute.xlu0 %9519
        %9522 = vset.pattern.permute.xlu0 38
        %9523 = vperm.xlu0 %9522, %v1442
        %v9524 = vpop.permute.xlu0 %9523
        %9526 = vset.pattern.permute.xlu0 38
        %9527 = vperm.xlu0 %9526, %v1443
        %v9528 = vpop.permute.xlu0 %9527
        %9530 = vset.pattern.permute.xlu0 38
        %9531 = vperm.xlu0 %9530, %v1444
        %v9532 = vpop.permute.xlu0 %9531
        %9534 = vset.pattern.permute.xlu0 38
        %9535 = vperm.xlu0 %9534, %v1445
        %v9536 = vpop.permute.xlu0 %9535
        %v9538 = vmul.f32 %v9508, %v1153
        %v9539 = vmul.f32 %v9508, %v1155
        %v9540 = vmul.f32 %v9508, %v1242
        %v9541 = vmul.f32 %v9508, %v1244
        %v9542 = vmul.f32 %v9512, %v1159
        %v9543 = vmul.f32 %v9512, %v1161
        %v9544 = vmul.f32 %v9512, %v1248
        %v9545 = vmul.f32 %v9512, %v1250
        %v9546 = vmul.f32 %v9516, %v1165
        %v9547 = vmul.f32 %v9516, %v1167
        %v9548 = vmul.f32 %v9516, %v1254
        %v9549 = vmul.f32 %v9516, %v1256
        %v9550 = vmul.f32 %v9520, %v1171
        %v9551 = vmul.f32 %v9520, %v1173
        %v9552 = vmul.f32 %v9520, %v1260
        %v9553 = vmul.f32 %v9520, %v1262
        %v9554 = vmul.f32 %v9524, %v1409
        %v9555 = vmul.f32 %v9524, %v1413
        %v9556 = vmul.f32 %v9524, %v1417
        %v9557 = vmul.f32 %v9524, %v1421
        %v9558 = vmul.f32 %v9528, %v1409
        %v9559 = vmul.f32 %v9528, %v1413
        %v9560 = vmul.f32 %v9528, %v1417
        %v9561 = vmul.f32 %v9528, %v1421
        %v9562 = vmul.f32 %v9532, %v1425
        %v9563 = vmul.f32 %v9532, %v1429
        %v9564 = vmul.f32 %v9532, %v1433
        %v9565 = vmul.f32 %v9532, %v1437
        %v9566 = vmul.f32 %v9536, %v1425
        %v9567 = vmul.f32 %v9536, %v1429
        %v9568 = vmul.f32 %v9536, %v1433
        %v9569 = vmul.f32 %v9536, %v1437
        %9602 = vrot.lane.b32.xlu0 %v9538, 37
        %v9603 = vpop.permute.xlu0 %9602
        %9604 = vrot.lane.b32.xlu0 %v9539, 37
        %v9605 = vpop.permute.xlu0 %9604
        %9606 = vrot.lane.b32.xlu0 %v9540, 37
        %v9607 = vpop.permute.xlu0 %9606
        %9608 = vrot.lane.b32.xlu0 %v9541, 37
        %v9609 = vpop.permute.xlu0 %9608
        %9610 = vrot.lane.b32.xlu0 %v9542, 37
        %v9611 = vpop.permute.xlu0 %9610
        %9612 = vrot.lane.b32.xlu0 %v9543, 37
        %v9613 = vpop.permute.xlu0 %9612
        %9614 = vrot.lane.b32.xlu0 %v9544, 37
        %v9615 = vpop.permute.xlu0 %9614
        %9616 = vrot.lane.b32.xlu0 %v9545, 37
        %v9617 = vpop.permute.xlu0 %9616
        %9618 = vrot.lane.b32.xlu0 %v9546, 37
        %v9619 = vpop.permute.xlu0 %9618
        %9620 = vrot.lane.b32.xlu0 %v9547, 37
        %v9621 = vpop.permute.xlu0 %9620
        %9622 = vrot.lane.b32.xlu0 %v9548, 37
        %v9623 = vpop.permute.xlu0 %9622
        %9624 = vrot.lane.b32.xlu0 %v9549, 37
        %v9625 = vpop.permute.xlu0 %9624
        %9626 = vrot.lane.b32.xlu0 %v9550, 37
        %v9627 = vpop.permute.xlu0 %9626
        %9628 = vrot.lane.b32.xlu0 %v9551, 37
        %v9629 = vpop.permute.xlu0 %9628
        %9630 = vrot.lane.b32.xlu0 %v9552, 37
        %v9631 = vpop.permute.xlu0 %9630
        %9632 = vrot.lane.b32.xlu0 %v9553, 37
        %v9633 = vpop.permute.xlu0 %9632
        %9634 = vrot.lane.b32.xlu0 %v9554, 37
        %v9635 = vpop.permute.xlu0 %9634
        %9636 = vrot.lane.b32.xlu0 %v9555, 37
        %v9637 = vpop.permute.xlu0 %9636
        %9638 = vrot.lane.b32.xlu0 %v9556, 37
        %v9639 = vpop.permute.xlu0 %9638
        %9640 = vrot.lane.b32.xlu0 %v9557, 37
        %v9641 = vpop.permute.xlu0 %9640
        %9642 = vrot.lane.b32.xlu0 %v9558, 37
        %v9643 = vpop.permute.xlu0 %9642
        %9644 = vrot.lane.b32.xlu0 %v9559, 37
        %v9645 = vpop.permute.xlu0 %9644
        %9646 = vrot.lane.b32.xlu0 %v9560, 37
        %v9647 = vpop.permute.xlu0 %9646
        %9648 = vrot.lane.b32.xlu0 %v9561, 37
        %v9649 = vpop.permute.xlu0 %9648
        %9650 = vrot.lane.b32.xlu0 %v9562, 37
        %v9651 = vpop.permute.xlu0 %9650
        %9652 = vrot.lane.b32.xlu0 %v9563, 37
        %v9653 = vpop.permute.xlu0 %9652
        %9654 = vrot.lane.b32.xlu0 %v9564, 37
        %v9655 = vpop.permute.xlu0 %9654
        %9656 = vrot.lane.b32.xlu0 %v9565, 37
        %v9657 = vpop.permute.xlu0 %9656
        %9658 = vrot.lane.b32.xlu0 %v9566, 37
        %v9659 = vpop.permute.xlu0 %9658
        %9660 = vrot.lane.b32.xlu0 %v9567, 37
        %v9661 = vpop.permute.xlu0 %9660
        %9662 = vrot.lane.b32.xlu0 %v9568, 37
        %v9663 = vpop.permute.xlu0 %9662
        %9664 = vrot.lane.b32.xlu0 %v9569, 37
        %v9665 = vpop.permute.xlu0 %9664
        %v9666 = vsel %vm8038, %v9603, %v9605
        %v9667 = vsel %vm8038, %v9605, %v9607
        %v9668 = vsel %vm8038, %v9607, %v9609
        %v9669 = vsel %vm8038, %v9611, %v9613
        %v9670 = vsel %vm8038, %v9613, %v9615
        %v9671 = vsel %vm8038, %v9615, %v9617
        %v9672 = vsel %vm8038, %v9619, %v9621
        %v9673 = vsel %vm8038, %v9621, %v9623
        %v9674 = vsel %vm8038, %v9623, %v9625
        %v9675 = vsel %vm8038, %v9627, %v9629
        %v9676 = vsel %vm8038, %v9629, %v9631
        %v9677 = vsel %vm8038, %v9631, %v9633
        %v9678 = vsel %vm8038, %v9635, %v9637
        %v9679 = vsel %vm8038, %v9637, %v9639
        %v9680 = vsel %vm8038, %v9639, %v9641
        %v9681 = vsel %vm8038, %v9643, %v9645
        %v9682 = vsel %vm8038, %v9645, %v9647
        %v9683 = vsel %vm8038, %v9647, %v9649
        %v9684 = vsel %vm8038, %v9651, %v9653
        %v9685 = vsel %vm8038, %v9653, %v9655
        %v9686 = vsel %vm8038, %v9655, %v9657
        %v9687 = vsel %vm8038, %v9659, %v9661
        %v9688 = vsel %vm8038, %v9661, %v9663
        %v9689 = vsel %vm8038, %v9663, %v9665
        %v9714 = vadd.f32 %v9482, %v9666
        %v9715 = vadd.f32 %v9483, %v9667
        %v9716 = vadd.f32 %v9484, %v9668
        %v9717 = vadd.f32 %v9485, %v9669
        %v9718 = vadd.f32 %v9486, %v9670
        %v9719 = vadd.f32 %v9487, %v9671
        %v9720 = vadd.f32 %v9488, %v9672
        %v9721 = vadd.f32 %v9489, %v9673
        %v9722 = vadd.f32 %v9490, %v9674
        %v9723 = vadd.f32 %v9491, %v9675
        %v9724 = vadd.f32 %v9492, %v9676
        %v9725 = vadd.f32 %v9493, %v9677
        %v9726 = vadd.f32 %v9494, %v9678
        %v9727 = vadd.f32 %v9495, %v9679
        %v9728 = vadd.f32 %v9496, %v9680
        %v9729 = vadd.f32 %v9497, %v9681
        %v9730 = vadd.f32 %v9498, %v9682
        %v9731 = vadd.f32 %v9499, %v9683
        %v9732 = vadd.f32 %v9500, %v9684
        %v9733 = vadd.f32 %v9501, %v9685
        %v9734 = vadd.f32 %v9502, %v9686
        %v9735 = vadd.f32 %v9503, %v9687
        %v9736 = vadd.f32 %v9504, %v9688
        %v9737 = vadd.f32 %v9505, %v9689
        %9738 = vset.pattern.permute.xlu0 39
        %9739 = vperm.xlu0 %9738, %v1438
        %v9740 = vpop.permute.xlu0 %9739
        %9742 = vset.pattern.permute.xlu0 39
        %9743 = vperm.xlu0 %9742, %v1439
        %v9744 = vpop.permute.xlu0 %9743
        %9746 = vset.pattern.permute.xlu0 39
        %9747 = vperm.xlu0 %9746, %v1440
        %v9748 = vpop.permute.xlu0 %9747
        %9750 = vset.pattern.permute.xlu0 39
        %9751 = vperm.xlu0 %9750, %v1441
        %v9752 = vpop.permute.xlu0 %9751
        %9754 = vset.pattern.permute.xlu0 39
        %9755 = vperm.xlu0 %9754, %v1442
        %v9756 = vpop.permute.xlu0 %9755
        %9758 = vset.pattern.permute.xlu0 39
        %9759 = vperm.xlu0 %9758, %v1443
        %v9760 = vpop.permute.xlu0 %9759
        %9762 = vset.pattern.permute.xlu0 39
        %9763 = vperm.xlu0 %9762, %v1444
        %v9764 = vpop.permute.xlu0 %9763
        %9766 = vset.pattern.permute.xlu0 39
        %9767 = vperm.xlu0 %9766, %v1445
        %v9768 = vpop.permute.xlu0 %9767
        %v9770 = vmul.f32 %v9740, %v1153
        %v9771 = vmul.f32 %v9740, %v1155
        %v9772 = vmul.f32 %v9740, %v1242
        %v9773 = vmul.f32 %v9740, %v1244
        %v9774 = vmul.f32 %v9744, %v1159
        %v9775 = vmul.f32 %v9744, %v1161
        %v9776 = vmul.f32 %v9744, %v1248
        %v9777 = vmul.f32 %v9744, %v1250
        %v9778 = vmul.f32 %v9748, %v1165
        %v9779 = vmul.f32 %v9748, %v1167
        %v9780 = vmul.f32 %v9748, %v1254
        %v9781 = vmul.f32 %v9748, %v1256
        %v9782 = vmul.f32 %v9752, %v1171
        %v9783 = vmul.f32 %v9752, %v1173
        %v9784 = vmul.f32 %v9752, %v1260
        %v9785 = vmul.f32 %v9752, %v1262
        %v9786 = vmul.f32 %v9756, %v1409
        %v9787 = vmul.f32 %v9756, %v1413
        %v9788 = vmul.f32 %v9756, %v1417
        %v9789 = vmul.f32 %v9756, %v1421
        %v9790 = vmul.f32 %v9760, %v1409
        %v9791 = vmul.f32 %v9760, %v1413
        %v9792 = vmul.f32 %v9760, %v1417
        %v9793 = vmul.f32 %v9760, %v1421
        %v9794 = vmul.f32 %v9764, %v1425
        %v9795 = vmul.f32 %v9764, %v1429
        %v9796 = vmul.f32 %v9764, %v1433
        %v9797 = vmul.f32 %v9764, %v1437
        %v9798 = vmul.f32 %v9768, %v1425
        %v9799 = vmul.f32 %v9768, %v1429
        %v9800 = vmul.f32 %v9768, %v1433
        %v9801 = vmul.f32 %v9768, %v1437
        %9834 = vrot.lane.b32.xlu0 %v9770, 36
        %v9835 = vpop.permute.xlu0 %9834
        %9836 = vrot.lane.b32.xlu0 %v9771, 36
        %v9837 = vpop.permute.xlu0 %9836
        %9838 = vrot.lane.b32.xlu0 %v9772, 36
        %v9839 = vpop.permute.xlu0 %9838
        %9840 = vrot.lane.b32.xlu0 %v9773, 36
        %v9841 = vpop.permute.xlu0 %9840
        %9842 = vrot.lane.b32.xlu0 %v9774, 36
        %v9843 = vpop.permute.xlu0 %9842
        %9844 = vrot.lane.b32.xlu0 %v9775, 36
        %v9845 = vpop.permute.xlu0 %9844
        %9846 = vrot.lane.b32.xlu0 %v9776, 36
        %v9847 = vpop.permute.xlu0 %9846
        %9848 = vrot.lane.b32.xlu0 %v9777, 36
        %v9849 = vpop.permute.xlu0 %9848
        %9850 = vrot.lane.b32.xlu0 %v9778, 36
        %v9851 = vpop.permute.xlu0 %9850
        %9852 = vrot.lane.b32.xlu0 %v9779, 36
        %v9853 = vpop.permute.xlu0 %9852
        %9854 = vrot.lane.b32.xlu0 %v9780, 36
        %v9855 = vpop.permute.xlu0 %9854
        %9856 = vrot.lane.b32.xlu0 %v9781, 36
        %v9857 = vpop.permute.xlu0 %9856
        %9858 = vrot.lane.b32.xlu0 %v9782, 36
        %v9859 = vpop.permute.xlu0 %9858
        %9860 = vrot.lane.b32.xlu0 %v9783, 36
        %v9861 = vpop.permute.xlu0 %9860
        %9862 = vrot.lane.b32.xlu0 %v9784, 36
        %v9863 = vpop.permute.xlu0 %9862
        %9864 = vrot.lane.b32.xlu0 %v9785, 36
        %v9865 = vpop.permute.xlu0 %9864
        %9866 = vrot.lane.b32.xlu0 %v9786, 36
        %v9867 = vpop.permute.xlu0 %9866
        %9868 = vrot.lane.b32.xlu0 %v9787, 36
        %v9869 = vpop.permute.xlu0 %9868
        %9870 = vrot.lane.b32.xlu0 %v9788, 36
        %v9871 = vpop.permute.xlu0 %9870
        %9872 = vrot.lane.b32.xlu0 %v9789, 36
        %v9873 = vpop.permute.xlu0 %9872
        %9874 = vrot.lane.b32.xlu0 %v9790, 36
        %v9875 = vpop.permute.xlu0 %9874
        %9876 = vrot.lane.b32.xlu0 %v9791, 36
        %v9877 = vpop.permute.xlu0 %9876
        %9878 = vrot.lane.b32.xlu0 %v9792, 36
        %v9879 = vpop.permute.xlu0 %9878
        %9880 = vrot.lane.b32.xlu0 %v9793, 36
        %v9881 = vpop.permute.xlu0 %9880
        %9882 = vrot.lane.b32.xlu0 %v9794, 36
        %v9883 = vpop.permute.xlu0 %9882
        %9884 = vrot.lane.b32.xlu0 %v9795, 36
        %v9885 = vpop.permute.xlu0 %9884
        %9886 = vrot.lane.b32.xlu0 %v9796, 36
        %v9887 = vpop.permute.xlu0 %9886
        %9888 = vrot.lane.b32.xlu0 %v9797, 36
        %v9889 = vpop.permute.xlu0 %9888
        %9890 = vrot.lane.b32.xlu0 %v9798, 36
        %v9891 = vpop.permute.xlu0 %9890
        %9892 = vrot.lane.b32.xlu0 %v9799, 36
        %v9893 = vpop.permute.xlu0 %9892
        %9894 = vrot.lane.b32.xlu0 %v9800, 36
        %v9895 = vpop.permute.xlu0 %9894
        %9896 = vrot.lane.b32.xlu0 %v9801, 36
        %v9897 = vpop.permute.xlu0 %9896
        %v9898 = vsel %vm8271, %v9835, %v9837
        %v9899 = vsel %vm8271, %v9837, %v9839
        %v9900 = vsel %vm8271, %v9839, %v9841
        %v9901 = vsel %vm8271, %v9843, %v9845
        %v9902 = vsel %vm8271, %v9845, %v9847
        %v9903 = vsel %vm8271, %v9847, %v9849
        %v9904 = vsel %vm8271, %v9851, %v9853
        %v9905 = vsel %vm8271, %v9853, %v9855
        %v9906 = vsel %vm8271, %v9855, %v9857
        %v9907 = vsel %vm8271, %v9859, %v9861
        %v9908 = vsel %vm8271, %v9861, %v9863
        %v9909 = vsel %vm8271, %v9863, %v9865
        %v9910 = vsel %vm8271, %v9867, %v9869
        %v9911 = vsel %vm8271, %v9869, %v9871
        %v9912 = vsel %vm8271, %v9871, %v9873
        %v9913 = vsel %vm8271, %v9875, %v9877
        %v9914 = vsel %vm8271, %v9877, %v9879
        %v9915 = vsel %vm8271, %v9879, %v9881
        %v9916 = vsel %vm8271, %v9883, %v9885
        %v9917 = vsel %vm8271, %v9885, %v9887
        %v9918 = vsel %vm8271, %v9887, %v9889
        %v9919 = vsel %vm8271, %v9891, %v9893
        %v9920 = vsel %vm8271, %v9893, %v9895
        %v9921 = vsel %vm8271, %v9895, %v9897
        %v9946 = vadd.f32 %v9714, %v9898
        %v9947 = vadd.f32 %v9715, %v9899
        %v9948 = vadd.f32 %v9716, %v9900
        %v9949 = vadd.f32 %v9717, %v9901
        %v9950 = vadd.f32 %v9718, %v9902
        %v9951 = vadd.f32 %v9719, %v9903
        %v9952 = vadd.f32 %v9720, %v9904
        %v9953 = vadd.f32 %v9721, %v9905
        %v9954 = vadd.f32 %v9722, %v9906
        %v9955 = vadd.f32 %v9723, %v9907
        %v9956 = vadd.f32 %v9724, %v9908
        %v9957 = vadd.f32 %v9725, %v9909
        %v9958 = vadd.f32 %v9726, %v9910
        %v9959 = vadd.f32 %v9727, %v9911
        %v9960 = vadd.f32 %v9728, %v9912
        %v9961 = vadd.f32 %v9729, %v9913
        %v9962 = vadd.f32 %v9730, %v9914
        %v9963 = vadd.f32 %v9731, %v9915
        %v9964 = vadd.f32 %v9732, %v9916
        %v9965 = vadd.f32 %v9733, %v9917
        %v9966 = vadd.f32 %v9734, %v9918
        %v9967 = vadd.f32 %v9735, %v9919
        %v9968 = vadd.f32 %v9736, %v9920
        %v9969 = vadd.f32 %v9737, %v9921
        %9970 = vset.pattern.permute.xlu0 40
        %9971 = vperm.xlu0 %9970, %v1438
        %v9972 = vpop.permute.xlu0 %9971
        %9974 = vset.pattern.permute.xlu0 40
        %9975 = vperm.xlu0 %9974, %v1439
        %v9976 = vpop.permute.xlu0 %9975
        %9978 = vset.pattern.permute.xlu0 40
        %9979 = vperm.xlu0 %9978, %v1440
        %v9980 = vpop.permute.xlu0 %9979
        %9982 = vset.pattern.permute.xlu0 40
        %9983 = vperm.xlu0 %9982, %v1441
        %v9984 = vpop.permute.xlu0 %9983
        %9986 = vset.pattern.permute.xlu0 40
        %9987 = vperm.xlu0 %9986, %v1442
        %v9988 = vpop.permute.xlu0 %9987
        %9990 = vset.pattern.permute.xlu0 40
        %9991 = vperm.xlu0 %9990, %v1443
        %v9992 = vpop.permute.xlu0 %9991
        %9994 = vset.pattern.permute.xlu0 40
        %9995 = vperm.xlu0 %9994, %v1444
        %v9996 = vpop.permute.xlu0 %9995
        %9998 = vset.pattern.permute.xlu0 40
        %9999 = vperm.xlu0 %9998, %v1445
        %v10000 = vpop.permute.xlu0 %9999
        %v10002 = vmul.f32 %v9972, %v1153
        %v10003 = vmul.f32 %v9972, %v1155
        %v10004 = vmul.f32 %v9972, %v1242
        %v10005 = vmul.f32 %v9972, %v1244
        %v10006 = vmul.f32 %v9976, %v1159
        %v10007 = vmul.f32 %v9976, %v1161
        %v10008 = vmul.f32 %v9976, %v1248
        %v10009 = vmul.f32 %v9976, %v1250
        %v10010 = vmul.f32 %v9980, %v1165
        %v10011 = vmul.f32 %v9980, %v1167
        %v10012 = vmul.f32 %v9980, %v1254
        %v10013 = vmul.f32 %v9980, %v1256
        %v10014 = vmul.f32 %v9984, %v1171
        %v10015 = vmul.f32 %v9984, %v1173
        %v10016 = vmul.f32 %v9984, %v1260
        %v10017 = vmul.f32 %v9984, %v1262
        %v10018 = vmul.f32 %v9988, %v1409
        %v10019 = vmul.f32 %v9988, %v1413
        %v10020 = vmul.f32 %v9988, %v1417
        %v10021 = vmul.f32 %v9988, %v1421
        %v10022 = vmul.f32 %v9992, %v1409
        %v10023 = vmul.f32 %v9992, %v1413
        %v10024 = vmul.f32 %v9992, %v1417
        %v10025 = vmul.f32 %v9992, %v1421
        %v10026 = vmul.f32 %v9996, %v1425
        %v10027 = vmul.f32 %v9996, %v1429
        %v10028 = vmul.f32 %v9996, %v1433
        %v10029 = vmul.f32 %v9996, %v1437
        %v10030 = vmul.f32 %v10000, %v1425
        %v10031 = vmul.f32 %v10000, %v1429
        %v10032 = vmul.f32 %v10000, %v1433
        %v10033 = vmul.f32 %v10000, %v1437
        %10066 = vrot.lane.b32.xlu0 %v10002, 35
        %v10067 = vpop.permute.xlu0 %10066
        %10068 = vrot.lane.b32.xlu0 %v10003, 35
        %v10069 = vpop.permute.xlu0 %10068
        %10070 = vrot.lane.b32.xlu0 %v10004, 35
        %v10071 = vpop.permute.xlu0 %10070
        %10072 = vrot.lane.b32.xlu0 %v10005, 35
        %v10073 = vpop.permute.xlu0 %10072
        %10074 = vrot.lane.b32.xlu0 %v10006, 35
        %v10075 = vpop.permute.xlu0 %10074
        %10076 = vrot.lane.b32.xlu0 %v10007, 35
        %v10077 = vpop.permute.xlu0 %10076
        %10078 = vrot.lane.b32.xlu0 %v10008, 35
        %v10079 = vpop.permute.xlu0 %10078
        %10080 = vrot.lane.b32.xlu0 %v10009, 35
        %v10081 = vpop.permute.xlu0 %10080
        %10082 = vrot.lane.b32.xlu0 %v10010, 35
        %v10083 = vpop.permute.xlu0 %10082
        %10084 = vrot.lane.b32.xlu0 %v10011, 35
        %v10085 = vpop.permute.xlu0 %10084
        %10086 = vrot.lane.b32.xlu0 %v10012, 35
        %v10087 = vpop.permute.xlu0 %10086
        %10088 = vrot.lane.b32.xlu0 %v10013, 35
        %v10089 = vpop.permute.xlu0 %10088
        %10090 = vrot.lane.b32.xlu0 %v10014, 35
        %v10091 = vpop.permute.xlu0 %10090
        %10092 = vrot.lane.b32.xlu0 %v10015, 35
        %v10093 = vpop.permute.xlu0 %10092
        %10094 = vrot.lane.b32.xlu0 %v10016, 35
        %v10095 = vpop.permute.xlu0 %10094
        %10096 = vrot.lane.b32.xlu0 %v10017, 35
        %v10097 = vpop.permute.xlu0 %10096
        %10098 = vrot.lane.b32.xlu0 %v10018, 35
        %v10099 = vpop.permute.xlu0 %10098
        %10100 = vrot.lane.b32.xlu0 %v10019, 35
        %v10101 = vpop.permute.xlu0 %10100
        %10102 = vrot.lane.b32.xlu0 %v10020, 35
        %v10103 = vpop.permute.xlu0 %10102
        %10104 = vrot.lane.b32.xlu0 %v10021, 35
        %v10105 = vpop.permute.xlu0 %10104
        %10106 = vrot.lane.b32.xlu0 %v10022, 35
        %v10107 = vpop.permute.xlu0 %10106
        %10108 = vrot.lane.b32.xlu0 %v10023, 35
        %v10109 = vpop.permute.xlu0 %10108
        %10110 = vrot.lane.b32.xlu0 %v10024, 35
        %v10111 = vpop.permute.xlu0 %10110
        %10112 = vrot.lane.b32.xlu0 %v10025, 35
        %v10113 = vpop.permute.xlu0 %10112
        %10114 = vrot.lane.b32.xlu0 %v10026, 35
        %v10115 = vpop.permute.xlu0 %10114
        %10116 = vrot.lane.b32.xlu0 %v10027, 35
        %v10117 = vpop.permute.xlu0 %10116
        %10118 = vrot.lane.b32.xlu0 %v10028, 35
        %v10119 = vpop.permute.xlu0 %10118
        %10120 = vrot.lane.b32.xlu0 %v10029, 35
        %v10121 = vpop.permute.xlu0 %10120
        %10122 = vrot.lane.b32.xlu0 %v10030, 35
        %v10123 = vpop.permute.xlu0 %10122
        %10124 = vrot.lane.b32.xlu0 %v10031, 35
        %v10125 = vpop.permute.xlu0 %10124
        %10126 = vrot.lane.b32.xlu0 %v10032, 35
        %v10127 = vpop.permute.xlu0 %10126
        %10128 = vrot.lane.b32.xlu0 %v10033, 35
        %v10129 = vpop.permute.xlu0 %10128
        %v10130 = vsel %vm8504, %v10067, %v10069
        %v10131 = vsel %vm8504, %v10069, %v10071
        %v10132 = vsel %vm8504, %v10071, %v10073
        %v10133 = vsel %vm8504, %v10075, %v10077
        %v10134 = vsel %vm8504, %v10077, %v10079
        %v10135 = vsel %vm8504, %v10079, %v10081
        %v10136 = vsel %vm8504, %v10083, %v10085
        %v10137 = vsel %vm8504, %v10085, %v10087
        %v10138 = vsel %vm8504, %v10087, %v10089
        %v10139 = vsel %vm8504, %v10091, %v10093
        %v10140 = vsel %vm8504, %v10093, %v10095
        %v10141 = vsel %vm8504, %v10095, %v10097
        %v10142 = vsel %vm8504, %v10099, %v10101
        %v10143 = vsel %vm8504, %v10101, %v10103
        %v10144 = vsel %vm8504, %v10103, %v10105
        %v10145 = vsel %vm8504, %v10107, %v10109
        %v10146 = vsel %vm8504, %v10109, %v10111
        %v10147 = vsel %vm8504, %v10111, %v10113
        %v10148 = vsel %vm8504, %v10115, %v10117
        %v10149 = vsel %vm8504, %v10117, %v10119
        %v10150 = vsel %vm8504, %v10119, %v10121
        %v10151 = vsel %vm8504, %v10123, %v10125
        %v10152 = vsel %vm8504, %v10125, %v10127
        %v10153 = vsel %vm8504, %v10127, %v10129
        %v10178 = vadd.f32 %v9946, %v10130
        %v10179 = vadd.f32 %v9947, %v10131
        %v10180 = vadd.f32 %v9948, %v10132
        %v10181 = vadd.f32 %v9949, %v10133
        %v10182 = vadd.f32 %v9950, %v10134
        %v10183 = vadd.f32 %v9951, %v10135
        %v10184 = vadd.f32 %v9952, %v10136
        %v10185 = vadd.f32 %v9953, %v10137
        %v10186 = vadd.f32 %v9954, %v10138
        %v10187 = vadd.f32 %v9955, %v10139
        %v10188 = vadd.f32 %v9956, %v10140
        %v10189 = vadd.f32 %v9957, %v10141
        %v10190 = vadd.f32 %v9958, %v10142
        %v10191 = vadd.f32 %v9959, %v10143
        %v10192 = vadd.f32 %v9960, %v10144
        %v10193 = vadd.f32 %v9961, %v10145
        %v10194 = vadd.f32 %v9962, %v10146
        %v10195 = vadd.f32 %v9963, %v10147
        %v10196 = vadd.f32 %v9964, %v10148
        %v10197 = vadd.f32 %v9965, %v10149
        %v10198 = vadd.f32 %v9966, %v10150
        %v10199 = vadd.f32 %v9967, %v10151
        %v10200 = vadd.f32 %v9968, %v10152
        %v10201 = vadd.f32 %v9969, %v10153
        %10202 = vset.pattern.permute.xlu0 41
        %10203 = vperm.xlu0 %10202, %v1438
        %v10204 = vpop.permute.xlu0 %10203
        %10206 = vset.pattern.permute.xlu0 41
        %10207 = vperm.xlu0 %10206, %v1439
        %v10208 = vpop.permute.xlu0 %10207
        %10210 = vset.pattern.permute.xlu0 41
        %10211 = vperm.xlu0 %10210, %v1440
        %v10212 = vpop.permute.xlu0 %10211
        %10214 = vset.pattern.permute.xlu0 41
        %10215 = vperm.xlu0 %10214, %v1441
        %v10216 = vpop.permute.xlu0 %10215
        %10218 = vset.pattern.permute.xlu0 41
        %10219 = vperm.xlu0 %10218, %v1442
        %v10220 = vpop.permute.xlu0 %10219
        %10222 = vset.pattern.permute.xlu0 41
        %10223 = vperm.xlu0 %10222, %v1443
        %v10224 = vpop.permute.xlu0 %10223
        %10226 = vset.pattern.permute.xlu0 41
        %10227 = vperm.xlu0 %10226, %v1444
        %v10228 = vpop.permute.xlu0 %10227
        %10230 = vset.pattern.permute.xlu0 41
        %10231 = vperm.xlu0 %10230, %v1445
        %v10232 = vpop.permute.xlu0 %10231
        %v10234 = vmul.f32 %v10204, %v1153
        %v10235 = vmul.f32 %v10204, %v1155
        %v10236 = vmul.f32 %v10204, %v1242
        %v10237 = vmul.f32 %v10204, %v1244
        %v10238 = vmul.f32 %v10208, %v1159
        %v10239 = vmul.f32 %v10208, %v1161
        %v10240 = vmul.f32 %v10208, %v1248
        %v10241 = vmul.f32 %v10208, %v1250
        %v10242 = vmul.f32 %v10212, %v1165
        %v10243 = vmul.f32 %v10212, %v1167
        %v10244 = vmul.f32 %v10212, %v1254
        %v10245 = vmul.f32 %v10212, %v1256
        %v10246 = vmul.f32 %v10216, %v1171
        %v10247 = vmul.f32 %v10216, %v1173
        %v10248 = vmul.f32 %v10216, %v1260
        %v10249 = vmul.f32 %v10216, %v1262
        %v10250 = vmul.f32 %v10220, %v1409
        %v10251 = vmul.f32 %v10220, %v1413
        %v10252 = vmul.f32 %v10220, %v1417
        %v10253 = vmul.f32 %v10220, %v1421
        %v10254 = vmul.f32 %v10224, %v1409
        %v10255 = vmul.f32 %v10224, %v1413
        %v10256 = vmul.f32 %v10224, %v1417
        %v10257 = vmul.f32 %v10224, %v1421
        %v10258 = vmul.f32 %v10228, %v1425
        %v10259 = vmul.f32 %v10228, %v1429
        %v10260 = vmul.f32 %v10228, %v1433
        %v10261 = vmul.f32 %v10228, %v1437
        %v10262 = vmul.f32 %v10232, %v1425
        %v10263 = vmul.f32 %v10232, %v1429
        %v10264 = vmul.f32 %v10232, %v1433
        %v10265 = vmul.f32 %v10232, %v1437
        %10298 = vrot.lane.b32.xlu0 %v10234, 34
        %v10299 = vpop.permute.xlu0 %10298
        %10300 = vrot.lane.b32.xlu0 %v10235, 34
        %v10301 = vpop.permute.xlu0 %10300
        %10302 = vrot.lane.b32.xlu0 %v10236, 34
        %v10303 = vpop.permute.xlu0 %10302
        %10304 = vrot.lane.b32.xlu0 %v10237, 34
        %v10305 = vpop.permute.xlu0 %10304
        %10306 = vrot.lane.b32.xlu0 %v10238, 34
        %v10307 = vpop.permute.xlu0 %10306
        %10308 = vrot.lane.b32.xlu0 %v10239, 34
        %v10309 = vpop.permute.xlu0 %10308
        %10310 = vrot.lane.b32.xlu0 %v10240, 34
        %v10311 = vpop.permute.xlu0 %10310
        %10312 = vrot.lane.b32.xlu0 %v10241, 34
        %v10313 = vpop.permute.xlu0 %10312
        %10314 = vrot.lane.b32.xlu0 %v10242, 34
        %v10315 = vpop.permute.xlu0 %10314
        %10316 = vrot.lane.b32.xlu0 %v10243, 34
        %v10317 = vpop.permute.xlu0 %10316
        %10318 = vrot.lane.b32.xlu0 %v10244, 34
        %v10319 = vpop.permute.xlu0 %10318
        %10320 = vrot.lane.b32.xlu0 %v10245, 34
        %v10321 = vpop.permute.xlu0 %10320
        %10322 = vrot.lane.b32.xlu0 %v10246, 34
        %v10323 = vpop.permute.xlu0 %10322
        %10324 = vrot.lane.b32.xlu0 %v10247, 34
        %v10325 = vpop.permute.xlu0 %10324
        %10326 = vrot.lane.b32.xlu0 %v10248, 34
        %v10327 = vpop.permute.xlu0 %10326
        %10328 = vrot.lane.b32.xlu0 %v10249, 34
        %v10329 = vpop.permute.xlu0 %10328
        %10330 = vrot.lane.b32.xlu0 %v10250, 34
        %v10331 = vpop.permute.xlu0 %10330
        %10332 = vrot.lane.b32.xlu0 %v10251, 34
        %v10333 = vpop.permute.xlu0 %10332
        %10334 = vrot.lane.b32.xlu0 %v10252, 34
        %v10335 = vpop.permute.xlu0 %10334
        %10336 = vrot.lane.b32.xlu0 %v10253, 34
        %v10337 = vpop.permute.xlu0 %10336
        %10338 = vrot.lane.b32.xlu0 %v10254, 34
        %v10339 = vpop.permute.xlu0 %10338
        %10340 = vrot.lane.b32.xlu0 %v10255, 34
        %v10341 = vpop.permute.xlu0 %10340
        %10342 = vrot.lane.b32.xlu0 %v10256, 34
        %v10343 = vpop.permute.xlu0 %10342
        %10344 = vrot.lane.b32.xlu0 %v10257, 34
        %v10345 = vpop.permute.xlu0 %10344
        %10346 = vrot.lane.b32.xlu0 %v10258, 34
        %v10347 = vpop.permute.xlu0 %10346
        %10348 = vrot.lane.b32.xlu0 %v10259, 34
        %v10349 = vpop.permute.xlu0 %10348
        %10350 = vrot.lane.b32.xlu0 %v10260, 34
        %v10351 = vpop.permute.xlu0 %10350
        %10352 = vrot.lane.b32.xlu0 %v10261, 34
        %v10353 = vpop.permute.xlu0 %10352
        %10354 = vrot.lane.b32.xlu0 %v10262, 34
        %v10355 = vpop.permute.xlu0 %10354
        %10356 = vrot.lane.b32.xlu0 %v10263, 34
        %v10357 = vpop.permute.xlu0 %10356
        %10358 = vrot.lane.b32.xlu0 %v10264, 34
        %v10359 = vpop.permute.xlu0 %10358
        %10360 = vrot.lane.b32.xlu0 %v10265, 34
        %v10361 = vpop.permute.xlu0 %10360
        %v10362 = vsel %vm8737, %v10299, %v10301
        %v10363 = vsel %vm8737, %v10301, %v10303
        %v10364 = vsel %vm8737, %v10303, %v10305
        %v10365 = vsel %vm8737, %v10307, %v10309
        %v10366 = vsel %vm8737, %v10309, %v10311
        %v10367 = vsel %vm8737, %v10311, %v10313
        %v10368 = vsel %vm8737, %v10315, %v10317
        %v10369 = vsel %vm8737, %v10317, %v10319
        %v10370 = vsel %vm8737, %v10319, %v10321
        %v10371 = vsel %vm8737, %v10323, %v10325
        %v10372 = vsel %vm8737, %v10325, %v10327
        %v10373 = vsel %vm8737, %v10327, %v10329
        %v10374 = vsel %vm8737, %v10331, %v10333
        %v10375 = vsel %vm8737, %v10333, %v10335
        %v10376 = vsel %vm8737, %v10335, %v10337
        %v10377 = vsel %vm8737, %v10339, %v10341
        %v10378 = vsel %vm8737, %v10341, %v10343
        %v10379 = vsel %vm8737, %v10343, %v10345
        %v10380 = vsel %vm8737, %v10347, %v10349
        %v10381 = vsel %vm8737, %v10349, %v10351
        %v10382 = vsel %vm8737, %v10351, %v10353
        %v10383 = vsel %vm8737, %v10355, %v10357
        %v10384 = vsel %vm8737, %v10357, %v10359
        %v10385 = vsel %vm8737, %v10359, %v10361
        %v10410 = vadd.f32 %v10178, %v10362
        %v10411 = vadd.f32 %v10179, %v10363
        %v10412 = vadd.f32 %v10180, %v10364
        %v10413 = vadd.f32 %v10181, %v10365
        %v10414 = vadd.f32 %v10182, %v10366
        %v10415 = vadd.f32 %v10183, %v10367
        %v10416 = vadd.f32 %v10184, %v10368
        %v10417 = vadd.f32 %v10185, %v10369
        %v10418 = vadd.f32 %v10186, %v10370
        %v10419 = vadd.f32 %v10187, %v10371
        %v10420 = vadd.f32 %v10188, %v10372
        %v10421 = vadd.f32 %v10189, %v10373
        %v10422 = vadd.f32 %v10190, %v10374
        %v10423 = vadd.f32 %v10191, %v10375
        %v10424 = vadd.f32 %v10192, %v10376
        %v10425 = vadd.f32 %v10193, %v10377
        %v10426 = vadd.f32 %v10194, %v10378
        %v10427 = vadd.f32 %v10195, %v10379
        %v10428 = vadd.f32 %v10196, %v10380
        %v10429 = vadd.f32 %v10197, %v10381
        %v10430 = vadd.f32 %v10198, %v10382
        %v10431 = vadd.f32 %v10199, %v10383
        %v10432 = vadd.f32 %v10200, %v10384
        %v10433 = vadd.f32 %v10201, %v10385
        %10434 = vset.pattern.permute.xlu0 42
        %10435 = vperm.xlu0 %10434, %v1438
        %v10436 = vpop.permute.xlu0 %10435
        %10438 = vset.pattern.permute.xlu0 42
        %10439 = vperm.xlu0 %10438, %v1439
        %v10440 = vpop.permute.xlu0 %10439
        %10442 = vset.pattern.permute.xlu0 42
        %10443 = vperm.xlu0 %10442, %v1440
        %v10444 = vpop.permute.xlu0 %10443
        %10446 = vset.pattern.permute.xlu0 42
        %10447 = vperm.xlu0 %10446, %v1441
        %v10448 = vpop.permute.xlu0 %10447
        %10450 = vset.pattern.permute.xlu0 42
        %10451 = vperm.xlu0 %10450, %v1442
        %v10452 = vpop.permute.xlu0 %10451
        %10454 = vset.pattern.permute.xlu0 42
        %10455 = vperm.xlu0 %10454, %v1443
        %v10456 = vpop.permute.xlu0 %10455
        %10458 = vset.pattern.permute.xlu0 42
        %10459 = vperm.xlu0 %10458, %v1444
        %v10460 = vpop.permute.xlu0 %10459
        %10462 = vset.pattern.permute.xlu0 42
        %10463 = vperm.xlu0 %10462, %v1445
        %v10464 = vpop.permute.xlu0 %10463
        %v10466 = vmul.f32 %v10436, %v1155
        %v10467 = vmul.f32 %v10436, %v1242
        %v10468 = vmul.f32 %v10436, %v1244
        %v10469 = vmul.f32 %v10440, %v1161
        %v10470 = vmul.f32 %v10440, %v1248
        %v10471 = vmul.f32 %v10440, %v1250
        %v10472 = vmul.f32 %v10444, %v1167
        %v10473 = vmul.f32 %v10444, %v1254
        %v10474 = vmul.f32 %v10444, %v1256
        %v10475 = vmul.f32 %v10448, %v1173
        %v10476 = vmul.f32 %v10448, %v1260
        %v10477 = vmul.f32 %v10448, %v1262
        %v10478 = vmul.f32 %v10452, %v1413
        %v10479 = vmul.f32 %v10452, %v1417
        %v10480 = vmul.f32 %v10452, %v1421
        %v10481 = vmul.f32 %v10456, %v1413
        %v10482 = vmul.f32 %v10456, %v1417
        %v10483 = vmul.f32 %v10456, %v1421
        %v10484 = vmul.f32 %v10460, %v1429
        %v10485 = vmul.f32 %v10460, %v1433
        %v10486 = vmul.f32 %v10460, %v1437
        %v10487 = vmul.f32 %v10464, %v1429
        %v10488 = vmul.f32 %v10464, %v1433
        %v10489 = vmul.f32 %v10464, %v1437
        %10514 = vrot.lane.b32.xlu0 %v10466, 124
        %v10515 = vpop.permute.xlu0 %10514
        %10516 = vrot.lane.b32.xlu0 %v10467, 124
        %v10517 = vpop.permute.xlu0 %10516
        %10518 = vrot.lane.b32.xlu0 %v10468, 124
        %v10519 = vpop.permute.xlu0 %10518
        %10520 = vrot.lane.b32.xlu0 %v10469, 124
        %v10521 = vpop.permute.xlu0 %10520
        %10522 = vrot.lane.b32.xlu0 %v10470, 124
        %v10523 = vpop.permute.xlu0 %10522
        %10524 = vrot.lane.b32.xlu0 %v10471, 124
        %v10525 = vpop.permute.xlu0 %10524
        %10526 = vrot.lane.b32.xlu0 %v10472, 124
        %v10527 = vpop.permute.xlu0 %10526
        %10528 = vrot.lane.b32.xlu0 %v10473, 124
        %v10529 = vpop.permute.xlu0 %10528
        %10530 = vrot.lane.b32.xlu0 %v10474, 124
        %v10531 = vpop.permute.xlu0 %10530
        %10532 = vrot.lane.b32.xlu0 %v10475, 124
        %v10533 = vpop.permute.xlu0 %10532
        %10534 = vrot.lane.b32.xlu0 %v10476, 124
        %v10535 = vpop.permute.xlu0 %10534
        %10536 = vrot.lane.b32.xlu0 %v10477, 124
        %v10537 = vpop.permute.xlu0 %10536
        %10538 = vrot.lane.b32.xlu0 %v10478, 124
        %v10539 = vpop.permute.xlu0 %10538
        %10540 = vrot.lane.b32.xlu0 %v10479, 124
        %v10541 = vpop.permute.xlu0 %10540
        %10542 = vrot.lane.b32.xlu0 %v10480, 124
        %v10543 = vpop.permute.xlu0 %10542
        %10544 = vrot.lane.b32.xlu0 %v10481, 124
        %v10545 = vpop.permute.xlu0 %10544
        %10546 = vrot.lane.b32.xlu0 %v10482, 124
        %v10547 = vpop.permute.xlu0 %10546
        %10548 = vrot.lane.b32.xlu0 %v10483, 124
        %v10549 = vpop.permute.xlu0 %10548
        %10550 = vrot.lane.b32.xlu0 %v10484, 124
        %v10551 = vpop.permute.xlu0 %10550
        %10552 = vrot.lane.b32.xlu0 %v10485, 124
        %v10553 = vpop.permute.xlu0 %10552
        %10554 = vrot.lane.b32.xlu0 %v10486, 124
        %v10555 = vpop.permute.xlu0 %10554
        %10556 = vrot.lane.b32.xlu0 %v10487, 124
        %v10557 = vpop.permute.xlu0 %10556
        %10558 = vrot.lane.b32.xlu0 %v10488, 124
        %v10559 = vpop.permute.xlu0 %10558
        %10560 = vrot.lane.b32.xlu0 %v10489, 124
        %v10561 = vpop.permute.xlu0 %10560
        %v10562 = vsel %vm2241, %v10515, %v10517
        %v10563 = vsel %vm2241, %v10517, %v10519
        %v10564 = vsel %vm2241, %v10521, %v10523
        %v10565 = vsel %vm2241, %v10523, %v10525
        %v10566 = vsel %vm2241, %v10527, %v10529
        %v10567 = vsel %vm2241, %v10529, %v10531
        %v10568 = vsel %vm2241, %v10533, %v10535
        %v10569 = vsel %vm2241, %v10535, %v10537
        %v10570 = vsel %vm2241, %v10539, %v10541
        %v10571 = vsel %vm2241, %v10541, %v10543
        %v10572 = vsel %vm2241, %v10545, %v10547
        %v10573 = vsel %vm2241, %v10547, %v10549
        %v10574 = vsel %vm2241, %v10551, %v10553
        %v10575 = vsel %vm2241, %v10553, %v10555
        %v10576 = vsel %vm2241, %v10557, %v10559
        %v10577 = vsel %vm2241, %v10559, %v10561
        %v10602 = vadd.f32 %v8786, %v10562
        %v10603 = vadd.f32 %v8787, %v10563
        %v10604 = vadd.f32 %v8788, %v10519
        %v10605 = vadd.f32 %v8789, %v10564
        %v10606 = vadd.f32 %v8790, %v10565
        %v10607 = vadd.f32 %v8791, %v10525
        %v10608 = vadd.f32 %v8792, %v10566
        %v10609 = vadd.f32 %v8793, %v10567
        %v10610 = vadd.f32 %v8794, %v10531
        %v10611 = vadd.f32 %v8795, %v10568
        %v10612 = vadd.f32 %v8796, %v10569
        %v10613 = vadd.f32 %v8797, %v10537
        %v10614 = vadd.f32 %v8798, %v10570
        %v10615 = vadd.f32 %v8799, %v10571
        %v10616 = vadd.f32 %v8800, %v10543
        %v10617 = vadd.f32 %v8801, %v10572
        %v10618 = vadd.f32 %v8802, %v10573
        %v10619 = vadd.f32 %v8803, %v10549
        %v10620 = vadd.f32 %v8804, %v10574
        %v10621 = vadd.f32 %v8805, %v10575
        %v10622 = vadd.f32 %v8806, %v10555
        %v10623 = vadd.f32 %v8807, %v10576
        %v10624 = vadd.f32 %v8808, %v10577
        %v10625 = vadd.f32 %v8809, %v10561
        %10626 = vset.pattern.permute.xlu0 43
        %10627 = vperm.xlu0 %10626, %v1438
        %v10628 = vpop.permute.xlu0 %10627
        %10630 = vset.pattern.permute.xlu0 43
        %10631 = vperm.xlu0 %10630, %v1439
        %v10632 = vpop.permute.xlu0 %10631
        %10634 = vset.pattern.permute.xlu0 43
        %10635 = vperm.xlu0 %10634, %v1440
        %v10636 = vpop.permute.xlu0 %10635
        %10638 = vset.pattern.permute.xlu0 43
        %10639 = vperm.xlu0 %10638, %v1441
        %v10640 = vpop.permute.xlu0 %10639
        %10642 = vset.pattern.permute.xlu0 43
        %10643 = vperm.xlu0 %10642, %v1442
        %v10644 = vpop.permute.xlu0 %10643
        %10646 = vset.pattern.permute.xlu0 43
        %10647 = vperm.xlu0 %10646, %v1443
        %v10648 = vpop.permute.xlu0 %10647
        %10650 = vset.pattern.permute.xlu0 43
        %10651 = vperm.xlu0 %10650, %v1444
        %v10652 = vpop.permute.xlu0 %10651
        %10654 = vset.pattern.permute.xlu0 43
        %10655 = vperm.xlu0 %10654, %v1445
        %v10656 = vpop.permute.xlu0 %10655
        %v10658 = vmul.f32 %v10628, %v1155
        %v10659 = vmul.f32 %v10628, %v1242
        %v10660 = vmul.f32 %v10628, %v1244
        %v10661 = vmul.f32 %v10632, %v1161
        %v10662 = vmul.f32 %v10632, %v1248
        %v10663 = vmul.f32 %v10632, %v1250
        %v10664 = vmul.f32 %v10636, %v1167
        %v10665 = vmul.f32 %v10636, %v1254
        %v10666 = vmul.f32 %v10636, %v1256
        %v10667 = vmul.f32 %v10640, %v1173
        %v10668 = vmul.f32 %v10640, %v1260
        %v10669 = vmul.f32 %v10640, %v1262
        %v10670 = vmul.f32 %v10644, %v1413
        %v10671 = vmul.f32 %v10644, %v1417
        %v10672 = vmul.f32 %v10644, %v1421
        %v10673 = vmul.f32 %v10648, %v1413
        %v10674 = vmul.f32 %v10648, %v1417
        %v10675 = vmul.f32 %v10648, %v1421
        %v10676 = vmul.f32 %v10652, %v1429
        %v10677 = vmul.f32 %v10652, %v1433
        %v10678 = vmul.f32 %v10652, %v1437
        %v10679 = vmul.f32 %v10656, %v1429
        %v10680 = vmul.f32 %v10656, %v1433
        %v10681 = vmul.f32 %v10656, %v1437
        %10706 = vrot.lane.b32.xlu0 %v10658, 123
        %v10707 = vpop.permute.xlu0 %10706
        %10708 = vrot.lane.b32.xlu0 %v10659, 123
        %v10709 = vpop.permute.xlu0 %10708
        %10710 = vrot.lane.b32.xlu0 %v10660, 123
        %v10711 = vpop.permute.xlu0 %10710
        %10712 = vrot.lane.b32.xlu0 %v10661, 123
        %v10713 = vpop.permute.xlu0 %10712
        %10714 = vrot.lane.b32.xlu0 %v10662, 123
        %v10715 = vpop.permute.xlu0 %10714
        %10716 = vrot.lane.b32.xlu0 %v10663, 123
        %v10717 = vpop.permute.xlu0 %10716
        %10718 = vrot.lane.b32.xlu0 %v10664, 123
        %v10719 = vpop.permute.xlu0 %10718
        %10720 = vrot.lane.b32.xlu0 %v10665, 123
        %v10721 = vpop.permute.xlu0 %10720
        %10722 = vrot.lane.b32.xlu0 %v10666, 123
        %v10723 = vpop.permute.xlu0 %10722
        %10724 = vrot.lane.b32.xlu0 %v10667, 123
        %v10725 = vpop.permute.xlu0 %10724
        %10726 = vrot.lane.b32.xlu0 %v10668, 123
        %v10727 = vpop.permute.xlu0 %10726
        %10728 = vrot.lane.b32.xlu0 %v10669, 123
        %v10729 = vpop.permute.xlu0 %10728
        %10730 = vrot.lane.b32.xlu0 %v10670, 123
        %v10731 = vpop.permute.xlu0 %10730
        %10732 = vrot.lane.b32.xlu0 %v10671, 123
        %v10733 = vpop.permute.xlu0 %10732
        %10734 = vrot.lane.b32.xlu0 %v10672, 123
        %v10735 = vpop.permute.xlu0 %10734
        %10736 = vrot.lane.b32.xlu0 %v10673, 123
        %v10737 = vpop.permute.xlu0 %10736
        %10738 = vrot.lane.b32.xlu0 %v10674, 123
        %v10739 = vpop.permute.xlu0 %10738
        %10740 = vrot.lane.b32.xlu0 %v10675, 123
        %v10741 = vpop.permute.xlu0 %10740
        %10742 = vrot.lane.b32.xlu0 %v10676, 123
        %v10743 = vpop.permute.xlu0 %10742
        %10744 = vrot.lane.b32.xlu0 %v10677, 123
        %v10745 = vpop.permute.xlu0 %10744
        %10746 = vrot.lane.b32.xlu0 %v10678, 123
        %v10747 = vpop.permute.xlu0 %10746
        %10748 = vrot.lane.b32.xlu0 %v10679, 123
        %v10749 = vpop.permute.xlu0 %10748
        %10750 = vrot.lane.b32.xlu0 %v10680, 123
        %v10751 = vpop.permute.xlu0 %10750
        %10752 = vrot.lane.b32.xlu0 %v10681, 123
        %v10753 = vpop.permute.xlu0 %10752
        %v10754 = vsel %vm2434, %v10707, %v10709
        %v10755 = vsel %vm2434, %v10709, %v10711
        %v10756 = vsel %vm2434, %v10713, %v10715
        %v10757 = vsel %vm2434, %v10715, %v10717
        %v10758 = vsel %vm2434, %v10719, %v10721
        %v10759 = vsel %vm2434, %v10721, %v10723
        %v10760 = vsel %vm2434, %v10725, %v10727
        %v10761 = vsel %vm2434, %v10727, %v10729
        %v10762 = vsel %vm2434, %v10731, %v10733
        %v10763 = vsel %vm2434, %v10733, %v10735
        %v10764 = vsel %vm2434, %v10737, %v10739
        %v10765 = vsel %vm2434, %v10739, %v10741
        %v10766 = vsel %vm2434, %v10743, %v10745
        %v10767 = vsel %vm2434, %v10745, %v10747
        %v10768 = vsel %vm2434, %v10749, %v10751
        %v10769 = vsel %vm2434, %v10751, %v10753
        %v10794 = vadd.f32 %v10602, %v10754
        %v10795 = vadd.f32 %v10603, %v10755
        %v10796 = vadd.f32 %v10604, %v10711
        %v10797 = vadd.f32 %v10605, %v10756
        %v10798 = vadd.f32 %v10606, %v10757
        %v10799 = vadd.f32 %v10607, %v10717
        %v10800 = vadd.f32 %v10608, %v10758
        %v10801 = vadd.f32 %v10609, %v10759
        %v10802 = vadd.f32 %v10610, %v10723
        %v10803 = vadd.f32 %v10611, %v10760
        %v10804 = vadd.f32 %v10612, %v10761
        %v10805 = vadd.f32 %v10613, %v10729
        %v10806 = vadd.f32 %v10614, %v10762
        %v10807 = vadd.f32 %v10615, %v10763
        %v10808 = vadd.f32 %v10616, %v10735
        %v10809 = vadd.f32 %v10617, %v10764
        %v10810 = vadd.f32 %v10618, %v10765
        %v10811 = vadd.f32 %v10619, %v10741
        %v10812 = vadd.f32 %v10620, %v10766
        %v10813 = vadd.f32 %v10621, %v10767
        %v10814 = vadd.f32 %v10622, %v10747
        %v10815 = vadd.f32 %v10623, %v10768
        %v10816 = vadd.f32 %v10624, %v10769
        %v10817 = vadd.f32 %v10625, %v10753
        %10818 = vset.pattern.permute.xlu0 44
        %10819 = vperm.xlu0 %10818, %v1438
        %v10820 = vpop.permute.xlu0 %10819
        %10822 = vset.pattern.permute.xlu0 44
        %10823 = vperm.xlu0 %10822, %v1439
        %v10824 = vpop.permute.xlu0 %10823
        %10826 = vset.pattern.permute.xlu0 44
        %10827 = vperm.xlu0 %10826, %v1440
        %v10828 = vpop.permute.xlu0 %10827
        %10830 = vset.pattern.permute.xlu0 44
        %10831 = vperm.xlu0 %10830, %v1441
        %v10832 = vpop.permute.xlu0 %10831
        %10834 = vset.pattern.permute.xlu0 44
        %10835 = vperm.xlu0 %10834, %v1442
        %v10836 = vpop.permute.xlu0 %10835
        %10838 = vset.pattern.permute.xlu0 44
        %10839 = vperm.xlu0 %10838, %v1443
        %v10840 = vpop.permute.xlu0 %10839
        %10842 = vset.pattern.permute.xlu0 44
        %10843 = vperm.xlu0 %10842, %v1444
        %v10844 = vpop.permute.xlu0 %10843
        %10846 = vset.pattern.permute.xlu0 44
        %10847 = vperm.xlu0 %10846, %v1445
        %v10848 = vpop.permute.xlu0 %10847
        %v10850 = vmul.f32 %v10820, %v1155
        %v10851 = vmul.f32 %v10820, %v1242
        %v10852 = vmul.f32 %v10820, %v1244
        %v10853 = vmul.f32 %v10824, %v1161
        %v10854 = vmul.f32 %v10824, %v1248
        %v10855 = vmul.f32 %v10824, %v1250
        %v10856 = vmul.f32 %v10828, %v1167
        %v10857 = vmul.f32 %v10828, %v1254
        %v10858 = vmul.f32 %v10828, %v1256
        %v10859 = vmul.f32 %v10832, %v1173
        %v10860 = vmul.f32 %v10832, %v1260
        %v10861 = vmul.f32 %v10832, %v1262
        %v10862 = vmul.f32 %v10836, %v1413
        %v10863 = vmul.f32 %v10836, %v1417
        %v10864 = vmul.f32 %v10836, %v1421
        %v10865 = vmul.f32 %v10840, %v1413
        %v10866 = vmul.f32 %v10840, %v1417
        %v10867 = vmul.f32 %v10840, %v1421
        %v10868 = vmul.f32 %v10844, %v1429
        %v10869 = vmul.f32 %v10844, %v1433
        %v10870 = vmul.f32 %v10844, %v1437
        %v10871 = vmul.f32 %v10848, %v1429
        %v10872 = vmul.f32 %v10848, %v1433
        %v10873 = vmul.f32 %v10848, %v1437
        %10898 = vrot.lane.b32.xlu0 %v10850, 122
        %v10899 = vpop.permute.xlu0 %10898
        %10900 = vrot.lane.b32.xlu0 %v10851, 122
        %v10901 = vpop.permute.xlu0 %10900
        %10902 = vrot.lane.b32.xlu0 %v10852, 122
        %v10903 = vpop.permute.xlu0 %10902
        %10904 = vrot.lane.b32.xlu0 %v10853, 122
        %v10905 = vpop.permute.xlu0 %10904
        %10906 = vrot.lane.b32.xlu0 %v10854, 122
        %v10907 = vpop.permute.xlu0 %10906
        %10908 = vrot.lane.b32.xlu0 %v10855, 122
        %v10909 = vpop.permute.xlu0 %10908
        %10910 = vrot.lane.b32.xlu0 %v10856, 122
        %v10911 = vpop.permute.xlu0 %10910
        %10912 = vrot.lane.b32.xlu0 %v10857, 122
        %v10913 = vpop.permute.xlu0 %10912
        %10914 = vrot.lane.b32.xlu0 %v10858, 122
        %v10915 = vpop.permute.xlu0 %10914
        %10916 = vrot.lane.b32.xlu0 %v10859, 122
        %v10917 = vpop.permute.xlu0 %10916
        %10918 = vrot.lane.b32.xlu0 %v10860, 122
        %v10919 = vpop.permute.xlu0 %10918
        %10920 = vrot.lane.b32.xlu0 %v10861, 122
        %v10921 = vpop.permute.xlu0 %10920
        %10922 = vrot.lane.b32.xlu0 %v10862, 122
        %v10923 = vpop.permute.xlu0 %10922
        %10924 = vrot.lane.b32.xlu0 %v10863, 122
        %v10925 = vpop.permute.xlu0 %10924
        %10926 = vrot.lane.b32.xlu0 %v10864, 122
        %v10927 = vpop.permute.xlu0 %10926
        %10928 = vrot.lane.b32.xlu0 %v10865, 122
        %v10929 = vpop.permute.xlu0 %10928
        %10930 = vrot.lane.b32.xlu0 %v10866, 122
        %v10931 = vpop.permute.xlu0 %10930
        %10932 = vrot.lane.b32.xlu0 %v10867, 122
        %v10933 = vpop.permute.xlu0 %10932
        %10934 = vrot.lane.b32.xlu0 %v10868, 122
        %v10935 = vpop.permute.xlu0 %10934
        %10936 = vrot.lane.b32.xlu0 %v10869, 122
        %v10937 = vpop.permute.xlu0 %10936
        %10938 = vrot.lane.b32.xlu0 %v10870, 122
        %v10939 = vpop.permute.xlu0 %10938
        %10940 = vrot.lane.b32.xlu0 %v10871, 122
        %v10941 = vpop.permute.xlu0 %10940
        %10942 = vrot.lane.b32.xlu0 %v10872, 122
        %v10943 = vpop.permute.xlu0 %10942
        %10944 = vrot.lane.b32.xlu0 %v10873, 122
        %v10945 = vpop.permute.xlu0 %10944
        %v10946 = vsel %vm2627, %v10899, %v10901
        %v10947 = vsel %vm2627, %v10901, %v10903
        %v10948 = vsel %vm2627, %v10905, %v10907
        %v10949 = vsel %vm2627, %v10907, %v10909
        %v10950 = vsel %vm2627, %v10911, %v10913
        %v10951 = vsel %vm2627, %v10913, %v10915
        %v10952 = vsel %vm2627, %v10917, %v10919
        %v10953 = vsel %vm2627, %v10919, %v10921
        %v10954 = vsel %vm2627, %v10923, %v10925
        %v10955 = vsel %vm2627, %v10925, %v10927
        %v10956 = vsel %vm2627, %v10929, %v10931
        %v10957 = vsel %vm2627, %v10931, %v10933
        %v10958 = vsel %vm2627, %v10935, %v10937
        %v10959 = vsel %vm2627, %v10937, %v10939
        %v10960 = vsel %vm2627, %v10941, %v10943
        %v10961 = vsel %vm2627, %v10943, %v10945
        %v10986 = vadd.f32 %v10794, %v10946
        %v10987 = vadd.f32 %v10795, %v10947
        %v10988 = vadd.f32 %v10796, %v10903
        %v10989 = vadd.f32 %v10797, %v10948
        %v10990 = vadd.f32 %v10798, %v10949
        %v10991 = vadd.f32 %v10799, %v10909
        %v10992 = vadd.f32 %v10800, %v10950
        %v10993 = vadd.f32 %v10801, %v10951
        %v10994 = vadd.f32 %v10802, %v10915
        %v10995 = vadd.f32 %v10803, %v10952
        %v10996 = vadd.f32 %v10804, %v10953
        %v10997 = vadd.f32 %v10805, %v10921
        %v10998 = vadd.f32 %v10806, %v10954
        %v10999 = vadd.f32 %v10807, %v10955
        %v11000 = vadd.f32 %v10808, %v10927
        %v11001 = vadd.f32 %v10809, %v10956
        %v11002 = vadd.f32 %v10810, %v10957
        %v11003 = vadd.f32 %v10811, %v10933
        %v11004 = vadd.f32 %v10812, %v10958
        %v11005 = vadd.f32 %v10813, %v10959
        %v11006 = vadd.f32 %v10814, %v10939
        %v11007 = vadd.f32 %v10815, %v10960
        %v11008 = vadd.f32 %v10816, %v10961
        %v11009 = vadd.f32 %v10817, %v10945
        %11010 = vset.pattern.permute.xlu0 45
        %11011 = vperm.xlu0 %11010, %v1438
        %v11012 = vpop.permute.xlu0 %11011
        %11014 = vset.pattern.permute.xlu0 45
        %11015 = vperm.xlu0 %11014, %v1439
        %v11016 = vpop.permute.xlu0 %11015
        %11018 = vset.pattern.permute.xlu0 45
        %11019 = vperm.xlu0 %11018, %v1440
        %v11020 = vpop.permute.xlu0 %11019
        %11022 = vset.pattern.permute.xlu0 45
        %11023 = vperm.xlu0 %11022, %v1441
        %v11024 = vpop.permute.xlu0 %11023
        %11026 = vset.pattern.permute.xlu0 45
        %11027 = vperm.xlu0 %11026, %v1442
        %v11028 = vpop.permute.xlu0 %11027
        %11030 = vset.pattern.permute.xlu0 45
        %11031 = vperm.xlu0 %11030, %v1443
        %v11032 = vpop.permute.xlu0 %11031
        %11034 = vset.pattern.permute.xlu0 45
        %11035 = vperm.xlu0 %11034, %v1444
        %v11036 = vpop.permute.xlu0 %11035
        %11038 = vset.pattern.permute.xlu0 45
        %11039 = vperm.xlu0 %11038, %v1445
        %v11040 = vpop.permute.xlu0 %11039
        %v11042 = vmul.f32 %v11012, %v1155
        %v11043 = vmul.f32 %v11012, %v1242
        %v11044 = vmul.f32 %v11012, %v1244
        %v11045 = vmul.f32 %v11016, %v1161
        %v11046 = vmul.f32 %v11016, %v1248
        %v11047 = vmul.f32 %v11016, %v1250
        %v11048 = vmul.f32 %v11020, %v1167
        %v11049 = vmul.f32 %v11020, %v1254
        %v11050 = vmul.f32 %v11020, %v1256
        %v11051 = vmul.f32 %v11024, %v1173
        %v11052 = vmul.f32 %v11024, %v1260
        %v11053 = vmul.f32 %v11024, %v1262
        %v11054 = vmul.f32 %v11028, %v1413
        %v11055 = vmul.f32 %v11028, %v1417
        %v11056 = vmul.f32 %v11028, %v1421
        %v11057 = vmul.f32 %v11032, %v1413
        %v11058 = vmul.f32 %v11032, %v1417
        %v11059 = vmul.f32 %v11032, %v1421
        %v11060 = vmul.f32 %v11036, %v1429
        %v11061 = vmul.f32 %v11036, %v1433
        %v11062 = vmul.f32 %v11036, %v1437
        %v11063 = vmul.f32 %v11040, %v1429
        %v11064 = vmul.f32 %v11040, %v1433
        %v11065 = vmul.f32 %v11040, %v1437
        %11090 = vrot.lane.b32.xlu0 %v11042, 121
        %v11091 = vpop.permute.xlu0 %11090
        %11092 = vrot.lane.b32.xlu0 %v11043, 121
        %v11093 = vpop.permute.xlu0 %11092
        %11094 = vrot.lane.b32.xlu0 %v11044, 121
        %v11095 = vpop.permute.xlu0 %11094
        %11096 = vrot.lane.b32.xlu0 %v11045, 121
        %v11097 = vpop.permute.xlu0 %11096
        %11098 = vrot.lane.b32.xlu0 %v11046, 121
        %v11099 = vpop.permute.xlu0 %11098
        %11100 = vrot.lane.b32.xlu0 %v11047, 121
        %v11101 = vpop.permute.xlu0 %11100
        %11102 = vrot.lane.b32.xlu0 %v11048, 121
        %v11103 = vpop.permute.xlu0 %11102
        %11104 = vrot.lane.b32.xlu0 %v11049, 121
        %v11105 = vpop.permute.xlu0 %11104
        %11106 = vrot.lane.b32.xlu0 %v11050, 121
        %v11107 = vpop.permute.xlu0 %11106
        %11108 = vrot.lane.b32.xlu0 %v11051, 121
        %v11109 = vpop.permute.xlu0 %11108
        %11110 = vrot.lane.b32.xlu0 %v11052, 121
        %v11111 = vpop.permute.xlu0 %11110
        %11112 = vrot.lane.b32.xlu0 %v11053, 121
        %v11113 = vpop.permute.xlu0 %11112
        %11114 = vrot.lane.b32.xlu0 %v11054, 121
        %v11115 = vpop.permute.xlu0 %11114
        %11116 = vrot.lane.b32.xlu0 %v11055, 121
        %v11117 = vpop.permute.xlu0 %11116
        %11118 = vrot.lane.b32.xlu0 %v11056, 121
        %v11119 = vpop.permute.xlu0 %11118
        %11120 = vrot.lane.b32.xlu0 %v11057, 121
        %v11121 = vpop.permute.xlu0 %11120
        %11122 = vrot.lane.b32.xlu0 %v11058, 121
        %v11123 = vpop.permute.xlu0 %11122
        %11124 = vrot.lane.b32.xlu0 %v11059, 121
        %v11125 = vpop.permute.xlu0 %11124
        %11126 = vrot.lane.b32.xlu0 %v11060, 121
        %v11127 = vpop.permute.xlu0 %11126
        %11128 = vrot.lane.b32.xlu0 %v11061, 121
        %v11129 = vpop.permute.xlu0 %11128
        %11130 = vrot.lane.b32.xlu0 %v11062, 121
        %v11131 = vpop.permute.xlu0 %11130
        %11132 = vrot.lane.b32.xlu0 %v11063, 121
        %v11133 = vpop.permute.xlu0 %11132
        %11134 = vrot.lane.b32.xlu0 %v11064, 121
        %v11135 = vpop.permute.xlu0 %11134
        %11136 = vrot.lane.b32.xlu0 %v11065, 121
        %v11137 = vpop.permute.xlu0 %11136
        %vm11138 = vcmask 990208
        %v11139 = vsel %vm11138, %v11091, %v11093
        %v11140 = vsel %vm11138, %v11093, %v11095
        %v11141 = vsel %vm11138, %v11097, %v11099
        %v11142 = vsel %vm11138, %v11099, %v11101
        %v11143 = vsel %vm11138, %v11103, %v11105
        %v11144 = vsel %vm11138, %v11105, %v11107
        %v11145 = vsel %vm11138, %v11109, %v11111
        %v11146 = vsel %vm11138, %v11111, %v11113
        %v11147 = vsel %vm11138, %v11115, %v11117
        %v11148 = vsel %vm11138, %v11117, %v11119
        %v11149 = vsel %vm11138, %v11121, %v11123
        %v11150 = vsel %vm11138, %v11123, %v11125
        %v11151 = vsel %vm11138, %v11127, %v11129
        %v11152 = vsel %vm11138, %v11129, %v11131
        %v11153 = vsel %vm11138, %v11133, %v11135
        %v11154 = vsel %vm11138, %v11135, %v11137
        %v11179 = vadd.f32 %v10986, %v11139
        %v11180 = vadd.f32 %v10987, %v11140
        %v11181 = vadd.f32 %v10988, %v11095
        %v11182 = vadd.f32 %v10989, %v11141
        %v11183 = vadd.f32 %v10990, %v11142
        %v11184 = vadd.f32 %v10991, %v11101
        %v11185 = vadd.f32 %v10992, %v11143
        %v11186 = vadd.f32 %v10993, %v11144
        %v11187 = vadd.f32 %v10994, %v11107
        %v11188 = vadd.f32 %v10995, %v11145
        %v11189 = vadd.f32 %v10996, %v11146
        %v11190 = vadd.f32 %v10997, %v11113
        %v11191 = vadd.f32 %v10998, %v11147
        %v11192 = vadd.f32 %v10999, %v11148
        %v11193 = vadd.f32 %v11000, %v11119
        %v11194 = vadd.f32 %v11001, %v11149
        %v11195 = vadd.f32 %v11002, %v11150
        %v11196 = vadd.f32 %v11003, %v11125
        %v11197 = vadd.f32 %v11004, %v11151
        %v11198 = vadd.f32 %v11005, %v11152
        %v11199 = vadd.f32 %v11006, %v11131
        %v11200 = vadd.f32 %v11007, %v11153
        %v11201 = vadd.f32 %v11008, %v11154
        %v11202 = vadd.f32 %v11009, %v11137
        %11203 = vset.pattern.permute.xlu0 46
        %11204 = vperm.xlu0 %11203, %v1438
        %v11205 = vpop.permute.xlu0 %11204
        %11207 = vset.pattern.permute.xlu0 46
        %11208 = vperm.xlu0 %11207, %v1439
        %v11209 = vpop.permute.xlu0 %11208
        %11211 = vset.pattern.permute.xlu0 46
        %11212 = vperm.xlu0 %11211, %v1440
        %v11213 = vpop.permute.xlu0 %11212
        %11215 = vset.pattern.permute.xlu0 46
        %11216 = vperm.xlu0 %11215, %v1441
        %v11217 = vpop.permute.xlu0 %11216
        %11219 = vset.pattern.permute.xlu0 46
        %11220 = vperm.xlu0 %11219, %v1442
        %v11221 = vpop.permute.xlu0 %11220
        %11223 = vset.pattern.permute.xlu0 46
        %11224 = vperm.xlu0 %11223, %v1443
        %v11225 = vpop.permute.xlu0 %11224
        %11227 = vset.pattern.permute.xlu0 46
        %11228 = vperm.xlu0 %11227, %v1444
        %v11229 = vpop.permute.xlu0 %11228
        %11231 = vset.pattern.permute.xlu0 46
        %11232 = vperm.xlu0 %11231, %v1445
        %v11233 = vpop.permute.xlu0 %11232
        %v11235 = vmul.f32 %v11205, %v1155
        %v11236 = vmul.f32 %v11205, %v1242
        %v11237 = vmul.f32 %v11205, %v1244
        %v11238 = vmul.f32 %v11209, %v1161
        %v11239 = vmul.f32 %v11209, %v1248
        %v11240 = vmul.f32 %v11209, %v1250
        %v11241 = vmul.f32 %v11213, %v1167
        %v11242 = vmul.f32 %v11213, %v1254
        %v11243 = vmul.f32 %v11213, %v1256
        %v11244 = vmul.f32 %v11217, %v1173
        %v11245 = vmul.f32 %v11217, %v1260
        %v11246 = vmul.f32 %v11217, %v1262
        %v11247 = vmul.f32 %v11221, %v1413
        %v11248 = vmul.f32 %v11221, %v1417
        %v11249 = vmul.f32 %v11221, %v1421
        %v11250 = vmul.f32 %v11225, %v1413
        %v11251 = vmul.f32 %v11225, %v1417
        %v11252 = vmul.f32 %v11225, %v1421
        %v11253 = vmul.f32 %v11229, %v1429
        %v11254 = vmul.f32 %v11229, %v1433
        %v11255 = vmul.f32 %v11229, %v1437
        %v11256 = vmul.f32 %v11233, %v1429
        %v11257 = vmul.f32 %v11233, %v1433
        %v11258 = vmul.f32 %v11233, %v1437
        %11283 = vrot.lane.b32.xlu0 %v11235, 120
        %v11284 = vpop.permute.xlu0 %11283
        %11285 = vrot.lane.b32.xlu0 %v11236, 120
        %v11286 = vpop.permute.xlu0 %11285
        %11287 = vrot.lane.b32.xlu0 %v11237, 120
        %v11288 = vpop.permute.xlu0 %11287
        %11289 = vrot.lane.b32.xlu0 %v11238, 120
        %v11290 = vpop.permute.xlu0 %11289
        %11291 = vrot.lane.b32.xlu0 %v11239, 120
        %v11292 = vpop.permute.xlu0 %11291
        %11293 = vrot.lane.b32.xlu0 %v11240, 120
        %v11294 = vpop.permute.xlu0 %11293
        %11295 = vrot.lane.b32.xlu0 %v11241, 120
        %v11296 = vpop.permute.xlu0 %11295
        %11297 = vrot.lane.b32.xlu0 %v11242, 120
        %v11298 = vpop.permute.xlu0 %11297
        %11299 = vrot.lane.b32.xlu0 %v11243, 120
        %v11300 = vpop.permute.xlu0 %11299
        %11301 = vrot.lane.b32.xlu0 %v11244, 120
        %v11302 = vpop.permute.xlu0 %11301
        %11303 = vrot.lane.b32.xlu0 %v11245, 120
        %v11304 = vpop.permute.xlu0 %11303
        %11305 = vrot.lane.b32.xlu0 %v11246, 120
        %v11306 = vpop.permute.xlu0 %11305
        %11307 = vrot.lane.b32.xlu0 %v11247, 120
        %v11308 = vpop.permute.xlu0 %11307
        %11309 = vrot.lane.b32.xlu0 %v11248, 120
        %v11310 = vpop.permute.xlu0 %11309
        %11311 = vrot.lane.b32.xlu0 %v11249, 120
        %v11312 = vpop.permute.xlu0 %11311
        %11313 = vrot.lane.b32.xlu0 %v11250, 120
        %v11314 = vpop.permute.xlu0 %11313
        %11315 = vrot.lane.b32.xlu0 %v11251, 120
        %v11316 = vpop.permute.xlu0 %11315
        %11317 = vrot.lane.b32.xlu0 %v11252, 120
        %v11318 = vpop.permute.xlu0 %11317
        %11319 = vrot.lane.b32.xlu0 %v11253, 120
        %v11320 = vpop.permute.xlu0 %11319
        %11321 = vrot.lane.b32.xlu0 %v11254, 120
        %v11322 = vpop.permute.xlu0 %11321
        %11323 = vrot.lane.b32.xlu0 %v11255, 120
        %v11324 = vpop.permute.xlu0 %11323
        %11325 = vrot.lane.b32.xlu0 %v11256, 120
        %v11326 = vpop.permute.xlu0 %11325
        %11327 = vrot.lane.b32.xlu0 %v11257, 120
        %v11328 = vpop.permute.xlu0 %11327
        %11329 = vrot.lane.b32.xlu0 %v11258, 120
        %v11330 = vpop.permute.xlu0 %11329
        %vm11331 = vcmask 982016
        %v11332 = vsel %vm11331, %v11284, %v11286
        %v11333 = vsel %vm11331, %v11286, %v11288
        %v11334 = vsel %vm11331, %v11290, %v11292
        %v11335 = vsel %vm11331, %v11292, %v11294
        %v11336 = vsel %vm11331, %v11296, %v11298
        %v11337 = vsel %vm11331, %v11298, %v11300
        %v11338 = vsel %vm11331, %v11302, %v11304
        %v11339 = vsel %vm11331, %v11304, %v11306
        %v11340 = vsel %vm11331, %v11308, %v11310
        %v11341 = vsel %vm11331, %v11310, %v11312
        %v11342 = vsel %vm11331, %v11314, %v11316
        %v11343 = vsel %vm11331, %v11316, %v11318
        %v11344 = vsel %vm11331, %v11320, %v11322
        %v11345 = vsel %vm11331, %v11322, %v11324
        %v11346 = vsel %vm11331, %v11326, %v11328
        %v11347 = vsel %vm11331, %v11328, %v11330
        %v11372 = vadd.f32 %v11179, %v11332
        %v11373 = vadd.f32 %v11180, %v11333
        %v11374 = vadd.f32 %v11181, %v11288
        %v11375 = vadd.f32 %v11182, %v11334
        %v11376 = vadd.f32 %v11183, %v11335
        %v11377 = vadd.f32 %v11184, %v11294
        %v11378 = vadd.f32 %v11185, %v11336
        %v11379 = vadd.f32 %v11186, %v11337
        %v11380 = vadd.f32 %v11187, %v11300
        %v11381 = vadd.f32 %v11188, %v11338
        %v11382 = vadd.f32 %v11189, %v11339
        %v11383 = vadd.f32 %v11190, %v11306
        %v11384 = vadd.f32 %v11191, %v11340
        %v11385 = vadd.f32 %v11192, %v11341
        %v11386 = vadd.f32 %v11193, %v11312
        %v11387 = vadd.f32 %v11194, %v11342
        %v11388 = vadd.f32 %v11195, %v11343
        %v11389 = vadd.f32 %v11196, %v11318
        %v11390 = vadd.f32 %v11197, %v11344
        %v11391 = vadd.f32 %v11198, %v11345
        %v11392 = vadd.f32 %v11199, %v11324
        %v11393 = vadd.f32 %v11200, %v11346
        %v11394 = vadd.f32 %v11201, %v11347
        %v11395 = vadd.f32 %v11202, %v11330
        %11396 = vset.pattern.permute.xlu0 47
        %11397 = vperm.xlu0 %11396, %v1438
        %v11398 = vpop.permute.xlu0 %11397
        %11400 = vset.pattern.permute.xlu0 47
        %11401 = vperm.xlu0 %11400, %v1439
        %v11402 = vpop.permute.xlu0 %11401
        %11404 = vset.pattern.permute.xlu0 47
        %11405 = vperm.xlu0 %11404, %v1440
        %v11406 = vpop.permute.xlu0 %11405
        %11408 = vset.pattern.permute.xlu0 47
        %11409 = vperm.xlu0 %11408, %v1441
        %v11410 = vpop.permute.xlu0 %11409
        %11412 = vset.pattern.permute.xlu0 47
        %11413 = vperm.xlu0 %11412, %v1442
        %v11414 = vpop.permute.xlu0 %11413
        %11416 = vset.pattern.permute.xlu0 47
        %11417 = vperm.xlu0 %11416, %v1443
        %v11418 = vpop.permute.xlu0 %11417
        %11420 = vset.pattern.permute.xlu0 47
        %11421 = vperm.xlu0 %11420, %v1444
        %v11422 = vpop.permute.xlu0 %11421
        %11424 = vset.pattern.permute.xlu0 47
        %11425 = vperm.xlu0 %11424, %v1445
        %v11426 = vpop.permute.xlu0 %11425
        %v11428 = vmul.f32 %v11398, %v1155
        %v11429 = vmul.f32 %v11398, %v1242
        %v11430 = vmul.f32 %v11398, %v1244
        %v11431 = vmul.f32 %v11402, %v1161
        %v11432 = vmul.f32 %v11402, %v1248
        %v11433 = vmul.f32 %v11402, %v1250
        %v11434 = vmul.f32 %v11406, %v1167
        %v11435 = vmul.f32 %v11406, %v1254
        %v11436 = vmul.f32 %v11406, %v1256
        %v11437 = vmul.f32 %v11410, %v1173
        %v11438 = vmul.f32 %v11410, %v1260
        %v11439 = vmul.f32 %v11410, %v1262
        %v11440 = vmul.f32 %v11414, %v1413
        %v11441 = vmul.f32 %v11414, %v1417
        %v11442 = vmul.f32 %v11414, %v1421
        %v11443 = vmul.f32 %v11418, %v1413
        %v11444 = vmul.f32 %v11418, %v1417
        %v11445 = vmul.f32 %v11418, %v1421
        %v11446 = vmul.f32 %v11422, %v1429
        %v11447 = vmul.f32 %v11422, %v1433
        %v11448 = vmul.f32 %v11422, %v1437
        %v11449 = vmul.f32 %v11426, %v1429
        %v11450 = vmul.f32 %v11426, %v1433
        %v11451 = vmul.f32 %v11426, %v1437
        %11476 = vrot.lane.b32.xlu0 %v11428, 119
        %v11477 = vpop.permute.xlu0 %11476
        %11478 = vrot.lane.b32.xlu0 %v11429, 119
        %v11479 = vpop.permute.xlu0 %11478
        %11480 = vrot.lane.b32.xlu0 %v11430, 119
        %v11481 = vpop.permute.xlu0 %11480
        %11482 = vrot.lane.b32.xlu0 %v11431, 119
        %v11483 = vpop.permute.xlu0 %11482
        %11484 = vrot.lane.b32.xlu0 %v11432, 119
        %v11485 = vpop.permute.xlu0 %11484
        %11486 = vrot.lane.b32.xlu0 %v11433, 119
        %v11487 = vpop.permute.xlu0 %11486
        %11488 = vrot.lane.b32.xlu0 %v11434, 119
        %v11489 = vpop.permute.xlu0 %11488
        %11490 = vrot.lane.b32.xlu0 %v11435, 119
        %v11491 = vpop.permute.xlu0 %11490
        %11492 = vrot.lane.b32.xlu0 %v11436, 119
        %v11493 = vpop.permute.xlu0 %11492
        %11494 = vrot.lane.b32.xlu0 %v11437, 119
        %v11495 = vpop.permute.xlu0 %11494
        %11496 = vrot.lane.b32.xlu0 %v11438, 119
        %v11497 = vpop.permute.xlu0 %11496
        %11498 = vrot.lane.b32.xlu0 %v11439, 119
        %v11499 = vpop.permute.xlu0 %11498
        %11500 = vrot.lane.b32.xlu0 %v11440, 119
        %v11501 = vpop.permute.xlu0 %11500
        %11502 = vrot.lane.b32.xlu0 %v11441, 119
        %v11503 = vpop.permute.xlu0 %11502
        %11504 = vrot.lane.b32.xlu0 %v11442, 119
        %v11505 = vpop.permute.xlu0 %11504
        %11506 = vrot.lane.b32.xlu0 %v11443, 119
        %v11507 = vpop.permute.xlu0 %11506
        %11508 = vrot.lane.b32.xlu0 %v11444, 119
        %v11509 = vpop.permute.xlu0 %11508
        %11510 = vrot.lane.b32.xlu0 %v11445, 119
        %v11511 = vpop.permute.xlu0 %11510
        %11512 = vrot.lane.b32.xlu0 %v11446, 119
        %v11513 = vpop.permute.xlu0 %11512
        %11514 = vrot.lane.b32.xlu0 %v11447, 119
        %v11515 = vpop.permute.xlu0 %11514
        %11516 = vrot.lane.b32.xlu0 %v11448, 119
        %v11517 = vpop.permute.xlu0 %11516
        %11518 = vrot.lane.b32.xlu0 %v11449, 119
        %v11519 = vpop.permute.xlu0 %11518
        %11520 = vrot.lane.b32.xlu0 %v11450, 119
        %v11521 = vpop.permute.xlu0 %11520
        %11522 = vrot.lane.b32.xlu0 %v11451, 119
        %v11523 = vpop.permute.xlu0 %11522
        %vm11524 = vcmask 973824
        %v11525 = vsel %vm11524, %v11477, %v11479
        %v11526 = vsel %vm11524, %v11479, %v11481
        %v11527 = vsel %vm11524, %v11483, %v11485
        %v11528 = vsel %vm11524, %v11485, %v11487
        %v11529 = vsel %vm11524, %v11489, %v11491
        %v11530 = vsel %vm11524, %v11491, %v11493
        %v11531 = vsel %vm11524, %v11495, %v11497
        %v11532 = vsel %vm11524, %v11497, %v11499
        %v11533 = vsel %vm11524, %v11501, %v11503
        %v11534 = vsel %vm11524, %v11503, %v11505
        %v11535 = vsel %vm11524, %v11507, %v11509
        %v11536 = vsel %vm11524, %v11509, %v11511
        %v11537 = vsel %vm11524, %v11513, %v11515
        %v11538 = vsel %vm11524, %v11515, %v11517
        %v11539 = vsel %vm11524, %v11519, %v11521
        %v11540 = vsel %vm11524, %v11521, %v11523
        %v11565 = vadd.f32 %v11372, %v11525
        %v11566 = vadd.f32 %v11373, %v11526
        %v11567 = vadd.f32 %v11374, %v11481
        %v11568 = vadd.f32 %v11375, %v11527
        %v11569 = vadd.f32 %v11376, %v11528
        %v11570 = vadd.f32 %v11377, %v11487
        %v11571 = vadd.f32 %v11378, %v11529
        %v11572 = vadd.f32 %v11379, %v11530
        %v11573 = vadd.f32 %v11380, %v11493
        %v11574 = vadd.f32 %v11381, %v11531
        %v11575 = vadd.f32 %v11382, %v11532
        %v11576 = vadd.f32 %v11383, %v11499
        %v11577 = vadd.f32 %v11384, %v11533
        %v11578 = vadd.f32 %v11385, %v11534
        %v11579 = vadd.f32 %v11386, %v11505
        %v11580 = vadd.f32 %v11387, %v11535
        %v11581 = vadd.f32 %v11388, %v11536
        %v11582 = vadd.f32 %v11389, %v11511
        %v11583 = vadd.f32 %v11390, %v11537
        %v11584 = vadd.f32 %v11391, %v11538
        %v11585 = vadd.f32 %v11392, %v11517
        %v11586 = vadd.f32 %v11393, %v11539
        %v11587 = vadd.f32 %v11394, %v11540
        %v11588 = vadd.f32 %v11395, %v11523
        %11589 = vset.pattern.permute.xlu0 48
        %11590 = vperm.xlu0 %11589, %v1438
        %v11591 = vpop.permute.xlu0 %11590
        %11593 = vset.pattern.permute.xlu0 48
        %11594 = vperm.xlu0 %11593, %v1439
        %v11595 = vpop.permute.xlu0 %11594
        %11597 = vset.pattern.permute.xlu0 48
        %11598 = vperm.xlu0 %11597, %v1440
        %v11599 = vpop.permute.xlu0 %11598
        %11601 = vset.pattern.permute.xlu0 48
        %11602 = vperm.xlu0 %11601, %v1441
        %v11603 = vpop.permute.xlu0 %11602
        %11605 = vset.pattern.permute.xlu0 48
        %11606 = vperm.xlu0 %11605, %v1442
        %v11607 = vpop.permute.xlu0 %11606
        %11609 = vset.pattern.permute.xlu0 48
        %11610 = vperm.xlu0 %11609, %v1443
        %v11611 = vpop.permute.xlu0 %11610
        %11613 = vset.pattern.permute.xlu0 48
        %11614 = vperm.xlu0 %11613, %v1444
        %v11615 = vpop.permute.xlu0 %11614
        %11617 = vset.pattern.permute.xlu0 48
        %11618 = vperm.xlu0 %11617, %v1445
        %v11619 = vpop.permute.xlu0 %11618
        %v11621 = vmul.f32 %v11591, %v1155
        %v11622 = vmul.f32 %v11591, %v1242
        %v11623 = vmul.f32 %v11591, %v1244
        %v11624 = vmul.f32 %v11595, %v1161
        %v11625 = vmul.f32 %v11595, %v1248
        %v11626 = vmul.f32 %v11595, %v1250
        %v11627 = vmul.f32 %v11599, %v1167
        %v11628 = vmul.f32 %v11599, %v1254
        %v11629 = vmul.f32 %v11599, %v1256
        %v11630 = vmul.f32 %v11603, %v1173
        %v11631 = vmul.f32 %v11603, %v1260
        %v11632 = vmul.f32 %v11603, %v1262
        %v11633 = vmul.f32 %v11607, %v1413
        %v11634 = vmul.f32 %v11607, %v1417
        %v11635 = vmul.f32 %v11607, %v1421
        %v11636 = vmul.f32 %v11611, %v1413
        %v11637 = vmul.f32 %v11611, %v1417
        %v11638 = vmul.f32 %v11611, %v1421
        %v11639 = vmul.f32 %v11615, %v1429
        %v11640 = vmul.f32 %v11615, %v1433
        %v11641 = vmul.f32 %v11615, %v1437
        %v11642 = vmul.f32 %v11619, %v1429
        %v11643 = vmul.f32 %v11619, %v1433
        %v11644 = vmul.f32 %v11619, %v1437
        %11669 = vrot.lane.b32.xlu0 %v11621, 118
        %v11670 = vpop.permute.xlu0 %11669
        %11671 = vrot.lane.b32.xlu0 %v11622, 118
        %v11672 = vpop.permute.xlu0 %11671
        %11673 = vrot.lane.b32.xlu0 %v11623, 118
        %v11674 = vpop.permute.xlu0 %11673
        %11675 = vrot.lane.b32.xlu0 %v11624, 118
        %v11676 = vpop.permute.xlu0 %11675
        %11677 = vrot.lane.b32.xlu0 %v11625, 118
        %v11678 = vpop.permute.xlu0 %11677
        %11679 = vrot.lane.b32.xlu0 %v11626, 118
        %v11680 = vpop.permute.xlu0 %11679
        %11681 = vrot.lane.b32.xlu0 %v11627, 118
        %v11682 = vpop.permute.xlu0 %11681
        %11683 = vrot.lane.b32.xlu0 %v11628, 118
        %v11684 = vpop.permute.xlu0 %11683
        %11685 = vrot.lane.b32.xlu0 %v11629, 118
        %v11686 = vpop.permute.xlu0 %11685
        %11687 = vrot.lane.b32.xlu0 %v11630, 118
        %v11688 = vpop.permute.xlu0 %11687
        %11689 = vrot.lane.b32.xlu0 %v11631, 118
        %v11690 = vpop.permute.xlu0 %11689
        %11691 = vrot.lane.b32.xlu0 %v11632, 118
        %v11692 = vpop.permute.xlu0 %11691
        %11693 = vrot.lane.b32.xlu0 %v11633, 118
        %v11694 = vpop.permute.xlu0 %11693
        %11695 = vrot.lane.b32.xlu0 %v11634, 118
        %v11696 = vpop.permute.xlu0 %11695
        %11697 = vrot.lane.b32.xlu0 %v11635, 118
        %v11698 = vpop.permute.xlu0 %11697
        %11699 = vrot.lane.b32.xlu0 %v11636, 118
        %v11700 = vpop.permute.xlu0 %11699
        %11701 = vrot.lane.b32.xlu0 %v11637, 118
        %v11702 = vpop.permute.xlu0 %11701
        %11703 = vrot.lane.b32.xlu0 %v11638, 118
        %v11704 = vpop.permute.xlu0 %11703
        %11705 = vrot.lane.b32.xlu0 %v11639, 118
        %v11706 = vpop.permute.xlu0 %11705
        %11707 = vrot.lane.b32.xlu0 %v11640, 118
        %v11708 = vpop.permute.xlu0 %11707
        %11709 = vrot.lane.b32.xlu0 %v11641, 118
        %v11710 = vpop.permute.xlu0 %11709
        %11711 = vrot.lane.b32.xlu0 %v11642, 118
        %v11712 = vpop.permute.xlu0 %11711
        %11713 = vrot.lane.b32.xlu0 %v11643, 118
        %v11714 = vpop.permute.xlu0 %11713
        %11715 = vrot.lane.b32.xlu0 %v11644, 118
        %v11716 = vpop.permute.xlu0 %11715
        %vm11717 = vcmask 965632
        %v11718 = vsel %vm11717, %v11670, %v11672
        %v11719 = vsel %vm11717, %v11672, %v11674
        %v11720 = vsel %vm11717, %v11676, %v11678
        %v11721 = vsel %vm11717, %v11678, %v11680
        %v11722 = vsel %vm11717, %v11682, %v11684
        %v11723 = vsel %vm11717, %v11684, %v11686
        %v11724 = vsel %vm11717, %v11688, %v11690
        %v11725 = vsel %vm11717, %v11690, %v11692
        %v11726 = vsel %vm11717, %v11694, %v11696
        %v11727 = vsel %vm11717, %v11696, %v11698
        %v11728 = vsel %vm11717, %v11700, %v11702
        %v11729 = vsel %vm11717, %v11702, %v11704
        %v11730 = vsel %vm11717, %v11706, %v11708
        %v11731 = vsel %vm11717, %v11708, %v11710
        %v11732 = vsel %vm11717, %v11712, %v11714
        %v11733 = vsel %vm11717, %v11714, %v11716
        %v11758 = vadd.f32 %v11565, %v11718
        %v11759 = vadd.f32 %v11566, %v11719
        %v11760 = vadd.f32 %v11567, %v11674
        %v11761 = vadd.f32 %v11568, %v11720
        %v11762 = vadd.f32 %v11569, %v11721
        %v11763 = vadd.f32 %v11570, %v11680
        %v11764 = vadd.f32 %v11571, %v11722
        %v11765 = vadd.f32 %v11572, %v11723
        %v11766 = vadd.f32 %v11573, %v11686
        %v11767 = vadd.f32 %v11574, %v11724
        %v11768 = vadd.f32 %v11575, %v11725
        %v11769 = vadd.f32 %v11576, %v11692
        %v11770 = vadd.f32 %v11577, %v11726
        %v11771 = vadd.f32 %v11578, %v11727
        %v11772 = vadd.f32 %v11579, %v11698
        %v11773 = vadd.f32 %v11580, %v11728
        %v11774 = vadd.f32 %v11581, %v11729
        %v11775 = vadd.f32 %v11582, %v11704
        %v11776 = vadd.f32 %v11583, %v11730
        %v11777 = vadd.f32 %v11584, %v11731
        %v11778 = vadd.f32 %v11585, %v11710
        %v11779 = vadd.f32 %v11586, %v11732
        %v11780 = vadd.f32 %v11587, %v11733
        %v11781 = vadd.f32 %v11588, %v11716
        %11806 = vrot.lane.b32.xlu0 %v10410, 106
        %v11807 = vpop.permute.xlu0 %11806
        %11808 = vrot.lane.b32.xlu0 %v10411, 106
        %v11809 = vpop.permute.xlu0 %11808
        %11810 = vrot.lane.b32.xlu0 %v10412, 106
        %v11811 = vpop.permute.xlu0 %11810
        %11812 = vrot.lane.b32.xlu0 %v10413, 106
        %v11813 = vpop.permute.xlu0 %11812
        %11814 = vrot.lane.b32.xlu0 %v10414, 106
        %v11815 = vpop.permute.xlu0 %11814
        %11816 = vrot.lane.b32.xlu0 %v10415, 106
        %v11817 = vpop.permute.xlu0 %11816
        %11818 = vrot.lane.b32.xlu0 %v10416, 106
        %v11819 = vpop.permute.xlu0 %11818
        %11820 = vrot.lane.b32.xlu0 %v10417, 106
        %v11821 = vpop.permute.xlu0 %11820
        %11822 = vrot.lane.b32.xlu0 %v10418, 106
        %v11823 = vpop.permute.xlu0 %11822
        %11824 = vrot.lane.b32.xlu0 %v10419, 106
        %v11825 = vpop.permute.xlu0 %11824
        %11826 = vrot.lane.b32.xlu0 %v10420, 106
        %v11827 = vpop.permute.xlu0 %11826
        %11828 = vrot.lane.b32.xlu0 %v10421, 106
        %v11829 = vpop.permute.xlu0 %11828
        %11830 = vrot.lane.b32.xlu0 %v10422, 106
        %v11831 = vpop.permute.xlu0 %11830
        %11832 = vrot.lane.b32.xlu0 %v10423, 106
        %v11833 = vpop.permute.xlu0 %11832
        %11834 = vrot.lane.b32.xlu0 %v10424, 106
        %v11835 = vpop.permute.xlu0 %11834
        %11836 = vrot.lane.b32.xlu0 %v10425, 106
        %v11837 = vpop.permute.xlu0 %11836
        %11838 = vrot.lane.b32.xlu0 %v10426, 106
        %v11839 = vpop.permute.xlu0 %11838
        %11840 = vrot.lane.b32.xlu0 %v10427, 106
        %v11841 = vpop.permute.xlu0 %11840
        %11842 = vrot.lane.b32.xlu0 %v10428, 106
        %v11843 = vpop.permute.xlu0 %11842
        %11844 = vrot.lane.b32.xlu0 %v10429, 106
        %v11845 = vpop.permute.xlu0 %11844
        %11846 = vrot.lane.b32.xlu0 %v10430, 106
        %v11847 = vpop.permute.xlu0 %11846
        %11848 = vrot.lane.b32.xlu0 %v10431, 106
        %v11849 = vpop.permute.xlu0 %11848
        %11850 = vrot.lane.b32.xlu0 %v10432, 106
        %v11851 = vpop.permute.xlu0 %11850
        %11852 = vrot.lane.b32.xlu0 %v10433, 106
        %v11853 = vpop.permute.xlu0 %11852
        %vm11854 = vcmask 867328
        %v11855 = vsel %vm11854, %v11807, %v11809
        %v11856 = vsel %vm11854, %v11809, %v11811
        %v11857 = vsel %vm11854, %v11813, %v11815
        %v11858 = vsel %vm11854, %v11815, %v11817
        %v11859 = vsel %vm11854, %v11819, %v11821
        %v11860 = vsel %vm11854, %v11821, %v11823
        %v11861 = vsel %vm11854, %v11825, %v11827
        %v11862 = vsel %vm11854, %v11827, %v11829
        %v11863 = vsel %vm11854, %v11831, %v11833
        %v11864 = vsel %vm11854, %v11833, %v11835
        %v11865 = vsel %vm11854, %v11837, %v11839
        %v11866 = vsel %vm11854, %v11839, %v11841
        %v11867 = vsel %vm11854, %v11843, %v11845
        %v11868 = vsel %vm11854, %v11845, %v11847
        %v11869 = vsel %vm11854, %v11849, %v11851
        %v11870 = vsel %vm11854, %v11851, %v11853
        %v11895 = vadd.f32 %v11758, %v11855
        %v11896 = vadd.f32 %v11759, %v11856
        %v11897 = vadd.f32 %v11760, %v11811
        %v11898 = vadd.f32 %v11761, %v11857
        %v11899 = vadd.f32 %v11762, %v11858
        %v11900 = vadd.f32 %v11763, %v11817
        %v11901 = vadd.f32 %v11764, %v11859
        %v11902 = vadd.f32 %v11765, %v11860
        %v11903 = vadd.f32 %v11766, %v11823
        %v11904 = vadd.f32 %v11767, %v11861
        %v11905 = vadd.f32 %v11768, %v11862
        %v11906 = vadd.f32 %v11769, %v11829
        %v11907 = vadd.f32 %v11770, %v11863
        %v11908 = vadd.f32 %v11771, %v11864
        %v11909 = vadd.f32 %v11772, %v11835
        %v11910 = vadd.f32 %v11773, %v11865
        %v11911 = vadd.f32 %v11774, %v11866
        %v11912 = vadd.f32 %v11775, %v11841
        %v11913 = vadd.f32 %v11776, %v11867
        %v11914 = vadd.f32 %v11777, %v11868
        %v11915 = vadd.f32 %v11778, %v11847
        %v11916 = vadd.f32 %v11779, %v11869
        %v11917 = vadd.f32 %v11780, %v11870
        %v11918 = vadd.f32 %v11781, %v11853
        %v11919 = vadd.f32 %v11895, %v11907
        %v11920 = vadd.f32 %v11896, %v11908
        %v11921 = vadd.f32 %v11897, %v11909
        %v11922 = vadd.f32 %v11898, %v11910
        %v11923 = vadd.f32 %v11899, %v11911
        %v11924 = vadd.f32 %v11900, %v11912
        %v11925 = vadd.f32 %v11901, %v11913
        %v11926 = vadd.f32 %v11902, %v11914
        %v11927 = vadd.f32 %v11903, %v11915
        %v11928 = vadd.f32 %v11904, %v11916
        %v11929 = vadd.f32 %v11905, %v11917
        %v11930 = vadd.f32 %v11906, %v11918
        %v11931 = vld [vmem:[%s3] sm:$0xff]
        %v11932 = vld [vmem:[%s3 + $0x8] sm:$0xff]
        %v11933 = vld [vmem:[%s3 + $0x10] sm:$0xff]
        %v11934 = vld [vmem:[%s3 + $0x18] sm:$0xff]
        %v11935 = vld [vmem:[%s3 + $0x20] sm:$0xff]
        %v11936 = vld [vmem:[%s3 + $0x28] sm:$0xff]
        %v11937 = vld [vmem:[%s3 + $0x30] sm:$0xff]
        %v11938 = vld [vmem:[%s3 + $0x38] sm:$0xff]
        %v11939 = vld [vmem:[%s3 + $0x40] sm:$0xff]
        %v11940 = vld [vmem:[%s3 + $0x48] sm:$0xff]
        %v11941 = vld [vmem:[%s3 + $0x50] sm:$0xff]
        %v11942 = vld [vmem:[%s3 + $0x58] sm:$0xff]
        %v11943 = vld [vmem:[%s3 + $0x60] sm:$0xff]
        %v11944 = vld [vmem:[%s3 + $0x68] sm:$0xff]
        %v11945 = vld [vmem:[%s3 + $0x70] sm:$0xff]
        %v11946 = vld [vmem:[%s3 + $0x78] sm:$0xff]
        %v11947 = vld [vmem:[%s3 + $0x80] sm:$0xff]
        %v11948 = vld [vmem:[%s3 + $0x88] sm:$0xff]
        %v11949 = vld [vmem:[%s3 + $0x90] sm:$0xff]
        %v11950 = vld [vmem:[%s3 + $0x98] sm:$0xff]
        %v11951 = vld [vmem:[%s3 + $0xa0] sm:$0xff]
        %v11952 = vld [vmem:[%s3 + $0xa8] sm:$0xff]
        %v11953 = vld [vmem:[%s3 + $0xb0] sm:$0xff]
        %v11954 = vld [vmem:[%s3 + $0xb8] sm:$0xff]
        %v11955 = vld [vmem:[%s3 + $0xc0] sm:$0xff]
        %v11956 = vld [vmem:[%s3 + $0xc8] sm:$0xff]
        %v11957 = vld [vmem:[%s3 + $0xd0] sm:$0xff]
        %v11958 = vld [vmem:[%s3 + $0xd8] sm:$0xff]
        %v11959 = vld [vmem:[%s3 + $0xe0] sm:$0xff]
        %v11960 = vld [vmem:[%s3 + $0xe8] sm:$0xff]
        %v11961 = vld [vmem:[%s3 + $0xf0] sm:$0xff]
        %v11962 = vld [vmem:[%s3 + $0xf8] sm:$0xff]
        %v11963 = vld [vmem:[%s3 + $0x100] sm:$0xff]
        %v11964 = vld [vmem:[%s3 + $0x108] sm:$0xff]
        %v11965 = vld [vmem:[%s3 + $0x110] sm:$0xff]
        %v11966 = vld [vmem:[%s3 + $0x118] sm:$0xff]
        %v11967 = vld [vmem:[%s3 + $0x120] sm:$0xff]
        %v11968 = vld [vmem:[%s3 + $0x128] sm:$0xff]
        %v11969 = vld [vmem:[%s3 + $0x130] sm:$0xff]
        %v11970 = vld [vmem:[%s3 + $0x138] sm:$0xff]
        %v11971 = vld [vmem:[%s3 + $0x140] sm:$0xff]
        %v11972 = vld [vmem:[%s3 + $0x148] sm:$0xff]
        %v11973 = vld [vmem:[%s3 + $0x150] sm:$0xff]
        %v11974 = vld [vmem:[%s3 + $0x158] sm:$0xff]
        %v11975 = vld [vmem:[%s3 + $0x160] sm:$0xff]
        %v11976 = vld [vmem:[%s3 + $0x168] sm:$0xff]
        %v11977 = vld [vmem:[%s3 + $0x170] sm:$0xff]
        %v11978 = vld [vmem:[%s3 + $0x178] sm:$0xff]
        %v11979 = vld [vmem:[%s3 + $0x180] sm:$0xff]
        %v11980 = vld [vmem:[%s3 + $0x188] sm:$0xff]
        %v11981 = vld [vmem:[%s3 + $0x190] sm:$0xff]
        %v11982 = vld [vmem:[%s3 + $0x198] sm:$0xff]
        %v11983 = vld [vmem:[%s3 + $0x1a0] sm:$0xff]
        %v11984 = vld [vmem:[%s3 + $0x1a8] sm:$0xff]
        %v11985 = vld [vmem:[%s3 + $0x1b0] sm:$0xff]
        %v11986 = vld [vmem:[%s3 + $0x1b8] sm:$0xff]
        %v11987 = vld [vmem:[%s3 + $0x1c0] sm:$0xff]
        %v11988 = vld [vmem:[%s3 + $0x1c8] sm:$0xff]
        %v11989 = vld [vmem:[%s3 + $0x1d0] sm:$0xff]
        %v11990 = vld [vmem:[%s3 + $0x1d8] sm:$0xff]
        %v11991 = vld [vmem:[%s3 + $0x1e0] sm:$0xff]
        %v11992 = vld [vmem:[%s3 + $0x1e8] sm:$0xff]
        %v11993 = vld [vmem:[%s3 + $0x1f0] sm:$0xff]
        %v11994 = vld [vmem:[%s3 + $0x1f8] sm:$0xff]
        %v11995 = vld [vmem:[%s3 + $0x200] sm:$0xff]
        %v11996 = vld [vmem:[%s3 + $0x208] sm:$0xff]
        %v11997 = vld [vmem:[%s3 + $0x210] sm:$0xff]
        %v11998 = vld [vmem:[%s3 + $0x218] sm:$0xff]
        %v11999 = vld [vmem:[%s3 + $0x220] sm:$0xff]
        %v12000 = vld [vmem:[%s3 + $0x228] sm:$0xff]
        %v12001 = vld [vmem:[%s3 + $0x230] sm:$0xff]
        %v12002 = vld [vmem:[%s3 + $0x238] sm:$0xff]
        %v12003 = vld [vmem:[%s3 + $0x240] sm:$0xff]
        %v12004 = vld [vmem:[%s3 + $0x248] sm:$0xff]
        %v12005 = vld [vmem:[%s3 + $0x250] sm:$0xff]
        %v12006 = vld [vmem:[%s3 + $0x258] sm:$0xff]
        %v12007 = vld [vmem:[%s3 + $0x260] sm:$0xff]
        %v12008 = vld [vmem:[%s3 + $0x268] sm:$0xff]
        %v12009 = vld [vmem:[%s3 + $0x270] sm:$0xff]
        %v12010 = vld [vmem:[%s3 + $0x278] sm:$0xff]
        %v12011 = vld [vmem:[%s3 + $0x280] sm:$0xff]
        %v12012 = vld [vmem:[%s3 + $0x288] sm:$0xff]
        %v12013 = vld [vmem:[%s3 + $0x290] sm:$0xff]
        %v12014 = vld [vmem:[%s3 + $0x298] sm:$0xff]
        %v12015 = vld [vmem:[%s3 + $0x2a0] sm:$0xff]
        %v12016 = vld [vmem:[%s3 + $0x2a8] sm:$0xff]
        %v12017 = vld [vmem:[%s3 + $0x2b0] sm:$0x3]
        %v12018 = vld [vmem:[%s3 + $0x2b8] sm:$0x3]
        %v12019 = vld [vmem:[%s7] sm:$0xff]
        %v12020 = vld [vmem:[%s7 + $0x8] sm:$0xff]
        %v12021 = vld [vmem:[%s7 + $0x10] sm:$0xff]
        %v12022 = vld [vmem:[%s7 + $0x18] sm:$0xff]
        %v12023 = vmul.f32 %v618, %v12019
        %v12024 = vmul.f32 %v619, %v12020
        %v12025 = vmul.f32 %v620, %v12021
        %v12026 = vmul.f32 %v621, %v12022
        %12028 = vset.pattern.permute.xlu0 0
        %12029 = vperm.xlu0 %12028, %v12023
        %v12030 = vpop.permute.xlu0 %12029
        %12033 = vset.pattern.permute.xlu0 0
        %12034 = vperm.xlu0 %12033, %v12024
        %v12035 = vpop.permute.xlu0 %12034
        %12038 = vset.pattern.permute.xlu0 0
        %12039 = vperm.xlu0 %12038, %v12025
        %v12040 = vpop.permute.xlu0 %12039
        %12043 = vset.pattern.permute.xlu0 0
        %12044 = vperm.xlu0 %12043, %v12026
        %v12045 = vpop.permute.xlu0 %12044
        %vm12047 = vcmask 736256
        %v12049 = vsel %vm12047, %v11921, 0
        %v12052 = vsel %vm12047, %v11924, 0
        %v12055 = vsel %vm12047, %v11927, 0
        %v12058 = vsel %vm12047, %v11930, 0
        %vm12060 = vcmask 1041408
        %v12062 = vsel %vm12060, %v12017, 0
        %v12065 = vsel %vm12060, %v12018, 0
        %12067 = vmatprep.subr.mxu0 %v11962
        %12068 = vmatpush1.msra.mxu0 %v11961
        %12069 = vmatprep.subr.mxu0 %v11960
        %12070 = vmatpush1.msra.mxu0 %v11959
        %12071 = vmatprep.subr.mxu0 %v11958
        %12072 = vmatpush1.msra.mxu0 %v11957
        %12073 = vmatprep.subr.mxu0 %v11956
        %12074 = vmatpush1.msra.mxu0 %v11955
        %12075 = vmatprep.subr.mxu0 %v11954
        %12076 = vmatpush1.msra.mxu0 %v11953
        %12077 = vmatprep.subr.mxu0 %v11952
        %12078 = vmatpush1.msra.mxu0 %v11951
        %12079 = vmatprep.subr.mxu0 %v11950
        %12080 = vmatpush1.msra.mxu0 %v11949
        %12081 = vmatprep.subr.mxu0 %v11948
        %12082 = vmatpush1.msra.mxu0 %v11947
        %12083 = vmatprep.subr.mxu0 %v11946
        %12084 = vmatpush1.msra.mxu0 %v11945
        %12085 = vmatprep.subr.mxu0 %v11944
        %12086 = vmatpush1.msra.mxu0 %v11943
        %12087 = vmatprep.subr.mxu0 %v11942
        %12088 = vmatpush1.msra.mxu0 %v11941
        %12089 = vmatprep.subr.mxu0 %v11940
        %12090 = vmatpush1.msra.mxu0 %v11939
        %12091 = vmatprep.subr.mxu0 %v11938
        %12092 = vmatpush1.msra.mxu0 %v11937
        %12093 = vmatprep.subr.mxu0 %v11936
        %12094 = vmatpush1.msra.mxu0 %v11935
        %12095 = vmatprep.subr.mxu0 %v11934
        %12096 = vmatpush1.msra.mxu0 %v11933
        %12097 = vmatprep.subr.mxu0 %v11932
        %12098 = vmatpush1.msra.mxu0 %v11931
        %12099 = vmatprep.subr.mxu0 %v11994
        %12100 = vmatpush2.msra.mxu0 %v11993
        %12101 = vmatprep.subr.mxu0 %v11992
        %12102 = vmatpush2.msra.mxu0 %v11991
        %12103 = vmatprep.subr.mxu0 %v11990
        %12104 = vmatpush2.msra.mxu0 %v11989
        %12105 = vmatprep.subr.mxu0 %v11988
        %12106 = vmatpush2.msra.mxu0 %v11987
        %12107 = vmatprep.subr.mxu0 %v11986
        %12108 = vmatpush2.msra.mxu0 %v11985
        %12109 = vmatprep.subr.mxu0 %v11984
        %12110 = vmatpush2.msra.mxu0 %v11983
        %12111 = vmatprep.subr.mxu0 %v11982
        %12112 = vmatpush2.msra.mxu0 %v11981
        %12113 = vmatprep.subr.mxu0 %v11980
        %12114 = vmatpush2.msra.mxu0 %v11979
        %12115 = vmatprep.subr.mxu0 %v11978
        %12116 = vmatpush2.msra.mxu0 %v11977
        %12117 = vmatprep.subr.mxu0 %v11976
        %12118 = vmatpush2.msra.mxu0 %v11975
        %12119 = vmatprep.subr.mxu0 %v11974
        %12120 = vmatpush2.msra.mxu0 %v11973
        %12121 = vmatprep.subr.mxu0 %v11972
        %12122 = vmatpush2.msra.mxu0 %v11971
        %12123 = vmatprep.subr.mxu0 %v11970
        %12124 = vmatpush2.msra.mxu0 %v11969
        %12125 = vmatprep.subr.mxu0 %v11968
        %12126 = vmatpush2.msra.mxu0 %v11967
        %12127 = vmatprep.subr.mxu0 %v11966
        %12128 = vmatpush2.msra.mxu0 %v11965
        %12129 = vmatprep.subr.mxu0 %v11964
        %12130 = vmatpush2.msra.mxu0 %v11963
        %12131 = vmatprep.mubr.f32.mxu0 %v11920
        %12132 = vmatmul.mubr.f32.gmra.mxu0 %v11919
        %v12133 = vpop.f32.mrf.mxu0
        %v12134 = vadd.f32 %v12030, %v12133
        %v12135 = vpop.f32.mrf.mxu0
        %v12136 = vadd.f32 %v12030, %v12135
        %12137 = vmatprep.mubr.f32.mxu0 %v11923
        %12138 = vmatmul.mubr.f32.gmra.mxu0 %v11922
        %v12139 = vpop.f32.mrf.mxu0
        %v12140 = vadd.f32 %v12035, %v12139
        %v12141 = vpop.f32.mrf.mxu0
        %v12142 = vadd.f32 %v12035, %v12141
        %12143 = vmatprep.mubr.f32.mxu0 %v11926
        %12144 = vmatmul.mubr.f32.gmra.mxu0 %v11925
        %v12145 = vpop.f32.mrf.mxu0
        %v12146 = vadd.f32 %v12040, %v12145
        %v12147 = vpop.f32.mrf.mxu0
        %v12148 = vadd.f32 %v12040, %v12147
        %12149 = vmatprep.mubr.f32.mxu0 %v11929
        %12150 = vmatmul.mubr.f32.gmra.mxu0 %v11928
        %v12151 = vpop.f32.mrf.mxu0
        %v12152 = vadd.f32 %v12045, %v12151
        %v12153 = vpop.f32.mrf.mxu0
        %v12154 = vadd.f32 %v12045, %v12153
        %12155 = vdwg.mxu0
        %12156 = vmatprep.subr.mxu0 0.0
        %12157 = vmatpush1.msra.mxu0 0.0
        %12158 = vmatprep.subr.mxu0 0.0
        %12159 = vmatpush1.msra.mxu0 0.0
        %12160 = vmatprep.subr.mxu0 0.0
        %12161 = vmatpush1.msra.mxu0 0.0
        %12162 = vmatprep.subr.mxu0 0.0
        %12163 = vmatpush1.msra.mxu0 0.0
        %12164 = vmatprep.subr.mxu0 %v12065
        %12165 = vmatpush1.msra.mxu0 %v12062
        %12166 = vmatprep.subr.mxu0 %v12016
        %12167 = vmatpush1.msra.mxu0 %v12015
        %12168 = vmatprep.subr.mxu0 %v12014
        %12169 = vmatpush1.msra.mxu0 %v12013
        %12170 = vmatprep.subr.mxu0 %v12012
        %12171 = vmatpush1.msra.mxu0 %v12011
        %12172 = vmatprep.subr.mxu0 %v12010
        %12173 = vmatpush1.msra.mxu0 %v12009
        %12174 = vmatprep.subr.mxu0 %v12008
        %12175 = vmatpush1.msra.mxu0 %v12007
        %12176 = vmatprep.subr.mxu0 %v12006
        %12177 = vmatpush1.msra.mxu0 %v12005
        %12178 = vmatprep.subr.mxu0 %v12004
        %12179 = vmatpush1.msra.mxu0 %v12003
        %12180 = vmatprep.subr.mxu0 %v12002
        %12181 = vmatpush1.msra.mxu0 %v12001
        %12182 = vmatprep.subr.mxu0 %v12000
        %12183 = vmatpush1.msra.mxu0 %v11999
        %12184 = vmatprep.subr.mxu0 %v11998
        %12185 = vmatpush1.msra.mxu0 %v11997
        %12186 = vmatprep.subr.mxu0 %v11996
        %12187 = vmatpush1.msra.mxu0 %v11995
        %12188 = vmatprep.subr.mxu0 0.0
        %12189 = vmatpush2.msra.mxu0 0.0
        %12190 = vmatprep.subr.mxu0 0.0
        %12191 = vmatpush2.msra.mxu0 0.0
        %12192 = vmatprep.subr.mxu0 0.0
        %12193 = vmatpush2.msra.mxu0 0.0
        %12194 = vmatprep.subr.mxu0 0.0
        %12195 = vmatpush2.msra.mxu0 0.0
        %12196 = vmatprep.subr.mxu0 0.0
        %12197 = vmatpush2.msra.mxu0 0.0
        %12198 = vmatprep.subr.mxu0 0.0
        %12199 = vmatpush2.msra.mxu0 0.0
        %12200 = vmatprep.subr.mxu0 0.0
        %12201 = vmatpush2.msra.mxu0 0.0
        %12202 = vmatprep.subr.mxu0 0.0
        %12203 = vmatpush2.msra.mxu0 0.0
        %12204 = vmatprep.subr.mxu0 0.0
        %12205 = vmatpush2.msra.mxu0 0.0
        %12206 = vmatprep.subr.mxu0 0.0
        %12207 = vmatpush2.msra.mxu0 0.0
        %12208 = vmatprep.subr.mxu0 0.0
        %12209 = vmatpush2.msra.mxu0 0.0
        %12210 = vmatprep.subr.mxu0 0.0
        %12211 = vmatpush2.msra.mxu0 0.0
        %12212 = vmatprep.subr.mxu0 0.0
        %12213 = vmatpush2.msra.mxu0 0.0
        %12214 = vmatprep.subr.mxu0 0.0
        %12215 = vmatpush2.msra.mxu0 0.0
        %12216 = vmatprep.subr.mxu0 0.0
        %12217 = vmatpush2.msra.mxu0 0.0
        %12218 = vmatprep.subr.mxu0 0.0
        %12219 = vmatpush2.msra.mxu0 0.0
        %12220 = vmatprep.mubr.f32.mxu0 0.0
        %12221 = vmatmul.mubr.f32.gmra.mxu0 %v12049
        %v12222 = vpop.f32.mrf.mxu0
        %v12223 = vadd.f32 %v12134, %v12222
        %v12224 = vpop.f32.mrf.mxu0
        %v12225 = vadd.f32 %v12136, %v12224
        %12226 = vmatprep.mubr.f32.mxu0 0.0
        %12227 = vmatmul.mubr.f32.gmra.mxu0 %v12052
        %v12228 = vpop.f32.mrf.mxu0
        %v12229 = vadd.f32 %v12140, %v12228
        %v12230 = vpop.f32.mrf.mxu0
        %v12231 = vadd.f32 %v12142, %v12230
        %12232 = vmatprep.mubr.f32.mxu0 0.0
        %12233 = vmatmul.mubr.f32.gmra.mxu0 %v12055
        %v12234 = vpop.f32.mrf.mxu0
        %v12235 = vadd.f32 %v12146, %v12234
        %v12236 = vpop.f32.mrf.mxu0
        %v12237 = vadd.f32 %v12148, %v12236
        %12238 = vmatprep.mubr.f32.mxu0 0.0
        %12239 = vmatmul.mubr.f32.gmra.mxu0 %v12058
        %v12240 = vpop.f32.mrf.mxu0
        %v12241 = vadd.f32 %v12152, %v12240
        %v12242 = vpop.f32.mrf.mxu0
        %v12243 = vadd.f32 %v12154, %v12242
        %12244 = vdwg.mxu0
        %v12245 = vld [vmem:[%s8] sm:$0xff]
        %v12246 = vld [vmem:[%s8 + $0x8] sm:$0xff]
        %v12247 = vld [vmem:[%s8 + $0x10] sm:$0xff]
        %v12248 = vld [vmem:[%s8 + $0x18] sm:$0xff]
        %12250 = vset.pattern.permute.xlu0 0
        %12251 = vperm.xlu0 %12250, %v12245
        %v12252 = vpop.permute.xlu0 %12251
        %12255 = vset.pattern.permute.xlu0 0
        %12256 = vperm.xlu0 %12255, %v12246
        %v12257 = vpop.permute.xlu0 %12256
        %12260 = vset.pattern.permute.xlu0 0
        %12261 = vperm.xlu0 %12260, %v12247
        %v12262 = vpop.permute.xlu0 %12261
        %12265 = vset.pattern.permute.xlu0 0
        %12266 = vperm.xlu0 %12265, %v12248
        %v12267 = vpop.permute.xlu0 %12266
        %v12269 = vadd.f32 %v12223, %v12252
        %v12270 = vadd.f32 %v12225, %v12252
        %v12271 = vadd.f32 %v12229, %v12257
        %v12272 = vadd.f32 %v12231, %v12257
        %v12273 = vadd.f32 %v12235, %v12262
        %v12274 = vadd.f32 %v12237, %v12262
        %v12275 = vadd.f32 %v12241, %v12267
        %v12276 = vadd.f32 %v12243, %v12267
        %v12277 = vxor.u32 %v12269, 2147483648
        %v12278 = vxor.u32 %v12270, 2147483648
        %v12279 = vxor.u32 %v12271, 2147483648
        %v12280 = vxor.u32 %v12272, 2147483648
        %v12281 = vxor.u32 %v12273, 2147483648
        %v12282 = vxor.u32 %v12274, 2147483648
        %v12283 = vxor.u32 %v12275, 2147483648
        %v12284 = vxor.u32 %v12276, 2147483648
        %v12285 = vmul.f32 %v12277, 1.442695
        %v12286 = vpow.pop %v12285
        %v12287 = vmul.f32 %v12278, 1.442695
        %v12288 = vpow.pop %v12287
        %v12289 = vmul.f32 %v12279, 1.442695
        %v12290 = vpow.pop %v12289
        %v12291 = vmul.f32 %v12280, 1.442695
        %v12292 = vpow.pop %v12291
        %v12293 = vmul.f32 %v12281, 1.442695
        %v12294 = vpow.pop %v12293
        %v12295 = vmul.f32 %v12282, 1.442695
        %v12296 = vpow.pop %v12295
        %v12297 = vmul.f32 %v12283, 1.442695
        %v12298 = vpow.pop %v12297
        %v12299 = vmul.f32 %v12284, 1.442695
        %v12300 = vpow.pop %v12299
        %v12301 = vadd.f32 %v12286, 1.0
        %v12302 = vadd.f32 %v12288, 1.0
        %v12303 = vadd.f32 %v12290, 1.0
        %v12304 = vadd.f32 %v12292, 1.0
        %v12305 = vadd.f32 %v12294, 1.0
        %v12306 = vadd.f32 %v12296, 1.0
        %v12307 = vadd.f32 %v12298, 1.0
        %v12308 = vadd.f32 %v12300, 1.0
        %v12309 = vrcp.pop %v12301
        %v12310 = vmul.f32 1.0, %v12309
        %v12311 = vrcp.pop %v12302
        %v12312 = vmul.f32 1.0, %v12311
        %v12313 = vrcp.pop %v12303
        %v12314 = vmul.f32 1.0, %v12313
        %v12315 = vrcp.pop %v12304
        %v12316 = vmul.f32 1.0, %v12315
        %v12317 = vrcp.pop %v12305
        %v12318 = vmul.f32 1.0, %v12317
        %v12319 = vrcp.pop %v12306
        %v12320 = vmul.f32 1.0, %v12319
        %v12321 = vrcp.pop %v12307
        %v12322 = vmul.f32 1.0, %v12321
        %v12323 = vrcp.pop %v12308
        %v12324 = vmul.f32 1.0, %v12323
        %v12325 = vxor.u32 %v12310, 2147483648
        %v12326 = vxor.u32 %v12312, 2147483648
        %v12327 = vxor.u32 %v12314, 2147483648
        %v12328 = vxor.u32 %v12316, 2147483648
        %v12329 = vxor.u32 %v12318, 2147483648
        %v12330 = vxor.u32 %v12320, 2147483648
        %v12331 = vxor.u32 %v12322, 2147483648
        %v12332 = vxor.u32 %v12324, 2147483648
        %v12333 = vmul.f32 %v12325, 1.442695
        %v12334 = vpow.pop %v12333
        %v12335 = vmul.f32 %v12326, 1.442695
        %v12336 = vpow.pop %v12335
        %v12337 = vmul.f32 %v12327, 1.442695
        %v12338 = vpow.pop %v12337
        %v12339 = vmul.f32 %v12328, 1.442695
        %v12340 = vpow.pop %v12339
        %v12341 = vmul.f32 %v12329, 1.442695
        %v12342 = vpow.pop %v12341
        %v12343 = vmul.f32 %v12330, 1.442695
        %v12344 = vpow.pop %v12343
        %v12345 = vmul.f32 %v12331, 1.442695
        %v12346 = vpow.pop %v12345
        %v12347 = vmul.f32 %v12332, 1.442695
        %v12348 = vpow.pop %v12347
        %v12349 = vadd.f32 %v12334, 1.0
        %v12350 = vadd.f32 %v12336, 1.0
        %v12351 = vadd.f32 %v12338, 1.0
        %v12352 = vadd.f32 %v12340, 1.0
        %v12353 = vadd.f32 %v12342, 1.0
        %v12354 = vadd.f32 %v12344, 1.0
        %v12355 = vadd.f32 %v12346, 1.0
        %v12356 = vadd.f32 %v12348, 1.0
        %v12357 = vrcp.pop %v12349
        %v12358 = vmul.f32 1.0, %v12357
        %v12359 = vrcp.pop %v12350
        %v12360 = vmul.f32 1.0, %v12359
        %v12361 = vrcp.pop %v12351
        %v12362 = vmul.f32 1.0, %v12361
        %v12363 = vrcp.pop %v12352
        %v12364 = vmul.f32 1.0, %v12363
        %v12365 = vrcp.pop %v12353
        %v12366 = vmul.f32 1.0, %v12365
        %v12367 = vrcp.pop %v12354
        %v12368 = vmul.f32 1.0, %v12367
        %v12369 = vrcp.pop %v12355
        %v12370 = vmul.f32 1.0, %v12369
        %v12371 = vrcp.pop %v12356
        %v12372 = vmul.f32 1.0, %v12371
        %v12373 = vadd.f32 %v540, %v532
        %v12374 = vadd.f32 %v541, %v533
        %v12375 = vadd.f32 %v542, %v534
        %v12376 = vadd.f32 %v543, %v535
        %v12377 = vadd.f32 %v544, %v536
        %v12378 = vadd.f32 %v545, %v537
        %v12379 = vadd.f32 %v546, %v538
        %v12380 = vadd.f32 %v547, %v539
        %v12381 = vsub.f32 %v524, %v532
        %v12382 = vsub.f32 %v525, %v533
        %v12383 = vsub.f32 %v526, %v534
        %v12384 = vsub.f32 %v527, %v535
        %v12385 = vsub.f32 %v528, %v536
        %v12386 = vsub.f32 %v529, %v537
        %v12387 = vsub.f32 %v530, %v538
        %v12388 = vsub.f32 %v531, %v539
        %v12389 = vmul.f32 %v12358, %v12381
        %v12390 = vmul.f32 %v12360, %v12382
        %v12391 = vmul.f32 %v12362, %v12383
        %v12392 = vmul.f32 %v12364, %v12384
        %v12393 = vmul.f32 %v12366, %v12385
        %v12394 = vmul.f32 %v12368, %v12386
        %v12395 = vmul.f32 %v12370, %v12387
        %v12396 = vmul.f32 %v12372, %v12388
        %v12397 = vadd.f32 %v12373, %v12389
        %v12398 = vadd.f32 %v12374, %v12390
        %v12399 = vadd.f32 %v12375, %v12391
        %v12400 = vadd.f32 %v12376, %v12392
        %v12401 = vadd.f32 %v12377, %v12393
        %v12402 = vadd.f32 %v12378, %v12394
        %v12403 = vadd.f32 %v12379, %v12395
        %v12404 = vadd.f32 %v12380, %v12396
        %v12405 = vld [vmem:[%s13] sm:$0xff]
        %v12406 = vld [vmem:[%s13 + $0x8] sm:$0xff]
        %v12407 = vld [vmem:[%s13 + $0x10] sm:$0xff]
        %v12408 = vld [vmem:[%s13 + $0x18] sm:$0xff]
        %v12409 = vld [vmem:[%s14] sm:$0xff]
        %v12410 = vld [vmem:[%s14 + $0x8] sm:$0xff]
        %v12411 = vld [vmem:[%s14 + $0x10] sm:$0xff]
        %v12412 = vld [vmem:[%s14 + $0x18] sm:$0xff]
        %12414 = vset.pattern.permute.xlu0 0
        %12415 = vperm.xlu0 %12414, %v12409
        %v12416 = vpop.permute.xlu0 %12415
        %12419 = vset.pattern.permute.xlu0 0
        %12420 = vperm.xlu0 %12419, %v12410
        %v12421 = vpop.permute.xlu0 %12420
        %12424 = vset.pattern.permute.xlu0 0
        %12425 = vperm.xlu0 %12424, %v12411
        %v12426 = vpop.permute.xlu0 %12425
        %12429 = vset.pattern.permute.xlu0 0
        %12430 = vperm.xlu0 %12429, %v12412
        %v12431 = vpop.permute.xlu0 %12430
        %vm12433 = vcmask 261120
        %v12435 = vsel %vm12433, %v12405, 0
        %v12438 = vsel %vm12433, %v12406, 0
        %v12441 = vsel %vm12433, %v12407, 0
        %v12444 = vsel %vm12433, %v12408, 0
        %12446 = vmatprep.subr.mxu0 0.0
        %12447 = vmatpush1.msra.mxu0 0.0
        %12448 = vmatprep.subr.mxu0 0.0
        %12449 = vmatpush1.msra.mxu0 0.0
        %12450 = vmatprep.subr.mxu0 0.0
        %12451 = vmatpush1.msra.mxu0 0.0
        %12452 = vmatprep.subr.mxu0 0.0
        %12453 = vmatpush1.msra.mxu0 0.0
        %12454 = vmatprep.subr.mxu0 0.0
        %12455 = vmatpush1.msra.mxu0 0.0
        %12456 = vmatprep.subr.mxu0 0.0
        %12457 = vmatpush1.msra.mxu0 0.0
        %12458 = vmatprep.subr.mxu0 0.0
        %12459 = vmatpush1.msra.mxu0 0.0
        %12460 = vmatprep.subr.mxu0 0.0
        %12461 = vmatpush1.msra.mxu0 0.0
        %12462 = vmatprep.subr.mxu0 0.0
        %12463 = vmatpush1.msra.mxu0 0.0
        %12464 = vmatprep.subr.mxu0 0.0
        %12465 = vmatpush1.msra.mxu0 0.0
        %12466 = vmatprep.subr.mxu0 0.0
        %12467 = vmatpush1.msra.mxu0 0.0
        %12468 = vmatprep.subr.mxu0 0.0
        %12469 = vmatpush1.msra.mxu0 0.0
        %12470 = vmatprep.subr.mxu0 %v12404
        %12471 = vmatpush1.msra.mxu0 %v12403
        %12472 = vmatprep.subr.mxu0 %v12402
        %12473 = vmatpush1.msra.mxu0 %v12401
        %12474 = vmatprep.subr.mxu0 %v12400
        %12475 = vmatpush1.msra.mxu0 %v12399
        %12476 = vmatprep.subr.mxu0 %v12398
        %12477 = vmatpush1.msra.mxu0 %v12397
        %12478 = vmatprep.subr.mxu0 0.0
        %12479 = vmatpush2.msra.mxu0 0.0
        %12480 = vmatprep.subr.mxu0 0.0
        %12481 = vmatpush2.msra.mxu0 0.0
        %12482 = vmatprep.subr.mxu0 0.0
        %12483 = vmatpush2.msra.mxu0 0.0
        %12484 = vmatprep.subr.mxu0 0.0
        %12485 = vmatpush2.msra.mxu0 0.0
        %12486 = vmatprep.subr.mxu0 0.0
        %12487 = vmatpush2.msra.mxu0 0.0
        %12488 = vmatprep.subr.mxu0 0.0
        %12489 = vmatpush2.msra.mxu0 0.0
        %12490 = vmatprep.subr.mxu0 0.0
        %12491 = vmatpush2.msra.mxu0 0.0
        %12492 = vmatprep.subr.mxu0 0.0
        %12493 = vmatpush2.msra.mxu0 0.0
        %12494 = vmatprep.subr.mxu0 0.0
        %12495 = vmatpush2.msra.mxu0 0.0
        %12496 = vmatprep.subr.mxu0 0.0
        %12497 = vmatpush2.msra.mxu0 0.0
        %12498 = vmatprep.subr.mxu0 0.0
        %12499 = vmatpush2.msra.mxu0 0.0
        %12500 = vmatprep.subr.mxu0 0.0
        %12501 = vmatpush2.msra.mxu0 0.0
        %12502 = vmatprep.subr.mxu0 0.0
        %12503 = vmatpush2.msra.mxu0 0.0
        %12504 = vmatprep.subr.mxu0 0.0
        %12505 = vmatpush2.msra.mxu0 0.0
        %12506 = vmatprep.subr.mxu0 0.0
        %12507 = vmatpush2.msra.mxu0 0.0
        %12508 = vmatprep.subr.mxu0 0.0
        %12509 = vmatpush2.msra.mxu0 0.0
        %12510 = vmatprep.mubr.f32.mxu0 0.0
        %12511 = vmatmul.mubr.f32.gmra.mxu0 %v12435
        %v12512 = vpop.f32.mrf.mxu0
        %v12513 = vadd.f32 %v12416, %v12512
        %v12514 = vpop.f32.mrf.mxu0
        %v12515 = vadd.f32 %v12416, %v12514
        %12516 = vmatprep.mubr.f32.mxu0 0.0
        %12517 = vmatmul.mubr.f32.gmra.mxu0 %v12438
        %v12518 = vpop.f32.mrf.mxu0
        %v12519 = vadd.f32 %v12421, %v12518
        %v12520 = vpop.f32.mrf.mxu0
        %v12521 = vadd.f32 %v12421, %v12520
        %12522 = vmatprep.mubr.f32.mxu0 0.0
        %12523 = vmatmul.mubr.f32.gmra.mxu0 %v12441
        %v12524 = vpop.f32.mrf.mxu0
        %v12525 = vadd.f32 %v12426, %v12524
        %v12526 = vpop.f32.mrf.mxu0
        %v12527 = vadd.f32 %v12426, %v12526
        %12528 = vmatprep.mubr.f32.mxu0 0.0
        %12529 = vmatmul.mubr.f32.gmra.mxu0 %v12444
        %v12530 = vpop.f32.mrf.mxu0
        %v12531 = vadd.f32 %v12431, %v12530
        %v12532 = vpop.f32.mrf.mxu0
        %v12533 = vadd.f32 %v12431, %v12532
        %12534 = vdwg.mxu0
        %12535 = vst [vmem:[%s508] sm:$0xff] %v12513
        %12536 = vst [vmem:[%s508 + $0x8] sm:$0xff] %v12515
        %12537 = vst [vmem:[%s508 + $0x10] sm:$0xff] %v12519
        %12538 = vst [vmem:[%s508 + $0x18] sm:$0xff] %v12521
        %12539 = vst [vmem:[%s508 + $0x20] sm:$0xff] %v12525
        %12540 = vst [vmem:[%s508 + $0x28] sm:$0xff] %v12527
        %12541 = vst [vmem:[%s508 + $0x30] sm:$0xff] %v12531
        %12542 = vst [vmem:[%s508 + $0x38] sm:$0xff] %v12533
        %s12543 = sand.u32 %s362, 1
        %s12544 = scalar_lea.sflag [#allocation3], %s12543
        %s12545 = sand.u32 %s362, 1
        %s12546 = smul.addr %s12545, 64
        %s12547 = scalar_lea.vmem [#allocation2], %s12546
        // Predicated region
        $region81: #{tpu_custom_call.1} parent=79 // pred_check
          %p12548 = pneg %p372
        $region82: #{tpu_custom_call.1} parent=79 // pred_check_branch
          %12550 = sbr.rel (%p12548) target = $region84
        $region83: #{tpu_custom_call.1} parent=79 // pred_region
          %s12551 = smul.u32 4, %s29
          %s12553 = ssub.s32 1024, 1024
          %12554 = vsyncadd %s12544, %s12553
          %s12555 = smul.addr %s12551, 2
          %s12556 = smul.addr %s12555, 128
          %s12557 = scalar_lea.hbm %s15, %s12556
          %s12558 = sshll.u32 %s12547, 4
          %s12559 = int_to_ptr.vmem [resolvable:$true] %s12558
          %12564 = dma.vmem_to_hbm [thread:$0]  %s12559, 1024, %s12557, %s12544, 256, 256, 16
        $region84: #{tpu_custom_call.1} parent=79 // pred_fallthru
          _
      $region80: #{tpu_custom_call.1} parent=5 // pred_fallthru
        _
      %p12565 = scmp.le.s32.totalorder 2, %s24
      // Predicated region
      $region85: #{tpu_custom_call.1} parent=5 // pred_check
        %p12566 = pneg %p12565
      $region86: #{tpu_custom_call.1} parent=5 // pred_check_branch
        %12568 = sbr.rel (%p12566) target = $region88
      $region87: #{tpu_custom_call.1} parent=5 // pred_region
        %s12569 = ssub.s32 %s24, 2
        // Predicated region
        $region89: #{tpu_custom_call.1} parent=87 // pred_check
          %p12570 = pneg %p378
        $region90: #{tpu_custom_call.1} parent=87 // pred_check_branch
          %12572 = sbr.rel (%p12570) target = $region92
        $region91: #{tpu_custom_call.1} parent=87 // pred_region
          %s12573 = sand.u32 %s363, 1
          %s12574 = scalar_lea.sflag [#allocation3], %s12573
          %s12575 = sand.u32 %s363, 1
          %s12576 = smul.addr %s12575, 64
          %s12577 = scalar_lea.vmem [#allocation2], %s12576
          %12578 = dma.done %s12574, 1024
        $region92: #{tpu_custom_call.1} parent=87 // pred_fallthru
          _
      $region88: #{tpu_custom_call.1} parent=5 // pred_fallthru
        _
    $region6: #{tpu_custom_call.1} parent=1 // loop_footer
      %s28 = sadd.s32 1, %s24
    $region7: #{tpu_custom_call.1} parent=1 // loop_footer_branch
      %23 = sbr.rel target = $region3
    $region8: #{tpu_custom_call.1} parent=1 // loop_exit
      _
    %12579 = vsyncpa [#allocation3], 1
    %s12580 = scalar_lea.sflag [#allocation3], 1
    %12581 = vsyncpa %s12580, 1

</llo_original>
